<compile_context>
chip_gen: v6e
topology: v6e:2x2x1
jax: 0.10.0
libtpu: 0.0.40
codegen_flags: <defaults>
</compile_context>

<pallas_src>
import functools

import jax
import jax.numpy as jnp
import numpy as np
from jax.experimental import pallas as pl
from jax.experimental.pallas import tpu as pltpu

BN_EPS = 1e-5


# ---------------------------------------------------------------------------
# Fused Pallas kernel
# ---------------------------------------------------------------------------
def _fused_kernel(
    x_ref,
    wb1_ref, b1_ref, gb1_ref,
    wb2_ref, b2_ref, gb2_ref,
    w3e_ref, w3o_ref, b3_ref, ee_ref, eo_ref,
    wb4_ref, b4_ref, gb3_ref,
    wb5_ref, b5_ref, gb4_ref,
    rpad_ref, wb6_ref, b6_ref, gb5_ref,
    g_ref, w8_ref, b8_ref,
    o_ref,
    *, n_batch):
  f32 = jnp.float32

  def conv3x3(x, wb_ref, b_ref):
    # x: (rows, W_in*Ci) slab; wb_ref: (3, W_in*Ci, OW*Co) banded weights.
    r = x.shape[0] - 2
    y = jnp.dot(x[0:r, :], wb_ref[0], preferred_element_type=f32)
    y = y + jnp.dot(x[1:r + 1, :], wb_ref[1], preferred_element_type=f32)
    y = y + jnp.dot(x[2:r + 2, :], wb_ref[2], preferred_element_type=f32)
    return y + b_ref[...]

  def chan_sel(ow, c):
    # (ow*c, c) one-hot selector summing the (col, channel) lane axis per chan.
    k = jax.lax.broadcasted_iota(jnp.int32, (ow * c, c), 0)
    ci = jax.lax.broadcasted_iota(jnp.int32, (ow * c, c), 1)
    return ((k & (c - 1)) == ci).astype(f32)          # c is a power of two

  def chan_sel_t(ow, c):
    ci = jax.lax.broadcasted_iota(jnp.int32, (c, ow * c), 0)
    k = jax.lax.broadcasted_iota(jnp.int32, (c, ow * c), 1)
    return ((k & (c - 1)) == ci).astype(f32)

  def bn_relu(y, gb_ref, ow, c, stride, oh):
    # Training-mode BatchNorm over the valid (n, oh, ow) positions, then ReLU.
    rows = y.shape[0]
    ri = jax.lax.broadcasted_iota(jnp.int32, (rows, 1), 0)
    valid = ri < oh                                    # image 0
    for n in range(1, n_batch):
      valid = jnp.logical_or(
          valid, jnp.logical_and(ri >= n * stride, ri < n * stride + oh))
    ym = jnp.where(valid, y, 0.0)
    ysq = jnp.where(valid, y * y, 0.0)
    s = chan_sel(ow, c)
    st = chan_sel_t(ow, c)
    inv_cnt = 1.0 / float(n_batch * oh * ow)
    sum_c = jnp.dot(jnp.sum(ym, axis=0, keepdims=True), s,
                    preferred_element_type=f32)        # (1, c)
    sq_c = jnp.dot(jnp.sum(ysq, axis=0, keepdims=True), s,
                   preferred_element_type=f32)
    mean_c = sum_c * inv_cnt
    var_c = sq_c * inv_cnt - mean_c * mean_c           # single-pass moments
    gamma = gb_ref[0:1, :]
    beta = gb_ref[1:2, :]
    scale_c = gamma * jax.lax.rsqrt(var_c + BN_EPS)
    shift_c = beta - mean_c * scale_c
    scale_cols = jnp.dot(scale_c, st, preferred_element_type=f32)
    shift_cols = jnp.dot(shift_c, st, preferred_element_type=f32)
    return jnp.maximum(y * scale_cols + shift_cols, 0.0)

  x0 = x_ref[...]                                                      # (28N, 28)
  x1 = bn_relu(conv3x3(x0, wb1_ref, b1_ref), gb1_ref, 26, 8, 28, 26)   # (28N-2, 208)
  x2 = bn_relu(conv3x3(x1, wb2_ref, b2_ref), gb2_ref, 24, 16, 28, 24)  # (28N-4, 384)

  # conv3 (1x1, bias, no BN/ReLU) fused with the 2x2 max pool.
  y3e = jnp.dot(x2, w3e_ref[...], preferred_element_type=f32) + b3_ref[...]
  y3o = jnp.dot(x2, w3o_ref[...], preferred_element_type=f32) + b3_ref[...]
  pw = jnp.maximum(y3e, y3o)                                           # w-pooled
  ph = jnp.maximum(
      jnp.dot(ee_ref[...], pw, preferred_element_type=f32),
      jnp.dot(eo_ref[...], pw, preferred_element_type=f32))            # (14N-2, 120)

  x4 = bn_relu(conv3x3(ph, wb4_ref, b4_ref), gb3_ref, 10, 16, 14, 10)  # (14N-4, 160)
  x5 = bn_relu(conv3x3(x4, wb5_ref, b5_ref), gb4_ref, 8, 16, 14, 8)    # (14N-6, 128)

  # conv6 has padding=1: scatter rows into a zero-padded slab with a selector
  # matmul (row pad); the column pad is folded into the banded weight.
  xp = jnp.dot(rpad_ref[...], x5, preferred_element_type=f32)          # (10N, 128)
  x6 = bn_relu(conv3x3(xp, wb6_ref, b6_ref), gb5_ref, 8, 16, 10, 8)    # (10N-2, 128)

  # Head: avgpool(6) -> 1x1 conv (16 -> 10) -> log_softmax.
  k = jax.lax.broadcasted_iota(jnp.int32, (128, 16), 0)
  c = jax.lax.broadcasted_iota(jnp.int32, (128, 16), 1)
  s_head = jnp.logical_and((k & 15) == c, k < 96).astype(f32) * (1.0 / 36.0)
  pooled = jnp.dot(jnp.dot(g_ref[...], x6, preferred_element_type=f32),
                   s_head, preferred_element_type=f32)                 # (N, 16)
  logits = jnp.dot(pooled, w8_ref[...], preferred_element_type=f32) + b8_ref[...]
  m = jnp.max(logits, axis=-1, keepdims=True)
  z = logits - m
  lse = jnp.log(jnp.sum(jnp.exp(z), axis=-1, keepdims=True))
  o_ref[...] = z - lse


# ---------------------------------------------------------------------------
# Host-side weight preprocessing (done once, outside the forward path)
# ---------------------------------------------------------------------------
def _banded_weight(w, w_in, ow, pad=0):
  """(co, ci, 3, 3) torch-layout weight -> (3, w_in*ci, ow*co) band matrices.

  band[di, w*ci + i, ow*co + o] = w[o, i, di, w - ow + pad] when in range, so
  out_row[r] = sum_di in_row[r + di] @ band[di] computes the conv over the
  (col, channel) lane axis of the 2-D activation slab.
  """
  co, ci, kh, kw = w.shape
  win = jnp.arange(w_in)[:, None]
  owi = jnp.arange(ow)[None, :]
  acc = jnp.zeros((kh, w_in, ci, ow, co), jnp.float32)
  for dj in range(kw):
    hit = (win == owi + dj - pad).astype(jnp.float32)                  # (w_in, ow)
    wd = jnp.transpose(w[:, :, :, dj], (2, 1, 0)).astype(jnp.float32)  # (kh, ci, co)
    acc = acc + hit[None, :, None, :, None] * wd[:, None, :, None, :]
  return acc.reshape(kh, w_in * ci, ow * co)


def _pool_1x1_weight(w, w_in, ow_pool, parity):
  """1x1 conv weight folded with selection of input columns w = 2*pw+parity."""
  co, ci = w.shape[0], w.shape[1]
  win = jnp.arange(w_in)[:, None]
  pwi = jnp.arange(ow_pool)[None, :]
  hit = (win == 2 * pwi + parity).astype(jnp.float32)                  # (w_in, ow_pool)
  wd = jnp.transpose(w[:, :, 0, 0]).astype(jnp.float32)                # (ci, co)
  return (hit[:, None, :, None] * wd[None, :, None, :]).reshape(
      w_in * ci, ow_pool * co)


def _tile_bias(b, ow):
  return jnp.tile(b.astype(jnp.float32), ow)[None, :]


def pack_params(p):
  """One-time weight preprocessing: banded slabs, tiled biases, BN packs."""
  return {
      "wb1": _banded_weight(p["w1"], 28, 26), "b1": _tile_bias(p["b1"], 26),
      "gb1": jnp.stack([p["g1"], p["be1"]]).astype(jnp.float32),
      "wb2": _banded_weight(p["w2"], 26, 24), "b2": _tile_bias(p["b2"], 24),
      "gb2": jnp.stack([p["g2"], p["be2"]]).astype(jnp.float32),
      "w3e": _pool_1x1_weight(p["w3"], 24, 12, 0),
      "w3o": _pool_1x1_weight(p["w3"], 24, 12, 1),
      "b3": _tile_bias(p["b3"], 12),
      "wb4": _banded_weight(p["w4"], 12, 10), "b4": _tile_bias(p["b4"], 10),
      "gb3": jnp.stack([p["g3"], p["be3"]]).astype(jnp.float32),
      "wb5": _banded_weight(p["w5"], 10, 8), "b5": _tile_bias(p["b5"], 8),
      "gb4": jnp.stack([p["g4"], p["be4"]]).astype(jnp.float32),
      "wb6": _banded_weight(p["w6"], 8, 8, pad=1), "b6": _tile_bias(p["b6"], 8),
      "gb5": jnp.stack([p["g5"], p["be5"]]).astype(jnp.float32),
      "w8": jnp.transpose(p["w8"][:, :, 0, 0]).astype(jnp.float32),
      "b8": p["b8"].astype(jnp.float32)[None, :],
  }


def _batch_selectors(n):
  """Batch-size-dependent constant selector matrices (baked in at trace time)."""
  # Even/odd row selectors for the 2x2 pool's vertical max
  # (per-image row stride is 28 before the pool, 14 after).
  rp = np.arange(14 * n - 2)[:, None]
  q = np.arange(28 * n - 4)[None, :]
  ee = (q == 2 * rp).astype(np.float32)
  eo = (q == 2 * rp + 1).astype(np.float32)
  # Row scatter implementing conv6's padding=1 (stride 14 -> 10 with one zero
  # row above/below the 8 valid rows of each image).
  r = np.arange(10 * n)[:, None]
  c = np.arange(14 * n - 6)[None, :]
  nr, hr = r // 10, r % 10
  rpad = ((hr >= 1) & (hr <= 8) & (c == nr * 14 + hr - 1)).astype(np.float32)
  # Head row gather: sums rows h < 6 of each image (per-image stride 10).
  gn = np.arange(n)[:, None]
  gc = np.arange(10 * n - 2)[None, :]
  g = ((gc // 10 == gn) & (gc % 10 < 6)).astype(np.float32)
  return jnp.asarray(ee), jnp.asarray(eo), jnp.asarray(rpad), jnp.asarray(g)


# ---------------------------------------------------------------------------
# Forward
# ---------------------------------------------------------------------------
def model3_forward(x_nchw, packed):
  n = x_nchw.shape[0]
  x2d = x_nchw.astype(jnp.float32).reshape(n * 28, 28)   # NCHW with C=1 -> slab
  ee, eo, rpad, g = _batch_selectors(n)
  pk = packed
  args = (
      x2d,
      pk["wb1"], pk["b1"], pk["gb1"],
      pk["wb2"], pk["b2"], pk["gb2"],
      pk["w3e"], pk["w3o"], pk["b3"], ee, eo,
      pk["wb4"], pk["b4"], pk["gb3"],
      pk["wb5"], pk["b5"], pk["gb4"],
      rpad, pk["wb6"], pk["b6"], pk["gb5"],
      g, pk["w8"], pk["b8"],
  )
  return pl.pallas_call(
      functools.partial(_fused_kernel, n_batch=n),
      out_shape=jax.ShapeDtypeStruct((n, 10), jnp.float32),
      in_specs=[pl.BlockSpec(memory_space=pltpu.MemorySpace.VMEM)
                for _ in args],
      out_specs=pl.BlockSpec(memory_space=pltpu.MemorySpace.VMEM),
  )(*args)


# ---------------------------------------------------------------------------
# Parameters + plain-XLA reference (used only to verify the kernel in main)
# ---------------------------------------------------------------------------
def init_params(key):
  ks = jax.random.split(key, 16)

  def conv_w(k, co, ci, kh, kw):
    fan_in = ci * kh * kw
    return jax.random.normal(k, (co, ci, kh, kw), jnp.float32) / jnp.sqrt(
        jnp.float32(fan_in))

  def conv_b(k, co):
    return jax.random.normal(k, (co,), jnp.float32) * 0.1

  return {
      "w1": conv_w(ks[0], 8, 1, 3, 3),    "b1": conv_b(ks[1], 8),
      "w2": conv_w(ks[2], 16, 8, 3, 3),   "b2": conv_b(ks[3], 16),
      "w3": conv_w(ks[4], 10, 16, 1, 1),  "b3": conv_b(ks[5], 10),
      "w4": conv_w(ks[6], 16, 10, 3, 3),  "b4": conv_b(ks[7], 16),
      "w5": conv_w(ks[8], 16, 16, 3, 3),  "b5": conv_b(ks[9], 16),
      "w6": conv_w(ks[10], 16, 16, 3, 3), "b6": conv_b(ks[11], 16),
      "w8": conv_w(ks[12], 10, 16, 1, 1), "b8": conv_b(ks[13], 10),
      # BatchNorm affine params (PyTorch default init: weight=1, bias=0)
      "g1": jnp.ones((8,), jnp.float32),  "be1": jnp.zeros((8,), jnp.float32),
      "g2": jnp.ones((16,), jnp.float32), "be2": jnp.zeros((16,), jnp.float32),
      "g3": jnp.ones((16,), jnp.float32), "be3": jnp.zeros((16,), jnp.float32),
      "g4": jnp.ones((16,), jnp.float32), "be4": jnp.zeros((16,), jnp.float32),
      "g5": jnp.ones((16,), jnp.float32), "be5": jnp.zeros((16,), jnp.float32),
  }


def _reference_forward(x, p):
  hi = jax.lax.Precision.HIGHEST

  def conv(x, w, b, pad=0):
    y = jax.lax.conv_general_dilated(
        x.astype(jnp.float32), w.astype(jnp.float32), (1, 1),
        ((pad, pad), (pad, pad)),
        dimension_numbers=("NCHW", "OIHW", "NCHW"), precision=hi)
    return y + b[None, :, None, None]

  def bn_relu(y, g, be):
    mean = jnp.mean(y, axis=(0, 2, 3), keepdims=True)
    var = jnp.mean((y - mean) ** 2, axis=(0, 2, 3), keepdims=True)
    yn = (y - mean) * jax.lax.rsqrt(var + BN_EPS)
    return jnp.maximum(yn * g[None, :, None, None] + be[None, :, None, None], 0.0)

  y = bn_relu(conv(x, p["w1"], p["b1"]), p["g1"], p["be1"])
  y = bn_relu(conv(y, p["w2"], p["b2"]), p["g2"], p["be2"])
  y = conv(y, p["w3"], p["b3"])
  y = jax.lax.reduce_window(y, -jnp.inf, jax.lax.max,
                            (1, 1, 2, 2), (1, 1, 2, 2), "VALID")
  y = bn_relu(conv(y, p["w4"], p["b4"]), p["g3"], p["be3"])
  y = bn_relu(conv(y, p["w5"], p["b5"]), p["g4"], p["be4"])
  y = bn_relu(conv(y, p["w6"], p["b6"], pad=1), p["g5"], p["be5"])
  y = jnp.mean(y[:, :, :6, :6], axis=(2, 3))                 # AvgPool2d(6)
  logits = jnp.dot(y, p["w8"][:, :, 0, 0].T, precision=hi) + p["b8"]
  return jax.nn.log_softmax(logits, axis=-1)


if __name__ == "__main__":
  key = jax.random.PRNGKey(0)
  kx, kp = jax.random.split(key)
  # 28x28 single-channel input (the only spatial size for which the module's
  # forward / final view(-1, 10) is well-formed).
  x = jax.random.normal(kx, (2, 1, 28, 28), jnp.float32)
  params = init_params(kp)

  packed = pack_params(params)                 # one-time weight preprocessing
  fwd = jax.jit(model3_forward)
  out = jax.block_until_ready(fwd(x, packed))

  assert out.shape == (2, 10), out.shape
  assert bool(jnp.all(jnp.isfinite(out)))
  # log_softmax rows should exponentiate-sum to ~1
  assert bool(jnp.all(jnp.abs(jnp.sum(jnp.exp(out), axis=-1) - 1.0) < 1e-4))
  # Cross-check against a plain-XLA reference of the same module.
  ref = _reference_forward(x, params)
  max_diff = float(jnp.max(jnp.abs(out - ref)))
  assert max_diff < 2e-2, max_diff
  print("KERNEL_OK")
</pallas_src>

<mosaic_0001>
module attributes {stable_mosaic.version = 11 : i64} {
  func.func @_fused_kernel(%arg0: memref<56x28xf32, #tpu.memory_space<vmem>>, %arg1: memref<3x28x208xf32, #tpu.memory_space<vmem>>, %arg2: memref<1x208xf32, #tpu.memory_space<vmem>>, %arg3: memref<2x8xf32, #tpu.memory_space<vmem>>, %arg4: memref<3x208x384xf32, #tpu.memory_space<vmem>>, %arg5: memref<1x384xf32, #tpu.memory_space<vmem>>, %arg6: memref<2x16xf32, #tpu.memory_space<vmem>>, %arg7: memref<384x120xf32, #tpu.memory_space<vmem>>, %arg8: memref<384x120xf32, #tpu.memory_space<vmem>>, %arg9: memref<1x120xf32, #tpu.memory_space<vmem>>, %arg10: memref<26x52xf32, #tpu.memory_space<vmem>>, %arg11: memref<26x52xf32, #tpu.memory_space<vmem>>, %arg12: memref<3x120x160xf32, #tpu.memory_space<vmem>>, %arg13: memref<1x160xf32, #tpu.memory_space<vmem>>, %arg14: memref<2x16xf32, #tpu.memory_space<vmem>>, %arg15: memref<3x160x128xf32, #tpu.memory_space<vmem>>, %arg16: memref<1x128xf32, #tpu.memory_space<vmem>>, %arg17: memref<2x16xf32, #tpu.memory_space<vmem>>, %arg18: memref<20x22xf32, #tpu.memory_space<vmem>>, %arg19: memref<3x128x128xf32, #tpu.memory_space<vmem>>, %arg20: memref<1x128xf32, #tpu.memory_space<vmem>>, %arg21: memref<2x16xf32, #tpu.memory_space<vmem>>, %arg22: memref<2x18xf32, #tpu.memory_space<vmem>>, %arg23: memref<16x10xf32, #tpu.memory_space<vmem>>, %arg24: memref<1x10xf32, #tpu.memory_space<vmem>>, %arg25: memref<2x10xf32, #tpu.memory_space<vmem>>) attributes {dimension_semantics = [], scalar_prefetch = 0 : i64, scratch_operands = 0 : i64, tpu.core_type = #tpu.core_type<tc>} {
    %c0 = arith.constant 0 : index
    %c0_0 = arith.constant 0 : index
    %0 = vector.load %arg0[%c0, %c0_0] : memref<56x28xf32, #tpu.memory_space<vmem>>, vector<56x28xf32>
    %1 = vector.extract_strided_slice %0 {offsets = [0, 0], sizes = [54, 28], strides = [1, 1]} : vector<56x28xf32> to vector<54x28xf32>
    %c0_1 = arith.constant 0 : index
    %c0_2 = arith.constant 0 : index
    %c0_3 = arith.constant 0 : index
    %2 = vector.load %arg1[%c0_1, %c0_2, %c0_3] : memref<3x28x208xf32, #tpu.memory_space<vmem>>, vector<1x28x208xf32>
    %3 = vector.shape_cast %2 : vector<1x28x208xf32> to vector<28x208xf32>
    %cst = arith.constant dense<0.000000e+00> : vector<54x208xf32>
    %4 = tpu.matmul %1, %3, %cst {dimension_numbers = #tpu.dot_dimension_numbers<[1], [0], [0], [1], [0, 0, 1, 1], [], []>} : vector<54x28xf32>, vector<28x208xf32>, vector<54x208xf32> -> vector<54x208xf32>
    %5 = vector.extract_strided_slice %0 {offsets = [1, 0], sizes = [54, 28], strides = [1, 1]} : vector<56x28xf32> to vector<54x28xf32>
    %c1 = arith.constant 1 : index
    %c0_4 = arith.constant 0 : index
    %c0_5 = arith.constant 0 : index
    %6 = vector.load %arg1[%c1, %c0_4, %c0_5] : memref<3x28x208xf32, #tpu.memory_space<vmem>>, vector<1x28x208xf32>
    %7 = vector.shape_cast %6 : vector<1x28x208xf32> to vector<28x208xf32>
    %cst_6 = arith.constant dense<0.000000e+00> : vector<54x208xf32>
    %8 = tpu.matmul %5, %7, %cst_6 {dimension_numbers = #tpu.dot_dimension_numbers<[1], [0], [0], [1], [0, 0, 1, 1], [], []>} : vector<54x28xf32>, vector<28x208xf32>, vector<54x208xf32> -> vector<54x208xf32>
    %9 = arith.addf %4, %8 : vector<54x208xf32>
    %10 = vector.extract_strided_slice %0 {offsets = [2, 0], sizes = [54, 28], strides = [1, 1]} : vector<56x28xf32> to vector<54x28xf32>
    %c2 = arith.constant 2 : index
    %c0_7 = arith.constant 0 : index
    %c0_8 = arith.constant 0 : index
    %11 = vector.load %arg1[%c2, %c0_7, %c0_8] : memref<3x28x208xf32, #tpu.memory_space<vmem>>, vector<1x28x208xf32>
    %12 = vector.shape_cast %11 : vector<1x28x208xf32> to vector<28x208xf32>
    %cst_9 = arith.constant dense<0.000000e+00> : vector<54x208xf32>
    %13 = tpu.matmul %10, %12, %cst_9 {dimension_numbers = #tpu.dot_dimension_numbers<[1], [0], [0], [1], [0, 0, 1, 1], [], []>} : vector<54x28xf32>, vector<28x208xf32>, vector<54x208xf32> -> vector<54x208xf32>
    %14 = arith.addf %9, %13 : vector<54x208xf32>
    %c0_10 = arith.constant 0 : index
    %c0_11 = arith.constant 0 : index
    %15 = vector.load %arg2[%c0_10, %c0_11] : memref<1x208xf32, #tpu.memory_space<vmem>>, vector<1x208xf32>
    %16 = vector.broadcast %15 : vector<1x208xf32> to vector<54x208xf32>
    %17 = arith.addf %14, %16 : vector<54x208xf32>
    %18 = tpu.iota {dimensions = array<i32: 0>} : vector<54x1xi32>
    %c26_i32 = arith.constant 26 : i32
    %19 = vector.broadcast %c26_i32 : i32 to vector<54x1xi32>
    %20 = arith.cmpi slt, %18, %19 : vector<54x1xi32>
    %c28_i32 = arith.constant 28 : i32
    %21 = vector.broadcast %c28_i32 : i32 to vector<54x1xi32>
    %22 = arith.cmpi sge, %18, %21 : vector<54x1xi32>
    %c54_i32 = arith.constant 54 : i32
    %23 = vector.broadcast %c54_i32 : i32 to vector<54x1xi32>
    %24 = arith.cmpi slt, %18, %23 : vector<54x1xi32>
    %25 = arith.andi %22, %24 : vector<54x1xi1>
    %26 = arith.ori %20, %25 : vector<54x1xi1>
    %cst_12 = arith.constant 0.000000e+00 : f32
    %27 = vector.shape_cast %26 : vector<54x1xi1> to vector<54x1xi1>
    %28 = vector.broadcast %27 : vector<54x1xi1> to vector<54x208xi1>
    %29 = vector.broadcast %cst_12 : f32 to vector<54x208xf32>
    %30 = arith.select %28, %17, %29 : vector<54x208xi1>, vector<54x208xf32>
    %31 = arith.mulf %17, %17 : vector<54x208xf32>
    %cst_13 = arith.constant 0.000000e+00 : f32
    %32 = vector.shape_cast %26 : vector<54x1xi1> to vector<54x1xi1>
    %33 = vector.broadcast %32 : vector<54x1xi1> to vector<54x208xi1>
    %34 = vector.broadcast %cst_13 : f32 to vector<54x208xf32>
    %35 = arith.select %33, %31, %34 : vector<54x208xi1>, vector<54x208xf32>
    %36 = tpu.iota {dimensions = array<i32: 0>} : vector<208x8xi32>
    %37 = tpu.iota {dimensions = array<i32: 1>} : vector<208x8xi32>
    %c7_i32 = arith.constant 7 : i32
    %38 = vector.broadcast %c7_i32 : i32 to vector<208x8xi32>
    %39 = arith.andi %36, %38 : vector<208x8xi32>
    %40 = arith.cmpi eq, %39, %37 : vector<208x8xi32>
    %41 = arith.extui %40 : vector<208x8xi1> to vector<208x8xi32>
    %42 = arith.sitofp %41 : vector<208x8xi32> to vector<208x8xf32>
    %43 = tpu.iota {dimensions = array<i32: 0>} : vector<8x208xi32>
    %44 = tpu.iota {dimensions = array<i32: 1>} : vector<8x208xi32>
    %c7_i32_14 = arith.constant 7 : i32
    %45 = vector.broadcast %c7_i32_14 : i32 to vector<8x208xi32>
    %46 = arith.andi %44, %45 : vector<8x208xi32>
    %47 = arith.cmpi eq, %46, %43 : vector<8x208xi32>
    %48 = arith.extui %47 : vector<8x208xi1> to vector<8x208xi32>
    %49 = arith.sitofp %48 : vector<8x208xi32> to vector<8x208xf32>
    %cst_15 = arith.constant dense<0.000000e+00> : vector<208xf32>
    %50 = vector.multi_reduction <add>, %30, %cst_15 [0] : vector<54x208xf32> to vector<208xf32>
    %51 = vector.shape_cast %50 : vector<208xf32> to vector<1x208xf32>
    %cst_16 = arith.constant dense<0.000000e+00> : vector<1x8xf32>
    %52 = tpu.matmul %51, %42, %cst_16 {dimension_numbers = #tpu.dot_dimension_numbers<[1], [0], [0], [1], [0, 0, 1, 1], [], []>} : vector<1x208xf32>, vector<208x8xf32>, vector<1x8xf32> -> vector<1x8xf32>
    %cst_17 = arith.constant dense<0.000000e+00> : vector<208xf32>
    %53 = vector.multi_reduction <add>, %35, %cst_17 [0] : vector<54x208xf32> to vector<208xf32>
    %54 = vector.shape_cast %53 : vector<208xf32> to vector<1x208xf32>
    %cst_18 = arith.constant dense<0.000000e+00> : vector<1x8xf32>
    %55 = tpu.matmul %54, %42, %cst_18 {dimension_numbers = #tpu.dot_dimension_numbers<[1], [0], [0], [1], [0, 0, 1, 1], [], []>} : vector<1x208xf32>, vector<208x8xf32>, vector<1x8xf32> -> vector<1x8xf32>
    %cst_19 = arith.constant 7.396450e-04 : f32
    %56 = vector.broadcast %cst_19 : f32 to vector<1x8xf32>
    %57 = arith.mulf %52, %56 : vector<1x8xf32>
    %cst_20 = arith.constant 7.396450e-04 : f32
    %58 = vector.broadcast %cst_20 : f32 to vector<1x8xf32>
    %59 = arith.mulf %55, %58 : vector<1x8xf32>
    %60 = arith.mulf %57, %57 : vector<1x8xf32>
    %61 = arith.subf %59, %60 : vector<1x8xf32>
    %c0_21 = arith.constant 0 : index
    %c0_22 = arith.constant 0 : index
    %62 = vector.load %arg3[%c0_21, %c0_22] : memref<2x8xf32, #tpu.memory_space<vmem>>, vector<1x8xf32>
    %c1_23 = arith.constant 1 : index
    %c0_24 = arith.constant 0 : index
    %63 = vector.load %arg3[%c1_23, %c0_24] : memref<2x8xf32, #tpu.memory_space<vmem>>, vector<1x8xf32>
    %cst_25 = arith.constant 9.99999974E-6 : f32
    %64 = vector.broadcast %cst_25 : f32 to vector<1x8xf32>
    %65 = arith.addf %61, %64 : vector<1x8xf32>
    %66 = math.rsqrt %65 : vector<1x8xf32>
    %67 = arith.mulf %62, %66 : vector<1x8xf32>
    %68 = arith.mulf %57, %67 : vector<1x8xf32>
    %69 = arith.subf %63, %68 : vector<1x8xf32>
    %cst_26 = arith.constant dense<0.000000e+00> : vector<1x208xf32>
    %70 = tpu.matmul %67, %49, %cst_26 {dimension_numbers = #tpu.dot_dimension_numbers<[1], [0], [0], [1], [0, 0, 1, 1], [], []>} : vector<1x8xf32>, vector<8x208xf32>, vector<1x208xf32> -> vector<1x208xf32>
    %cst_27 = arith.constant dense<0.000000e+00> : vector<1x208xf32>
    %71 = tpu.matmul %69, %49, %cst_27 {dimension_numbers = #tpu.dot_dimension_numbers<[1], [0], [0], [1], [0, 0, 1, 1], [], []>} : vector<1x8xf32>, vector<8x208xf32>, vector<1x208xf32> -> vector<1x208xf32>
    %72 = vector.broadcast %70 : vector<1x208xf32> to vector<54x208xf32>
    %73 = arith.mulf %17, %72 : vector<54x208xf32>
    %74 = vector.broadcast %71 : vector<1x208xf32> to vector<54x208xf32>
    %75 = arith.addf %73, %74 : vector<54x208xf32>
    %cst_28 = arith.constant 0.000000e+00 : f32
    %76 = vector.broadcast %cst_28 : f32 to vector<54x208xf32>
    %77 = arith.maximumf %75, %76 : vector<54x208xf32>
    %78 = vector.extract_strided_slice %77 {offsets = [0, 0], sizes = [52, 208], strides = [1, 1]} : vector<54x208xf32> to vector<52x208xf32>
    %c0_29 = arith.constant 0 : index
    %c0_30 = arith.constant 0 : index
    %c0_31 = arith.constant 0 : index
    %79 = vector.load %arg4[%c0_29, %c0_30, %c0_31] : memref<3x208x384xf32, #tpu.memory_space<vmem>>, vector<1x208x384xf32>
    %80 = vector.shape_cast %79 : vector<1x208x384xf32> to vector<208x384xf32>
    %cst_32 = arith.constant dense<0.000000e+00> : vector<52x384xf32>
    %81 = tpu.matmul %78, %80, %cst_32 {dimension_numbers = #tpu.dot_dimension_numbers<[1], [0], [0], [1], [0, 0, 1, 1], [], []>} : vector<52x208xf32>, vector<208x384xf32>, vector<52x384xf32> -> vector<52x384xf32>
    %82 = vector.extract_strided_slice %77 {offsets = [1, 0], sizes = [52, 208], strides = [1, 1]} : vector<54x208xf32> to vector<52x208xf32>
    %c1_33 = arith.constant 1 : index
    %c0_34 = arith.constant 0 : index
    %c0_35 = arith.constant 0 : index
    %83 = vector.load %arg4[%c1_33, %c0_34, %c0_35] : memref<3x208x384xf32, #tpu.memory_space<vmem>>, vector<1x208x384xf32>
    %84 = vector.shape_cast %83 : vector<1x208x384xf32> to vector<208x384xf32>
    %cst_36 = arith.constant dense<0.000000e+00> : vector<52x384xf32>
    %85 = tpu.matmul %82, %84, %cst_36 {dimension_numbers = #tpu.dot_dimension_numbers<[1], [0], [0], [1], [0, 0, 1, 1], [], []>} : vector<52x208xf32>, vector<208x384xf32>, vector<52x384xf32> -> vector<52x384xf32>
    %86 = arith.addf %81, %85 : vector<52x384xf32>
    %87 = vector.extract_strided_slice %77 {offsets = [2, 0], sizes = [52, 208], strides = [1, 1]} : vector<54x208xf32> to vector<52x208xf32>
    %c2_37 = arith.constant 2 : index
    %c0_38 = arith.constant 0 : index
    %c0_39 = arith.constant 0 : index
    %88 = vector.load %arg4[%c2_37, %c0_38, %c0_39] : memref<3x208x384xf32, #tpu.memory_space<vmem>>, vector<1x208x384xf32>
    %89 = vector.shape_cast %88 : vector<1x208x384xf32> to vector<208x384xf32>
    %cst_40 = arith.constant dense<0.000000e+00> : vector<52x384xf32>
    %90 = tpu.matmul %87, %89, %cst_40 {dimension_numbers = #tpu.dot_dimension_numbers<[1], [0], [0], [1], [0, 0, 1, 1], [], []>} : vector<52x208xf32>, vector<208x384xf32>, vector<52x384xf32> -> vector<52x384xf32>
    %91 = arith.addf %86, %90 : vector<52x384xf32>
    %c0_41 = arith.constant 0 : index
    %c0_42 = arith.constant 0 : index
    %92 = vector.load %arg5[%c0_41, %c0_42] : memref<1x384xf32, #tpu.memory_space<vmem>>, vector<1x384xf32>
    %93 = vector.broadcast %92 : vector<1x384xf32> to vector<52x384xf32>
    %94 = arith.addf %91, %93 : vector<52x384xf32>
    %95 = tpu.iota {dimensions = array<i32: 0>} : vector<52x1xi32>
    %c24_i32 = arith.constant 24 : i32
    %96 = vector.broadcast %c24_i32 : i32 to vector<52x1xi32>
    %97 = arith.cmpi slt, %95, %96 : vector<52x1xi32>
    %c28_i32_43 = arith.constant 28 : i32
    %98 = vector.broadcast %c28_i32_43 : i32 to vector<52x1xi32>
    %99 = arith.cmpi sge, %95, %98 : vector<52x1xi32>
    %c52_i32 = arith.constant 52 : i32
    %100 = vector.broadcast %c52_i32 : i32 to vector<52x1xi32>
    %101 = arith.cmpi slt, %95, %100 : vector<52x1xi32>
    %102 = arith.andi %99, %101 : vector<52x1xi1>
    %103 = arith.ori %97, %102 : vector<52x1xi1>
    %cst_44 = arith.constant 0.000000e+00 : f32
    %104 = vector.shape_cast %103 : vector<52x1xi1> to vector<52x1xi1>
    %105 = vector.broadcast %104 : vector<52x1xi1> to vector<52x384xi1>
    %106 = vector.broadcast %cst_44 : f32 to vector<52x384xf32>
    %107 = arith.select %105, %94, %106 : vector<52x384xi1>, vector<52x384xf32>
    %108 = arith.mulf %94, %94 : vector<52x384xf32>
    %cst_45 = arith.constant 0.000000e+00 : f32
    %109 = vector.shape_cast %103 : vector<52x1xi1> to vector<52x1xi1>
    %110 = vector.broadcast %109 : vector<52x1xi1> to vector<52x384xi1>
    %111 = vector.broadcast %cst_45 : f32 to vector<52x384xf32>
    %112 = arith.select %110, %108, %111 : vector<52x384xi1>, vector<52x384xf32>
    %113 = tpu.iota {dimensions = array<i32: 0>} : vector<384x16xi32>
    %114 = tpu.iota {dimensions = array<i32: 1>} : vector<384x16xi32>
    %c15_i32 = arith.constant 15 : i32
    %115 = vector.broadcast %c15_i32 : i32 to vector<384x16xi32>
    %116 = arith.andi %113, %115 : vector<384x16xi32>
    %117 = arith.cmpi eq, %116, %114 : vector<384x16xi32>
    %118 = arith.extui %117 : vector<384x16xi1> to vector<384x16xi32>
    %119 = arith.sitofp %118 : vector<384x16xi32> to vector<384x16xf32>
    %120 = tpu.iota {dimensions = array<i32: 0>} : vector<16x384xi32>
    %121 = tpu.iota {dimensions = array<i32: 1>} : vector<16x384xi32>
    %c15_i32_46 = arith.constant 15 : i32
    %122 = vector.broadcast %c15_i32_46 : i32 to vector<16x384xi32>
    %123 = arith.andi %121, %122 : vector<16x384xi32>
    %124 = arith.cmpi eq, %123, %120 : vector<16x384xi32>
    %125 = arith.extui %124 : vector<16x384xi1> to vector<16x384xi32>
    %126 = arith.sitofp %125 : vector<16x384xi32> to vector<16x384xf32>
    %cst_47 = arith.constant dense<0.000000e+00> : vector<384xf32>
    %127 = vector.multi_reduction <add>, %107, %cst_47 [0] : vector<52x384xf32> to vector<384xf32>
    %128 = vector.shape_cast %127 : vector<384xf32> to vector<1x384xf32>
    %cst_48 = arith.constant dense<0.000000e+00> : vector<1x16xf32>
    %129 = tpu.matmul %128, %119, %cst_48 {dimension_numbers = #tpu.dot_dimension_numbers<[1], [0], [0], [1], [0, 0, 1, 1], [], []>} : vector<1x384xf32>, vector<384x16xf32>, vector<1x16xf32> -> vector<1x16xf32>
    %cst_49 = arith.constant dense<0.000000e+00> : vector<384xf32>
    %130 = vector.multi_reduction <add>, %112, %cst_49 [0] : vector<52x384xf32> to vector<384xf32>
    %131 = vector.shape_cast %130 : vector<384xf32> to vector<1x384xf32>
    %cst_50 = arith.constant dense<0.000000e+00> : vector<1x16xf32>
    %132 = tpu.matmul %131, %119, %cst_50 {dimension_numbers = #tpu.dot_dimension_numbers<[1], [0], [0], [1], [0, 0, 1, 1], [], []>} : vector<1x384xf32>, vector<384x16xf32>, vector<1x16xf32> -> vector<1x16xf32>
    %cst_51 = arith.constant 8.68055562E-4 : f32
    %133 = vector.broadcast %cst_51 : f32 to vector<1x16xf32>
    %134 = arith.mulf %129, %133 : vector<1x16xf32>
    %cst_52 = arith.constant 8.68055562E-4 : f32
    %135 = vector.broadcast %cst_52 : f32 to vector<1x16xf32>
    %136 = arith.mulf %132, %135 : vector<1x16xf32>
    %137 = arith.mulf %134, %134 : vector<1x16xf32>
    %138 = arith.subf %136, %137 : vector<1x16xf32>
    %c0_53 = arith.constant 0 : index
    %c0_54 = arith.constant 0 : index
    %139 = vector.load %arg6[%c0_53, %c0_54] : memref<2x16xf32, #tpu.memory_space<vmem>>, vector<1x16xf32>
    %c1_55 = arith.constant 1 : index
    %c0_56 = arith.constant 0 : index
    %140 = vector.load %arg6[%c1_55, %c0_56] : memref<2x16xf32, #tpu.memory_space<vmem>>, vector<1x16xf32>
    %cst_57 = arith.constant 9.99999974E-6 : f32
    %141 = vector.broadcast %cst_57 : f32 to vector<1x16xf32>
    %142 = arith.addf %138, %141 : vector<1x16xf32>
    %143 = math.rsqrt %142 : vector<1x16xf32>
    %144 = arith.mulf %139, %143 : vector<1x16xf32>
    %145 = arith.mulf %134, %144 : vector<1x16xf32>
    %146 = arith.subf %140, %145 : vector<1x16xf32>
    %cst_58 = arith.constant dense<0.000000e+00> : vector<1x384xf32>
    %147 = tpu.matmul %144, %126, %cst_58 {dimension_numbers = #tpu.dot_dimension_numbers<[1], [0], [0], [1], [0, 0, 1, 1], [], []>} : vector<1x16xf32>, vector<16x384xf32>, vector<1x384xf32> -> vector<1x384xf32>
    %cst_59 = arith.constant dense<0.000000e+00> : vector<1x384xf32>
    %148 = tpu.matmul %146, %126, %cst_59 {dimension_numbers = #tpu.dot_dimension_numbers<[1], [0], [0], [1], [0, 0, 1, 1], [], []>} : vector<1x16xf32>, vector<16x384xf32>, vector<1x384xf32> -> vector<1x384xf32>
    %149 = vector.broadcast %147 : vector<1x384xf32> to vector<52x384xf32>
    %150 = arith.mulf %94, %149 : vector<52x384xf32>
    %151 = vector.broadcast %148 : vector<1x384xf32> to vector<52x384xf32>
    %152 = arith.addf %150, %151 : vector<52x384xf32>
    %cst_60 = arith.constant 0.000000e+00 : f32
    %153 = vector.broadcast %cst_60 : f32 to vector<52x384xf32>
    %154 = arith.maximumf %152, %153 : vector<52x384xf32>
    %c0_61 = arith.constant 0 : index
    %c0_62 = arith.constant 0 : index
    %155 = vector.load %arg7[%c0_61, %c0_62] : memref<384x120xf32, #tpu.memory_space<vmem>>, vector<384x120xf32>
    %cst_63 = arith.constant dense<0.000000e+00> : vector<52x120xf32>
    %156 = tpu.matmul %154, %155, %cst_63 {dimension_numbers = #tpu.dot_dimension_numbers<[1], [0], [0], [1], [0, 0, 1, 1], [], []>} : vector<52x384xf32>, vector<384x120xf32>, vector<52x120xf32> -> vector<52x120xf32>
    %c0_64 = arith.constant 0 : index
    %c0_65 = arith.constant 0 : index
    %157 = vector.load %arg9[%c0_64, %c0_65] : memref<1x120xf32, #tpu.memory_space<vmem>>, vector<1x120xf32>
    %158 = vector.broadcast %157 : vector<1x120xf32> to vector<52x120xf32>
    %159 = arith.addf %156, %158 : vector<52x120xf32>
    %c0_66 = arith.constant 0 : index
    %c0_67 = arith.constant 0 : index
    %160 = vector.load %arg8[%c0_66, %c0_67] : memref<384x120xf32, #tpu.memory_space<vmem>>, vector<384x120xf32>
    %cst_68 = arith.constant dense<0.000000e+00> : vector<52x120xf32>
    %161 = tpu.matmul %154, %160, %cst_68 {dimension_numbers = #tpu.dot_dimension_numbers<[1], [0], [0], [1], [0, 0, 1, 1], [], []>} : vector<52x384xf32>, vector<384x120xf32>, vector<52x120xf32> -> vector<52x120xf32>
    %c0_69 = arith.constant 0 : index
    %c0_70 = arith.constant 0 : index
    %162 = vector.load %arg9[%c0_69, %c0_70] : memref<1x120xf32, #tpu.memory_space<vmem>>, vector<1x120xf32>
    %163 = vector.broadcast %162 : vector<1x120xf32> to vector<52x120xf32>
    %164 = arith.addf %161, %163 : vector<52x120xf32>
    %165 = arith.maximumf %159, %164 : vector<52x120xf32>
    %c0_71 = arith.constant 0 : index
    %c0_72 = arith.constant 0 : index
    %166 = vector.load %arg10[%c0_71, %c0_72] : memref<26x52xf32, #tpu.memory_space<vmem>>, vector<26x52xf32>
    %cst_73 = arith.constant dense<0.000000e+00> : vector<26x120xf32>
    %167 = tpu.matmul %166, %165, %cst_73 {dimension_numbers = #tpu.dot_dimension_numbers<[1], [0], [0], [1], [0, 0, 1, 1], [], []>} : vector<26x52xf32>, vector<52x120xf32>, vector<26x120xf32> -> vector<26x120xf32>
    %c0_74 = arith.constant 0 : index
    %c0_75 = arith.constant 0 : index
    %168 = vector.load %arg11[%c0_74, %c0_75] : memref<26x52xf32, #tpu.memory_space<vmem>>, vector<26x52xf32>
    %cst_76 = arith.constant dense<0.000000e+00> : vector<26x120xf32>
    %169 = tpu.matmul %168, %165, %cst_76 {dimension_numbers = #tpu.dot_dimension_numbers<[1], [0], [0], [1], [0, 0, 1, 1], [], []>} : vector<26x52xf32>, vector<52x120xf32>, vector<26x120xf32> -> vector<26x120xf32>
    %170 = arith.maximumf %167, %169 : vector<26x120xf32>
    %171 = vector.extract_strided_slice %170 {offsets = [0, 0], sizes = [24, 120], strides = [1, 1]} : vector<26x120xf32> to vector<24x120xf32>
    %c0_77 = arith.constant 0 : index
    %c0_78 = arith.constant 0 : index
    %c0_79 = arith.constant 0 : index
    %172 = vector.load %arg12[%c0_77, %c0_78, %c0_79] : memref<3x120x160xf32, #tpu.memory_space<vmem>>, vector<1x120x160xf32>
    %173 = vector.shape_cast %172 : vector<1x120x160xf32> to vector<120x160xf32>
    %cst_80 = arith.constant dense<0.000000e+00> : vector<24x160xf32>
    %174 = tpu.matmul %171, %173, %cst_80 {dimension_numbers = #tpu.dot_dimension_numbers<[1], [0], [0], [1], [0, 0, 1, 1], [], []>} : vector<24x120xf32>, vector<120x160xf32>, vector<24x160xf32> -> vector<24x160xf32>
    %175 = vector.extract_strided_slice %170 {offsets = [1, 0], sizes = [24, 120], strides = [1, 1]} : vector<26x120xf32> to vector<24x120xf32>
    %c1_81 = arith.constant 1 : index
    %c0_82 = arith.constant 0 : index
    %c0_83 = arith.constant 0 : index
    %176 = vector.load %arg12[%c1_81, %c0_82, %c0_83] : memref<3x120x160xf32, #tpu.memory_space<vmem>>, vector<1x120x160xf32>
    %177 = vector.shape_cast %176 : vector<1x120x160xf32> to vector<120x160xf32>
    %cst_84 = arith.constant dense<0.000000e+00> : vector<24x160xf32>
    %178 = tpu.matmul %175, %177, %cst_84 {dimension_numbers = #tpu.dot_dimension_numbers<[1], [0], [0], [1], [0, 0, 1, 1], [], []>} : vector<24x120xf32>, vector<120x160xf32>, vector<24x160xf32> -> vector<24x160xf32>
    %179 = arith.addf %174, %178 : vector<24x160xf32>
    %180 = vector.extract_strided_slice %170 {offsets = [2, 0], sizes = [24, 120], strides = [1, 1]} : vector<26x120xf32> to vector<24x120xf32>
    %c2_85 = arith.constant 2 : index
    %c0_86 = arith.constant 0 : index
    %c0_87 = arith.constant 0 : index
    %181 = vector.load %arg12[%c2_85, %c0_86, %c0_87] : memref<3x120x160xf32, #tpu.memory_space<vmem>>, vector<1x120x160xf32>
    %182 = vector.shape_cast %181 : vector<1x120x160xf32> to vector<120x160xf32>
    %cst_88 = arith.constant dense<0.000000e+00> : vector<24x160xf32>
    %183 = tpu.matmul %180, %182, %cst_88 {dimension_numbers = #tpu.dot_dimension_numbers<[1], [0], [0], [1], [0, 0, 1, 1], [], []>} : vector<24x120xf32>, vector<120x160xf32>, vector<24x160xf32> -> vector<24x160xf32>
    %184 = arith.addf %179, %183 : vector<24x160xf32>
    %c0_89 = arith.constant 0 : index
    %c0_90 = arith.constant 0 : index
    %185 = vector.load %arg13[%c0_89, %c0_90] : memref<1x160xf32, #tpu.memory_space<vmem>>, vector<1x160xf32>
    %186 = vector.broadcast %185 : vector<1x160xf32> to vector<24x160xf32>
    %187 = arith.addf %184, %186 : vector<24x160xf32>
    %188 = tpu.iota {dimensions = array<i32: 0>} : vector<24x1xi32>
    %c10_i32 = arith.constant 10 : i32
    %189 = vector.broadcast %c10_i32 : i32 to vector<24x1xi32>
    %190 = arith.cmpi slt, %188, %189 : vector<24x1xi32>
    %c14_i32 = arith.constant 14 : i32
    %191 = vector.broadcast %c14_i32 : i32 to vector<24x1xi32>
    %192 = arith.cmpi sge, %188, %191 : vector<24x1xi32>
    %c24_i32_91 = arith.constant 24 : i32
    %193 = vector.broadcast %c24_i32_91 : i32 to vector<24x1xi32>
    %194 = arith.cmpi slt, %188, %193 : vector<24x1xi32>
    %195 = arith.andi %192, %194 : vector<24x1xi1>
    %196 = arith.ori %190, %195 : vector<24x1xi1>
    %cst_92 = arith.constant 0.000000e+00 : f32
    %197 = vector.shape_cast %196 : vector<24x1xi1> to vector<24x1xi1>
    %198 = vector.broadcast %197 : vector<24x1xi1> to vector<24x160xi1>
    %199 = vector.broadcast %cst_92 : f32 to vector<24x160xf32>
    %200 = arith.select %198, %187, %199 : vector<24x160xi1>, vector<24x160xf32>
    %201 = arith.mulf %187, %187 : vector<24x160xf32>
    %cst_93 = arith.constant 0.000000e+00 : f32
    %202 = vector.shape_cast %196 : vector<24x1xi1> to vector<24x1xi1>
    %203 = vector.broadcast %202 : vector<24x1xi1> to vector<24x160xi1>
    %204 = vector.broadcast %cst_93 : f32 to vector<24x160xf32>
    %205 = arith.select %203, %201, %204 : vector<24x160xi1>, vector<24x160xf32>
    %206 = tpu.iota {dimensions = array<i32: 0>} : vector<160x16xi32>
    %207 = tpu.iota {dimensions = array<i32: 1>} : vector<160x16xi32>
    %c15_i32_94 = arith.constant 15 : i32
    %208 = vector.broadcast %c15_i32_94 : i32 to vector<160x16xi32>
    %209 = arith.andi %206, %208 : vector<160x16xi32>
    %210 = arith.cmpi eq, %209, %207 : vector<160x16xi32>
    %211 = arith.extui %210 : vector<160x16xi1> to vector<160x16xi32>
    %212 = arith.sitofp %211 : vector<160x16xi32> to vector<160x16xf32>
    %213 = tpu.iota {dimensions = array<i32: 0>} : vector<16x160xi32>
    %214 = tpu.iota {dimensions = array<i32: 1>} : vector<16x160xi32>
    %c15_i32_95 = arith.constant 15 : i32
    %215 = vector.broadcast %c15_i32_95 : i32 to vector<16x160xi32>
    %216 = arith.andi %214, %215 : vector<16x160xi32>
    %217 = arith.cmpi eq, %216, %213 : vector<16x160xi32>
    %218 = arith.extui %217 : vector<16x160xi1> to vector<16x160xi32>
    %219 = arith.sitofp %218 : vector<16x160xi32> to vector<16x160xf32>
    %cst_96 = arith.constant dense<0.000000e+00> : vector<160xf32>
    %220 = vector.multi_reduction <add>, %200, %cst_96 [0] : vector<24x160xf32> to vector<160xf32>
    %221 = vector.shape_cast %220 : vector<160xf32> to vector<1x160xf32>
    %cst_97 = arith.constant dense<0.000000e+00> : vector<1x16xf32>
    %222 = tpu.matmul %221, %212, %cst_97 {dimension_numbers = #tpu.dot_dimension_numbers<[1], [0], [0], [1], [0, 0, 1, 1], [], []>} : vector<1x160xf32>, vector<160x16xf32>, vector<1x16xf32> -> vector<1x16xf32>
    %cst_98 = arith.constant dense<0.000000e+00> : vector<160xf32>
    %223 = vector.multi_reduction <add>, %205, %cst_98 [0] : vector<24x160xf32> to vector<160xf32>
    %224 = vector.shape_cast %223 : vector<160xf32> to vector<1x160xf32>
    %cst_99 = arith.constant dense<0.000000e+00> : vector<1x16xf32>
    %225 = tpu.matmul %224, %212, %cst_99 {dimension_numbers = #tpu.dot_dimension_numbers<[1], [0], [0], [1], [0, 0, 1, 1], [], []>} : vector<1x160xf32>, vector<160x16xf32>, vector<1x16xf32> -> vector<1x16xf32>
    %cst_100 = arith.constant 5.000000e-03 : f32
    %226 = vector.broadcast %cst_100 : f32 to vector<1x16xf32>
    %227 = arith.mulf %222, %226 : vector<1x16xf32>
    %cst_101 = arith.constant 5.000000e-03 : f32
    %228 = vector.broadcast %cst_101 : f32 to vector<1x16xf32>
    %229 = arith.mulf %225, %228 : vector<1x16xf32>
    %230 = arith.mulf %227, %227 : vector<1x16xf32>
    %231 = arith.subf %229, %230 : vector<1x16xf32>
    %c0_102 = arith.constant 0 : index
    %c0_103 = arith.constant 0 : index
    %232 = vector.load %arg14[%c0_102, %c0_103] : memref<2x16xf32, #tpu.memory_space<vmem>>, vector<1x16xf32>
    %c1_104 = arith.constant 1 : index
    %c0_105 = arith.constant 0 : index
    %233 = vector.load %arg14[%c1_104, %c0_105] : memref<2x16xf32, #tpu.memory_space<vmem>>, vector<1x16xf32>
    %cst_106 = arith.constant 9.99999974E-6 : f32
    %234 = vector.broadcast %cst_106 : f32 to vector<1x16xf32>
    %235 = arith.addf %231, %234 : vector<1x16xf32>
    %236 = math.rsqrt %235 : vector<1x16xf32>
    %237 = arith.mulf %232, %236 : vector<1x16xf32>
    %238 = arith.mulf %227, %237 : vector<1x16xf32>
    %239 = arith.subf %233, %238 : vector<1x16xf32>
    %cst_107 = arith.constant dense<0.000000e+00> : vector<1x160xf32>
    %240 = tpu.matmul %237, %219, %cst_107 {dimension_numbers = #tpu.dot_dimension_numbers<[1], [0], [0], [1], [0, 0, 1, 1], [], []>} : vector<1x16xf32>, vector<16x160xf32>, vector<1x160xf32> -> vector<1x160xf32>
    %cst_108 = arith.constant dense<0.000000e+00> : vector<1x160xf32>
    %241 = tpu.matmul %239, %219, %cst_108 {dimension_numbers = #tpu.dot_dimension_numbers<[1], [0], [0], [1], [0, 0, 1, 1], [], []>} : vector<1x16xf32>, vector<16x160xf32>, vector<1x160xf32> -> vector<1x160xf32>
    %242 = vector.broadcast %240 : vector<1x160xf32> to vector<24x160xf32>
    %243 = arith.mulf %187, %242 : vector<24x160xf32>
    %244 = vector.broadcast %241 : vector<1x160xf32> to vector<24x160xf32>
    %245 = arith.addf %243, %244 : vector<24x160xf32>
    %cst_109 = arith.constant 0.000000e+00 : f32
    %246 = vector.broadcast %cst_109 : f32 to vector<24x160xf32>
    %247 = arith.maximumf %245, %246 : vector<24x160xf32>
    %248 = vector.extract_strided_slice %247 {offsets = [0, 0], sizes = [22, 160], strides = [1, 1]} : vector<24x160xf32> to vector<22x160xf32>
    %c0_110 = arith.constant 0 : index
    %c0_111 = arith.constant 0 : index
    %c0_112 = arith.constant 0 : index
    %249 = vector.load %arg15[%c0_110, %c0_111, %c0_112] : memref<3x160x128xf32, #tpu.memory_space<vmem>>, vector<1x160x128xf32>
    %250 = vector.shape_cast %249 : vector<1x160x128xf32> to vector<160x128xf32>
    %cst_113 = arith.constant dense<0.000000e+00> : vector<22x128xf32>
    %251 = tpu.matmul %248, %250, %cst_113 {dimension_numbers = #tpu.dot_dimension_numbers<[1], [0], [0], [1], [0, 0, 1, 1], [], []>} : vector<22x160xf32>, vector<160x128xf32>, vector<22x128xf32> -> vector<22x128xf32>
    %252 = vector.extract_strided_slice %247 {offsets = [1, 0], sizes = [22, 160], strides = [1, 1]} : vector<24x160xf32> to vector<22x160xf32>
    %c1_114 = arith.constant 1 : index
    %c0_115 = arith.constant 0 : index
    %c0_116 = arith.constant 0 : index
    %253 = vector.load %arg15[%c1_114, %c0_115, %c0_116] : memref<3x160x128xf32, #tpu.memory_space<vmem>>, vector<1x160x128xf32>
    %254 = vector.shape_cast %253 : vector<1x160x128xf32> to vector<160x128xf32>
    %cst_117 = arith.constant dense<0.000000e+00> : vector<22x128xf32>
    %255 = tpu.matmul %252, %254, %cst_117 {dimension_numbers = #tpu.dot_dimension_numbers<[1], [0], [0], [1], [0, 0, 1, 1], [], []>} : vector<22x160xf32>, vector<160x128xf32>, vector<22x128xf32> -> vector<22x128xf32>
    %256 = arith.addf %251, %255 : vector<22x128xf32>
    %257 = vector.extract_strided_slice %247 {offsets = [2, 0], sizes = [22, 160], strides = [1, 1]} : vector<24x160xf32> to vector<22x160xf32>
    %c2_118 = arith.constant 2 : index
    %c0_119 = arith.constant 0 : index
    %c0_120 = arith.constant 0 : index
    %258 = vector.load %arg15[%c2_118, %c0_119, %c0_120] : memref<3x160x128xf32, #tpu.memory_space<vmem>>, vector<1x160x128xf32>
    %259 = vector.shape_cast %258 : vector<1x160x128xf32> to vector<160x128xf32>
    %cst_121 = arith.constant dense<0.000000e+00> : vector<22x128xf32>
    %260 = tpu.matmul %257, %259, %cst_121 {dimension_numbers = #tpu.dot_dimension_numbers<[1], [0], [0], [1], [0, 0, 1, 1], [], []>} : vector<22x160xf32>, vector<160x128xf32>, vector<22x128xf32> -> vector<22x128xf32>
    %261 = arith.addf %256, %260 : vector<22x128xf32>
    %c0_122 = arith.constant 0 : index
    %c0_123 = arith.constant 0 : index
    %262 = vector.load %arg16[%c0_122, %c0_123] : memref<1x128xf32, #tpu.memory_space<vmem>>, vector<1x128xf32>
    %263 = vector.broadcast %262 : vector<1x128xf32> to vector<22x128xf32>
    %264 = arith.addf %261, %263 : vector<22x128xf32>
    %265 = tpu.iota {dimensions = array<i32: 0>} : vector<22x1xi32>
    %c8_i32 = arith.constant 8 : i32
    %266 = vector.broadcast %c8_i32 : i32 to vector<22x1xi32>
    %267 = arith.cmpi slt, %265, %266 : vector<22x1xi32>
    %c14_i32_124 = arith.constant 14 : i32
    %268 = vector.broadcast %c14_i32_124 : i32 to vector<22x1xi32>
    %269 = arith.cmpi sge, %265, %268 : vector<22x1xi32>
    %c22_i32 = arith.constant 22 : i32
    %270 = vector.broadcast %c22_i32 : i32 to vector<22x1xi32>
    %271 = arith.cmpi slt, %265, %270 : vector<22x1xi32>
    %272 = arith.andi %269, %271 : vector<22x1xi1>
    %273 = arith.ori %267, %272 : vector<22x1xi1>
    %cst_125 = arith.constant 0.000000e+00 : f32
    %274 = vector.shape_cast %273 : vector<22x1xi1> to vector<22x1xi1>
    %275 = vector.broadcast %274 : vector<22x1xi1> to vector<22x128xi1>
    %276 = vector.broadcast %cst_125 : f32 to vector<22x128xf32>
    %277 = arith.select %275, %264, %276 : vector<22x128xi1>, vector<22x128xf32>
    %278 = arith.mulf %264, %264 : vector<22x128xf32>
    %cst_126 = arith.constant 0.000000e+00 : f32
    %279 = vector.shape_cast %273 : vector<22x1xi1> to vector<22x1xi1>
    %280 = vector.broadcast %279 : vector<22x1xi1> to vector<22x128xi1>
    %281 = vector.broadcast %cst_126 : f32 to vector<22x128xf32>
    %282 = arith.select %280, %278, %281 : vector<22x128xi1>, vector<22x128xf32>
    %283 = tpu.iota {dimensions = array<i32: 0>} : vector<128x16xi32>
    %284 = tpu.iota {dimensions = array<i32: 1>} : vector<128x16xi32>
    %c15_i32_127 = arith.constant 15 : i32
    %285 = vector.broadcast %c15_i32_127 : i32 to vector<128x16xi32>
    %286 = arith.andi %283, %285 : vector<128x16xi32>
    %287 = arith.cmpi eq, %286, %284 : vector<128x16xi32>
    %288 = arith.extui %287 : vector<128x16xi1> to vector<128x16xi32>
    %289 = arith.sitofp %288 : vector<128x16xi32> to vector<128x16xf32>
    %290 = tpu.iota {dimensions = array<i32: 0>} : vector<16x128xi32>
    %291 = tpu.iota {dimensions = array<i32: 1>} : vector<16x128xi32>
    %c15_i32_128 = arith.constant 15 : i32
    %292 = vector.broadcast %c15_i32_128 : i32 to vector<16x128xi32>
    %293 = arith.andi %291, %292 : vector<16x128xi32>
    %294 = arith.cmpi eq, %293, %290 : vector<16x128xi32>
    %295 = arith.extui %294 : vector<16x128xi1> to vector<16x128xi32>
    %296 = arith.sitofp %295 : vector<16x128xi32> to vector<16x128xf32>
    %cst_129 = arith.constant dense<0.000000e+00> : vector<128xf32>
    %297 = vector.multi_reduction <add>, %277, %cst_129 [0] : vector<22x128xf32> to vector<128xf32>
    %298 = vector.shape_cast %297 : vector<128xf32> to vector<1x128xf32>
    %cst_130 = arith.constant dense<0.000000e+00> : vector<1x16xf32>
    %299 = tpu.matmul %298, %289, %cst_130 {dimension_numbers = #tpu.dot_dimension_numbers<[1], [0], [0], [1], [0, 0, 1, 1], [], []>} : vector<1x128xf32>, vector<128x16xf32>, vector<1x16xf32> -> vector<1x16xf32>
    %cst_131 = arith.constant dense<0.000000e+00> : vector<128xf32>
    %300 = vector.multi_reduction <add>, %282, %cst_131 [0] : vector<22x128xf32> to vector<128xf32>
    %301 = vector.shape_cast %300 : vector<128xf32> to vector<1x128xf32>
    %cst_132 = arith.constant dense<0.000000e+00> : vector<1x16xf32>
    %302 = tpu.matmul %301, %289, %cst_132 {dimension_numbers = #tpu.dot_dimension_numbers<[1], [0], [0], [1], [0, 0, 1, 1], [], []>} : vector<1x128xf32>, vector<128x16xf32>, vector<1x16xf32> -> vector<1x16xf32>
    %cst_133 = arith.constant 7.812500e-03 : f32
    %303 = vector.broadcast %cst_133 : f32 to vector<1x16xf32>
    %304 = arith.mulf %299, %303 : vector<1x16xf32>
    %cst_134 = arith.constant 7.812500e-03 : f32
    %305 = vector.broadcast %cst_134 : f32 to vector<1x16xf32>
    %306 = arith.mulf %302, %305 : vector<1x16xf32>
    %307 = arith.mulf %304, %304 : vector<1x16xf32>
    %308 = arith.subf %306, %307 : vector<1x16xf32>
    %c0_135 = arith.constant 0 : index
    %c0_136 = arith.constant 0 : index
    %309 = vector.load %arg17[%c0_135, %c0_136] : memref<2x16xf32, #tpu.memory_space<vmem>>, vector<1x16xf32>
    %c1_137 = arith.constant 1 : index
    %c0_138 = arith.constant 0 : index
    %310 = vector.load %arg17[%c1_137, %c0_138] : memref<2x16xf32, #tpu.memory_space<vmem>>, vector<1x16xf32>
    %cst_139 = arith.constant 9.99999974E-6 : f32
    %311 = vector.broadcast %cst_139 : f32 to vector<1x16xf32>
    %312 = arith.addf %308, %311 : vector<1x16xf32>
    %313 = math.rsqrt %312 : vector<1x16xf32>
    %314 = arith.mulf %309, %313 : vector<1x16xf32>
    %315 = arith.mulf %304, %314 : vector<1x16xf32>
    %316 = arith.subf %310, %315 : vector<1x16xf32>
    %cst_140 = arith.constant dense<0.000000e+00> : vector<1x128xf32>
    %317 = tpu.matmul %314, %296, %cst_140 {dimension_numbers = #tpu.dot_dimension_numbers<[1], [0], [0], [1], [0, 0, 1, 1], [], []>} : vector<1x16xf32>, vector<16x128xf32>, vector<1x128xf32> -> vector<1x128xf32>
    %cst_141 = arith.constant dense<0.000000e+00> : vector<1x128xf32>
    %318 = tpu.matmul %316, %296, %cst_141 {dimension_numbers = #tpu.dot_dimension_numbers<[1], [0], [0], [1], [0, 0, 1, 1], [], []>} : vector<1x16xf32>, vector<16x128xf32>, vector<1x128xf32> -> vector<1x128xf32>
    %319 = vector.broadcast %317 : vector<1x128xf32> to vector<22x128xf32>
    %320 = arith.mulf %264, %319 : vector<22x128xf32>
    %321 = vector.broadcast %318 : vector<1x128xf32> to vector<22x128xf32>
    %322 = arith.addf %320, %321 : vector<22x128xf32>
    %cst_142 = arith.constant 0.000000e+00 : f32
    %323 = vector.broadcast %cst_142 : f32 to vector<22x128xf32>
    %324 = arith.maximumf %322, %323 : vector<22x128xf32>
    %c0_143 = arith.constant 0 : index
    %c0_144 = arith.constant 0 : index
    %325 = vector.load %arg18[%c0_143, %c0_144] : memref<20x22xf32, #tpu.memory_space<vmem>>, vector<20x22xf32>
    %cst_145 = arith.constant dense<0.000000e+00> : vector<20x128xf32>
    %326 = tpu.matmul %325, %324, %cst_145 {dimension_numbers = #tpu.dot_dimension_numbers<[1], [0], [0], [1], [0, 0, 1, 1], [], []>} : vector<20x22xf32>, vector<22x128xf32>, vector<20x128xf32> -> vector<20x128xf32>
    %327 = vector.extract_strided_slice %326 {offsets = [0, 0], sizes = [18, 128], strides = [1, 1]} : vector<20x128xf32> to vector<18x128xf32>
    %c0_146 = arith.constant 0 : index
    %c0_147 = arith.constant 0 : index
    %c0_148 = arith.constant 0 : index
    %328 = vector.load %arg19[%c0_146, %c0_147, %c0_148] : memref<3x128x128xf32, #tpu.memory_space<vmem>>, vector<1x128x128xf32>
    %329 = vector.shape_cast %328 : vector<1x128x128xf32> to vector<128x128xf32>
    %cst_149 = arith.constant dense<0.000000e+00> : vector<18x128xf32>
    %330 = tpu.matmul %327, %329, %cst_149 {dimension_numbers = #tpu.dot_dimension_numbers<[1], [0], [0], [1], [0, 0, 1, 1], [], []>} : vector<18x128xf32>, vector<128x128xf32>, vector<18x128xf32> -> vector<18x128xf32>
    %331 = vector.extract_strided_slice %326 {offsets = [1, 0], sizes = [18, 128], strides = [1, 1]} : vector<20x128xf32> to vector<18x128xf32>
    %c1_150 = arith.constant 1 : index
    %c0_151 = arith.constant 0 : index
    %c0_152 = arith.constant 0 : index
    %332 = vector.load %arg19[%c1_150, %c0_151, %c0_152] : memref<3x128x128xf32, #tpu.memory_space<vmem>>, vector<1x128x128xf32>
    %333 = vector.shape_cast %332 : vector<1x128x128xf32> to vector<128x128xf32>
    %cst_153 = arith.constant dense<0.000000e+00> : vector<18x128xf32>
    %334 = tpu.matmul %331, %333, %cst_153 {dimension_numbers = #tpu.dot_dimension_numbers<[1], [0], [0], [1], [0, 0, 1, 1], [], []>} : vector<18x128xf32>, vector<128x128xf32>, vector<18x128xf32> -> vector<18x128xf32>
    %335 = arith.addf %330, %334 : vector<18x128xf32>
    %336 = vector.extract_strided_slice %326 {offsets = [2, 0], sizes = [18, 128], strides = [1, 1]} : vector<20x128xf32> to vector<18x128xf32>
    %c2_154 = arith.constant 2 : index
    %c0_155 = arith.constant 0 : index
    %c0_156 = arith.constant 0 : index
    %337 = vector.load %arg19[%c2_154, %c0_155, %c0_156] : memref<3x128x128xf32, #tpu.memory_space<vmem>>, vector<1x128x128xf32>
    %338 = vector.shape_cast %337 : vector<1x128x128xf32> to vector<128x128xf32>
    %cst_157 = arith.constant dense<0.000000e+00> : vector<18x128xf32>
    %339 = tpu.matmul %336, %338, %cst_157 {dimension_numbers = #tpu.dot_dimension_numbers<[1], [0], [0], [1], [0, 0, 1, 1], [], []>} : vector<18x128xf32>, vector<128x128xf32>, vector<18x128xf32> -> vector<18x128xf32>
    %340 = arith.addf %335, %339 : vector<18x128xf32>
    %c0_158 = arith.constant 0 : index
    %c0_159 = arith.constant 0 : index
    %341 = vector.load %arg20[%c0_158, %c0_159] : memref<1x128xf32, #tpu.memory_space<vmem>>, vector<1x128xf32>
    %342 = vector.broadcast %341 : vector<1x128xf32> to vector<18x128xf32>
    %343 = arith.addf %340, %342 : vector<18x128xf32>
    %344 = tpu.iota {dimensions = array<i32: 0>} : vector<18x1xi32>
    %c8_i32_160 = arith.constant 8 : i32
    %345 = vector.broadcast %c8_i32_160 : i32 to vector<18x1xi32>
    %346 = arith.cmpi slt, %344, %345 : vector<18x1xi32>
    %c10_i32_161 = arith.constant 10 : i32
    %347 = vector.broadcast %c10_i32_161 : i32 to vector<18x1xi32>
    %348 = arith.cmpi sge, %344, %347 : vector<18x1xi32>
    %c18_i32 = arith.constant 18 : i32
    %349 = vector.broadcast %c18_i32 : i32 to vector<18x1xi32>
    %350 = arith.cmpi slt, %344, %349 : vector<18x1xi32>
    %351 = arith.andi %348, %350 : vector<18x1xi1>
    %352 = arith.ori %346, %351 : vector<18x1xi1>
    %cst_162 = arith.constant 0.000000e+00 : f32
    %353 = vector.shape_cast %352 : vector<18x1xi1> to vector<18x1xi1>
    %354 = vector.broadcast %353 : vector<18x1xi1> to vector<18x128xi1>
    %355 = vector.broadcast %cst_162 : f32 to vector<18x128xf32>
    %356 = arith.select %354, %343, %355 : vector<18x128xi1>, vector<18x128xf32>
    %357 = arith.mulf %343, %343 : vector<18x128xf32>
    %cst_163 = arith.constant 0.000000e+00 : f32
    %358 = vector.shape_cast %352 : vector<18x1xi1> to vector<18x1xi1>
    %359 = vector.broadcast %358 : vector<18x1xi1> to vector<18x128xi1>
    %360 = vector.broadcast %cst_163 : f32 to vector<18x128xf32>
    %361 = arith.select %359, %357, %360 : vector<18x128xi1>, vector<18x128xf32>
    %362 = tpu.iota {dimensions = array<i32: 0>} : vector<128x16xi32>
    %363 = tpu.iota {dimensions = array<i32: 1>} : vector<128x16xi32>
    %c15_i32_164 = arith.constant 15 : i32
    %364 = vector.broadcast %c15_i32_164 : i32 to vector<128x16xi32>
    %365 = arith.andi %362, %364 : vector<128x16xi32>
    %366 = arith.cmpi eq, %365, %363 : vector<128x16xi32>
    %367 = arith.extui %366 : vector<128x16xi1> to vector<128x16xi32>
    %368 = arith.sitofp %367 : vector<128x16xi32> to vector<128x16xf32>
    %369 = tpu.iota {dimensions = array<i32: 0>} : vector<16x128xi32>
    %370 = tpu.iota {dimensions = array<i32: 1>} : vector<16x128xi32>
    %c15_i32_165 = arith.constant 15 : i32
    %371 = vector.broadcast %c15_i32_165 : i32 to vector<16x128xi32>
    %372 = arith.andi %370, %371 : vector<16x128xi32>
    %373 = arith.cmpi eq, %372, %369 : vector<16x128xi32>
    %374 = arith.extui %373 : vector<16x128xi1> to vector<16x128xi32>
    %375 = arith.sitofp %374 : vector<16x128xi32> to vector<16x128xf32>
    %cst_166 = arith.constant dense<0.000000e+00> : vector<128xf32>
    %376 = vector.multi_reduction <add>, %356, %cst_166 [0] : vector<18x128xf32> to vector<128xf32>
    %377 = vector.shape_cast %376 : vector<128xf32> to vector<1x128xf32>
    %cst_167 = arith.constant dense<0.000000e+00> : vector<1x16xf32>
    %378 = tpu.matmul %377, %368, %cst_167 {dimension_numbers = #tpu.dot_dimension_numbers<[1], [0], [0], [1], [0, 0, 1, 1], [], []>} : vector<1x128xf32>, vector<128x16xf32>, vector<1x16xf32> -> vector<1x16xf32>
    %cst_168 = arith.constant dense<0.000000e+00> : vector<128xf32>
    %379 = vector.multi_reduction <add>, %361, %cst_168 [0] : vector<18x128xf32> to vector<128xf32>
    %380 = vector.shape_cast %379 : vector<128xf32> to vector<1x128xf32>
    %cst_169 = arith.constant dense<0.000000e+00> : vector<1x16xf32>
    %381 = tpu.matmul %380, %368, %cst_169 {dimension_numbers = #tpu.dot_dimension_numbers<[1], [0], [0], [1], [0, 0, 1, 1], [], []>} : vector<1x128xf32>, vector<128x16xf32>, vector<1x16xf32> -> vector<1x16xf32>
    %cst_170 = arith.constant 7.812500e-03 : f32
    %382 = vector.broadcast %cst_170 : f32 to vector<1x16xf32>
    %383 = arith.mulf %378, %382 : vector<1x16xf32>
    %cst_171 = arith.constant 7.812500e-03 : f32
    %384 = vector.broadcast %cst_171 : f32 to vector<1x16xf32>
    %385 = arith.mulf %381, %384 : vector<1x16xf32>
    %386 = arith.mulf %383, %383 : vector<1x16xf32>
    %387 = arith.subf %385, %386 : vector<1x16xf32>
    %c0_172 = arith.constant 0 : index
    %c0_173 = arith.constant 0 : index
    %388 = vector.load %arg21[%c0_172, %c0_173] : memref<2x16xf32, #tpu.memory_space<vmem>>, vector<1x16xf32>
    %c1_174 = arith.constant 1 : index
    %c0_175 = arith.constant 0 : index
    %389 = vector.load %arg21[%c1_174, %c0_175] : memref<2x16xf32, #tpu.memory_space<vmem>>, vector<1x16xf32>
    %cst_176 = arith.constant 9.99999974E-6 : f32
    %390 = vector.broadcast %cst_176 : f32 to vector<1x16xf32>
    %391 = arith.addf %387, %390 : vector<1x16xf32>
    %392 = math.rsqrt %391 : vector<1x16xf32>
    %393 = arith.mulf %388, %392 : vector<1x16xf32>
    %394 = arith.mulf %383, %393 : vector<1x16xf32>
    %395 = arith.subf %389, %394 : vector<1x16xf32>
    %cst_177 = arith.constant dense<0.000000e+00> : vector<1x128xf32>
    %396 = tpu.matmul %393, %375, %cst_177 {dimension_numbers = #tpu.dot_dimension_numbers<[1], [0], [0], [1], [0, 0, 1, 1], [], []>} : vector<1x16xf32>, vector<16x128xf32>, vector<1x128xf32> -> vector<1x128xf32>
    %cst_178 = arith.constant dense<0.000000e+00> : vector<1x128xf32>
    %397 = tpu.matmul %395, %375, %cst_178 {dimension_numbers = #tpu.dot_dimension_numbers<[1], [0], [0], [1], [0, 0, 1, 1], [], []>} : vector<1x16xf32>, vector<16x128xf32>, vector<1x128xf32> -> vector<1x128xf32>
    %398 = vector.broadcast %396 : vector<1x128xf32> to vector<18x128xf32>
    %399 = arith.mulf %343, %398 : vector<18x128xf32>
    %400 = vector.broadcast %397 : vector<1x128xf32> to vector<18x128xf32>
    %401 = arith.addf %399, %400 : vector<18x128xf32>
    %cst_179 = arith.constant 0.000000e+00 : f32
    %402 = vector.broadcast %cst_179 : f32 to vector<18x128xf32>
    %403 = arith.maximumf %401, %402 : vector<18x128xf32>
    %404 = tpu.iota {dimensions = array<i32: 0>} : vector<128x16xi32>
    %405 = tpu.iota {dimensions = array<i32: 1>} : vector<128x16xi32>
    %c15_i32_180 = arith.constant 15 : i32
    %406 = vector.broadcast %c15_i32_180 : i32 to vector<128x16xi32>
    %407 = arith.andi %404, %406 : vector<128x16xi32>
    %408 = arith.cmpi eq, %407, %405 : vector<128x16xi32>
    %c96_i32 = arith.constant 96 : i32
    %409 = vector.broadcast %c96_i32 : i32 to vector<128x16xi32>
    %410 = arith.cmpi slt, %404, %409 : vector<128x16xi32>
    %411 = arith.andi %408, %410 : vector<128x16xi1>
    %412 = arith.extui %411 : vector<128x16xi1> to vector<128x16xi32>
    %413 = arith.sitofp %412 : vector<128x16xi32> to vector<128x16xf32>
    %cst_181 = arith.constant 0.027777778 : f32
    %414 = vector.broadcast %cst_181 : f32 to vector<128x16xf32>
    %415 = arith.mulf %413, %414 : vector<128x16xf32>
    %c0_182 = arith.constant 0 : index
    %c0_183 = arith.constant 0 : index
    %416 = vector.load %arg22[%c0_182, %c0_183] : memref<2x18xf32, #tpu.memory_space<vmem>>, vector<2x18xf32>
    %cst_184 = arith.constant dense<0.000000e+00> : vector<2x128xf32>
    %417 = tpu.matmul %416, %403, %cst_184 {dimension_numbers = #tpu.dot_dimension_numbers<[1], [0], [0], [1], [0, 0, 1, 1], [], []>} : vector<2x18xf32>, vector<18x128xf32>, vector<2x128xf32> -> vector<2x128xf32>
    %cst_185 = arith.constant dense<0.000000e+00> : vector<2x16xf32>
    %418 = tpu.matmul %417, %415, %cst_185 {dimension_numbers = #tpu.dot_dimension_numbers<[1], [0], [0], [1], [0, 0, 1, 1], [], []>} : vector<2x128xf32>, vector<128x16xf32>, vector<2x16xf32> -> vector<2x16xf32>
    %c0_186 = arith.constant 0 : index
    %c0_187 = arith.constant 0 : index
    %419 = vector.load %arg23[%c0_186, %c0_187] : memref<16x10xf32, #tpu.memory_space<vmem>>, vector<16x10xf32>
    %cst_188 = arith.constant dense<0.000000e+00> : vector<2x10xf32>
    %420 = tpu.matmul %418, %419, %cst_188 {dimension_numbers = #tpu.dot_dimension_numbers<[1], [0], [0], [1], [0, 0, 1, 1], [], []>} : vector<2x16xf32>, vector<16x10xf32>, vector<2x10xf32> -> vector<2x10xf32>
    %c0_189 = arith.constant 0 : index
    %c0_190 = arith.constant 0 : index
    %421 = vector.load %arg24[%c0_189, %c0_190] : memref<1x10xf32, #tpu.memory_space<vmem>>, vector<1x10xf32>
    %422 = vector.broadcast %421 : vector<1x10xf32> to vector<2x10xf32>
    %423 = arith.addf %420, %422 : vector<2x10xf32>
    %cst_191 = arith.constant dense<0xFF800000> : vector<2xf32>
    %424 = vector.multi_reduction <maximumf>, %423, %cst_191 [1] : vector<2x10xf32> to vector<2xf32>
    %425 = vector.shape_cast %424 : vector<2xf32> to vector<2x1xf32>
    %426 = vector.broadcast %425 : vector<2x1xf32> to vector<2x10xf32>
    %427 = arith.subf %423, %426 : vector<2x10xf32>
    %428 = math.exp %427 : vector<2x10xf32>
    %cst_192 = arith.constant dense<0.000000e+00> : vector<2xf32>
    %429 = vector.multi_reduction <add>, %428, %cst_192 [1] : vector<2x10xf32> to vector<2xf32>
    %430 = vector.shape_cast %429 : vector<2xf32> to vector<2x1xf32>
    %431 = math.log %430 : vector<2x1xf32>
    %432 = vector.broadcast %431 : vector<2x1xf32> to vector<2x10xf32>
    %433 = arith.subf %427, %432 : vector<2x10xf32>
    %c0_193 = arith.constant 0 : index
    %c0_194 = arith.constant 0 : index
    %434 = vector.load %arg25[%c0_193, %c0_194] : memref<2x10xf32, #tpu.memory_space<vmem>>, vector<2x10xf32>
    tpu.vector_store %arg25[%c0_193, %c0_194], %433 {strides = array<i32>} : memref<2x10xf32, #tpu.memory_space<vmem>>, vector<2x10xf32>,
    return
  }
}

</mosaic_0001>

<llo_original>
// kernel: model3_forward.1
$region0: #{model3_forward.1}
  #allocation0 [shape = 'u32[]', space=smem, size = 0x4, offset = 0x4, fixed_abs, tag = 'smem constant byte address 0x4 - core index']
  #allocation1 [shape = 'u32[144,128]{1,0:T(1,128)}', space=vmem, size = 0x12000, scoped, tag = 'internal scratch']
  %s0 = inlined_call_operand.vmem [shape: f32[56,28], index: 0, kind: input, shape index: {}]
  %s1 = inlined_call_operand.vmem [shape: f32[3,28,208], index: 1, kind: input, shape index: {}]
  %s2 = inlined_call_operand.vmem [shape: f32[1,208], index: 2, kind: input, shape index: {}]
  %s3 = inlined_call_operand.vmem [shape: f32[2,8], index: 3, kind: input, shape index: {}]
  %s4 = inlined_call_operand.vmem [shape: f32[3,208,384], index: 4, kind: input, shape index: {}]
  %s5 = inlined_call_operand.vmem [shape: f32[1,384], index: 5, kind: input, shape index: {}]
  %s6 = inlined_call_operand.vmem [shape: f32[2,16], index: 6, kind: input, shape index: {}]
  %s7 = inlined_call_operand.vmem [shape: f32[384,120], index: 7, kind: input, shape index: {}]
  %s8 = inlined_call_operand.vmem [shape: f32[384,120], index: 8, kind: input, shape index: {}]
  %s9 = inlined_call_operand.vmem [shape: f32[1,120], index: 9, kind: input, shape index: {}]
  %s10 = inlined_call_operand.vmem [shape: f32[26,52], index: 10, kind: input, shape index: {}]
  %s11 = inlined_call_operand.vmem [shape: f32[26,52], index: 11, kind: input, shape index: {}]
  %s12 = inlined_call_operand.vmem [shape: f32[3,120,160], index: 12, kind: input, shape index: {}]
  %s13 = inlined_call_operand.vmem [shape: f32[1,160], index: 13, kind: input, shape index: {}]
  %s14 = inlined_call_operand.vmem [shape: f32[2,16], index: 14, kind: input, shape index: {}]
  %s15 = inlined_call_operand.vmem [shape: f32[3,160,128], index: 15, kind: input, shape index: {}]
  %s16 = inlined_call_operand.hbm [shape: f32[1,128], index: 16, kind: input, shape index: {}]
  %s17 = inlined_call_operand.vmem [shape: f32[2,16], index: 17, kind: input, shape index: {}]
  %s18 = inlined_call_operand.vmem [shape: f32[20,22], index: 18, kind: input, shape index: {}]
  %s19 = inlined_call_operand.hbm [shape: f32[3,128,128], index: 19, kind: input, shape index: {}]
  %s20 = inlined_call_operand.hbm [shape: f32[1,128], index: 20, kind: input, shape index: {}]
  %s21 = inlined_call_operand.hbm [shape: f32[2,16], index: 21, kind: input, shape index: {}]
  %s22 = inlined_call_operand.hbm [shape: f32[2,18], index: 22, kind: input, shape index: {}]
  %s23 = inlined_call_operand.vmem [shape: f32[16,10], index: 23, kind: input, shape index: {}]
  %s24 = inlined_call_operand.hbm [shape: f32[1,10], index: 24, kind: input, shape index: {}]
  %s25 = inlined_call_operand.hbm [shape: f32[2,10], index: 25, kind: output, shape index: {}]
  %s26 = sld [smem:[#allocation0]]
  $region134: #{model3_forward.1} parent=0
    _
  %s28 = ssub.s32 1, %s26
  %s29 = scalar_select 0, %s28, %s26
  $region1: #{model3_forward.1} parent=0
    #allocation2 [shape = 'u8[512]{0}', space=vmem, size = 0x400, scoped, tag = 'input window, operand 16, single buffered']
    #allocation3 [shape = 's32[1]{0}', space=sflag, size = 0x4, scoped, tag = 'scoped memory for model3_forward.1']
    #allocation4 [shape = 's32[1]{0}', space=sflag, size = 0x4, scoped, tag = 'scoped memory for model3_forward.1']
    #allocation5 [shape = 'u8[196608]{0}', space=vmem, size = 0x30000, scoped, tag = 'input window, operand 19, single buffered']
    #allocation6 [shape = 's32[1]{0}', space=sflag, size = 0x4, scoped, tag = 'scoped memory for model3_forward.1']
    #allocation7 [shape = 'u8[512]{0}', space=vmem, size = 0x400, scoped, tag = 'input window, operand 20, single buffered']
    #allocation8 [shape = 'u8[1024]{0}', space=vmem, size = 0x400, scoped, tag = 'input window, operand 21, single buffered']
    #allocation9 [shape = 's32[1]{0}', space=sflag, size = 0x4, scoped, tag = 'scoped memory for model3_forward.1']
    #allocation10 [shape = 'u8[1024]{0}', space=vmem, size = 0x400, scoped, tag = 'input window, operand 22, single buffered']
    #allocation11 [shape = 'u8[512]{0}', space=vmem, size = 0x400, scoped, tag = 'input window, operand 24, single buffered']
    #allocation12 [shape = 's32[1]{0}', space=sflag, size = 0x4, scoped, tag = 'scoped memory for model3_forward.1']
    #allocation13 [shape = 'u8[1024]{0}', space=vmem, size = 0x400, scoped, tag = 'output window, operand 0, single buffered']
    %30 = vsyncpa [#allocation3], 0
    %31 = vsyncpa [#allocation6], 0
    %32 = vsyncpa [#allocation9], 0
    %33 = vsyncpa [#allocation12], 0
    %34 = vsyncpa [#allocation4], 0
    // Predicated region
    $region2: #{model3_forward.1} parent=1 // pred_check
      _
    $region3: #{model3_forward.1} parent=1 // pred_check_branch
      %36 = sbr.rel (0) target = $region5
    $region4: #{model3_forward.1} parent=1 // pred_region
      _
    $region5: #{model3_forward.1} parent=1 // pred_fallthru
      _
    // Predicated region
    $region6: #{model3_forward.1} parent=1 // pred_check
      _
    $region7: #{model3_forward.1} parent=1 // pred_check_branch
      %38 = sbr.rel (0) target = $region9
    $region8: #{model3_forward.1} parent=1 // pred_region
      _
    $region9: #{model3_forward.1} parent=1 // pred_fallthru
      _
    // Predicated region
    $region10: #{model3_forward.1} parent=1 // pred_check
      _
    $region11: #{model3_forward.1} parent=1 // pred_check_branch
      %40 = sbr.rel (0) target = $region13
    $region12: #{model3_forward.1} parent=1 // pred_region
      _
    $region13: #{model3_forward.1} parent=1 // pred_fallthru
      _
    // Predicated region
    $region14: #{model3_forward.1} parent=1 // pred_check
      _
    $region15: #{model3_forward.1} parent=1 // pred_check_branch
      %42 = sbr.rel (0) target = $region17
    $region16: #{model3_forward.1} parent=1 // pred_region
      _
    $region17: #{model3_forward.1} parent=1 // pred_fallthru
      _
    // Predicated region
    $region18: #{model3_forward.1} parent=1 // pred_check
      _
    $region19: #{model3_forward.1} parent=1 // pred_check_branch
      %44 = sbr.rel (0) target = $region21
    $region20: #{model3_forward.1} parent=1 // pred_region
      _
    $region21: #{model3_forward.1} parent=1 // pred_fallthru
      _
    // Predicated region
    $region22: #{model3_forward.1} parent=1 // pred_check
      _
    $region23: #{model3_forward.1} parent=1 // pred_check_branch
      %46 = sbr.rel (0) target = $region25
    $region24: #{model3_forward.1} parent=1 // pred_region
      _
    $region25: #{model3_forward.1} parent=1 // pred_fallthru
      _
    // Predicated region
    $region26: #{model3_forward.1} parent=1 // pred_check
      _
    $region27: #{model3_forward.1} parent=1 // pred_check_branch
      %48 = sbr.rel (0) target = $region29
    $region28: #{model3_forward.1} parent=1 // pred_region
      _
    $region29: #{model3_forward.1} parent=1 // pred_fallthru
      _
    // Predicated region
    $region30: #{model3_forward.1} parent=1 // pred_check
      _
    $region31: #{model3_forward.1} parent=1 // pred_check_branch
      %50 = sbr.rel (0) target = $region33
    $region32: #{model3_forward.1} parent=1 // pred_region
      _
    $region33: #{model3_forward.1} parent=1 // pred_fallthru
      _
    // Predicated region
    $region34: #{model3_forward.1} parent=1 // pred_check
      _
    $region35: #{model3_forward.1} parent=1 // pred_check_branch
      %52 = sbr.rel (0) target = $region37
    $region36: #{model3_forward.1} parent=1 // pred_region
      _
    $region37: #{model3_forward.1} parent=1 // pred_fallthru
      _
    // Predicated region
    $region38: #{model3_forward.1} parent=1 // pred_check
      _
    $region39: #{model3_forward.1} parent=1 // pred_check_branch
      %54 = sbr.rel (0) target = $region41
    $region40: #{model3_forward.1} parent=1 // pred_region
      _
    $region41: #{model3_forward.1} parent=1 // pred_fallthru
      _
    // Predicated region
    $region42: #{model3_forward.1} parent=1 // pred_check
      _
    $region43: #{model3_forward.1} parent=1 // pred_check_branch
      %56 = sbr.rel (0) target = $region45
    $region44: #{model3_forward.1} parent=1 // pred_region
      _
    $region45: #{model3_forward.1} parent=1 // pred_fallthru
      _
    // Predicated region
    $region46: #{model3_forward.1} parent=1 // pred_check
      _
    $region47: #{model3_forward.1} parent=1 // pred_check_branch
      %58 = sbr.rel (0) target = $region49
    $region48: #{model3_forward.1} parent=1 // pred_region
      _
    $region49: #{model3_forward.1} parent=1 // pred_fallthru
      _
    // Predicated region
    $region50: #{model3_forward.1} parent=1 // pred_check
      _
    $region51: #{model3_forward.1} parent=1 // pred_check_branch
      %60 = sbr.rel (0) target = $region53
    $region52: #{model3_forward.1} parent=1 // pred_region
      _
    $region53: #{model3_forward.1} parent=1 // pred_fallthru
      _
    // Predicated region
    $region54: #{model3_forward.1} parent=1 // pred_check
      _
    $region55: #{model3_forward.1} parent=1 // pred_check_branch
      %62 = sbr.rel (0) target = $region57
    $region56: #{model3_forward.1} parent=1 // pred_region
      _
    $region57: #{model3_forward.1} parent=1 // pred_fallthru
      _
    // Predicated region
    $region58: #{model3_forward.1} parent=1 // pred_check
      _
    $region59: #{model3_forward.1} parent=1 // pred_check_branch
      %64 = sbr.rel (0) target = $region61
    $region60: #{model3_forward.1} parent=1 // pred_region
      _
    $region61: #{model3_forward.1} parent=1 // pred_fallthru
      _
    // Predicated region
    $region62: #{model3_forward.1} parent=1 // pred_check
      _
    $region63: #{model3_forward.1} parent=1 // pred_check_branch
      %66 = sbr.rel (0) target = $region65
    $region64: #{model3_forward.1} parent=1 // pred_region
      _
    $region65: #{model3_forward.1} parent=1 // pred_fallthru
      _
    // Predicated region
    $region66: #{model3_forward.1} parent=1 // pred_check
      _
    $region67: #{model3_forward.1} parent=1 // pred_check_branch
      %68 = sbr.rel (0) target = $region69
    $region68: #{model3_forward.1} parent=1 // pred_region
      %s70 = ssub.s32 16, 16
      %71 = vsyncadd [#allocation3], %s70
      %s73 = sshll.u32 [#allocation2], 4
      %s74 = int_to_ptr.vmem [resolvable:$true] %s73
      %76 = dma.hbm_to_vmem [thread:$0]  %s16, 16, %s74, [#allocation3]
    $region69: #{model3_forward.1} parent=1 // pred_fallthru
      _
    // Predicated region
    $region70: #{model3_forward.1} parent=1 // pred_check
      _
    $region71: #{model3_forward.1} parent=1 // pred_check_branch
      %78 = sbr.rel (0) target = $region73
    $region72: #{model3_forward.1} parent=1 // pred_region
      _
    $region73: #{model3_forward.1} parent=1 // pred_fallthru
      _
    // Predicated region
    $region74: #{model3_forward.1} parent=1 // pred_check
      _
    $region75: #{model3_forward.1} parent=1 // pred_check_branch
      %80 = sbr.rel (0) target = $region77
    $region76: #{model3_forward.1} parent=1 // pred_region
      _
    $region77: #{model3_forward.1} parent=1 // pred_fallthru
      _
    // Predicated region
    $region78: #{model3_forward.1} parent=1 // pred_check
      _
    $region79: #{model3_forward.1} parent=1 // pred_check_branch
      %82 = sbr.rel (0) target = $region81
    $region80: #{model3_forward.1} parent=1 // pred_region
      %s84 = ssub.s32 6144, 6144
      %85 = vsyncadd [#allocation6], %s84
      %s86 = sshll.u32 [#allocation5], 4
      %s87 = int_to_ptr.vmem [resolvable:$true] %s86
      %92 = dma.hbm_to_vmem [thread:$0]  %s19, 6144, %s87, [#allocation6], 128, 128, 8
    $region81: #{model3_forward.1} parent=1 // pred_fallthru
      _
    // Predicated region
    $region82: #{model3_forward.1} parent=1 // pred_check
      _
    $region83: #{model3_forward.1} parent=1 // pred_check_branch
      %94 = sbr.rel (0) target = $region85
    $region84: #{model3_forward.1} parent=1 // pred_region
      %s96 = ssub.s32 16, 16
      %97 = vsyncadd [#allocation6], %s96
      %s99 = sshll.u32 [#allocation7], 4
      %s100 = int_to_ptr.vmem [resolvable:$true] %s99
      %102 = dma.hbm_to_vmem [thread:$0]  %s20, 16, %s100, [#allocation6]
    $region85: #{model3_forward.1} parent=1 // pred_fallthru
      _
    // Predicated region
    $region86: #{model3_forward.1} parent=1 // pred_check
      _
    $region87: #{model3_forward.1} parent=1 // pred_check_branch
      %104 = sbr.rel (0) target = $region89
    $region88: #{model3_forward.1} parent=1 // pred_region
      %s106 = ssub.s32 32, 32
      %107 = vsyncadd [#allocation9], %s106
      %s109 = sshll.u32 [#allocation8], 4
      %s110 = int_to_ptr.vmem [resolvable:$true] %s109
      %112 = dma.hbm_to_vmem [thread:$0]  %s21, 32, %s110, [#allocation9]
    $region89: #{model3_forward.1} parent=1 // pred_fallthru
      _
    // Predicated region
    $region90: #{model3_forward.1} parent=1 // pred_check
      _
    $region91: #{model3_forward.1} parent=1 // pred_check_branch
      %114 = sbr.rel (0) target = $region93
    $region92: #{model3_forward.1} parent=1 // pred_region
      %s116 = ssub.s32 32, 32
      %117 = vsyncadd [#allocation9], %s116
      %s119 = sshll.u32 [#allocation10], 4
      %s120 = int_to_ptr.vmem [resolvable:$true] %s119
      %122 = dma.hbm_to_vmem [thread:$0]  %s22, 32, %s120, [#allocation9]
    $region93: #{model3_forward.1} parent=1 // pred_fallthru
      _
    // Predicated region
    $region94: #{model3_forward.1} parent=1 // pred_check
      _
    $region95: #{model3_forward.1} parent=1 // pred_check_branch
      %124 = sbr.rel (0) target = $region97
    $region96: #{model3_forward.1} parent=1 // pred_region
      _
    $region97: #{model3_forward.1} parent=1 // pred_fallthru
      _
    // Predicated region
    $region98: #{model3_forward.1} parent=1 // pred_check
      _
    $region99: #{model3_forward.1} parent=1 // pred_check_branch
      %126 = sbr.rel (0) target = $region101
    $region100: #{model3_forward.1} parent=1 // pred_region
      %s128 = ssub.s32 16, 16
      %129 = vsyncadd [#allocation12], %s128
      %s131 = sshll.u32 [#allocation11], 4
      %s132 = int_to_ptr.vmem [resolvable:$true] %s131
      %134 = dma.hbm_to_vmem [thread:$0]  %s24, 16, %s132, [#allocation12]
    $region101: #{model3_forward.1} parent=1 // pred_fallthru
      _
    // Predicated region
    $region102: #{model3_forward.1} parent=1 // pred_check
      _
    $region103: #{model3_forward.1} parent=1 // pred_check_branch
      %136 = sbr.rel (0) target = $region105
    $region104: #{model3_forward.1} parent=1 // pred_region
      %137 = dma.done [#allocation3], 16
    $region105: #{model3_forward.1} parent=1 // pred_fallthru
      _
    // Predicated region
    $region106: #{model3_forward.1} parent=1 // pred_check
      _
    $region107: #{model3_forward.1} parent=1 // pred_check_branch
      %139 = sbr.rel (0) target = $region109
    $region108: #{model3_forward.1} parent=1 // pred_region
      %140 = dma.done [#allocation6], 6144
    $region109: #{model3_forward.1} parent=1 // pred_fallthru
      _
    // Predicated region
    $region110: #{model3_forward.1} parent=1 // pred_check
      _
    $region111: #{model3_forward.1} parent=1 // pred_check_branch
      %142 = sbr.rel (0) target = $region113
    $region112: #{model3_forward.1} parent=1 // pred_region
      %143 = dma.done [#allocation6], 16
    $region113: #{model3_forward.1} parent=1 // pred_fallthru
      _
    // Predicated region
    $region114: #{model3_forward.1} parent=1 // pred_check
      _
    $region115: #{model3_forward.1} parent=1 // pred_check_branch
      %145 = sbr.rel (0) target = $region117
    $region116: #{model3_forward.1} parent=1 // pred_region
      %146 = dma.done [#allocation9], 32
    $region117: #{model3_forward.1} parent=1 // pred_fallthru
      _
    // Predicated region
    $region118: #{model3_forward.1} parent=1 // pred_check
      _
    $region119: #{model3_forward.1} parent=1 // pred_check_branch
      %148 = sbr.rel (0) target = $region121
    $region120: #{model3_forward.1} parent=1 // pred_region
      %149 = dma.done [#allocation9], 32
    $region121: #{model3_forward.1} parent=1 // pred_fallthru
      _
    // Predicated region
    $region122: #{model3_forward.1} parent=1 // pred_check
      _
    $region123: #{model3_forward.1} parent=1 // pred_check_branch
      %151 = sbr.rel (0) target = $region125
    $region124: #{model3_forward.1} parent=1 // pred_region
      %152 = dma.done [#allocation12], 16
    $region125: #{model3_forward.1} parent=1 // pred_fallthru
      _
    %v153 = vld [vmem:[%s0] sm:$0xff]
    %v154 = vld [vmem:[%s0 + $0x8] sm:$0xff]
    %v155 = vld [vmem:[%s0 + $0x10] sm:$0xff]
    %v156 = vld [vmem:[%s0 + $0x18] sm:$0xff]
    %v157 = vld [vmem:[%s0 + $0x20] sm:$0xff]
    %v158 = vld [vmem:[%s0 + $0x28] sm:$0xff]
    %v159 = vld [vmem:[%s0 + $0x30] sm:$0xff]
    %v160 = vld [vmem:[%s1] sm:$0xff]
    %v161 = vld [vmem:[%s1 + $0x8] sm:$0xff]
    %v162 = vld [vmem:[%s1 + $0x10] sm:$0xff]
    %v163 = vld [vmem:[%s1 + $0x18] sm:$0xff]
    %v164 = vld [vmem:[%s1 + $0x20] sm:$0xff]
    %v165 = vld [vmem:[%s1 + $0x28] sm:$0xff]
    %v166 = vld [vmem:[%s1 + $0x30] sm:$0xf]
    %v167 = vld [vmem:[%s1 + $0x38] sm:$0xf]
    %s168 = scalar_lea.vmem %s1, 64
    %v169 = vld [vmem:[%s168] sm:$0xff]
    %v170 = vld [vmem:[%s168 + $0x8] sm:$0xff]
    %v171 = vld [vmem:[%s168 + $0x10] sm:$0xff]
    %v172 = vld [vmem:[%s168 + $0x18] sm:$0xff]
    %v173 = vld [vmem:[%s168 + $0x20] sm:$0xff]
    %v174 = vld [vmem:[%s168 + $0x28] sm:$0xff]
    %v175 = vld [vmem:[%s168 + $0x30] sm:$0xf]
    %v176 = vld [vmem:[%s168 + $0x38] sm:$0xf]
    %vm184 = vcmask 1046528
    %v185 = vrot.slane %v153, 1
    %v186 = vrot.slane %v154, 1
    %v187 = vsel %vm184, %v185, %v186
    %v188 = vrot.slane %v155, 1
    %v189 = vsel %vm184, %v186, %v188
    %v190 = vrot.slane %v156, 1
    %v191 = vsel %vm184, %v188, %v190
    %v192 = vrot.slane %v157, 1
    %v193 = vsel %vm184, %v190, %v192
    %v194 = vrot.slane %v158, 1
    %v195 = vsel %vm184, %v192, %v194
    %v196 = vrot.slane %v159, 1
    %v197 = vsel %vm184, %v194, %v196
    %vm198 = vcmask 228352
    %v199 = vsel %vm198, %v187, 0
    %v201 = vsel %vm198, %v189, 0
    %v203 = vsel %vm198, %v191, 0
    %v205 = vsel %vm198, %v193, 0
    %v207 = vsel %vm198, %v195, 0
    %v209 = vsel %vm198, %v197, 0
    %v211 = vsel %vm198, %v196, 0
    %vm213 = vcmask 1043456
    %v215 = vsel %vm213, %v175, 0
    %v218 = vsel %vm213, %v176, 0
    %220 = vmatprep.subr.mxu0 0.0
    %221 = vmatpush1.msra.mxu0 0.0
    %222 = vmatprep.subr.mxu0 0.0
    %223 = vmatpush1.msra.mxu0 0.0
    %224 = vmatprep.subr.mxu0 0.0
    %225 = vmatpush1.msra.mxu0 0.0
    %226 = vmatprep.subr.mxu0 0.0
    %227 = vmatpush1.msra.mxu0 0.0
    %228 = vmatprep.subr.mxu0 0.0
    %229 = vmatpush1.msra.mxu0 0.0
    %230 = vmatprep.subr.mxu0 0.0
    %231 = vmatpush1.msra.mxu0 0.0
    %232 = vmatprep.subr.mxu0 0.0
    %233 = vmatpush1.msra.mxu0 0.0
    %234 = vmatprep.subr.mxu0 0.0
    %235 = vmatpush1.msra.mxu0 0.0
    %236 = vmatprep.subr.mxu0 0.0
    %237 = vmatpush1.msra.mxu0 0.0
    %238 = vmatprep.subr.mxu0 0.0
    %239 = vmatpush1.msra.mxu0 0.0
    %240 = vmatprep.subr.mxu0 0.0
    %241 = vmatpush1.msra.mxu0 0.0
    %242 = vmatprep.subr.mxu0 0.0
    %243 = vmatpush1.msra.mxu0 0.0
    %244 = vmatprep.subr.mxu0 %v218
    %245 = vmatpush1.msra.mxu0 %v215
    %246 = vmatprep.subr.mxu0 %v174
    %247 = vmatpush1.msra.mxu0 %v173
    %248 = vmatprep.subr.mxu0 %v172
    %249 = vmatpush1.msra.mxu0 %v171
    %250 = vmatprep.subr.mxu0 %v170
    %251 = vmatpush1.msra.mxu0 %v169
    %252 = vmatprep.subr.mxu0 0.0
    %253 = vmatpush2.msra.mxu0 0.0
    %254 = vmatprep.subr.mxu0 0.0
    %255 = vmatpush2.msra.mxu0 0.0
    %256 = vmatprep.subr.mxu0 0.0
    %257 = vmatpush2.msra.mxu0 0.0
    %258 = vmatprep.subr.mxu0 0.0
    %259 = vmatpush2.msra.mxu0 0.0
    %260 = vmatprep.subr.mxu0 0.0
    %261 = vmatpush2.msra.mxu0 0.0
    %262 = vmatprep.subr.mxu0 0.0
    %263 = vmatpush2.msra.mxu0 0.0
    %264 = vmatprep.subr.mxu0 0.0
    %265 = vmatpush2.msra.mxu0 0.0
    %266 = vmatprep.subr.mxu0 0.0
    %267 = vmatpush2.msra.mxu0 0.0
    %268 = vmatprep.subr.mxu0 0.0
    %269 = vmatpush2.msra.mxu0 0.0
    %270 = vmatprep.subr.mxu0 0.0
    %271 = vmatpush2.msra.mxu0 0.0
    %272 = vmatprep.subr.mxu0 0.0
    %273 = vmatpush2.msra.mxu0 0.0
    %274 = vmatprep.subr.mxu0 0.0
    %275 = vmatpush2.msra.mxu0 0.0
    %276 = vmatprep.subr.mxu0 0.0
    %277 = vmatpush2.msra.mxu0 0.0
    %278 = vmatprep.subr.mxu0 0.0
    %279 = vmatpush2.msra.mxu0 0.0
    %280 = vmatprep.subr.mxu0 0.0
    %281 = vmatpush2.msra.mxu0 0.0
    %282 = vmatprep.subr.mxu0 0.0
    %283 = vmatpush2.msra.mxu0 0.0
    %284 = vmatprep.mubr.f32.mxu0 0.0
    %285 = vmatmul.mubr.f32.gmra.mxu0 %v199
    %v286 = vpop.f32.mrf.mxu0
    %v287 = vadd.f32 0.0, %v286
    %v288 = vpop.f32.mrf.mxu0
    %v289 = vadd.f32 0.0, %v288
    %290 = vmatprep.mubr.f32.mxu0 0.0
    %291 = vmatmul.mubr.f32.gmra.mxu0 %v201
    %v292 = vpop.f32.mrf.mxu0
    %v293 = vadd.f32 0.0, %v292
    %v294 = vpop.f32.mrf.mxu0
    %v295 = vadd.f32 0.0, %v294
    %296 = vmatprep.mubr.f32.mxu0 0.0
    %297 = vmatmul.mubr.f32.gmra.mxu0 %v203
    %v298 = vpop.f32.mrf.mxu0
    %v299 = vadd.f32 0.0, %v298
    %v300 = vpop.f32.mrf.mxu0
    %v301 = vadd.f32 0.0, %v300
    %302 = vmatprep.mubr.f32.mxu0 0.0
    %303 = vmatmul.mubr.f32.gmra.mxu0 %v205
    %v304 = vpop.f32.mrf.mxu0
    %v305 = vadd.f32 0.0, %v304
    %v306 = vpop.f32.mrf.mxu0
    %v307 = vadd.f32 0.0, %v306
    %308 = vmatprep.mubr.f32.mxu0 0.0
    %309 = vmatmul.mubr.f32.gmra.mxu0 %v207
    %v310 = vpop.f32.mrf.mxu0
    %v311 = vadd.f32 0.0, %v310
    %v312 = vpop.f32.mrf.mxu0
    %v313 = vadd.f32 0.0, %v312
    %314 = vmatprep.mubr.f32.mxu0 0.0
    %315 = vmatmul.mubr.f32.gmra.mxu0 %v209
    %v316 = vpop.f32.mrf.mxu0
    %v317 = vadd.f32 0.0, %v316
    %v318 = vpop.f32.mrf.mxu0
    %v319 = vadd.f32 0.0, %v318
    %320 = vmatprep.mubr.f32.mxu0 0.0
    %321 = vmatmul.mubr.f32.gmra.mxu0 %v211
    %v322 = vpop.f32.mrf.mxu0
    %v323 = vadd.f32 0.0, %v322
    %v324 = vpop.f32.mrf.mxu0
    %v325 = vadd.f32 0.0, %v324
    %326 = vdwg.mxu0
    %v327 = vsel %vm198, %v153, 0
    %v329 = vsel %vm198, %v154, 0
    %v331 = vsel %vm198, %v155, 0
    %v333 = vsel %vm198, %v156, 0
    %v335 = vsel %vm198, %v157, 0
    %v337 = vsel %vm198, %v158, 0
    %v339 = vsel %vm198, %v159, 0
    %v342 = vsel %vm213, %v166, 0
    %v345 = vsel %vm213, %v167, 0
    %347 = vmatprep.subr.mxu0 0.0
    %348 = vmatpush1.msra.mxu0 0.0
    %349 = vmatprep.subr.mxu0 0.0
    %350 = vmatpush1.msra.mxu0 0.0
    %351 = vmatprep.subr.mxu0 0.0
    %352 = vmatpush1.msra.mxu0 0.0
    %353 = vmatprep.subr.mxu0 0.0
    %354 = vmatpush1.msra.mxu0 0.0
    %355 = vmatprep.subr.mxu0 0.0
    %356 = vmatpush1.msra.mxu0 0.0
    %357 = vmatprep.subr.mxu0 0.0
    %358 = vmatpush1.msra.mxu0 0.0
    %359 = vmatprep.subr.mxu0 0.0
    %360 = vmatpush1.msra.mxu0 0.0
    %361 = vmatprep.subr.mxu0 0.0
    %362 = vmatpush1.msra.mxu0 0.0
    %363 = vmatprep.subr.mxu0 0.0
    %364 = vmatpush1.msra.mxu0 0.0
    %365 = vmatprep.subr.mxu0 0.0
    %366 = vmatpush1.msra.mxu0 0.0
    %367 = vmatprep.subr.mxu0 0.0
    %368 = vmatpush1.msra.mxu0 0.0
    %369 = vmatprep.subr.mxu0 0.0
    %370 = vmatpush1.msra.mxu0 0.0
    %371 = vmatprep.subr.mxu0 %v345
    %372 = vmatpush1.msra.mxu0 %v342
    %373 = vmatprep.subr.mxu0 %v165
    %374 = vmatpush1.msra.mxu0 %v164
    %375 = vmatprep.subr.mxu0 %v163
    %376 = vmatpush1.msra.mxu0 %v162
    %377 = vmatprep.subr.mxu0 %v161
    %378 = vmatpush1.msra.mxu0 %v160
    %379 = vmatprep.subr.mxu0 0.0
    %380 = vmatpush2.msra.mxu0 0.0
    %381 = vmatprep.subr.mxu0 0.0
    %382 = vmatpush2.msra.mxu0 0.0
    %383 = vmatprep.subr.mxu0 0.0
    %384 = vmatpush2.msra.mxu0 0.0
    %385 = vmatprep.subr.mxu0 0.0
    %386 = vmatpush2.msra.mxu0 0.0
    %387 = vmatprep.subr.mxu0 0.0
    %388 = vmatpush2.msra.mxu0 0.0
    %389 = vmatprep.subr.mxu0 0.0
    %390 = vmatpush2.msra.mxu0 0.0
    %391 = vmatprep.subr.mxu0 0.0
    %392 = vmatpush2.msra.mxu0 0.0
    %393 = vmatprep.subr.mxu0 0.0
    %394 = vmatpush2.msra.mxu0 0.0
    %395 = vmatprep.subr.mxu0 0.0
    %396 = vmatpush2.msra.mxu0 0.0
    %397 = vmatprep.subr.mxu0 0.0
    %398 = vmatpush2.msra.mxu0 0.0
    %399 = vmatprep.subr.mxu0 0.0
    %400 = vmatpush2.msra.mxu0 0.0
    %401 = vmatprep.subr.mxu0 0.0
    %402 = vmatpush2.msra.mxu0 0.0
    %403 = vmatprep.subr.mxu0 0.0
    %404 = vmatpush2.msra.mxu0 0.0
    %405 = vmatprep.subr.mxu0 0.0
    %406 = vmatpush2.msra.mxu0 0.0
    %407 = vmatprep.subr.mxu0 0.0
    %408 = vmatpush2.msra.mxu0 0.0
    %409 = vmatprep.subr.mxu0 0.0
    %410 = vmatpush2.msra.mxu0 0.0
    %411 = vmatprep.mubr.f32.mxu0 0.0
    %412 = vmatmul.mubr.f32.gmra.mxu0 %v327
    %v413 = vpop.f32.mrf.mxu0
    %v414 = vadd.f32 %v287, %v413
    %v415 = vpop.f32.mrf.mxu0
    %v416 = vadd.f32 %v289, %v415
    %417 = vmatprep.mubr.f32.mxu0 0.0
    %418 = vmatmul.mubr.f32.gmra.mxu0 %v329
    %v419 = vpop.f32.mrf.mxu0
    %v420 = vadd.f32 %v293, %v419
    %v421 = vpop.f32.mrf.mxu0
    %v422 = vadd.f32 %v295, %v421
    %423 = vmatprep.mubr.f32.mxu0 0.0
    %424 = vmatmul.mubr.f32.gmra.mxu0 %v331
    %v425 = vpop.f32.mrf.mxu0
    %v426 = vadd.f32 %v299, %v425
    %v427 = vpop.f32.mrf.mxu0
    %v428 = vadd.f32 %v301, %v427
    %429 = vmatprep.mubr.f32.mxu0 0.0
    %430 = vmatmul.mubr.f32.gmra.mxu0 %v333
    %v431 = vpop.f32.mrf.mxu0
    %v432 = vadd.f32 %v305, %v431
    %v433 = vpop.f32.mrf.mxu0
    %v434 = vadd.f32 %v307, %v433
    %435 = vmatprep.mubr.f32.mxu0 0.0
    %436 = vmatmul.mubr.f32.gmra.mxu0 %v335
    %v437 = vpop.f32.mrf.mxu0
    %v438 = vadd.f32 %v311, %v437
    %v439 = vpop.f32.mrf.mxu0
    %v440 = vadd.f32 %v313, %v439
    %441 = vmatprep.mubr.f32.mxu0 0.0
    %442 = vmatmul.mubr.f32.gmra.mxu0 %v337
    %v443 = vpop.f32.mrf.mxu0
    %v444 = vadd.f32 %v317, %v443
    %v445 = vpop.f32.mrf.mxu0
    %v446 = vadd.f32 %v319, %v445
    %447 = vmatprep.mubr.f32.mxu0 0.0
    %448 = vmatmul.mubr.f32.gmra.mxu0 %v339
    %v449 = vpop.f32.mrf.mxu0
    %v450 = vadd.f32 %v323, %v449
    %v451 = vpop.f32.mrf.mxu0
    %v452 = vadd.f32 %v325, %v451
    %453 = vdwg.mxu0
    %s454 = scalar_lea.vmem %s1, 128
    %v455 = vld [vmem:[%s454] sm:$0xff]
    %v456 = vld [vmem:[%s454 + $0x8] sm:$0xff]
    %v457 = vld [vmem:[%s454 + $0x10] sm:$0xff]
    %v458 = vld [vmem:[%s454 + $0x18] sm:$0xff]
    %v459 = vld [vmem:[%s454 + $0x20] sm:$0xff]
    %v460 = vld [vmem:[%s454 + $0x28] sm:$0xff]
    %v461 = vld [vmem:[%s454 + $0x30] sm:$0xf]
    %v462 = vld [vmem:[%s454 + $0x38] sm:$0xf]
    %vm463 = vcmask 1045504
    %v464 = vrot.slane %v153, 2
    %v465 = vrot.slane %v154, 2
    %v466 = vsel %vm463, %v464, %v465
    %v467 = vrot.slane %v155, 2
    %v468 = vsel %vm463, %v465, %v467
    %v469 = vrot.slane %v156, 2
    %v470 = vsel %vm463, %v467, %v469
    %v471 = vrot.slane %v157, 2
    %v472 = vsel %vm463, %v469, %v471
    %v473 = vrot.slane %v158, 2
    %v474 = vsel %vm463, %v471, %v473
    %v475 = vrot.slane %v159, 2
    %v476 = vsel %vm463, %v473, %v475
    %v477 = vsel %vm198, %v466, 0
    %v479 = vsel %vm198, %v468, 0
    %v481 = vsel %vm198, %v470, 0
    %v483 = vsel %vm198, %v472, 0
    %v485 = vsel %vm198, %v474, 0
    %v487 = vsel %vm198, %v476, 0
    %v489 = vsel %vm198, %v475, 0
    %v492 = vsel %vm213, %v461, 0
    %v495 = vsel %vm213, %v462, 0
    %497 = vmatprep.subr.mxu0 0.0
    %498 = vmatpush1.msra.mxu0 0.0
    %499 = vmatprep.subr.mxu0 0.0
    %500 = vmatpush1.msra.mxu0 0.0
    %501 = vmatprep.subr.mxu0 0.0
    %502 = vmatpush1.msra.mxu0 0.0
    %503 = vmatprep.subr.mxu0 0.0
    %504 = vmatpush1.msra.mxu0 0.0
    %505 = vmatprep.subr.mxu0 0.0
    %506 = vmatpush1.msra.mxu0 0.0
    %507 = vmatprep.subr.mxu0 0.0
    %508 = vmatpush1.msra.mxu0 0.0
    %509 = vmatprep.subr.mxu0 0.0
    %510 = vmatpush1.msra.mxu0 0.0
    %511 = vmatprep.subr.mxu0 0.0
    %512 = vmatpush1.msra.mxu0 0.0
    %513 = vmatprep.subr.mxu0 0.0
    %514 = vmatpush1.msra.mxu0 0.0
    %515 = vmatprep.subr.mxu0 0.0
    %516 = vmatpush1.msra.mxu0 0.0
    %517 = vmatprep.subr.mxu0 0.0
    %518 = vmatpush1.msra.mxu0 0.0
    %519 = vmatprep.subr.mxu0 0.0
    %520 = vmatpush1.msra.mxu0 0.0
    %521 = vmatprep.subr.mxu0 %v495
    %522 = vmatpush1.msra.mxu0 %v492
    %523 = vmatprep.subr.mxu0 %v460
    %524 = vmatpush1.msra.mxu0 %v459
    %525 = vmatprep.subr.mxu0 %v458
    %526 = vmatpush1.msra.mxu0 %v457
    %527 = vmatprep.subr.mxu0 %v456
    %528 = vmatpush1.msra.mxu0 %v455
    %529 = vmatprep.subr.mxu0 0.0
    %530 = vmatpush2.msra.mxu0 0.0
    %531 = vmatprep.subr.mxu0 0.0
    %532 = vmatpush2.msra.mxu0 0.0
    %533 = vmatprep.subr.mxu0 0.0
    %534 = vmatpush2.msra.mxu0 0.0
    %535 = vmatprep.subr.mxu0 0.0
    %536 = vmatpush2.msra.mxu0 0.0
    %537 = vmatprep.subr.mxu0 0.0
    %538 = vmatpush2.msra.mxu0 0.0
    %539 = vmatprep.subr.mxu0 0.0
    %540 = vmatpush2.msra.mxu0 0.0
    %541 = vmatprep.subr.mxu0 0.0
    %542 = vmatpush2.msra.mxu0 0.0
    %543 = vmatprep.subr.mxu0 0.0
    %544 = vmatpush2.msra.mxu0 0.0
    %545 = vmatprep.subr.mxu0 0.0
    %546 = vmatpush2.msra.mxu0 0.0
    %547 = vmatprep.subr.mxu0 0.0
    %548 = vmatpush2.msra.mxu0 0.0
    %549 = vmatprep.subr.mxu0 0.0
    %550 = vmatpush2.msra.mxu0 0.0
    %551 = vmatprep.subr.mxu0 0.0
    %552 = vmatpush2.msra.mxu0 0.0
    %553 = vmatprep.subr.mxu0 0.0
    %554 = vmatpush2.msra.mxu0 0.0
    %555 = vmatprep.subr.mxu0 0.0
    %556 = vmatpush2.msra.mxu0 0.0
    %557 = vmatprep.subr.mxu0 0.0
    %558 = vmatpush2.msra.mxu0 0.0
    %559 = vmatprep.subr.mxu0 0.0
    %560 = vmatpush2.msra.mxu0 0.0
    %561 = vmatprep.mubr.f32.mxu0 0.0
    %562 = vmatmul.mubr.f32.gmra.mxu0 %v477
    %v563 = vpop.f32.mrf.mxu0
    %v564 = vadd.f32 0.0, %v563
    %v565 = vpop.f32.mrf.mxu0
    %v566 = vadd.f32 0.0, %v565
    %567 = vmatprep.mubr.f32.mxu0 0.0
    %568 = vmatmul.mubr.f32.gmra.mxu0 %v479
    %v569 = vpop.f32.mrf.mxu0
    %v570 = vadd.f32 0.0, %v569
    %v571 = vpop.f32.mrf.mxu0
    %v572 = vadd.f32 0.0, %v571
    %573 = vmatprep.mubr.f32.mxu0 0.0
    %574 = vmatmul.mubr.f32.gmra.mxu0 %v481
    %v575 = vpop.f32.mrf.mxu0
    %v576 = vadd.f32 0.0, %v575
    %v577 = vpop.f32.mrf.mxu0
    %v578 = vadd.f32 0.0, %v577
    %579 = vmatprep.mubr.f32.mxu0 0.0
    %580 = vmatmul.mubr.f32.gmra.mxu0 %v483
    %v581 = vpop.f32.mrf.mxu0
    %v582 = vadd.f32 0.0, %v581
    %v583 = vpop.f32.mrf.mxu0
    %v584 = vadd.f32 0.0, %v583
    %585 = vmatprep.mubr.f32.mxu0 0.0
    %586 = vmatmul.mubr.f32.gmra.mxu0 %v485
    %v587 = vpop.f32.mrf.mxu0
    %v588 = vadd.f32 0.0, %v587
    %v589 = vpop.f32.mrf.mxu0
    %v590 = vadd.f32 0.0, %v589
    %591 = vmatprep.mubr.f32.mxu0 0.0
    %592 = vmatmul.mubr.f32.gmra.mxu0 %v487
    %v593 = vpop.f32.mrf.mxu0
    %v594 = vadd.f32 0.0, %v593
    %v595 = vpop.f32.mrf.mxu0
    %v596 = vadd.f32 0.0, %v595
    %597 = vmatprep.mubr.f32.mxu0 0.0
    %598 = vmatmul.mubr.f32.gmra.mxu0 %v489
    %v599 = vpop.f32.mrf.mxu0
    %v600 = vadd.f32 0.0, %v599
    %v601 = vpop.f32.mrf.mxu0
    %v602 = vadd.f32 0.0, %v601
    %603 = vdwg.mxu0
    %v604 = vadd.f32 %v414, %v564
    %v605 = vadd.f32 %v416, %v566
    %v606 = vadd.f32 %v420, %v570
    %v607 = vadd.f32 %v422, %v572
    %v608 = vadd.f32 %v426, %v576
    %v609 = vadd.f32 %v428, %v578
    %v610 = vadd.f32 %v432, %v582
    %v611 = vadd.f32 %v434, %v584
    %v612 = vadd.f32 %v438, %v588
    %v613 = vadd.f32 %v440, %v590
    %v614 = vadd.f32 %v444, %v594
    %v615 = vadd.f32 %v446, %v596
    %v616 = vadd.f32 %v450, %v600
    %v617 = vadd.f32 %v452, %v602
    %v618 = vld [vmem:[%s2] sm:$0x3]
    %v620 = vlaneseq
    %v621 = vshrl.u32 %v620, 7
    %v622 = vsub.s32 0, %v621
    %v623 = vrot.slane %v618, %v622
    %v624 = vlaneseq
    %v625 = vshrl.u32 %v624, 7
    %v626 = vsub.s32 1, %v625
    %v627 = vrot.slane %v618, %v626
    %v630 = vadd.f32 %v604, %v623
    %v631 = vadd.f32 %v605, %v627
    %v632 = vadd.f32 %v606, %v623
    %v633 = vadd.f32 %v607, %v627
    %v634 = vadd.f32 %v608, %v623
    %v635 = vadd.f32 %v609, %v627
    %v636 = vadd.f32 %v610, %v623
    %v637 = vadd.f32 %v611, %v627
    %v638 = vadd.f32 %v612, %v623
    %v639 = vadd.f32 %v613, %v627
    %v640 = vadd.f32 %v614, %v623
    %v641 = vadd.f32 %v615, %v627
    %v642 = vadd.f32 %v616, %v623
    %v643 = vadd.f32 %v617, %v627
    %v644 = vlaneseq
    %v645 = vshrl.u32 %v644, 7
    %v646 = vadd.s32 %v645, 8
    %v647 = vadd.s32 %v645, 16
    %v648 = vadd.s32 %v645, 24
    %v649 = vadd.s32 %v645, 32
    %v650 = vadd.s32 %v645, 40
    %v651 = vadd.s32 %v645, 48
    %vm652 = vcmp.lt.s32.totalorder %v645, 26
    %vm653 = vcmp.lt.s32.totalorder %v646, 26
    %vm654 = vcmp.lt.s32.totalorder %v647, 26
    %vm655 = vcmp.lt.s32.totalorder %v648, 26
    %vm656 = vcmp.lt.s32.totalorder %v649, 26
    %vm657 = vcmp.lt.s32.totalorder %v650, 26
    %vm658 = vcmp.lt.s32.totalorder %v651, 26
    %vm659 = vcmp.ge.s32.totalorder %v645, 28
    %vm660 = vcmp.ge.s32.totalorder %v646, 28
    %vm661 = vcmp.ge.s32.totalorder %v647, 28
    %vm662 = vcmp.ge.s32.totalorder %v648, 28
    %vm663 = vcmp.ge.s32.totalorder %v649, 28
    %vm664 = vcmp.ge.s32.totalorder %v650, 28
    %vm665 = vcmp.ge.s32.totalorder %v651, 28
    %vm666 = vcmp.lt.s32.totalorder %v645, 54
    %vm667 = vcmp.lt.s32.totalorder %v646, 54
    %vm668 = vcmp.lt.s32.totalorder %v647, 54
    %vm669 = vcmp.lt.s32.totalorder %v648, 54
    %vm670 = vcmp.lt.s32.totalorder %v649, 54
    %vm671 = vcmp.lt.s32.totalorder %v650, 54
    %vm672 = vcmp.lt.s32.totalorder %v651, 54
    %vm673 = vmand %vm659, %vm666
    %vm674 = vmand %vm660, %vm667
    %vm675 = vmand %vm661, %vm668
    %vm676 = vmand %vm662, %vm669
    %vm677 = vmand %vm663, %vm670
    %vm678 = vmand %vm664, %vm671
    %vm679 = vmand %vm665, %vm672
    %vm680 = vmor %vm652, %vm673
    %vm681 = vmor %vm653, %vm674
    %vm682 = vmor %vm654, %vm675
    %vm683 = vmor %vm655, %vm676
    %vm684 = vmor %vm656, %vm677
    %vm685 = vmor %vm657, %vm678
    %vm686 = vmor %vm658, %vm679
    %v687 = vsel %vm680, 1, 0
    %v688 = vsel %vm681, 1, 0
    %v689 = vsel %vm682, 1, 0
    %v690 = vsel %vm683, 1, 0
    %v691 = vsel %vm684, 1, 0
    %v692 = vsel %vm685, 1, 0
    %v693 = vsel %vm686, 1, 0
    %vm694 = vcmp.eq.s32.totalorder %v687, 1
    %vm695 = vcmp.eq.s32.totalorder %v688, 1
    %vm696 = vcmp.eq.s32.totalorder %v689, 1
    %vm697 = vcmp.eq.s32.totalorder %v690, 1
    %vm698 = vcmp.eq.s32.totalorder %v691, 1
    %vm699 = vcmp.eq.s32.totalorder %v692, 1
    %vm700 = vcmp.eq.s32.totalorder %v693, 1
    %v701 = vsel %vm694, %v630, 0.0
    %v702 = vsel %vm694, %v631, 0.0
    %v703 = vsel %vm695, %v632, 0.0
    %v704 = vsel %vm695, %v633, 0.0
    %v705 = vsel %vm696, %v634, 0.0
    %v706 = vsel %vm696, %v635, 0.0
    %v707 = vsel %vm697, %v636, 0.0
    %v708 = vsel %vm697, %v637, 0.0
    %v709 = vsel %vm698, %v638, 0.0
    %v710 = vsel %vm698, %v639, 0.0
    %v711 = vsel %vm699, %v640, 0.0
    %v712 = vsel %vm699, %v641, 0.0
    %v713 = vsel %vm700, %v642, 0.0
    %v714 = vsel %vm700, %v643, 0.0
    %v715 = vmul.f32 %v630, %v630
    %v716 = vmul.f32 %v631, %v631
    %v717 = vmul.f32 %v632, %v632
    %v718 = vmul.f32 %v633, %v633
    %v719 = vmul.f32 %v634, %v634
    %v720 = vmul.f32 %v635, %v635
    %v721 = vmul.f32 %v636, %v636
    %v722 = vmul.f32 %v637, %v637
    %v723 = vmul.f32 %v638, %v638
    %v724 = vmul.f32 %v639, %v639
    %v725 = vmul.f32 %v640, %v640
    %v726 = vmul.f32 %v641, %v641
    %v727 = vmul.f32 %v642, %v642
    %v728 = vmul.f32 %v643, %v643
    %v729 = vsel %vm694, %v715, 0.0
    %v730 = vsel %vm694, %v716, 0.0
    %v731 = vsel %vm695, %v717, 0.0
    %v732 = vsel %vm695, %v718, 0.0
    %v733 = vsel %vm696, %v719, 0.0
    %v734 = vsel %vm696, %v720, 0.0
    %v735 = vsel %vm697, %v721, 0.0
    %v736 = vsel %vm697, %v722, 0.0
    %v737 = vsel %vm698, %v723, 0.0
    %v738 = vsel %vm698, %v724, 0.0
    %v739 = vsel %vm699, %v725, 0.0
    %v740 = vsel %vm699, %v726, 0.0
    %v741 = vsel %vm700, %v727, 0.0
    %v742 = vsel %vm700, %v728, 0.0
    %v743 = vadd.s32 %v645, 56
    %v744 = vadd.s32 %v645, 64
    %v745 = vadd.s32 %v645, 72
    %v746 = vadd.s32 %v645, 80
    %v747 = vadd.s32 %v645, 88
    %v748 = vadd.s32 %v645, 96
    %v749 = vadd.s32 %v645, 104
    %v750 = vadd.s32 %v645, 112
    %v751 = vadd.s32 %v645, 120
    %v752 = vadd.s32 %v645, 128
    %v753 = vadd.s32 %v645, 136
    %v754 = vadd.s32 %v645, 144
    %v755 = vadd.s32 %v645, 152
    %v756 = vadd.s32 %v645, 160
    %v757 = vadd.s32 %v645, 168
    %v758 = vadd.s32 %v645, 176
    %v759 = vadd.s32 %v645, 184
    %v760 = vadd.s32 %v645, 192
    %v761 = vadd.s32 %v645, 200
    %v762 = vlaneseq
    %v763 = vand.u32 %v762, 127
    %v764 = vand.u32 %v645, 7
    %v765 = vand.u32 %v646, 7
    %v766 = vand.u32 %v647, 7
    %v767 = vand.u32 %v648, 7
    %v768 = vand.u32 %v649, 7
    %v769 = vand.u32 %v650, 7
    %v770 = vand.u32 %v651, 7
    %v771 = vand.u32 %v743, 7
    %v772 = vand.u32 %v744, 7
    %v773 = vand.u32 %v745, 7
    %v774 = vand.u32 %v746, 7
    %v775 = vand.u32 %v747, 7
    %v776 = vand.u32 %v748, 7
    %v777 = vand.u32 %v749, 7
    %v778 = vand.u32 %v750, 7
    %v779 = vand.u32 %v751, 7
    %v780 = vand.u32 %v752, 7
    %v781 = vand.u32 %v753, 7
    %v782 = vand.u32 %v754, 7
    %v783 = vand.u32 %v755, 7
    %v784 = vand.u32 %v756, 7
    %v785 = vand.u32 %v757, 7
    %v786 = vand.u32 %v758, 7
    %v787 = vand.u32 %v759, 7
    %v788 = vand.u32 %v760, 7
    %v789 = vand.u32 %v761, 7
    %vm790 = vcmp.eq.s32.totalorder %v764, %v763
    %vm791 = vcmp.eq.s32.totalorder %v765, %v763
    %vm792 = vcmp.eq.s32.totalorder %v766, %v763
    %vm793 = vcmp.eq.s32.totalorder %v767, %v763
    %vm794 = vcmp.eq.s32.totalorder %v768, %v763
    %vm795 = vcmp.eq.s32.totalorder %v769, %v763
    %vm796 = vcmp.eq.s32.totalorder %v770, %v763
    %vm797 = vcmp.eq.s32.totalorder %v771, %v763
    %vm798 = vcmp.eq.s32.totalorder %v772, %v763
    %vm799 = vcmp.eq.s32.totalorder %v773, %v763
    %vm800 = vcmp.eq.s32.totalorder %v774, %v763
    %vm801 = vcmp.eq.s32.totalorder %v775, %v763
    %vm802 = vcmp.eq.s32.totalorder %v776, %v763
    %vm803 = vcmp.eq.s32.totalorder %v777, %v763
    %vm804 = vcmp.eq.s32.totalorder %v778, %v763
    %vm805 = vcmp.eq.s32.totalorder %v779, %v763
    %vm806 = vcmp.eq.s32.totalorder %v780, %v763
    %vm807 = vcmp.eq.s32.totalorder %v781, %v763
    %vm808 = vcmp.eq.s32.totalorder %v782, %v763
    %vm809 = vcmp.eq.s32.totalorder %v783, %v763
    %vm810 = vcmp.eq.s32.totalorder %v784, %v763
    %vm811 = vcmp.eq.s32.totalorder %v785, %v763
    %vm812 = vcmp.eq.s32.totalorder %v786, %v763
    %vm813 = vcmp.eq.s32.totalorder %v787, %v763
    %vm814 = vcmp.eq.s32.totalorder %v788, %v763
    %vm815 = vcmp.eq.s32.totalorder %v789, %v763
    %v816 = vsel %vm790, 1, 0
    %v817 = vsel %vm791, 1, 0
    %v818 = vsel %vm792, 1, 0
    %v819 = vsel %vm793, 1, 0
    %v820 = vsel %vm794, 1, 0
    %v821 = vsel %vm795, 1, 0
    %v822 = vsel %vm796, 1, 0
    %v823 = vsel %vm797, 1, 0
    %v824 = vsel %vm798, 1, 0
    %v825 = vsel %vm799, 1, 0
    %v826 = vsel %vm800, 1, 0
    %v827 = vsel %vm801, 1, 0
    %v828 = vsel %vm802, 1, 0
    %v829 = vsel %vm803, 1, 0
    %v830 = vsel %vm804, 1, 0
    %v831 = vsel %vm805, 1, 0
    %v832 = vsel %vm806, 1, 0
    %v833 = vsel %vm807, 1, 0
    %v834 = vsel %vm808, 1, 0
    %v835 = vsel %vm809, 1, 0
    %v836 = vsel %vm810, 1, 0
    %v837 = vsel %vm811, 1, 0
    %v838 = vsel %vm812, 1, 0
    %v839 = vsel %vm813, 1, 0
    %v840 = vsel %vm814, 1, 0
    %v841 = vsel %vm815, 1, 0
    %v842 = vcvt.s32.f32 %v816
    %v843 = vcvt.s32.f32 %v817
    %v844 = vcvt.s32.f32 %v818
    %v845 = vcvt.s32.f32 %v819
    %v846 = vcvt.s32.f32 %v820
    %v847 = vcvt.s32.f32 %v821
    %v848 = vcvt.s32.f32 %v822
    %v849 = vcvt.s32.f32 %v823
    %v850 = vcvt.s32.f32 %v824
    %v851 = vcvt.s32.f32 %v825
    %v852 = vcvt.s32.f32 %v826
    %v853 = vcvt.s32.f32 %v827
    %v854 = vcvt.s32.f32 %v828
    %v855 = vcvt.s32.f32 %v829
    %v856 = vcvt.s32.f32 %v830
    %v857 = vcvt.s32.f32 %v831
    %v858 = vcvt.s32.f32 %v832
    %v859 = vcvt.s32.f32 %v833
    %v860 = vcvt.s32.f32 %v834
    %v861 = vcvt.s32.f32 %v835
    %v862 = vcvt.s32.f32 %v836
    %v863 = vcvt.s32.f32 %v837
    %v864 = vcvt.s32.f32 %v838
    %v865 = vcvt.s32.f32 %v839
    %v866 = vcvt.s32.f32 %v840
    %v867 = vcvt.s32.f32 %v841
    %v868 = vadd.s32 %v763, 128
    %v869 = vand.u32 %v763, 7
    %v870 = vand.u32 %v868, 7
    %vm871 = vcmp.eq.s32.totalorder %v869, %v645
    %vm872 = vcmp.eq.s32.totalorder %v870, %v645
    %v873 = vsel %vm871, 1, 0
    %v874 = vsel %vm872, 1, 0
    %v875 = vcvt.s32.f32 %v873
    %v876 = vcvt.s32.f32 %v874
    %v877 = vadd.f32 %v701, %v703
    %v878 = vadd.f32 %v877, %v705
    %v879 = vadd.f32 %v878, %v707
    %v880 = vadd.f32 %v879, %v709
    %v881 = vadd.f32 %v880, %v711
    %v882 = vsel %vm463, %v713, 0.0
    %v883 = vadd.f32 %v881, %v882
    %v884 = vrot.slane %v883, 4
    %v885 = vadd.f32 %v883, %v884
    %v886 = vrot.slane %v885, 2
    %v887 = vadd.f32 %v885, %v886
    %v888 = vrot.slane %v887, 1
    %v889 = vadd.f32 %v887, %v888
    %vm890 = vcmask 654336
    %v891 = vsel %vm890, %v702, 0.0
    %v892 = vsel %vm890, %v704, 0.0
    %v893 = vadd.f32 %v891, %v892
    %v894 = vsel %vm890, %v706, 0.0
    %v895 = vadd.f32 %v893, %v894
    %v896 = vsel %vm890, %v708, 0.0
    %v897 = vadd.f32 %v895, %v896
    %v898 = vsel %vm890, %v710, 0.0
    %v899 = vadd.f32 %v897, %v898
    %v900 = vsel %vm890, %v712, 0.0
    %v901 = vadd.f32 %v899, %v900
    %vm902 = vcmask 652288
    %v903 = vsel %vm902, %v714, 0.0
    %v904 = vadd.f32 %v901, %v903
    %v905 = vrot.slane %v904, 4
    %v906 = vadd.f32 %v904, %v905
    %v907 = vrot.slane %v906, 2
    %v908 = vadd.f32 %v906, %v907
    %v909 = vrot.slane %v908, 1
    %v910 = vadd.f32 %v908, %v909
    %v912 = vsel %vm890, %v910, 0
    %914 = vmatprep.subr.mxu0 0.0
    %915 = vmatpush1.msra.mxu0 %v857
    %916 = vmatprep.subr.mxu0 0.0
    %917 = vmatpush1.msra.mxu0 %v856
    %918 = vmatprep.subr.mxu0 0.0
    %919 = vmatpush1.msra.mxu0 %v855
    %920 = vmatprep.subr.mxu0 0.0
    %921 = vmatpush1.msra.mxu0 %v854
    %922 = vmatprep.subr.mxu0 0.0
    %923 = vmatpush1.msra.mxu0 %v853
    %924 = vmatprep.subr.mxu0 0.0
    %925 = vmatpush1.msra.mxu0 %v852
    %926 = vmatprep.subr.mxu0 0.0
    %927 = vmatpush1.msra.mxu0 %v851
    %928 = vmatprep.subr.mxu0 0.0
    %929 = vmatpush1.msra.mxu0 %v850
    %930 = vmatprep.subr.mxu0 0.0
    %931 = vmatpush1.msra.mxu0 %v849
    %932 = vmatprep.subr.mxu0 0.0
    %933 = vmatpush1.msra.mxu0 %v848
    %934 = vmatprep.subr.mxu0 0.0
    %935 = vmatpush1.msra.mxu0 %v847
    %936 = vmatprep.subr.mxu0 0.0
    %937 = vmatpush1.msra.mxu0 %v846
    %938 = vmatprep.subr.mxu0 0.0
    %939 = vmatpush1.msra.mxu0 %v845
    %940 = vmatprep.subr.mxu0 0.0
    %941 = vmatpush1.msra.mxu0 %v844
    %942 = vmatprep.subr.mxu0 0.0
    %943 = vmatpush1.msra.mxu0 %v843
    %944 = vmatprep.subr.mxu0 0.0
    %945 = vmatpush1.msra.mxu0 %v842
    %946 = vmatprep.subr.mxu0 0.0
    %947 = vmatpush2.msra.mxu0 0.0
    %948 = vmatprep.subr.mxu0 0.0
    %949 = vmatpush2.msra.mxu0 0.0
    %950 = vmatprep.subr.mxu0 0.0
    %951 = vmatpush2.msra.mxu0 0.0
    %952 = vmatprep.subr.mxu0 0.0
    %953 = vmatpush2.msra.mxu0 0.0
    %954 = vmatprep.subr.mxu0 0.0
    %955 = vmatpush2.msra.mxu0 0.0
    %956 = vmatprep.subr.mxu0 0.0
    %957 = vmatpush2.msra.mxu0 0.0
    %958 = vmatprep.subr.mxu0 0.0
    %959 = vmatpush2.msra.mxu0 %v867
    %960 = vmatprep.subr.mxu0 0.0
    %961 = vmatpush2.msra.mxu0 %v866
    %962 = vmatprep.subr.mxu0 0.0
    %963 = vmatpush2.msra.mxu0 %v865
    %964 = vmatprep.subr.mxu0 0.0
    %965 = vmatpush2.msra.mxu0 %v864
    %966 = vmatprep.subr.mxu0 0.0
    %967 = vmatpush2.msra.mxu0 %v863
    %968 = vmatprep.subr.mxu0 0.0
    %969 = vmatpush2.msra.mxu0 %v862
    %970 = vmatprep.subr.mxu0 0.0
    %971 = vmatpush2.msra.mxu0 %v861
    %972 = vmatprep.subr.mxu0 0.0
    %973 = vmatpush2.msra.mxu0 %v860
    %974 = vmatprep.subr.mxu0 0.0
    %975 = vmatpush2.msra.mxu0 %v859
    %976 = vmatprep.subr.mxu0 0.0
    %977 = vmatpush2.msra.mxu0 %v858
    %978 = vmatprep.mubr.f32.mxu0 %v912
    %979 = vmatmul.mubr.f32.gmra.mxu0 %v889
    %v980 = vpop.f32.mrf.mxu0
    %v981 = vadd.f32 0.0, %v980
    %v982 = vpop.f32.mrf.mxu0
    %983 = vdwg.mxu0
    %v984 = vadd.f32 %v729, %v731
    %v985 = vadd.f32 %v984, %v733
    %v986 = vadd.f32 %v985, %v735
    %v987 = vadd.f32 %v986, %v737
    %v988 = vadd.f32 %v987, %v739
    %v989 = vsel %vm463, %v741, 0.0
    %v990 = vadd.f32 %v988, %v989
    %v991 = vrot.slane %v990, 4
    %v992 = vadd.f32 %v990, %v991
    %v993 = vrot.slane %v992, 2
    %v994 = vadd.f32 %v992, %v993
    %v995 = vrot.slane %v994, 1
    %v996 = vadd.f32 %v994, %v995
    %v997 = vsel %vm890, %v730, 0.0
    %v998 = vsel %vm890, %v732, 0.0
    %v999 = vadd.f32 %v997, %v998
    %v1000 = vsel %vm890, %v734, 0.0
    %v1001 = vadd.f32 %v999, %v1000
    %v1002 = vsel %vm890, %v736, 0.0
    %v1003 = vadd.f32 %v1001, %v1002
    %v1004 = vsel %vm890, %v738, 0.0
    %v1005 = vadd.f32 %v1003, %v1004
    %v1006 = vsel %vm890, %v740, 0.0
    %v1007 = vadd.f32 %v1005, %v1006
    %v1008 = vsel %vm902, %v742, 0.0
    %v1009 = vadd.f32 %v1007, %v1008
    %v1010 = vrot.slane %v1009, 4
    %v1011 = vadd.f32 %v1009, %v1010
    %v1012 = vrot.slane %v1011, 2
    %v1013 = vadd.f32 %v1011, %v1012
    %v1014 = vrot.slane %v1013, 1
    %v1015 = vadd.f32 %v1013, %v1014
    %v1017 = vsel %vm890, %v1015, 0
    %1019 = vmatprep.subr.mxu0 0.0
    %1020 = vmatpush1.msra.mxu0 %v857
    %1021 = vmatprep.subr.mxu0 0.0
    %1022 = vmatpush1.msra.mxu0 %v856
    %1023 = vmatprep.subr.mxu0 0.0
    %1024 = vmatpush1.msra.mxu0 %v855
    %1025 = vmatprep.subr.mxu0 0.0
    %1026 = vmatpush1.msra.mxu0 %v854
    %1027 = vmatprep.subr.mxu0 0.0
    %1028 = vmatpush1.msra.mxu0 %v853
    %1029 = vmatprep.subr.mxu0 0.0
    %1030 = vmatpush1.msra.mxu0 %v852
    %1031 = vmatprep.subr.mxu0 0.0
    %1032 = vmatpush1.msra.mxu0 %v851
    %1033 = vmatprep.subr.mxu0 0.0
    %1034 = vmatpush1.msra.mxu0 %v850
    %1035 = vmatprep.subr.mxu0 0.0
    %1036 = vmatpush1.msra.mxu0 %v849
    %1037 = vmatprep.subr.mxu0 0.0
    %1038 = vmatpush1.msra.mxu0 %v848
    %1039 = vmatprep.subr.mxu0 0.0
    %1040 = vmatpush1.msra.mxu0 %v847
    %1041 = vmatprep.subr.mxu0 0.0
    %1042 = vmatpush1.msra.mxu0 %v846
    %1043 = vmatprep.subr.mxu0 0.0
    %1044 = vmatpush1.msra.mxu0 %v845
    %1045 = vmatprep.subr.mxu0 0.0
    %1046 = vmatpush1.msra.mxu0 %v844
    %1047 = vmatprep.subr.mxu0 0.0
    %1048 = vmatpush1.msra.mxu0 %v843
    %1049 = vmatprep.subr.mxu0 0.0
    %1050 = vmatpush1.msra.mxu0 %v842
    %1051 = vmatprep.subr.mxu0 0.0
    %1052 = vmatpush2.msra.mxu0 0.0
    %1053 = vmatprep.subr.mxu0 0.0
    %1054 = vmatpush2.msra.mxu0 0.0
    %1055 = vmatprep.subr.mxu0 0.0
    %1056 = vmatpush2.msra.mxu0 0.0
    %1057 = vmatprep.subr.mxu0 0.0
    %1058 = vmatpush2.msra.mxu0 0.0
    %1059 = vmatprep.subr.mxu0 0.0
    %1060 = vmatpush2.msra.mxu0 0.0
    %1061 = vmatprep.subr.mxu0 0.0
    %1062 = vmatpush2.msra.mxu0 0.0
    %1063 = vmatprep.subr.mxu0 0.0
    %1064 = vmatpush2.msra.mxu0 %v867
    %1065 = vmatprep.subr.mxu0 0.0
    %1066 = vmatpush2.msra.mxu0 %v866
    %1067 = vmatprep.subr.mxu0 0.0
    %1068 = vmatpush2.msra.mxu0 %v865
    %1069 = vmatprep.subr.mxu0 0.0
    %1070 = vmatpush2.msra.mxu0 %v864
    %1071 = vmatprep.subr.mxu0 0.0
    %1072 = vmatpush2.msra.mxu0 %v863
    %1073 = vmatprep.subr.mxu0 0.0
    %1074 = vmatpush2.msra.mxu0 %v862
    %1075 = vmatprep.subr.mxu0 0.0
    %1076 = vmatpush2.msra.mxu0 %v861
    %1077 = vmatprep.subr.mxu0 0.0
    %1078 = vmatpush2.msra.mxu0 %v860
    %1079 = vmatprep.subr.mxu0 0.0
    %1080 = vmatpush2.msra.mxu0 %v859
    %1081 = vmatprep.subr.mxu0 0.0
    %1082 = vmatpush2.msra.mxu0 %v858
    %1083 = vmatprep.mubr.f32.mxu0 %v1017
    %1084 = vmatmul.mubr.f32.gmra.mxu0 %v996
    %v1085 = vpop.f32.mrf.mxu0
    %v1086 = vadd.f32 0.0, %v1085
    %v1087 = vpop.f32.mrf.mxu0
    %1088 = vdwg.mxu0
    %v1089 = vmul.f32 %v981, 0.000739645
    %v1090 = vmul.f32 %v1086, 0.000739645
    %v1091 = vmul.f32 %v1089, %v1089
    %v1092 = vsub.f32 %v1090, %v1091
    %v1093 = vld [vmem:[%s3] sm:$0x1]
    %v1094 = vld [vmem:[%s3 + $0x1] sm:$0x1]
    %v1095 = vadd.f32 %v1092, 1e-05
    %v1096 = vrsqrt.pop %v1095
    %v1097 = vmul.f32 %v1093, %v1096
    %v1098 = vmul.f32 %v1089, %v1097
    %v1099 = vsub.f32 %v1094, %v1098
    %vm1100 = vcmask 64512
    %v1102 = vsel %vm1100, %v1097, 0
    %1104 = vmatprep.subr.mxu0 0.0
    %1105 = vmatpush1.msra.mxu0 0.0
    %1106 = vmatprep.subr.mxu0 0.0
    %1107 = vmatpush1.msra.mxu0 0.0
    %1108 = vmatprep.subr.mxu0 0.0
    %1109 = vmatpush1.msra.mxu0 0.0
    %1110 = vmatprep.subr.mxu0 0.0
    %1111 = vmatpush1.msra.mxu0 0.0
    %1112 = vmatprep.subr.mxu0 0.0
    %1113 = vmatpush1.msra.mxu0 0.0
    %1114 = vmatprep.subr.mxu0 0.0
    %1115 = vmatpush1.msra.mxu0 0.0
    %1116 = vmatprep.subr.mxu0 0.0
    %1117 = vmatpush1.msra.mxu0 0.0
    %1118 = vmatprep.subr.mxu0 0.0
    %1119 = vmatpush1.msra.mxu0 0.0
    %1120 = vmatprep.subr.mxu0 0.0
    %1121 = vmatpush1.msra.mxu0 0.0
    %1122 = vmatprep.subr.mxu0 0.0
    %1123 = vmatpush1.msra.mxu0 0.0
    %1124 = vmatprep.subr.mxu0 0.0
    %1125 = vmatpush1.msra.mxu0 0.0
    %1126 = vmatprep.subr.mxu0 0.0
    %1127 = vmatpush1.msra.mxu0 0.0
    %1128 = vmatprep.subr.mxu0 0.0
    %1129 = vmatpush1.msra.mxu0 0.0
    %1130 = vmatprep.subr.mxu0 0.0
    %1131 = vmatpush1.msra.mxu0 0.0
    %1132 = vmatprep.subr.mxu0 0.0
    %1133 = vmatpush1.msra.mxu0 0.0
    %1134 = vmatprep.subr.mxu0 %v876
    %1135 = vmatpush1.msra.mxu0 %v875
    %1136 = vmatprep.subr.mxu0 0.0
    %1137 = vmatpush2.msra.mxu0 0.0
    %1138 = vmatprep.subr.mxu0 0.0
    %1139 = vmatpush2.msra.mxu0 0.0
    %1140 = vmatprep.subr.mxu0 0.0
    %1141 = vmatpush2.msra.mxu0 0.0
    %1142 = vmatprep.subr.mxu0 0.0
    %1143 = vmatpush2.msra.mxu0 0.0
    %1144 = vmatprep.subr.mxu0 0.0
    %1145 = vmatpush2.msra.mxu0 0.0
    %1146 = vmatprep.subr.mxu0 0.0
    %1147 = vmatpush2.msra.mxu0 0.0
    %1148 = vmatprep.subr.mxu0 0.0
    %1149 = vmatpush2.msra.mxu0 0.0
    %1150 = vmatprep.subr.mxu0 0.0
    %1151 = vmatpush2.msra.mxu0 0.0
    %1152 = vmatprep.subr.mxu0 0.0
    %1153 = vmatpush2.msra.mxu0 0.0
    %1154 = vmatprep.subr.mxu0 0.0
    %1155 = vmatpush2.msra.mxu0 0.0
    %1156 = vmatprep.subr.mxu0 0.0
    %1157 = vmatpush2.msra.mxu0 0.0
    %1158 = vmatprep.subr.mxu0 0.0
    %1159 = vmatpush2.msra.mxu0 0.0
    %1160 = vmatprep.subr.mxu0 0.0
    %1161 = vmatpush2.msra.mxu0 0.0
    %1162 = vmatprep.subr.mxu0 0.0
    %1163 = vmatpush2.msra.mxu0 0.0
    %1164 = vmatprep.subr.mxu0 0.0
    %1165 = vmatpush2.msra.mxu0 0.0
    %1166 = vmatprep.subr.mxu0 0.0
    %1167 = vmatpush2.msra.mxu0 0.0
    %1168 = vmatprep.mubr.f32.mxu0 0.0
    %1169 = vmatmul.mubr.f32.gmra.mxu0 %v1102
    %v1170 = vpop.f32.mrf.mxu0
    %v1171 = vadd.f32 0.0, %v1170
    %v1172 = vpop.f32.mrf.mxu0
    %v1173 = vadd.f32 0.0, %v1172
    %1174 = vdwg.mxu0
    %v1176 = vsel %vm1100, %v1099, 0
    %1178 = vmatprep.subr.mxu0 0.0
    %1179 = vmatpush1.msra.mxu0 0.0
    %1180 = vmatprep.subr.mxu0 0.0
    %1181 = vmatpush1.msra.mxu0 0.0
    %1182 = vmatprep.subr.mxu0 0.0
    %1183 = vmatpush1.msra.mxu0 0.0
    %1184 = vmatprep.subr.mxu0 0.0
    %1185 = vmatpush1.msra.mxu0 0.0
    %1186 = vmatprep.subr.mxu0 0.0
    %1187 = vmatpush1.msra.mxu0 0.0
    %1188 = vmatprep.subr.mxu0 0.0
    %1189 = vmatpush1.msra.mxu0 0.0
    %1190 = vmatprep.subr.mxu0 0.0
    %1191 = vmatpush1.msra.mxu0 0.0
    %1192 = vmatprep.subr.mxu0 0.0
    %1193 = vmatpush1.msra.mxu0 0.0
    %1194 = vmatprep.subr.mxu0 0.0
    %1195 = vmatpush1.msra.mxu0 0.0
    %1196 = vmatprep.subr.mxu0 0.0
    %1197 = vmatpush1.msra.mxu0 0.0
    %1198 = vmatprep.subr.mxu0 0.0
    %1199 = vmatpush1.msra.mxu0 0.0
    %1200 = vmatprep.subr.mxu0 0.0
    %1201 = vmatpush1.msra.mxu0 0.0
    %1202 = vmatprep.subr.mxu0 0.0
    %1203 = vmatpush1.msra.mxu0 0.0
    %1204 = vmatprep.subr.mxu0 0.0
    %1205 = vmatpush1.msra.mxu0 0.0
    %1206 = vmatprep.subr.mxu0 0.0
    %1207 = vmatpush1.msra.mxu0 0.0
    %1208 = vmatprep.subr.mxu0 %v876
    %1209 = vmatpush1.msra.mxu0 %v875
    %1210 = vmatprep.subr.mxu0 0.0
    %1211 = vmatpush2.msra.mxu0 0.0
    %1212 = vmatprep.subr.mxu0 0.0
    %1213 = vmatpush2.msra.mxu0 0.0
    %1214 = vmatprep.subr.mxu0 0.0
    %1215 = vmatpush2.msra.mxu0 0.0
    %1216 = vmatprep.subr.mxu0 0.0
    %1217 = vmatpush2.msra.mxu0 0.0
    %1218 = vmatprep.subr.mxu0 0.0
    %1219 = vmatpush2.msra.mxu0 0.0
    %1220 = vmatprep.subr.mxu0 0.0
    %1221 = vmatpush2.msra.mxu0 0.0
    %1222 = vmatprep.subr.mxu0 0.0
    %1223 = vmatpush2.msra.mxu0 0.0
    %1224 = vmatprep.subr.mxu0 0.0
    %1225 = vmatpush2.msra.mxu0 0.0
    %1226 = vmatprep.subr.mxu0 0.0
    %1227 = vmatpush2.msra.mxu0 0.0
    %1228 = vmatprep.subr.mxu0 0.0
    %1229 = vmatpush2.msra.mxu0 0.0
    %1230 = vmatprep.subr.mxu0 0.0
    %1231 = vmatpush2.msra.mxu0 0.0
    %1232 = vmatprep.subr.mxu0 0.0
    %1233 = vmatpush2.msra.mxu0 0.0
    %1234 = vmatprep.subr.mxu0 0.0
    %1235 = vmatpush2.msra.mxu0 0.0
    %1236 = vmatprep.subr.mxu0 0.0
    %1237 = vmatpush2.msra.mxu0 0.0
    %1238 = vmatprep.subr.mxu0 0.0
    %1239 = vmatpush2.msra.mxu0 0.0
    %1240 = vmatprep.subr.mxu0 0.0
    %1241 = vmatpush2.msra.mxu0 0.0
    %1242 = vmatprep.mubr.f32.mxu0 0.0
    %1243 = vmatmul.mubr.f32.gmra.mxu0 %v1176
    %v1244 = vpop.f32.mrf.mxu0
    %v1245 = vadd.f32 0.0, %v1244
    %v1246 = vpop.f32.mrf.mxu0
    %v1247 = vadd.f32 0.0, %v1246
    %1248 = vdwg.mxu0
    %v1249 = vlaneseq
    %v1250 = vshrl.u32 %v1249, 7
    %v1251 = vsub.s32 0, %v1250
    %v1252 = vrot.slane %v1171, %v1251
    %v1253 = vlaneseq
    %v1254 = vshrl.u32 %v1253, 7
    %v1255 = vsub.s32 0, %v1254
    %v1256 = vrot.slane %v1173, %v1255
    %v1257 = vmul.f32 %v630, %v1252
    %v1258 = vmul.f32 %v631, %v1256
    %v1259 = vmul.f32 %v632, %v1252
    %v1260 = vmul.f32 %v633, %v1256
    %v1261 = vmul.f32 %v634, %v1252
    %v1262 = vmul.f32 %v635, %v1256
    %v1263 = vmul.f32 %v636, %v1252
    %v1264 = vmul.f32 %v637, %v1256
    %v1265 = vmul.f32 %v638, %v1252
    %v1266 = vmul.f32 %v639, %v1256
    %v1267 = vmul.f32 %v640, %v1252
    %v1268 = vmul.f32 %v641, %v1256
    %v1269 = vmul.f32 %v642, %v1252
    %v1270 = vmul.f32 %v643, %v1256
    %v1271 = vlaneseq
    %v1272 = vshrl.u32 %v1271, 7
    %v1273 = vsub.s32 0, %v1272
    %v1274 = vrot.slane %v1245, %v1273
    %v1275 = vlaneseq
    %v1276 = vshrl.u32 %v1275, 7
    %v1277 = vsub.s32 0, %v1276
    %v1278 = vrot.slane %v1247, %v1277
    %v1279 = vadd.f32 %v1257, %v1274
    %v1280 = vadd.f32 %v1258, %v1278
    %v1281 = vadd.f32 %v1259, %v1274
    %v1282 = vadd.f32 %v1260, %v1278
    %v1283 = vadd.f32 %v1261, %v1274
    %v1284 = vadd.f32 %v1262, %v1278
    %v1285 = vadd.f32 %v1263, %v1274
    %v1286 = vadd.f32 %v1264, %v1278
    %v1287 = vadd.f32 %v1265, %v1274
    %v1288 = vadd.f32 %v1266, %v1278
    %v1289 = vadd.f32 %v1267, %v1274
    %v1290 = vadd.f32 %v1268, %v1278
    %v1291 = vadd.f32 %v1269, %v1274
    %v1292 = vadd.f32 %v1270, %v1278
    %v1293 = vmax.f32 %v1279, 0.0
    %v1294 = vmax.f32 %v1280, 0.0
    %v1295 = vmax.f32 %v1281, 0.0
    %v1296 = vmax.f32 %v1282, 0.0
    %v1297 = vmax.f32 %v1283, 0.0
    %v1298 = vmax.f32 %v1284, 0.0
    %v1299 = vmax.f32 %v1285, 0.0
    %v1300 = vmax.f32 %v1286, 0.0
    %v1301 = vmax.f32 %v1287, 0.0
    %v1302 = vmax.f32 %v1288, 0.0
    %v1303 = vmax.f32 %v1289, 0.0
    %v1304 = vmax.f32 %v1290, 0.0
    %v1305 = vmax.f32 %v1291, 0.0
    %v1306 = vmax.f32 %v1292, 0.0
    %v1307 = vld [vmem:[%s4] sm:$0xff]
    %v1308 = vld [vmem:[%s4 + $0x8] sm:$0xff]
    %v1309 = vld [vmem:[%s4 + $0x10] sm:$0xff]
    %v1310 = vld [vmem:[%s4 + $0x18] sm:$0xff]
    %v1311 = vld [vmem:[%s4 + $0x20] sm:$0xff]
    %v1312 = vld [vmem:[%s4 + $0x28] sm:$0xff]
    %v1313 = vld [vmem:[%s4 + $0x30] sm:$0xff]
    %v1314 = vld [vmem:[%s4 + $0x38] sm:$0xff]
    %v1315 = vld [vmem:[%s4 + $0x40] sm:$0xff]
    %v1316 = vld [vmem:[%s4 + $0x48] sm:$0xff]
    %v1317 = vld [vmem:[%s4 + $0x50] sm:$0xff]
    %v1318 = vld [vmem:[%s4 + $0x58] sm:$0xff]
    %v1319 = vld [vmem:[%s4 + $0x60] sm:$0xff]
    %v1320 = vld [vmem:[%s4 + $0x68] sm:$0xff]
    %v1321 = vld [vmem:[%s4 + $0x70] sm:$0xff]
    %v1322 = vld [vmem:[%s4 + $0x78] sm:$0xff]
    %v1323 = vld [vmem:[%s4 + $0x80] sm:$0xff]
    %v1324 = vld [vmem:[%s4 + $0x88] sm:$0xff]
    %v1325 = vld [vmem:[%s4 + $0x90] sm:$0xff]
    %v1326 = vld [vmem:[%s4 + $0x98] sm:$0xff]
    %v1327 = vld [vmem:[%s4 + $0xa0] sm:$0xff]
    %v1328 = vld [vmem:[%s4 + $0xa8] sm:$0xff]
    %v1329 = vld [vmem:[%s4 + $0xb0] sm:$0xff]
    %v1330 = vld [vmem:[%s4 + $0xb8] sm:$0xff]
    %v1331 = vld [vmem:[%s4 + $0xc0] sm:$0xff]
    %v1332 = vld [vmem:[%s4 + $0xc8] sm:$0xff]
    %v1333 = vld [vmem:[%s4 + $0xd0] sm:$0xff]
    %v1334 = vld [vmem:[%s4 + $0xd8] sm:$0xff]
    %v1335 = vld [vmem:[%s4 + $0xe0] sm:$0xff]
    %v1336 = vld [vmem:[%s4 + $0xe8] sm:$0xff]
    %v1337 = vld [vmem:[%s4 + $0xf0] sm:$0xff]
    %v1338 = vld [vmem:[%s4 + $0xf8] sm:$0xff]
    %v1339 = vld [vmem:[%s4 + $0x100] sm:$0xff]
    %v1340 = vld [vmem:[%s4 + $0x108] sm:$0xff]
    %v1341 = vld [vmem:[%s4 + $0x110] sm:$0xff]
    %v1342 = vld [vmem:[%s4 + $0x118] sm:$0xff]
    %v1343 = vld [vmem:[%s4 + $0x120] sm:$0xff]
    %v1344 = vld [vmem:[%s4 + $0x128] sm:$0xff]
    %v1345 = vld [vmem:[%s4 + $0x130] sm:$0xff]
    %v1346 = vld [vmem:[%s4 + $0x138] sm:$0xff]
    %v1347 = vld [vmem:[%s4 + $0x140] sm:$0xff]
    %v1348 = vld [vmem:[%s4 + $0x148] sm:$0xff]
    %v1349 = vld [vmem:[%s4 + $0x150] sm:$0xff]
    %v1350 = vld [vmem:[%s4 + $0x158] sm:$0xff]
    %v1351 = vld [vmem:[%s4 + $0x160] sm:$0xff]
    %v1352 = vld [vmem:[%s4 + $0x168] sm:$0xff]
    %v1353 = vld [vmem:[%s4 + $0x170] sm:$0xff]
    %v1354 = vld [vmem:[%s4 + $0x178] sm:$0xff]
    %v1355 = vld [vmem:[%s4 + $0x180] sm:$0xff]
    %v1356 = vld [vmem:[%s4 + $0x188] sm:$0xff]
    %v1357 = vld [vmem:[%s4 + $0x190] sm:$0xff]
    %v1358 = vld [vmem:[%s4 + $0x198] sm:$0xff]
    %v1359 = vld [vmem:[%s4 + $0x1a0] sm:$0xff]
    %v1360 = vld [vmem:[%s4 + $0x1a8] sm:$0xff]
    %v1361 = vld [vmem:[%s4 + $0x1b0] sm:$0xff]
    %v1362 = vld [vmem:[%s4 + $0x1b8] sm:$0xff]
    %v1363 = vld [vmem:[%s4 + $0x1c0] sm:$0xff]
    %v1364 = vld [vmem:[%s4 + $0x1c8] sm:$0xff]
    %v1365 = vld [vmem:[%s4 + $0x1d0] sm:$0xff]
    %v1366 = vld [vmem:[%s4 + $0x1d8] sm:$0xff]
    %v1367 = vld [vmem:[%s4 + $0x1e0] sm:$0xff]
    %v1368 = vld [vmem:[%s4 + $0x1e8] sm:$0xff]
    %v1369 = vld [vmem:[%s4 + $0x1f0] sm:$0xff]
    %v1370 = vld [vmem:[%s4 + $0x1f8] sm:$0xff]
    %v1371 = vld [vmem:[%s4 + $0x200] sm:$0xff]
    %v1372 = vld [vmem:[%s4 + $0x208] sm:$0xff]
    %v1373 = vld [vmem:[%s4 + $0x210] sm:$0xff]
    %v1374 = vld [vmem:[%s4 + $0x218] sm:$0xff]
    %v1375 = vld [vmem:[%s4 + $0x220] sm:$0xff]
    %v1376 = vld [vmem:[%s4 + $0x228] sm:$0xff]
    %v1377 = vld [vmem:[%s4 + $0x230] sm:$0xff]
    %v1378 = vld [vmem:[%s4 + $0x238] sm:$0xff]
    %v1379 = vld [vmem:[%s4 + $0x240] sm:$0xff]
    %v1380 = vld [vmem:[%s4 + $0x248] sm:$0xff]
    %v1381 = vld [vmem:[%s4 + $0x250] sm:$0xff]
    %v1382 = vld [vmem:[%s4 + $0x258] sm:$0xff]
    %v1383 = vld [vmem:[%s4 + $0x260] sm:$0xff]
    %v1384 = vld [vmem:[%s4 + $0x268] sm:$0xff]
    %s1385 = scalar_lea.vmem %s4, 624
    %v1386 = vld [vmem:[%s1385] sm:$0xff]
    %v1387 = vld [vmem:[%s1385 + $0x8] sm:$0xff]
    %v1388 = vld [vmem:[%s1385 + $0x10] sm:$0xff]
    %v1389 = vld [vmem:[%s1385 + $0x18] sm:$0xff]
    %v1390 = vld [vmem:[%s1385 + $0x20] sm:$0xff]
    %v1391 = vld [vmem:[%s1385 + $0x28] sm:$0xff]
    %v1392 = vld [vmem:[%s1385 + $0x30] sm:$0xff]
    %v1393 = vld [vmem:[%s1385 + $0x38] sm:$0xff]
    %v1394 = vld [vmem:[%s1385 + $0x40] sm:$0xff]
    %v1395 = vld [vmem:[%s1385 + $0x48] sm:$0xff]
    %v1396 = vld [vmem:[%s1385 + $0x50] sm:$0xff]
    %v1397 = vld [vmem:[%s1385 + $0x58] sm:$0xff]
    %v1398 = vld [vmem:[%s1385 + $0x60] sm:$0xff]
    %v1399 = vld [vmem:[%s1385 + $0x68] sm:$0xff]
    %v1400 = vld [vmem:[%s1385 + $0x70] sm:$0xff]
    %v1401 = vld [vmem:[%s1385 + $0x78] sm:$0xff]
    %v1402 = vld [vmem:[%s1385 + $0x80] sm:$0xff]
    %v1403 = vld [vmem:[%s1385 + $0x88] sm:$0xff]
    %v1404 = vld [vmem:[%s1385 + $0x90] sm:$0xff]
    %v1405 = vld [vmem:[%s1385 + $0x98] sm:$0xff]
    %v1406 = vld [vmem:[%s1385 + $0xa0] sm:$0xff]
    %v1407 = vld [vmem:[%s1385 + $0xa8] sm:$0xff]
    %v1408 = vld [vmem:[%s1385 + $0xb0] sm:$0xff]
    %v1409 = vld [vmem:[%s1385 + $0xb8] sm:$0xff]
    %v1410 = vld [vmem:[%s1385 + $0xc0] sm:$0xff]
    %v1411 = vld [vmem:[%s1385 + $0xc8] sm:$0xff]
    %v1412 = vld [vmem:[%s1385 + $0xd0] sm:$0xff]
    %v1413 = vld [vmem:[%s1385 + $0xd8] sm:$0xff]
    %v1414 = vld [vmem:[%s1385 + $0xe0] sm:$0xff]
    %v1415 = vld [vmem:[%s1385 + $0xe8] sm:$0xff]
    %v1416 = vld [vmem:[%s1385 + $0xf0] sm:$0xff]
    %v1417 = vld [vmem:[%s1385 + $0xf8] sm:$0xff]
    %v1418 = vld [vmem:[%s1385 + $0x100] sm:$0xff]
    %v1419 = vld [vmem:[%s1385 + $0x108] sm:$0xff]
    %v1420 = vld [vmem:[%s1385 + $0x110] sm:$0xff]
    %v1421 = vld [vmem:[%s1385 + $0x118] sm:$0xff]
    %v1422 = vld [vmem:[%s1385 + $0x120] sm:$0xff]
    %v1423 = vld [vmem:[%s1385 + $0x128] sm:$0xff]
    %v1424 = vld [vmem:[%s1385 + $0x130] sm:$0xff]
    %v1425 = vld [vmem:[%s1385 + $0x138] sm:$0xff]
    %v1426 = vld [vmem:[%s1385 + $0x140] sm:$0xff]
    %v1427 = vld [vmem:[%s1385 + $0x148] sm:$0xff]
    %v1428 = vld [vmem:[%s1385 + $0x150] sm:$0xff]
    %v1429 = vld [vmem:[%s1385 + $0x158] sm:$0xff]
    %v1430 = vld [vmem:[%s1385 + $0x160] sm:$0xff]
    %v1431 = vld [vmem:[%s1385 + $0x168] sm:$0xff]
    %v1432 = vld [vmem:[%s1385 + $0x170] sm:$0xff]
    %v1433 = vld [vmem:[%s1385 + $0x178] sm:$0xff]
    %v1434 = vld [vmem:[%s1385 + $0x180] sm:$0xff]
    %v1435 = vld [vmem:[%s1385 + $0x188] sm:$0xff]
    %v1436 = vld [vmem:[%s1385 + $0x190] sm:$0xff]
    %v1437 = vld [vmem:[%s1385 + $0x198] sm:$0xff]
    %v1438 = vld [vmem:[%s1385 + $0x1a0] sm:$0xff]
    %v1439 = vld [vmem:[%s1385 + $0x1a8] sm:$0xff]
    %v1440 = vld [vmem:[%s1385 + $0x1b0] sm:$0xff]
    %v1441 = vld [vmem:[%s1385 + $0x1b8] sm:$0xff]
    %v1442 = vld [vmem:[%s1385 + $0x1c0] sm:$0xff]
    %v1443 = vld [vmem:[%s1385 + $0x1c8] sm:$0xff]
    %v1444 = vld [vmem:[%s1385 + $0x1d0] sm:$0xff]
    %v1445 = vld [vmem:[%s1385 + $0x1d8] sm:$0xff]
    %v1446 = vld [vmem:[%s1385 + $0x1e0] sm:$0xff]
    %v1447 = vld [vmem:[%s1385 + $0x1e8] sm:$0xff]
    %v1448 = vld [vmem:[%s1385 + $0x1f0] sm:$0xff]
    %v1449 = vld [vmem:[%s1385 + $0x1f8] sm:$0xff]
    %v1450 = vld [vmem:[%s1385 + $0x200] sm:$0xff]
    %v1451 = vld [vmem:[%s1385 + $0x208] sm:$0xff]
    %v1452 = vld [vmem:[%s1385 + $0x210] sm:$0xff]
    %v1453 = vld [vmem:[%s1385 + $0x218] sm:$0xff]
    %v1454 = vld [vmem:[%s1385 + $0x220] sm:$0xff]
    %v1455 = vld [vmem:[%s1385 + $0x228] sm:$0xff]
    %v1456 = vld [vmem:[%s1385 + $0x230] sm:$0xff]
    %v1457 = vld [vmem:[%s1385 + $0x238] sm:$0xff]
    %v1458 = vld [vmem:[%s1385 + $0x240] sm:$0xff]
    %v1459 = vld [vmem:[%s1385 + $0x248] sm:$0xff]
    %v1460 = vld [vmem:[%s1385 + $0x250] sm:$0xff]
    %v1461 = vld [vmem:[%s1385 + $0x258] sm:$0xff]
    %v1462 = vld [vmem:[%s1385 + $0x260] sm:$0xff]
    %v1463 = vld [vmem:[%s1385 + $0x268] sm:$0xff]
    %v1478 = vrot.slane %v1293, 1
    %v1479 = vrot.slane %v1295, 1
    %v1480 = vsel %vm184, %v1478, %v1479
    %v1481 = vrot.slane %v1294, 1
    %v1482 = vrot.slane %v1296, 1
    %v1483 = vsel %vm184, %v1481, %v1482
    %v1484 = vrot.slane %v1297, 1
    %v1485 = vsel %vm184, %v1479, %v1484
    %v1486 = vrot.slane %v1298, 1
    %v1487 = vsel %vm184, %v1482, %v1486
    %v1488 = vrot.slane %v1299, 1
    %v1489 = vsel %vm184, %v1484, %v1488
    %v1490 = vrot.slane %v1300, 1
    %v1491 = vsel %vm184, %v1486, %v1490
    %v1492 = vrot.slane %v1301, 1
    %v1493 = vsel %vm184, %v1488, %v1492
    %v1494 = vrot.slane %v1302, 1
    %v1495 = vsel %vm184, %v1490, %v1494
    %v1496 = vrot.slane %v1303, 1
    %v1497 = vsel %vm184, %v1492, %v1496
    %v1498 = vrot.slane %v1304, 1
    %v1499 = vsel %vm184, %v1494, %v1498
    %v1500 = vrot.slane %v1305, 1
    %v1501 = vsel %vm184, %v1496, %v1500
    %v1502 = vrot.slane %v1306, 1
    %v1503 = vsel %vm184, %v1498, %v1502
    %v1511 = vsel %vm890, %v1483, 0
    %v1513 = vsel %vm890, %v1487, 0
    %v1515 = vsel %vm890, %v1491, 0
    %v1517 = vsel %vm890, %v1495, 0
    %v1519 = vsel %vm890, %v1499, 0
    %v1521 = vsel %vm890, %v1503, 0
    %v1523 = vsel %vm890, %v1502, 0
    %1525 = vmatprep.subr.mxu0 %v1432
    %1526 = vmatpush1.msra.mxu0 %v1431
    %1527 = vmatprep.subr.mxu0 %v1429
    %1528 = vmatpush1.msra.mxu0 %v1428
    %1529 = vmatprep.subr.mxu0 %v1426
    %1530 = vmatpush1.msra.mxu0 %v1425
    %1531 = vmatprep.subr.mxu0 %v1423
    %1532 = vmatpush1.msra.mxu0 %v1422
    %1533 = vmatprep.subr.mxu0 %v1420
    %1534 = vmatpush1.msra.mxu0 %v1419
    %1535 = vmatprep.subr.mxu0 %v1417
    %1536 = vmatpush1.msra.mxu0 %v1416
    %1537 = vmatprep.subr.mxu0 %v1414
    %1538 = vmatpush1.msra.mxu0 %v1413
    %1539 = vmatprep.subr.mxu0 %v1411
    %1540 = vmatpush1.msra.mxu0 %v1410
    %1541 = vmatprep.subr.mxu0 %v1408
    %1542 = vmatpush1.msra.mxu0 %v1407
    %1543 = vmatprep.subr.mxu0 %v1405
    %1544 = vmatpush1.msra.mxu0 %v1404
    %1545 = vmatprep.subr.mxu0 %v1402
    %1546 = vmatpush1.msra.mxu0 %v1401
    %1547 = vmatprep.subr.mxu0 %v1399
    %1548 = vmatpush1.msra.mxu0 %v1398
    %1549 = vmatprep.subr.mxu0 %v1396
    %1550 = vmatpush1.msra.mxu0 %v1395
    %1551 = vmatprep.subr.mxu0 %v1393
    %1552 = vmatpush1.msra.mxu0 %v1392
    %1553 = vmatprep.subr.mxu0 %v1390
    %1554 = vmatpush1.msra.mxu0 %v1389
    %1555 = vmatprep.subr.mxu0 %v1387
    %1556 = vmatpush1.msra.mxu0 %v1386
    %1557 = vmatprep.subr.mxu0 0.0
    %1558 = vmatpush2.msra.mxu0 0.0
    %1559 = vmatprep.subr.mxu0 0.0
    %1560 = vmatpush2.msra.mxu0 0.0
    %1561 = vmatprep.subr.mxu0 0.0
    %1562 = vmatpush2.msra.mxu0 0.0
    %1563 = vmatprep.subr.mxu0 0.0
    %1564 = vmatpush2.msra.mxu0 0.0
    %1565 = vmatprep.subr.mxu0 0.0
    %1566 = vmatpush2.msra.mxu0 0.0
    %1567 = vmatprep.subr.mxu0 0.0
    %1568 = vmatpush2.msra.mxu0 0.0
    %1569 = vmatprep.subr.mxu0 %v1462
    %1570 = vmatpush2.msra.mxu0 %v1461
    %1571 = vmatprep.subr.mxu0 %v1459
    %1572 = vmatpush2.msra.mxu0 %v1458
    %1573 = vmatprep.subr.mxu0 %v1456
    %1574 = vmatpush2.msra.mxu0 %v1455
    %1575 = vmatprep.subr.mxu0 %v1453
    %1576 = vmatpush2.msra.mxu0 %v1452
    %1577 = vmatprep.subr.mxu0 %v1450
    %1578 = vmatpush2.msra.mxu0 %v1449
    %1579 = vmatprep.subr.mxu0 %v1447
    %1580 = vmatpush2.msra.mxu0 %v1446
    %1581 = vmatprep.subr.mxu0 %v1444
    %1582 = vmatpush2.msra.mxu0 %v1443
    %1583 = vmatprep.subr.mxu0 %v1441
    %1584 = vmatpush2.msra.mxu0 %v1440
    %1585 = vmatprep.subr.mxu0 %v1438
    %1586 = vmatpush2.msra.mxu0 %v1437
    %1587 = vmatprep.subr.mxu0 %v1435
    %1588 = vmatpush2.msra.mxu0 %v1434
    %1589 = vmatprep.mubr.f32.mxu0 %v1511
    %1590 = vmatmul.mubr.f32.gmra.mxu0 %v1480
    %v1591 = vpop.f32.mrf.mxu0
    %v1592 = vadd.f32 0.0, %v1591
    %v1593 = vpop.f32.mrf.mxu0
    %v1594 = vadd.f32 0.0, %v1593
    %1595 = vmatprep.mubr.f32.mxu0 %v1513
    %1596 = vmatmul.mubr.f32.gmra.mxu0 %v1485
    %v1597 = vpop.f32.mrf.mxu0
    %v1598 = vadd.f32 0.0, %v1597
    %v1599 = vpop.f32.mrf.mxu0
    %v1600 = vadd.f32 0.0, %v1599
    %1601 = vmatprep.mubr.f32.mxu0 %v1515
    %1602 = vmatmul.mubr.f32.gmra.mxu0 %v1489
    %v1603 = vpop.f32.mrf.mxu0
    %v1604 = vadd.f32 0.0, %v1603
    %v1605 = vpop.f32.mrf.mxu0
    %v1606 = vadd.f32 0.0, %v1605
    %1607 = vmatprep.mubr.f32.mxu0 %v1517
    %1608 = vmatmul.mubr.f32.gmra.mxu0 %v1493
    %v1609 = vpop.f32.mrf.mxu0
    %v1610 = vadd.f32 0.0, %v1609
    %v1611 = vpop.f32.mrf.mxu0
    %v1612 = vadd.f32 0.0, %v1611
    %1613 = vmatprep.mubr.f32.mxu0 %v1519
    %1614 = vmatmul.mubr.f32.gmra.mxu0 %v1497
    %v1615 = vpop.f32.mrf.mxu0
    %v1616 = vadd.f32 0.0, %v1615
    %v1617 = vpop.f32.mrf.mxu0
    %v1618 = vadd.f32 0.0, %v1617
    %1619 = vmatprep.mubr.f32.mxu0 %v1521
    %1620 = vmatmul.mubr.f32.gmra.mxu0 %v1501
    %v1621 = vpop.f32.mrf.mxu0
    %v1622 = vadd.f32 0.0, %v1621
    %v1623 = vpop.f32.mrf.mxu0
    %v1624 = vadd.f32 0.0, %v1623
    %1625 = vmatprep.mubr.f32.mxu0 %v1523
    %1626 = vmatmul.mubr.f32.gmra.mxu0 %v1500
    %v1627 = vpop.f32.mrf.mxu0
    %v1628 = vadd.f32 0.0, %v1627
    %v1629 = vpop.f32.mrf.mxu0
    %v1630 = vadd.f32 0.0, %v1629
    %1631 = vdwg.mxu0
    %1632 = vmatprep.subr.mxu0 0.0
    %1633 = vmatpush1.msra.mxu0 %v1433
    %1634 = vmatprep.subr.mxu0 0.0
    %1635 = vmatpush1.msra.mxu0 %v1430
    %1636 = vmatprep.subr.mxu0 0.0
    %1637 = vmatpush1.msra.mxu0 %v1427
    %1638 = vmatprep.subr.mxu0 0.0
    %1639 = vmatpush1.msra.mxu0 %v1424
    %1640 = vmatprep.subr.mxu0 0.0
    %1641 = vmatpush1.msra.mxu0 %v1421
    %1642 = vmatprep.subr.mxu0 0.0
    %1643 = vmatpush1.msra.mxu0 %v1418
    %1644 = vmatprep.subr.mxu0 0.0
    %1645 = vmatpush1.msra.mxu0 %v1415
    %1646 = vmatprep.subr.mxu0 0.0
    %1647 = vmatpush1.msra.mxu0 %v1412
    %1648 = vmatprep.subr.mxu0 0.0
    %1649 = vmatpush1.msra.mxu0 %v1409
    %1650 = vmatprep.subr.mxu0 0.0
    %1651 = vmatpush1.msra.mxu0 %v1406
    %1652 = vmatprep.subr.mxu0 0.0
    %1653 = vmatpush1.msra.mxu0 %v1403
    %1654 = vmatprep.subr.mxu0 0.0
    %1655 = vmatpush1.msra.mxu0 %v1400
    %1656 = vmatprep.subr.mxu0 0.0
    %1657 = vmatpush1.msra.mxu0 %v1397
    %1658 = vmatprep.subr.mxu0 0.0
    %1659 = vmatpush1.msra.mxu0 %v1394
    %1660 = vmatprep.subr.mxu0 0.0
    %1661 = vmatpush1.msra.mxu0 %v1391
    %1662 = vmatprep.subr.mxu0 0.0
    %1663 = vmatpush1.msra.mxu0 %v1388
    %1664 = vmatprep.subr.mxu0 0.0
    %1665 = vmatpush2.msra.mxu0 0.0
    %1666 = vmatprep.subr.mxu0 0.0
    %1667 = vmatpush2.msra.mxu0 0.0
    %1668 = vmatprep.subr.mxu0 0.0
    %1669 = vmatpush2.msra.mxu0 0.0
    %1670 = vmatprep.subr.mxu0 0.0
    %1671 = vmatpush2.msra.mxu0 0.0
    %1672 = vmatprep.subr.mxu0 0.0
    %1673 = vmatpush2.msra.mxu0 0.0
    %1674 = vmatprep.subr.mxu0 0.0
    %1675 = vmatpush2.msra.mxu0 0.0
    %1676 = vmatprep.subr.mxu0 0.0
    %1677 = vmatpush2.msra.mxu0 %v1463
    %1678 = vmatprep.subr.mxu0 0.0
    %1679 = vmatpush2.msra.mxu0 %v1460
    %1680 = vmatprep.subr.mxu0 0.0
    %1681 = vmatpush2.msra.mxu0 %v1457
    %1682 = vmatprep.subr.mxu0 0.0
    %1683 = vmatpush2.msra.mxu0 %v1454
    %1684 = vmatprep.subr.mxu0 0.0
    %1685 = vmatpush2.msra.mxu0 %v1451
    %1686 = vmatprep.subr.mxu0 0.0
    %1687 = vmatpush2.msra.mxu0 %v1448
    %1688 = vmatprep.subr.mxu0 0.0
    %1689 = vmatpush2.msra.mxu0 %v1445
    %1690 = vmatprep.subr.mxu0 0.0
    %1691 = vmatpush2.msra.mxu0 %v1442
    %1692 = vmatprep.subr.mxu0 0.0
    %1693 = vmatpush2.msra.mxu0 %v1439
    %1694 = vmatprep.subr.mxu0 0.0
    %1695 = vmatpush2.msra.mxu0 %v1436
    %1696 = vmatprep.mubr.f32.mxu0 %v1511
    %1697 = vmatmul.mubr.f32.gmra.mxu0 %v1480
    %v1698 = vpop.f32.mrf.mxu0
    %v1699 = vadd.f32 0.0, %v1698
    %v1700 = vpop.f32.mrf.mxu0
    %1701 = vmatprep.mubr.f32.mxu0 %v1513
    %1702 = vmatmul.mubr.f32.gmra.mxu0 %v1485
    %v1703 = vpop.f32.mrf.mxu0
    %v1704 = vadd.f32 0.0, %v1703
    %v1705 = vpop.f32.mrf.mxu0
    %1706 = vmatprep.mubr.f32.mxu0 %v1515
    %1707 = vmatmul.mubr.f32.gmra.mxu0 %v1489
    %v1708 = vpop.f32.mrf.mxu0
    %v1709 = vadd.f32 0.0, %v1708
    %v1710 = vpop.f32.mrf.mxu0
    %1711 = vmatprep.mubr.f32.mxu0 %v1517
    %1712 = vmatmul.mubr.f32.gmra.mxu0 %v1493
    %v1713 = vpop.f32.mrf.mxu0
    %v1714 = vadd.f32 0.0, %v1713
    %v1715 = vpop.f32.mrf.mxu0
    %1716 = vmatprep.mubr.f32.mxu0 %v1519
    %1717 = vmatmul.mubr.f32.gmra.mxu0 %v1497
    %v1718 = vpop.f32.mrf.mxu0
    %v1719 = vadd.f32 0.0, %v1718
    %v1720 = vpop.f32.mrf.mxu0
    %1721 = vmatprep.mubr.f32.mxu0 %v1521
    %1722 = vmatmul.mubr.f32.gmra.mxu0 %v1501
    %v1723 = vpop.f32.mrf.mxu0
    %v1724 = vadd.f32 0.0, %v1723
    %v1725 = vpop.f32.mrf.mxu0
    %1726 = vmatprep.mubr.f32.mxu0 %v1523
    %1727 = vmatmul.mubr.f32.gmra.mxu0 %v1500
    %v1728 = vpop.f32.mrf.mxu0
    %v1729 = vadd.f32 0.0, %v1728
    %v1730 = vpop.f32.mrf.mxu0
    %1731 = vdwg.mxu0
    %v1732 = vsel %vm890, %v1294, 0
    %v1734 = vsel %vm890, %v1296, 0
    %v1736 = vsel %vm890, %v1298, 0
    %v1738 = vsel %vm890, %v1300, 0
    %v1740 = vsel %vm890, %v1302, 0
    %v1742 = vsel %vm890, %v1304, 0
    %v1744 = vsel %vm890, %v1306, 0
    %1746 = vmatprep.subr.mxu0 %v1353
    %1747 = vmatpush1.msra.mxu0 %v1352
    %1748 = vmatprep.subr.mxu0 %v1350
    %1749 = vmatpush1.msra.mxu0 %v1349
    %1750 = vmatprep.subr.mxu0 %v1347
    %1751 = vmatpush1.msra.mxu0 %v1346
    %1752 = vmatprep.subr.mxu0 %v1344
    %1753 = vmatpush1.msra.mxu0 %v1343
    %1754 = vmatprep.subr.mxu0 %v1341
    %1755 = vmatpush1.msra.mxu0 %v1340
    %1756 = vmatprep.subr.mxu0 %v1338
    %1757 = vmatpush1.msra.mxu0 %v1337
    %1758 = vmatprep.subr.mxu0 %v1335
    %1759 = vmatpush1.msra.mxu0 %v1334
    %1760 = vmatprep.subr.mxu0 %v1332
    %1761 = vmatpush1.msra.mxu0 %v1331
    %1762 = vmatprep.subr.mxu0 %v1329
    %1763 = vmatpush1.msra.mxu0 %v1328
    %1764 = vmatprep.subr.mxu0 %v1326
    %1765 = vmatpush1.msra.mxu0 %v1325
    %1766 = vmatprep.subr.mxu0 %v1323
    %1767 = vmatpush1.msra.mxu0 %v1322
    %1768 = vmatprep.subr.mxu0 %v1320
    %1769 = vmatpush1.msra.mxu0 %v1319
    %1770 = vmatprep.subr.mxu0 %v1317
    %1771 = vmatpush1.msra.mxu0 %v1316
    %1772 = vmatprep.subr.mxu0 %v1314
    %1773 = vmatpush1.msra.mxu0 %v1313
    %1774 = vmatprep.subr.mxu0 %v1311
    %1775 = vmatpush1.msra.mxu0 %v1310
    %1776 = vmatprep.subr.mxu0 %v1308
    %1777 = vmatpush1.msra.mxu0 %v1307
    %1778 = vmatprep.subr.mxu0 0.0
    %1779 = vmatpush2.msra.mxu0 0.0
    %1780 = vmatprep.subr.mxu0 0.0
    %1781 = vmatpush2.msra.mxu0 0.0
    %1782 = vmatprep.subr.mxu0 0.0
    %1783 = vmatpush2.msra.mxu0 0.0
    %1784 = vmatprep.subr.mxu0 0.0
    %1785 = vmatpush2.msra.mxu0 0.0
    %1786 = vmatprep.subr.mxu0 0.0
    %1787 = vmatpush2.msra.mxu0 0.0
    %1788 = vmatprep.subr.mxu0 0.0
    %1789 = vmatpush2.msra.mxu0 0.0
    %1790 = vmatprep.subr.mxu0 %v1383
    %1791 = vmatpush2.msra.mxu0 %v1382
    %1792 = vmatprep.subr.mxu0 %v1380
    %1793 = vmatpush2.msra.mxu0 %v1379
    %1794 = vmatprep.subr.mxu0 %v1377
    %1795 = vmatpush2.msra.mxu0 %v1376
    %1796 = vmatprep.subr.mxu0 %v1374
    %1797 = vmatpush2.msra.mxu0 %v1373
    %1798 = vmatprep.subr.mxu0 %v1371
    %1799 = vmatpush2.msra.mxu0 %v1370
    %1800 = vmatprep.subr.mxu0 %v1368
    %1801 = vmatpush2.msra.mxu0 %v1367
    %1802 = vmatprep.subr.mxu0 %v1365
    %1803 = vmatpush2.msra.mxu0 %v1364
    %1804 = vmatprep.subr.mxu0 %v1362
    %1805 = vmatpush2.msra.mxu0 %v1361
    %1806 = vmatprep.subr.mxu0 %v1359
    %1807 = vmatpush2.msra.mxu0 %v1358
    %1808 = vmatprep.subr.mxu0 %v1356
    %1809 = vmatpush2.msra.mxu0 %v1355
    %1810 = vmatprep.mubr.f32.mxu0 %v1732
    %1811 = vmatmul.mubr.f32.gmra.mxu0 %v1293
    %v1812 = vpop.f32.mrf.mxu0
    %v1813 = vadd.f32 %v1592, %v1812
    %v1814 = vpop.f32.mrf.mxu0
    %v1815 = vadd.f32 %v1594, %v1814
    %1816 = vmatprep.mubr.f32.mxu0 %v1734
    %1817 = vmatmul.mubr.f32.gmra.mxu0 %v1295
    %v1818 = vpop.f32.mrf.mxu0
    %v1819 = vadd.f32 %v1598, %v1818
    %v1820 = vpop.f32.mrf.mxu0
    %v1821 = vadd.f32 %v1600, %v1820
    %1822 = vmatprep.mubr.f32.mxu0 %v1736
    %1823 = vmatmul.mubr.f32.gmra.mxu0 %v1297
    %v1824 = vpop.f32.mrf.mxu0
    %v1825 = vadd.f32 %v1604, %v1824
    %v1826 = vpop.f32.mrf.mxu0
    %v1827 = vadd.f32 %v1606, %v1826
    %1828 = vmatprep.mubr.f32.mxu0 %v1738
    %1829 = vmatmul.mubr.f32.gmra.mxu0 %v1299
    %v1830 = vpop.f32.mrf.mxu0
    %v1831 = vadd.f32 %v1610, %v1830
    %v1832 = vpop.f32.mrf.mxu0
    %v1833 = vadd.f32 %v1612, %v1832
    %1834 = vmatprep.mubr.f32.mxu0 %v1740
    %1835 = vmatmul.mubr.f32.gmra.mxu0 %v1301
    %v1836 = vpop.f32.mrf.mxu0
    %v1837 = vadd.f32 %v1616, %v1836
    %v1838 = vpop.f32.mrf.mxu0
    %v1839 = vadd.f32 %v1618, %v1838
    %1840 = vmatprep.mubr.f32.mxu0 %v1742
    %1841 = vmatmul.mubr.f32.gmra.mxu0 %v1303
    %v1842 = vpop.f32.mrf.mxu0
    %v1843 = vadd.f32 %v1622, %v1842
    %v1844 = vpop.f32.mrf.mxu0
    %v1845 = vadd.f32 %v1624, %v1844
    %1846 = vmatprep.mubr.f32.mxu0 %v1744
    %1847 = vmatmul.mubr.f32.gmra.mxu0 %v1305
    %v1848 = vpop.f32.mrf.mxu0
    %v1849 = vadd.f32 %v1628, %v1848
    %v1850 = vpop.f32.mrf.mxu0
    %v1851 = vadd.f32 %v1630, %v1850
    %1852 = vdwg.mxu0
    %1853 = vmatprep.subr.mxu0 0.0
    %1854 = vmatpush1.msra.mxu0 %v1354
    %1855 = vmatprep.subr.mxu0 0.0
    %1856 = vmatpush1.msra.mxu0 %v1351
    %1857 = vmatprep.subr.mxu0 0.0
    %1858 = vmatpush1.msra.mxu0 %v1348
    %1859 = vmatprep.subr.mxu0 0.0
    %1860 = vmatpush1.msra.mxu0 %v1345
    %1861 = vmatprep.subr.mxu0 0.0
    %1862 = vmatpush1.msra.mxu0 %v1342
    %1863 = vmatprep.subr.mxu0 0.0
    %1864 = vmatpush1.msra.mxu0 %v1339
    %1865 = vmatprep.subr.mxu0 0.0
    %1866 = vmatpush1.msra.mxu0 %v1336
    %1867 = vmatprep.subr.mxu0 0.0
    %1868 = vmatpush1.msra.mxu0 %v1333
    %1869 = vmatprep.subr.mxu0 0.0
    %1870 = vmatpush1.msra.mxu0 %v1330
    %1871 = vmatprep.subr.mxu0 0.0
    %1872 = vmatpush1.msra.mxu0 %v1327
    %1873 = vmatprep.subr.mxu0 0.0
    %1874 = vmatpush1.msra.mxu0 %v1324
    %1875 = vmatprep.subr.mxu0 0.0
    %1876 = vmatpush1.msra.mxu0 %v1321
    %1877 = vmatprep.subr.mxu0 0.0
    %1878 = vmatpush1.msra.mxu0 %v1318
    %1879 = vmatprep.subr.mxu0 0.0
    %1880 = vmatpush1.msra.mxu0 %v1315
    %1881 = vmatprep.subr.mxu0 0.0
    %1882 = vmatpush1.msra.mxu0 %v1312
    %1883 = vmatprep.subr.mxu0 0.0
    %1884 = vmatpush1.msra.mxu0 %v1309
    %1885 = vmatprep.subr.mxu0 0.0
    %1886 = vmatpush2.msra.mxu0 0.0
    %1887 = vmatprep.subr.mxu0 0.0
    %1888 = vmatpush2.msra.mxu0 0.0
    %1889 = vmatprep.subr.mxu0 0.0
    %1890 = vmatpush2.msra.mxu0 0.0
    %1891 = vmatprep.subr.mxu0 0.0
    %1892 = vmatpush2.msra.mxu0 0.0
    %1893 = vmatprep.subr.mxu0 0.0
    %1894 = vmatpush2.msra.mxu0 0.0
    %1895 = vmatprep.subr.mxu0 0.0
    %1896 = vmatpush2.msra.mxu0 0.0
    %1897 = vmatprep.subr.mxu0 0.0
    %1898 = vmatpush2.msra.mxu0 %v1384
    %1899 = vmatprep.subr.mxu0 0.0
    %1900 = vmatpush2.msra.mxu0 %v1381
    %1901 = vmatprep.subr.mxu0 0.0
    %1902 = vmatpush2.msra.mxu0 %v1378
    %1903 = vmatprep.subr.mxu0 0.0
    %1904 = vmatpush2.msra.mxu0 %v1375
    %1905 = vmatprep.subr.mxu0 0.0
    %1906 = vmatpush2.msra.mxu0 %v1372
    %1907 = vmatprep.subr.mxu0 0.0
    %1908 = vmatpush2.msra.mxu0 %v1369
    %1909 = vmatprep.subr.mxu0 0.0
    %1910 = vmatpush2.msra.mxu0 %v1366
    %1911 = vmatprep.subr.mxu0 0.0
    %1912 = vmatpush2.msra.mxu0 %v1363
    %1913 = vmatprep.subr.mxu0 0.0
    %1914 = vmatpush2.msra.mxu0 %v1360
    %1915 = vmatprep.subr.mxu0 0.0
    %1916 = vmatpush2.msra.mxu0 %v1357
    %1917 = vmatprep.mubr.f32.mxu0 %v1732
    %1918 = vmatmul.mubr.f32.gmra.mxu0 %v1293
    %v1919 = vpop.f32.mrf.mxu0
    %v1920 = vadd.f32 %v1699, %v1919
    %v1921 = vpop.f32.mrf.mxu0
    %1922 = vmatprep.mubr.f32.mxu0 %v1734
    %1923 = vmatmul.mubr.f32.gmra.mxu0 %v1295
    %v1924 = vpop.f32.mrf.mxu0
    %v1925 = vadd.f32 %v1704, %v1924
    %v1926 = vpop.f32.mrf.mxu0
    %1927 = vmatprep.mubr.f32.mxu0 %v1736
    %1928 = vmatmul.mubr.f32.gmra.mxu0 %v1297
    %v1929 = vpop.f32.mrf.mxu0
    %v1930 = vadd.f32 %v1709, %v1929
    %v1931 = vpop.f32.mrf.mxu0
    %1932 = vmatprep.mubr.f32.mxu0 %v1738
    %1933 = vmatmul.mubr.f32.gmra.mxu0 %v1299
    %v1934 = vpop.f32.mrf.mxu0
    %v1935 = vadd.f32 %v1714, %v1934
    %v1936 = vpop.f32.mrf.mxu0
    %1937 = vmatprep.mubr.f32.mxu0 %v1740
    %1938 = vmatmul.mubr.f32.gmra.mxu0 %v1301
    %v1939 = vpop.f32.mrf.mxu0
    %v1940 = vadd.f32 %v1719, %v1939
    %v1941 = vpop.f32.mrf.mxu0
    %1942 = vmatprep.mubr.f32.mxu0 %v1742
    %1943 = vmatmul.mubr.f32.gmra.mxu0 %v1303
    %v1944 = vpop.f32.mrf.mxu0
    %v1945 = vadd.f32 %v1724, %v1944
    %v1946 = vpop.f32.mrf.mxu0
    %1947 = vmatprep.mubr.f32.mxu0 %v1744
    %1948 = vmatmul.mubr.f32.gmra.mxu0 %v1305
    %v1949 = vpop.f32.mrf.mxu0
    %v1950 = vadd.f32 %v1729, %v1949
    %v1951 = vpop.f32.mrf.mxu0
    %1952 = vdwg.mxu0
    %s1953 = scalar_lea.vmem %s4, 1248
    %v1954 = vld [vmem:[%s1953] sm:$0xff]
    %v1955 = vld [vmem:[%s1953 + $0x8] sm:$0xff]
    %v1956 = vld [vmem:[%s1953 + $0x10] sm:$0xff]
    %v1957 = vld [vmem:[%s1953 + $0x18] sm:$0xff]
    %v1958 = vld [vmem:[%s1953 + $0x20] sm:$0xff]
    %v1959 = vld [vmem:[%s1953 + $0x28] sm:$0xff]
    %v1960 = vld [vmem:[%s1953 + $0x30] sm:$0xff]
    %v1961 = vld [vmem:[%s1953 + $0x38] sm:$0xff]
    %v1962 = vld [vmem:[%s1953 + $0x40] sm:$0xff]
    %v1963 = vld [vmem:[%s1953 + $0x48] sm:$0xff]
    %v1964 = vld [vmem:[%s1953 + $0x50] sm:$0xff]
    %v1965 = vld [vmem:[%s1953 + $0x58] sm:$0xff]
    %v1966 = vld [vmem:[%s1953 + $0x60] sm:$0xff]
    %v1967 = vld [vmem:[%s1953 + $0x68] sm:$0xff]
    %v1968 = vld [vmem:[%s1953 + $0x70] sm:$0xff]
    %v1969 = vld [vmem:[%s1953 + $0x78] sm:$0xff]
    %v1970 = vld [vmem:[%s1953 + $0x80] sm:$0xff]
    %v1971 = vld [vmem:[%s1953 + $0x88] sm:$0xff]
    %v1972 = vld [vmem:[%s1953 + $0x90] sm:$0xff]
    %v1973 = vld [vmem:[%s1953 + $0x98] sm:$0xff]
    %v1974 = vld [vmem:[%s1953 + $0xa0] sm:$0xff]
    %v1975 = vld [vmem:[%s1953 + $0xa8] sm:$0xff]
    %v1976 = vld [vmem:[%s1953 + $0xb0] sm:$0xff]
    %v1977 = vld [vmem:[%s1953 + $0xb8] sm:$0xff]
    %v1978 = vld [vmem:[%s1953 + $0xc0] sm:$0xff]
    %v1979 = vld [vmem:[%s1953 + $0xc8] sm:$0xff]
    %v1980 = vld [vmem:[%s1953 + $0xd0] sm:$0xff]
    %v1981 = vld [vmem:[%s1953 + $0xd8] sm:$0xff]
    %v1982 = vld [vmem:[%s1953 + $0xe0] sm:$0xff]
    %v1983 = vld [vmem:[%s1953 + $0xe8] sm:$0xff]
    %v1984 = vld [vmem:[%s1953 + $0xf0] sm:$0xff]
    %v1985 = vld [vmem:[%s1953 + $0xf8] sm:$0xff]
    %v1986 = vld [vmem:[%s1953 + $0x100] sm:$0xff]
    %v1987 = vld [vmem:[%s1953 + $0x108] sm:$0xff]
    %v1988 = vld [vmem:[%s1953 + $0x110] sm:$0xff]
    %v1989 = vld [vmem:[%s1953 + $0x118] sm:$0xff]
    %v1990 = vld [vmem:[%s1953 + $0x120] sm:$0xff]
    %v1991 = vld [vmem:[%s1953 + $0x128] sm:$0xff]
    %v1992 = vld [vmem:[%s1953 + $0x130] sm:$0xff]
    %v1993 = vld [vmem:[%s1953 + $0x138] sm:$0xff]
    %v1994 = vld [vmem:[%s1953 + $0x140] sm:$0xff]
    %v1995 = vld [vmem:[%s1953 + $0x148] sm:$0xff]
    %v1996 = vld [vmem:[%s1953 + $0x150] sm:$0xff]
    %v1997 = vld [vmem:[%s1953 + $0x158] sm:$0xff]
    %v1998 = vld [vmem:[%s1953 + $0x160] sm:$0xff]
    %v1999 = vld [vmem:[%s1953 + $0x168] sm:$0xff]
    %v2000 = vld [vmem:[%s1953 + $0x170] sm:$0xff]
    %v2001 = vld [vmem:[%s1953 + $0x178] sm:$0xff]
    %v2002 = vld [vmem:[%s1953 + $0x180] sm:$0xff]
    %v2003 = vld [vmem:[%s1953 + $0x188] sm:$0xff]
    %v2004 = vld [vmem:[%s1953 + $0x190] sm:$0xff]
    %v2005 = vld [vmem:[%s1953 + $0x198] sm:$0xff]
    %v2006 = vld [vmem:[%s1953 + $0x1a0] sm:$0xff]
    %v2007 = vld [vmem:[%s1953 + $0x1a8] sm:$0xff]
    %v2008 = vld [vmem:[%s1953 + $0x1b0] sm:$0xff]
    %v2009 = vld [vmem:[%s1953 + $0x1b8] sm:$0xff]
    %v2010 = vld [vmem:[%s1953 + $0x1c0] sm:$0xff]
    %v2011 = vld [vmem:[%s1953 + $0x1c8] sm:$0xff]
    %v2012 = vld [vmem:[%s1953 + $0x1d0] sm:$0xff]
    %v2013 = vld [vmem:[%s1953 + $0x1d8] sm:$0xff]
    %v2014 = vld [vmem:[%s1953 + $0x1e0] sm:$0xff]
    %v2015 = vld [vmem:[%s1953 + $0x1e8] sm:$0xff]
    %v2016 = vld [vmem:[%s1953 + $0x1f0] sm:$0xff]
    %v2017 = vld [vmem:[%s1953 + $0x1f8] sm:$0xff]
    %v2018 = vld [vmem:[%s1953 + $0x200] sm:$0xff]
    %v2019 = vld [vmem:[%s1953 + $0x208] sm:$0xff]
    %v2020 = vld [vmem:[%s1953 + $0x210] sm:$0xff]
    %v2021 = vld [vmem:[%s1953 + $0x218] sm:$0xff]
    %v2022 = vld [vmem:[%s1953 + $0x220] sm:$0xff]
    %v2023 = vld [vmem:[%s1953 + $0x228] sm:$0xff]
    %v2024 = vld [vmem:[%s1953 + $0x230] sm:$0xff]
    %v2025 = vld [vmem:[%s1953 + $0x238] sm:$0xff]
    %v2026 = vld [vmem:[%s1953 + $0x240] sm:$0xff]
    %v2027 = vld [vmem:[%s1953 + $0x248] sm:$0xff]
    %v2028 = vld [vmem:[%s1953 + $0x250] sm:$0xff]
    %v2029 = vld [vmem:[%s1953 + $0x258] sm:$0xff]
    %v2030 = vld [vmem:[%s1953 + $0x260] sm:$0xff]
    %v2031 = vld [vmem:[%s1953 + $0x268] sm:$0xff]
    %v2032 = vrot.slane %v1293, 2
    %v2033 = vrot.slane %v1295, 2
    %v2034 = vsel %vm463, %v2032, %v2033
    %v2035 = vrot.slane %v1294, 2
    %v2036 = vrot.slane %v1296, 2
    %v2037 = vsel %vm463, %v2035, %v2036
    %v2038 = vrot.slane %v1297, 2
    %v2039 = vsel %vm463, %v2033, %v2038
    %v2040 = vrot.slane %v1298, 2
    %v2041 = vsel %vm463, %v2036, %v2040
    %v2042 = vrot.slane %v1299, 2
    %v2043 = vsel %vm463, %v2038, %v2042
    %v2044 = vrot.slane %v1300, 2
    %v2045 = vsel %vm463, %v2040, %v2044
    %v2046 = vrot.slane %v1301, 2
    %v2047 = vsel %vm463, %v2042, %v2046
    %v2048 = vrot.slane %v1302, 2
    %v2049 = vsel %vm463, %v2044, %v2048
    %v2050 = vrot.slane %v1303, 2
    %v2051 = vsel %vm463, %v2046, %v2050
    %v2052 = vrot.slane %v1304, 2
    %v2053 = vsel %vm463, %v2048, %v2052
    %v2054 = vrot.slane %v1305, 2
    %v2055 = vsel %vm463, %v2050, %v2054
    %v2056 = vrot.slane %v1306, 2
    %v2057 = vsel %vm463, %v2052, %v2056
    %v2065 = vsel %vm890, %v2037, 0
    %v2067 = vsel %vm890, %v2041, 0
    %v2069 = vsel %vm890, %v2045, 0
    %v2071 = vsel %vm890, %v2049, 0
    %v2073 = vsel %vm890, %v2053, 0
    %v2075 = vsel %vm890, %v2057, 0
    %v2077 = vsel %vm890, %v2056, 0
    %2079 = vmatprep.subr.mxu0 %v2000
    %2080 = vmatpush1.msra.mxu0 %v1999
    %2081 = vmatprep.subr.mxu0 %v1997
    %2082 = vmatpush1.msra.mxu0 %v1996
    %2083 = vmatprep.subr.mxu0 %v1994
    %2084 = vmatpush1.msra.mxu0 %v1993
    %2085 = vmatprep.subr.mxu0 %v1991
    %2086 = vmatpush1.msra.mxu0 %v1990
    %2087 = vmatprep.subr.mxu0 %v1988
    %2088 = vmatpush1.msra.mxu0 %v1987
    %2089 = vmatprep.subr.mxu0 %v1985
    %2090 = vmatpush1.msra.mxu0 %v1984
    %2091 = vmatprep.subr.mxu0 %v1982
    %2092 = vmatpush1.msra.mxu0 %v1981
    %2093 = vmatprep.subr.mxu0 %v1979
    %2094 = vmatpush1.msra.mxu0 %v1978
    %2095 = vmatprep.subr.mxu0 %v1976
    %2096 = vmatpush1.msra.mxu0 %v1975
    %2097 = vmatprep.subr.mxu0 %v1973
    %2098 = vmatpush1.msra.mxu0 %v1972
    %2099 = vmatprep.subr.mxu0 %v1970
    %2100 = vmatpush1.msra.mxu0 %v1969
    %2101 = vmatprep.subr.mxu0 %v1967
    %2102 = vmatpush1.msra.mxu0 %v1966
    %2103 = vmatprep.subr.mxu0 %v1964
    %2104 = vmatpush1.msra.mxu0 %v1963
    %2105 = vmatprep.subr.mxu0 %v1961
    %2106 = vmatpush1.msra.mxu0 %v1960
    %2107 = vmatprep.subr.mxu0 %v1958
    %2108 = vmatpush1.msra.mxu0 %v1957
    %2109 = vmatprep.subr.mxu0 %v1955
    %2110 = vmatpush1.msra.mxu0 %v1954
    %2111 = vmatprep.subr.mxu0 0.0
    %2112 = vmatpush2.msra.mxu0 0.0
    %2113 = vmatprep.subr.mxu0 0.0
    %2114 = vmatpush2.msra.mxu0 0.0
    %2115 = vmatprep.subr.mxu0 0.0
    %2116 = vmatpush2.msra.mxu0 0.0
    %2117 = vmatprep.subr.mxu0 0.0
    %2118 = vmatpush2.msra.mxu0 0.0
    %2119 = vmatprep.subr.mxu0 0.0
    %2120 = vmatpush2.msra.mxu0 0.0
    %2121 = vmatprep.subr.mxu0 0.0
    %2122 = vmatpush2.msra.mxu0 0.0
    %2123 = vmatprep.subr.mxu0 %v2030
    %2124 = vmatpush2.msra.mxu0 %v2029
    %2125 = vmatprep.subr.mxu0 %v2027
    %2126 = vmatpush2.msra.mxu0 %v2026
    %2127 = vmatprep.subr.mxu0 %v2024
    %2128 = vmatpush2.msra.mxu0 %v2023
    %2129 = vmatprep.subr.mxu0 %v2021
    %2130 = vmatpush2.msra.mxu0 %v2020
    %2131 = vmatprep.subr.mxu0 %v2018
    %2132 = vmatpush2.msra.mxu0 %v2017
    %2133 = vmatprep.subr.mxu0 %v2015
    %2134 = vmatpush2.msra.mxu0 %v2014
    %2135 = vmatprep.subr.mxu0 %v2012
    %2136 = vmatpush2.msra.mxu0 %v2011
    %2137 = vmatprep.subr.mxu0 %v2009
    %2138 = vmatpush2.msra.mxu0 %v2008
    %2139 = vmatprep.subr.mxu0 %v2006
    %2140 = vmatpush2.msra.mxu0 %v2005
    %2141 = vmatprep.subr.mxu0 %v2003
    %2142 = vmatpush2.msra.mxu0 %v2002
    %2143 = vmatprep.mubr.f32.mxu0 %v2065
    %2144 = vmatmul.mubr.f32.gmra.mxu0 %v2034
    %v2145 = vpop.f32.mrf.mxu0
    %v2146 = vadd.f32 0.0, %v2145
    %v2147 = vpop.f32.mrf.mxu0
    %v2148 = vadd.f32 0.0, %v2147
    %2149 = vmatprep.mubr.f32.mxu0 %v2067
    %2150 = vmatmul.mubr.f32.gmra.mxu0 %v2039
    %v2151 = vpop.f32.mrf.mxu0
    %v2152 = vadd.f32 0.0, %v2151
    %v2153 = vpop.f32.mrf.mxu0
    %v2154 = vadd.f32 0.0, %v2153
    %2155 = vmatprep.mubr.f32.mxu0 %v2069
    %2156 = vmatmul.mubr.f32.gmra.mxu0 %v2043
    %v2157 = vpop.f32.mrf.mxu0
    %v2158 = vadd.f32 0.0, %v2157
    %v2159 = vpop.f32.mrf.mxu0
    %v2160 = vadd.f32 0.0, %v2159
    %2161 = vmatprep.mubr.f32.mxu0 %v2071
    %2162 = vmatmul.mubr.f32.gmra.mxu0 %v2047
    %v2163 = vpop.f32.mrf.mxu0
    %v2164 = vadd.f32 0.0, %v2163
    %v2165 = vpop.f32.mrf.mxu0
    %v2166 = vadd.f32 0.0, %v2165
    %2167 = vmatprep.mubr.f32.mxu0 %v2073
    %2168 = vmatmul.mubr.f32.gmra.mxu0 %v2051
    %v2169 = vpop.f32.mrf.mxu0
    %v2170 = vadd.f32 0.0, %v2169
    %v2171 = vpop.f32.mrf.mxu0
    %v2172 = vadd.f32 0.0, %v2171
    %2173 = vmatprep.mubr.f32.mxu0 %v2075
    %2174 = vmatmul.mubr.f32.gmra.mxu0 %v2055
    %v2175 = vpop.f32.mrf.mxu0
    %v2176 = vadd.f32 0.0, %v2175
    %v2177 = vpop.f32.mrf.mxu0
    %v2178 = vadd.f32 0.0, %v2177
    %2179 = vmatprep.mubr.f32.mxu0 %v2077
    %2180 = vmatmul.mubr.f32.gmra.mxu0 %v2054
    %v2181 = vpop.f32.mrf.mxu0
    %v2182 = vadd.f32 0.0, %v2181
    %v2183 = vpop.f32.mrf.mxu0
    %v2184 = vadd.f32 0.0, %v2183
    %2185 = vdwg.mxu0
    %2186 = vmatprep.subr.mxu0 0.0
    %2187 = vmatpush1.msra.mxu0 %v2001
    %2188 = vmatprep.subr.mxu0 0.0
    %2189 = vmatpush1.msra.mxu0 %v1998
    %2190 = vmatprep.subr.mxu0 0.0
    %2191 = vmatpush1.msra.mxu0 %v1995
    %2192 = vmatprep.subr.mxu0 0.0
    %2193 = vmatpush1.msra.mxu0 %v1992
    %2194 = vmatprep.subr.mxu0 0.0
    %2195 = vmatpush1.msra.mxu0 %v1989
    %2196 = vmatprep.subr.mxu0 0.0
    %2197 = vmatpush1.msra.mxu0 %v1986
    %2198 = vmatprep.subr.mxu0 0.0
    %2199 = vmatpush1.msra.mxu0 %v1983
    %2200 = vmatprep.subr.mxu0 0.0
    %2201 = vmatpush1.msra.mxu0 %v1980
    %2202 = vmatprep.subr.mxu0 0.0
    %2203 = vmatpush1.msra.mxu0 %v1977
    %2204 = vmatprep.subr.mxu0 0.0
    %2205 = vmatpush1.msra.mxu0 %v1974
    %2206 = vmatprep.subr.mxu0 0.0
    %2207 = vmatpush1.msra.mxu0 %v1971
    %2208 = vmatprep.subr.mxu0 0.0
    %2209 = vmatpush1.msra.mxu0 %v1968
    %2210 = vmatprep.subr.mxu0 0.0
    %2211 = vmatpush1.msra.mxu0 %v1965
    %2212 = vmatprep.subr.mxu0 0.0
    %2213 = vmatpush1.msra.mxu0 %v1962
    %2214 = vmatprep.subr.mxu0 0.0
    %2215 = vmatpush1.msra.mxu0 %v1959
    %2216 = vmatprep.subr.mxu0 0.0
    %2217 = vmatpush1.msra.mxu0 %v1956
    %2218 = vmatprep.subr.mxu0 0.0
    %2219 = vmatpush2.msra.mxu0 0.0
    %2220 = vmatprep.subr.mxu0 0.0
    %2221 = vmatpush2.msra.mxu0 0.0
    %2222 = vmatprep.subr.mxu0 0.0
    %2223 = vmatpush2.msra.mxu0 0.0
    %2224 = vmatprep.subr.mxu0 0.0
    %2225 = vmatpush2.msra.mxu0 0.0
    %2226 = vmatprep.subr.mxu0 0.0
    %2227 = vmatpush2.msra.mxu0 0.0
    %2228 = vmatprep.subr.mxu0 0.0
    %2229 = vmatpush2.msra.mxu0 0.0
    %2230 = vmatprep.subr.mxu0 0.0
    %2231 = vmatpush2.msra.mxu0 %v2031
    %2232 = vmatprep.subr.mxu0 0.0
    %2233 = vmatpush2.msra.mxu0 %v2028
    %2234 = vmatprep.subr.mxu0 0.0
    %2235 = vmatpush2.msra.mxu0 %v2025
    %2236 = vmatprep.subr.mxu0 0.0
    %2237 = vmatpush2.msra.mxu0 %v2022
    %2238 = vmatprep.subr.mxu0 0.0
    %2239 = vmatpush2.msra.mxu0 %v2019
    %2240 = vmatprep.subr.mxu0 0.0
    %2241 = vmatpush2.msra.mxu0 %v2016
    %2242 = vmatprep.subr.mxu0 0.0
    %2243 = vmatpush2.msra.mxu0 %v2013
    %2244 = vmatprep.subr.mxu0 0.0
    %2245 = vmatpush2.msra.mxu0 %v2010
    %2246 = vmatprep.subr.mxu0 0.0
    %2247 = vmatpush2.msra.mxu0 %v2007
    %2248 = vmatprep.subr.mxu0 0.0
    %2249 = vmatpush2.msra.mxu0 %v2004
    %2250 = vmatprep.mubr.f32.mxu0 %v2065
    %2251 = vmatmul.mubr.f32.gmra.mxu0 %v2034
    %v2252 = vpop.f32.mrf.mxu0
    %v2253 = vadd.f32 0.0, %v2252
    %v2254 = vpop.f32.mrf.mxu0
    %2255 = vmatprep.mubr.f32.mxu0 %v2067
    %2256 = vmatmul.mubr.f32.gmra.mxu0 %v2039
    %v2257 = vpop.f32.mrf.mxu0
    %v2258 = vadd.f32 0.0, %v2257
    %v2259 = vpop.f32.mrf.mxu0
    %2260 = vmatprep.mubr.f32.mxu0 %v2069
    %2261 = vmatmul.mubr.f32.gmra.mxu0 %v2043
    %v2262 = vpop.f32.mrf.mxu0
    %v2263 = vadd.f32 0.0, %v2262
    %v2264 = vpop.f32.mrf.mxu0
    %2265 = vmatprep.mubr.f32.mxu0 %v2071
    %2266 = vmatmul.mubr.f32.gmra.mxu0 %v2047
    %v2267 = vpop.f32.mrf.mxu0
    %v2268 = vadd.f32 0.0, %v2267
    %v2269 = vpop.f32.mrf.mxu0
    %2270 = vmatprep.mubr.f32.mxu0 %v2073
    %2271 = vmatmul.mubr.f32.gmra.mxu0 %v2051
    %v2272 = vpop.f32.mrf.mxu0
    %v2273 = vadd.f32 0.0, %v2272
    %v2274 = vpop.f32.mrf.mxu0
    %2275 = vmatprep.mubr.f32.mxu0 %v2075
    %2276 = vmatmul.mubr.f32.gmra.mxu0 %v2055
    %v2277 = vpop.f32.mrf.mxu0
    %v2278 = vadd.f32 0.0, %v2277
    %v2279 = vpop.f32.mrf.mxu0
    %2280 = vmatprep.mubr.f32.mxu0 %v2077
    %2281 = vmatmul.mubr.f32.gmra.mxu0 %v2054
    %v2282 = vpop.f32.mrf.mxu0
    %v2283 = vadd.f32 0.0, %v2282
    %v2284 = vpop.f32.mrf.mxu0
    %2285 = vdwg.mxu0
    %v2286 = vadd.f32 %v1813, %v2146
    %v2287 = vadd.f32 %v1815, %v2148
    %v2288 = vadd.f32 %v1920, %v2253
    %v2289 = vadd.f32 %v1819, %v2152
    %v2290 = vadd.f32 %v1821, %v2154
    %v2291 = vadd.f32 %v1925, %v2258
    %v2292 = vadd.f32 %v1825, %v2158
    %v2293 = vadd.f32 %v1827, %v2160
    %v2294 = vadd.f32 %v1930, %v2263
    %v2295 = vadd.f32 %v1831, %v2164
    %v2296 = vadd.f32 %v1833, %v2166
    %v2297 = vadd.f32 %v1935, %v2268
    %v2298 = vadd.f32 %v1837, %v2170
    %v2299 = vadd.f32 %v1839, %v2172
    %v2300 = vadd.f32 %v1940, %v2273
    %v2301 = vadd.f32 %v1843, %v2176
    %v2302 = vadd.f32 %v1845, %v2178
    %v2303 = vadd.f32 %v1945, %v2278
    %v2304 = vadd.f32 %v1849, %v2182
    %v2305 = vadd.f32 %v1851, %v2184
    %v2306 = vadd.f32 %v1950, %v2283
    %v2307 = vld [vmem:[%s5] sm:$0x7]
    %v2309 = vlaneseq
    %v2310 = vshrl.u32 %v2309, 7
    %v2311 = vsub.s32 0, %v2310
    %v2312 = vrot.slane %v2307, %v2311
    %v2313 = vlaneseq
    %v2314 = vshrl.u32 %v2313, 7
    %v2315 = vsub.s32 1, %v2314
    %v2316 = vrot.slane %v2307, %v2315
    %v2317 = vlaneseq
    %v2318 = vshrl.u32 %v2317, 7
    %v2319 = vsub.s32 2, %v2318
    %v2320 = vrot.slane %v2307, %v2319
    %v2324 = vadd.f32 %v2286, %v2312
    %v2325 = vadd.f32 %v2287, %v2316
    %v2326 = vadd.f32 %v2288, %v2320
    %v2327 = vadd.f32 %v2289, %v2312
    %v2328 = vadd.f32 %v2290, %v2316
    %v2329 = vadd.f32 %v2291, %v2320
    %v2330 = vadd.f32 %v2292, %v2312
    %v2331 = vadd.f32 %v2293, %v2316
    %v2332 = vadd.f32 %v2294, %v2320
    %v2333 = vadd.f32 %v2295, %v2312
    %v2334 = vadd.f32 %v2296, %v2316
    %v2335 = vadd.f32 %v2297, %v2320
    %v2336 = vadd.f32 %v2298, %v2312
    %v2337 = vadd.f32 %v2299, %v2316
    %v2338 = vadd.f32 %v2300, %v2320
    %v2339 = vadd.f32 %v2301, %v2312
    %v2340 = vadd.f32 %v2302, %v2316
    %v2341 = vadd.f32 %v2303, %v2320
    %v2342 = vadd.f32 %v2304, %v2312
    %v2343 = vadd.f32 %v2305, %v2316
    %v2344 = vadd.f32 %v2306, %v2320
    %vm2345 = vcmp.lt.s32.totalorder %v645, 24
    %vm2346 = vcmp.lt.s32.totalorder %v646, 24
    %vm2347 = vcmp.lt.s32.totalorder %v647, 24
    %vm2348 = vcmp.lt.s32.totalorder %v648, 24
    %vm2349 = vcmp.lt.s32.totalorder %v649, 24
    %vm2350 = vcmp.lt.s32.totalorder %v650, 24
    %vm2351 = vcmp.lt.s32.totalorder %v651, 24
    %vm2352 = vcmp.lt.s32.totalorder %v645, 52
    %vm2353 = vcmp.lt.s32.totalorder %v646, 52
    %vm2354 = vcmp.lt.s32.totalorder %v647, 52
    %vm2355 = vcmp.lt.s32.totalorder %v648, 52
    %vm2356 = vcmp.lt.s32.totalorder %v649, 52
    %vm2357 = vcmp.lt.s32.totalorder %v650, 52
    %vm2358 = vcmp.lt.s32.totalorder %v651, 52
    %vm2359 = vmand %vm659, %vm2352
    %vm2360 = vmand %vm660, %vm2353
    %vm2361 = vmand %vm661, %vm2354
    %vm2362 = vmand %vm662, %vm2355
    %vm2363 = vmand %vm663, %vm2356
    %vm2364 = vmand %vm664, %vm2357
    %vm2365 = vmand %vm665, %vm2358
    %vm2366 = vmor %vm2345, %vm2359
    %vm2367 = vmor %vm2346, %vm2360
    %vm2368 = vmor %vm2347, %vm2361
    %vm2369 = vmor %vm2348, %vm2362
    %vm2370 = vmor %vm2349, %vm2363
    %vm2371 = vmor %vm2350, %vm2364
    %vm2372 = vmor %vm2351, %vm2365
    %v2373 = vsel %vm2366, 1, 0
    %v2374 = vsel %vm2367, 1, 0
    %v2375 = vsel %vm2368, 1, 0
    %v2376 = vsel %vm2369, 1, 0
    %v2377 = vsel %vm2370, 1, 0
    %v2378 = vsel %vm2371, 1, 0
    %v2379 = vsel %vm2372, 1, 0
    %vm2380 = vcmp.eq.s32.totalorder %v2373, 1
    %vm2381 = vcmp.eq.s32.totalorder %v2374, 1
    %vm2382 = vcmp.eq.s32.totalorder %v2375, 1
    %vm2383 = vcmp.eq.s32.totalorder %v2376, 1
    %vm2384 = vcmp.eq.s32.totalorder %v2377, 1
    %vm2385 = vcmp.eq.s32.totalorder %v2378, 1
    %vm2386 = vcmp.eq.s32.totalorder %v2379, 1
    %v2387 = vsel %vm2380, %v2324, 0.0
    %v2388 = vsel %vm2380, %v2325, 0.0
    %v2389 = vsel %vm2380, %v2326, 0.0
    %v2390 = vsel %vm2381, %v2327, 0.0
    %v2391 = vsel %vm2381, %v2328, 0.0
    %v2392 = vsel %vm2381, %v2329, 0.0
    %v2393 = vsel %vm2382, %v2330, 0.0
    %v2394 = vsel %vm2382, %v2331, 0.0
    %v2395 = vsel %vm2382, %v2332, 0.0
    %v2396 = vsel %vm2383, %v2333, 0.0
    %v2397 = vsel %vm2383, %v2334, 0.0
    %v2398 = vsel %vm2383, %v2335, 0.0
    %v2399 = vsel %vm2384, %v2336, 0.0
    %v2400 = vsel %vm2384, %v2337, 0.0
    %v2401 = vsel %vm2384, %v2338, 0.0
    %v2402 = vsel %vm2385, %v2339, 0.0
    %v2403 = vsel %vm2385, %v2340, 0.0
    %v2404 = vsel %vm2385, %v2341, 0.0
    %v2405 = vsel %vm2386, %v2342, 0.0
    %v2406 = vsel %vm2386, %v2343, 0.0
    %v2407 = vsel %vm2386, %v2344, 0.0
    %v2408 = vmul.f32 %v2324, %v2324
    %v2409 = vmul.f32 %v2325, %v2325
    %v2410 = vmul.f32 %v2326, %v2326
    %v2411 = vmul.f32 %v2327, %v2327
    %v2412 = vmul.f32 %v2328, %v2328
    %v2413 = vmul.f32 %v2329, %v2329
    %v2414 = vmul.f32 %v2330, %v2330
    %v2415 = vmul.f32 %v2331, %v2331
    %v2416 = vmul.f32 %v2332, %v2332
    %v2417 = vmul.f32 %v2333, %v2333
    %v2418 = vmul.f32 %v2334, %v2334
    %v2419 = vmul.f32 %v2335, %v2335
    %v2420 = vmul.f32 %v2336, %v2336
    %v2421 = vmul.f32 %v2337, %v2337
    %v2422 = vmul.f32 %v2338, %v2338
    %v2423 = vmul.f32 %v2339, %v2339
    %v2424 = vmul.f32 %v2340, %v2340
    %v2425 = vmul.f32 %v2341, %v2341
    %v2426 = vmul.f32 %v2342, %v2342
    %v2427 = vmul.f32 %v2343, %v2343
    %v2428 = vmul.f32 %v2344, %v2344
    %v2429 = vsel %vm2380, %v2408, 0.0
    %v2430 = vsel %vm2380, %v2409, 0.0
    %v2431 = vsel %vm2380, %v2410, 0.0
    %v2432 = vsel %vm2381, %v2411, 0.0
    %v2433 = vsel %vm2381, %v2412, 0.0
    %v2434 = vsel %vm2381, %v2413, 0.0
    %v2435 = vsel %vm2382, %v2414, 0.0
    %v2436 = vsel %vm2382, %v2415, 0.0
    %v2437 = vsel %vm2382, %v2416, 0.0
    %v2438 = vsel %vm2383, %v2417, 0.0
    %v2439 = vsel %vm2383, %v2418, 0.0
    %v2440 = vsel %vm2383, %v2419, 0.0
    %v2441 = vsel %vm2384, %v2420, 0.0
    %v2442 = vsel %vm2384, %v2421, 0.0
    %v2443 = vsel %vm2384, %v2422, 0.0
    %v2444 = vsel %vm2385, %v2423, 0.0
    %v2445 = vsel %vm2385, %v2424, 0.0
    %v2446 = vsel %vm2385, %v2425, 0.0
    %v2447 = vsel %vm2386, %v2426, 0.0
    %v2448 = vsel %vm2386, %v2427, 0.0
    %v2449 = vsel %vm2386, %v2428, 0.0
    %v2450 = vadd.s32 %v645, 208
    %v2451 = vadd.s32 %v645, 216
    %v2452 = vadd.s32 %v645, 224
    %v2453 = vadd.s32 %v645, 232
    %v2454 = vadd.s32 %v645, 240
    %v2455 = vadd.s32 %v645, 248
    %v2456 = vadd.s32 %v645, 256
    %v2457 = vadd.s32 %v645, 264
    %v2458 = vadd.s32 %v645, 272
    %v2459 = vadd.s32 %v645, 280
    %v2460 = vadd.s32 %v645, 288
    %v2461 = vadd.s32 %v645, 296
    %v2462 = vadd.s32 %v645, 304
    %v2463 = vadd.s32 %v645, 312
    %v2464 = vadd.s32 %v645, 320
    %v2465 = vadd.s32 %v645, 328
    %v2466 = vadd.s32 %v645, 336
    %v2467 = vadd.s32 %v645, 344
    %v2468 = vadd.s32 %v645, 352
    %v2469 = vadd.s32 %v645, 360
    %v2470 = vadd.s32 %v645, 368
    %v2471 = vadd.s32 %v645, 376
    %v2472 = vand.u32 %v645, 15
    %v2473 = vand.u32 %v646, 15
    %v2474 = vand.u32 %v647, 15
    %v2475 = vand.u32 %v648, 15
    %v2476 = vand.u32 %v649, 15
    %v2477 = vand.u32 %v650, 15
    %v2478 = vand.u32 %v651, 15
    %v2479 = vand.u32 %v743, 15
    %v2480 = vand.u32 %v744, 15
    %v2481 = vand.u32 %v745, 15
    %v2482 = vand.u32 %v746, 15
    %v2483 = vand.u32 %v747, 15
    %v2484 = vand.u32 %v748, 15
    %v2485 = vand.u32 %v749, 15
    %v2486 = vand.u32 %v750, 15
    %v2487 = vand.u32 %v751, 15
    %v2488 = vand.u32 %v752, 15
    %v2489 = vand.u32 %v753, 15
    %v2490 = vand.u32 %v754, 15
    %v2491 = vand.u32 %v755, 15
    %v2492 = vand.u32 %v756, 15
    %v2493 = vand.u32 %v757, 15
    %v2494 = vand.u32 %v758, 15
    %v2495 = vand.u32 %v759, 15
    %v2496 = vand.u32 %v760, 15
    %v2497 = vand.u32 %v761, 15
    %v2498 = vand.u32 %v2450, 15
    %v2499 = vand.u32 %v2451, 15
    %v2500 = vand.u32 %v2452, 15
    %v2501 = vand.u32 %v2453, 15
    %v2502 = vand.u32 %v2454, 15
    %v2503 = vand.u32 %v2455, 15
    %v2504 = vand.u32 %v2456, 15
    %v2505 = vand.u32 %v2457, 15
    %v2506 = vand.u32 %v2458, 15
    %v2507 = vand.u32 %v2459, 15
    %v2508 = vand.u32 %v2460, 15
    %v2509 = vand.u32 %v2461, 15
    %v2510 = vand.u32 %v2462, 15
    %v2511 = vand.u32 %v2463, 15
    %v2512 = vand.u32 %v2464, 15
    %v2513 = vand.u32 %v2465, 15
    %v2514 = vand.u32 %v2466, 15
    %v2515 = vand.u32 %v2467, 15
    %v2516 = vand.u32 %v2468, 15
    %v2517 = vand.u32 %v2469, 15
    %v2518 = vand.u32 %v2470, 15
    %v2519 = vand.u32 %v2471, 15
    %vm2520 = vcmp.eq.s32.totalorder %v2472, %v763
    %vm2521 = vcmp.eq.s32.totalorder %v2473, %v763
    %vm2522 = vcmp.eq.s32.totalorder %v2474, %v763
    %vm2523 = vcmp.eq.s32.totalorder %v2475, %v763
    %vm2524 = vcmp.eq.s32.totalorder %v2476, %v763
    %vm2525 = vcmp.eq.s32.totalorder %v2477, %v763
    %vm2526 = vcmp.eq.s32.totalorder %v2478, %v763
    %vm2527 = vcmp.eq.s32.totalorder %v2479, %v763
    %vm2528 = vcmp.eq.s32.totalorder %v2480, %v763
    %vm2529 = vcmp.eq.s32.totalorder %v2481, %v763
    %vm2530 = vcmp.eq.s32.totalorder %v2482, %v763
    %vm2531 = vcmp.eq.s32.totalorder %v2483, %v763
    %vm2532 = vcmp.eq.s32.totalorder %v2484, %v763
    %vm2533 = vcmp.eq.s32.totalorder %v2485, %v763
    %vm2534 = vcmp.eq.s32.totalorder %v2486, %v763
    %vm2535 = vcmp.eq.s32.totalorder %v2487, %v763
    %vm2536 = vcmp.eq.s32.totalorder %v2488, %v763
    %vm2537 = vcmp.eq.s32.totalorder %v2489, %v763
    %vm2538 = vcmp.eq.s32.totalorder %v2490, %v763
    %vm2539 = vcmp.eq.s32.totalorder %v2491, %v763
    %vm2540 = vcmp.eq.s32.totalorder %v2492, %v763
    %vm2541 = vcmp.eq.s32.totalorder %v2493, %v763
    %vm2542 = vcmp.eq.s32.totalorder %v2494, %v763
    %vm2543 = vcmp.eq.s32.totalorder %v2495, %v763
    %vm2544 = vcmp.eq.s32.totalorder %v2496, %v763
    %vm2545 = vcmp.eq.s32.totalorder %v2497, %v763
    %vm2546 = vcmp.eq.s32.totalorder %v2498, %v763
    %vm2547 = vcmp.eq.s32.totalorder %v2499, %v763
    %vm2548 = vcmp.eq.s32.totalorder %v2500, %v763
    %vm2549 = vcmp.eq.s32.totalorder %v2501, %v763
    %vm2550 = vcmp.eq.s32.totalorder %v2502, %v763
    %vm2551 = vcmp.eq.s32.totalorder %v2503, %v763
    %vm2552 = vcmp.eq.s32.totalorder %v2504, %v763
    %vm2553 = vcmp.eq.s32.totalorder %v2505, %v763
    %vm2554 = vcmp.eq.s32.totalorder %v2506, %v763
    %vm2555 = vcmp.eq.s32.totalorder %v2507, %v763
    %vm2556 = vcmp.eq.s32.totalorder %v2508, %v763
    %vm2557 = vcmp.eq.s32.totalorder %v2509, %v763
    %vm2558 = vcmp.eq.s32.totalorder %v2510, %v763
    %vm2559 = vcmp.eq.s32.totalorder %v2511, %v763
    %vm2560 = vcmp.eq.s32.totalorder %v2512, %v763
    %vm2561 = vcmp.eq.s32.totalorder %v2513, %v763
    %vm2562 = vcmp.eq.s32.totalorder %v2514, %v763
    %vm2563 = vcmp.eq.s32.totalorder %v2515, %v763
    %vm2564 = vcmp.eq.s32.totalorder %v2516, %v763
    %vm2565 = vcmp.eq.s32.totalorder %v2517, %v763
    %vm2566 = vcmp.eq.s32.totalorder %v2518, %v763
    %vm2567 = vcmp.eq.s32.totalorder %v2519, %v763
    %v2568 = vsel %vm2520, 1, 0
    %v2569 = vsel %vm2521, 1, 0
    %v2570 = vsel %vm2522, 1, 0
    %v2571 = vsel %vm2523, 1, 0
    %v2572 = vsel %vm2524, 1, 0
    %v2573 = vsel %vm2525, 1, 0
    %v2574 = vsel %vm2526, 1, 0
    %v2575 = vsel %vm2527, 1, 0
    %v2576 = vsel %vm2528, 1, 0
    %v2577 = vsel %vm2529, 1, 0
    %v2578 = vsel %vm2530, 1, 0
    %v2579 = vsel %vm2531, 1, 0
    %v2580 = vsel %vm2532, 1, 0
    %v2581 = vsel %vm2533, 1, 0
    %v2582 = vsel %vm2534, 1, 0
    %v2583 = vsel %vm2535, 1, 0
    %v2584 = vsel %vm2536, 1, 0
    %v2585 = vsel %vm2537, 1, 0
    %v2586 = vsel %vm2538, 1, 0
    %v2587 = vsel %vm2539, 1, 0
    %v2588 = vsel %vm2540, 1, 0
    %v2589 = vsel %vm2541, 1, 0
    %v2590 = vsel %vm2542, 1, 0
    %v2591 = vsel %vm2543, 1, 0
    %v2592 = vsel %vm2544, 1, 0
    %v2593 = vsel %vm2545, 1, 0
    %v2594 = vsel %vm2546, 1, 0
    %v2595 = vsel %vm2547, 1, 0
    %v2596 = vsel %vm2548, 1, 0
    %v2597 = vsel %vm2549, 1, 0
    %v2598 = vsel %vm2550, 1, 0
    %v2599 = vsel %vm2551, 1, 0
    %v2600 = vsel %vm2552, 1, 0
    %v2601 = vsel %vm2553, 1, 0
    %v2602 = vsel %vm2554, 1, 0
    %v2603 = vsel %vm2555, 1, 0
    %v2604 = vsel %vm2556, 1, 0
    %v2605 = vsel %vm2557, 1, 0
    %v2606 = vsel %vm2558, 1, 0
    %v2607 = vsel %vm2559, 1, 0
    %v2608 = vsel %vm2560, 1, 0
    %v2609 = vsel %vm2561, 1, 0
    %v2610 = vsel %vm2562, 1, 0
    %v2611 = vsel %vm2563, 1, 0
    %v2612 = vsel %vm2564, 1, 0
    %v2613 = vsel %vm2565, 1, 0
    %v2614 = vsel %vm2566, 1, 0
    %v2615 = vsel %vm2567, 1, 0
    %v2616 = vcvt.s32.f32 %v2568
    %v2617 = vcvt.s32.f32 %v2569
    %v2618 = vcvt.s32.f32 %v2570
    %v2619 = vcvt.s32.f32 %v2571
    %v2620 = vcvt.s32.f32 %v2572
    %v2621 = vcvt.s32.f32 %v2573
    %v2622 = vcvt.s32.f32 %v2574
    %v2623 = vcvt.s32.f32 %v2575
    %v2624 = vcvt.s32.f32 %v2576
    %v2625 = vcvt.s32.f32 %v2577
    %v2626 = vcvt.s32.f32 %v2578
    %v2627 = vcvt.s32.f32 %v2579
    %v2628 = vcvt.s32.f32 %v2580
    %v2629 = vcvt.s32.f32 %v2581
    %v2630 = vcvt.s32.f32 %v2582
    %v2631 = vcvt.s32.f32 %v2583
    %v2632 = vcvt.s32.f32 %v2584
    %v2633 = vcvt.s32.f32 %v2585
    %v2634 = vcvt.s32.f32 %v2586
    %v2635 = vcvt.s32.f32 %v2587
    %v2636 = vcvt.s32.f32 %v2588
    %v2637 = vcvt.s32.f32 %v2589
    %v2638 = vcvt.s32.f32 %v2590
    %v2639 = vcvt.s32.f32 %v2591
    %v2640 = vcvt.s32.f32 %v2592
    %v2641 = vcvt.s32.f32 %v2593
    %v2642 = vcvt.s32.f32 %v2594
    %v2643 = vcvt.s32.f32 %v2595
    %v2644 = vcvt.s32.f32 %v2596
    %v2645 = vcvt.s32.f32 %v2597
    %v2646 = vcvt.s32.f32 %v2598
    %v2647 = vcvt.s32.f32 %v2599
    %v2648 = vcvt.s32.f32 %v2600
    %v2649 = vcvt.s32.f32 %v2601
    %v2650 = vcvt.s32.f32 %v2602
    %v2651 = vcvt.s32.f32 %v2603
    %v2652 = vcvt.s32.f32 %v2604
    %v2653 = vcvt.s32.f32 %v2605
    %v2654 = vcvt.s32.f32 %v2606
    %v2655 = vcvt.s32.f32 %v2607
    %v2656 = vcvt.s32.f32 %v2608
    %v2657 = vcvt.s32.f32 %v2609
    %v2658 = vcvt.s32.f32 %v2610
    %v2659 = vcvt.s32.f32 %v2611
    %v2660 = vcvt.s32.f32 %v2612
    %v2661 = vcvt.s32.f32 %v2613
    %v2662 = vcvt.s32.f32 %v2614
    %v2663 = vcvt.s32.f32 %v2615
    %v2664 = vadd.s32 %v763, 256
    %v2665 = vand.u32 %v763, 15
    %v2666 = vand.u32 %v868, 15
    %v2667 = vand.u32 %v2664, 15
    %vm2668 = vcmp.eq.s32.totalorder %v2665, %v645
    %vm2669 = vcmp.eq.s32.totalorder %v2666, %v645
    %vm2670 = vcmp.eq.s32.totalorder %v2667, %v645
    %vm2671 = vcmp.eq.s32.totalorder %v2665, %v646
    %vm2672 = vcmp.eq.s32.totalorder %v2666, %v646
    %vm2673 = vcmp.eq.s32.totalorder %v2667, %v646
    %v2674 = vsel %vm2668, 1, 0
    %v2675 = vsel %vm2669, 1, 0
    %v2676 = vsel %vm2670, 1, 0
    %v2677 = vsel %vm2671, 1, 0
    %v2678 = vsel %vm2672, 1, 0
    %v2679 = vsel %vm2673, 1, 0
    %v2680 = vcvt.s32.f32 %v2674
    %v2681 = vcvt.s32.f32 %v2675
    %v2682 = vcvt.s32.f32 %v2676
    %v2683 = vcvt.s32.f32 %v2677
    %v2684 = vcvt.s32.f32 %v2678
    %v2685 = vcvt.s32.f32 %v2679
    %v2686 = vadd.f32 %v2387, %v2390
    %v2687 = vadd.f32 %v2686, %v2393
    %v2688 = vadd.f32 %v2687, %v2396
    %v2689 = vadd.f32 %v2688, %v2399
    %v2690 = vadd.f32 %v2689, %v2402
    %v2691 = vsel %vm213, %v2405, 0.0
    %v2692 = vadd.f32 %v2690, %v2691
    %v2693 = vrot.slane %v2692, 4
    %v2694 = vadd.f32 %v2692, %v2693
    %v2695 = vrot.slane %v2694, 2
    %v2696 = vadd.f32 %v2694, %v2695
    %v2697 = vrot.slane %v2696, 1
    %v2698 = vadd.f32 %v2696, %v2697
    %v2699 = vadd.f32 %v2388, %v2391
    %v2700 = vadd.f32 %v2699, %v2394
    %v2701 = vadd.f32 %v2700, %v2397
    %v2702 = vadd.f32 %v2701, %v2400
    %v2703 = vadd.f32 %v2702, %v2403
    %v2704 = vsel %vm213, %v2406, 0.0
    %v2705 = vadd.f32 %v2703, %v2704
    %v2706 = vrot.slane %v2705, 4
    %v2707 = vadd.f32 %v2705, %v2706
    %v2708 = vrot.slane %v2707, 2
    %v2709 = vadd.f32 %v2707, %v2708
    %v2710 = vrot.slane %v2709, 1
    %v2711 = vadd.f32 %v2709, %v2710
    %v2712 = vadd.f32 %v2389, %v2392
    %v2713 = vadd.f32 %v2712, %v2395
    %v2714 = vadd.f32 %v2713, %v2398
    %v2715 = vadd.f32 %v2714, %v2401
    %v2716 = vadd.f32 %v2715, %v2404
    %v2717 = vsel %vm213, %v2407, 0.0
    %v2718 = vadd.f32 %v2716, %v2717
    %v2719 = vrot.slane %v2718, 4
    %v2720 = vadd.f32 %v2718, %v2719
    %v2721 = vrot.slane %v2720, 2
    %v2722 = vadd.f32 %v2720, %v2721
    %v2723 = vrot.slane %v2722, 1
    %v2724 = vadd.f32 %v2722, %v2723
    %2725 = vmatprep.subr.mxu0 0.0
    %2726 = vmatpush1.msra.mxu0 %v2631
    %2727 = vmatprep.subr.mxu0 0.0
    %2728 = vmatpush1.msra.mxu0 %v2630
    %2729 = vmatprep.subr.mxu0 0.0
    %2730 = vmatpush1.msra.mxu0 %v2629
    %2731 = vmatprep.subr.mxu0 0.0
    %2732 = vmatpush1.msra.mxu0 %v2628
    %2733 = vmatprep.subr.mxu0 0.0
    %2734 = vmatpush1.msra.mxu0 %v2627
    %2735 = vmatprep.subr.mxu0 0.0
    %2736 = vmatpush1.msra.mxu0 %v2626
    %2737 = vmatprep.subr.mxu0 0.0
    %2738 = vmatpush1.msra.mxu0 %v2625
    %2739 = vmatprep.subr.mxu0 0.0
    %2740 = vmatpush1.msra.mxu0 %v2624
    %2741 = vmatprep.subr.mxu0 0.0
    %2742 = vmatpush1.msra.mxu0 %v2623
    %2743 = vmatprep.subr.mxu0 0.0
    %2744 = vmatpush1.msra.mxu0 %v2622
    %2745 = vmatprep.subr.mxu0 0.0
    %2746 = vmatpush1.msra.mxu0 %v2621
    %2747 = vmatprep.subr.mxu0 0.0
    %2748 = vmatpush1.msra.mxu0 %v2620
    %2749 = vmatprep.subr.mxu0 0.0
    %2750 = vmatpush1.msra.mxu0 %v2619
    %2751 = vmatprep.subr.mxu0 0.0
    %2752 = vmatpush1.msra.mxu0 %v2618
    %2753 = vmatprep.subr.mxu0 0.0
    %2754 = vmatpush1.msra.mxu0 %v2617
    %2755 = vmatprep.subr.mxu0 0.0
    %2756 = vmatpush1.msra.mxu0 %v2616
    %2757 = vmatprep.subr.mxu0 0.0
    %2758 = vmatpush2.msra.mxu0 %v2647
    %2759 = vmatprep.subr.mxu0 0.0
    %2760 = vmatpush2.msra.mxu0 %v2646
    %2761 = vmatprep.subr.mxu0 0.0
    %2762 = vmatpush2.msra.mxu0 %v2645
    %2763 = vmatprep.subr.mxu0 0.0
    %2764 = vmatpush2.msra.mxu0 %v2644
    %2765 = vmatprep.subr.mxu0 0.0
    %2766 = vmatpush2.msra.mxu0 %v2643
    %2767 = vmatprep.subr.mxu0 0.0
    %2768 = vmatpush2.msra.mxu0 %v2642
    %2769 = vmatprep.subr.mxu0 0.0
    %2770 = vmatpush2.msra.mxu0 %v2641
    %2771 = vmatprep.subr.mxu0 0.0
    %2772 = vmatpush2.msra.mxu0 %v2640
    %2773 = vmatprep.subr.mxu0 0.0
    %2774 = vmatpush2.msra.mxu0 %v2639
    %2775 = vmatprep.subr.mxu0 0.0
    %2776 = vmatpush2.msra.mxu0 %v2638
    %2777 = vmatprep.subr.mxu0 0.0
    %2778 = vmatpush2.msra.mxu0 %v2637
    %2779 = vmatprep.subr.mxu0 0.0
    %2780 = vmatpush2.msra.mxu0 %v2636
    %2781 = vmatprep.subr.mxu0 0.0
    %2782 = vmatpush2.msra.mxu0 %v2635
    %2783 = vmatprep.subr.mxu0 0.0
    %2784 = vmatpush2.msra.mxu0 %v2634
    %2785 = vmatprep.subr.mxu0 0.0
    %2786 = vmatpush2.msra.mxu0 %v2633
    %2787 = vmatprep.subr.mxu0 0.0
    %2788 = vmatpush2.msra.mxu0 %v2632
    %2789 = vmatprep.mubr.f32.mxu0 %v2711
    %2790 = vmatmul.mubr.f32.gmra.mxu0 %v2698
    %v2791 = vpop.f32.mrf.mxu0
    %v2792 = vadd.f32 0.0, %v2791
    %v2793 = vpop.f32.mrf.mxu0
    %2794 = vdwg.mxu0
    %2795 = vmatprep.subr.mxu0 0.0
    %2796 = vmatpush1.msra.mxu0 %v2663
    %2797 = vmatprep.subr.mxu0 0.0
    %2798 = vmatpush1.msra.mxu0 %v2662
    %2799 = vmatprep.subr.mxu0 0.0
    %2800 = vmatpush1.msra.mxu0 %v2661
    %2801 = vmatprep.subr.mxu0 0.0
    %2802 = vmatpush1.msra.mxu0 %v2660
    %2803 = vmatprep.subr.mxu0 0.0
    %2804 = vmatpush1.msra.mxu0 %v2659
    %2805 = vmatprep.subr.mxu0 0.0
    %2806 = vmatpush1.msra.mxu0 %v2658
    %2807 = vmatprep.subr.mxu0 0.0
    %2808 = vmatpush1.msra.mxu0 %v2657
    %2809 = vmatprep.subr.mxu0 0.0
    %2810 = vmatpush1.msra.mxu0 %v2656
    %2811 = vmatprep.subr.mxu0 0.0
    %2812 = vmatpush1.msra.mxu0 %v2655
    %2813 = vmatprep.subr.mxu0 0.0
    %2814 = vmatpush1.msra.mxu0 %v2654
    %2815 = vmatprep.subr.mxu0 0.0
    %2816 = vmatpush1.msra.mxu0 %v2653
    %2817 = vmatprep.subr.mxu0 0.0
    %2818 = vmatpush1.msra.mxu0 %v2652
    %2819 = vmatprep.subr.mxu0 0.0
    %2820 = vmatpush1.msra.mxu0 %v2651
    %2821 = vmatprep.subr.mxu0 0.0
    %2822 = vmatpush1.msra.mxu0 %v2650
    %2823 = vmatprep.subr.mxu0 0.0
    %2824 = vmatpush1.msra.mxu0 %v2649
    %2825 = vmatprep.subr.mxu0 0.0
    %2826 = vmatpush1.msra.mxu0 %v2648
    %2827 = vmatprep.subr.mxu0 0.0
    %2828 = vmatpush2.msra.mxu0 0.0
    %2829 = vmatprep.subr.mxu0 0.0
    %2830 = vmatpush2.msra.mxu0 0.0
    %2831 = vmatprep.subr.mxu0 0.0
    %2832 = vmatpush2.msra.mxu0 0.0
    %2833 = vmatprep.subr.mxu0 0.0
    %2834 = vmatpush2.msra.mxu0 0.0
    %2835 = vmatprep.subr.mxu0 0.0
    %2836 = vmatpush2.msra.mxu0 0.0
    %2837 = vmatprep.subr.mxu0 0.0
    %2838 = vmatpush2.msra.mxu0 0.0
    %2839 = vmatprep.subr.mxu0 0.0
    %2840 = vmatpush2.msra.mxu0 0.0
    %2841 = vmatprep.subr.mxu0 0.0
    %2842 = vmatpush2.msra.mxu0 0.0
    %2843 = vmatprep.subr.mxu0 0.0
    %2844 = vmatpush2.msra.mxu0 0.0
    %2845 = vmatprep.subr.mxu0 0.0
    %2846 = vmatpush2.msra.mxu0 0.0
    %2847 = vmatprep.subr.mxu0 0.0
    %2848 = vmatpush2.msra.mxu0 0.0
    %2849 = vmatprep.subr.mxu0 0.0
    %2850 = vmatpush2.msra.mxu0 0.0
    %2851 = vmatprep.subr.mxu0 0.0
    %2852 = vmatpush2.msra.mxu0 0.0
    %2853 = vmatprep.subr.mxu0 0.0
    %2854 = vmatpush2.msra.mxu0 0.0
    %2855 = vmatprep.subr.mxu0 0.0
    %2856 = vmatpush2.msra.mxu0 0.0
    %2857 = vmatprep.subr.mxu0 0.0
    %2858 = vmatpush2.msra.mxu0 0.0
    %2859 = vmatprep.mubr.f32.mxu0 0.0
    %2860 = vmatmul.mubr.f32.gmra.mxu0 %v2724
    %v2861 = vpop.f32.mrf.mxu0
    %v2862 = vadd.f32 %v2792, %v2861
    %v2863 = vpop.f32.mrf.mxu0
    %2864 = vdwg.mxu0
    %v2865 = vadd.f32 %v2429, %v2432
    %v2866 = vadd.f32 %v2865, %v2435
    %v2867 = vadd.f32 %v2866, %v2438
    %v2868 = vadd.f32 %v2867, %v2441
    %v2869 = vadd.f32 %v2868, %v2444
    %v2870 = vsel %vm213, %v2447, 0.0
    %v2871 = vadd.f32 %v2869, %v2870
    %v2872 = vrot.slane %v2871, 4
    %v2873 = vadd.f32 %v2871, %v2872
    %v2874 = vrot.slane %v2873, 2
    %v2875 = vadd.f32 %v2873, %v2874
    %v2876 = vrot.slane %v2875, 1
    %v2877 = vadd.f32 %v2875, %v2876
    %v2878 = vadd.f32 %v2430, %v2433
    %v2879 = vadd.f32 %v2878, %v2436
    %v2880 = vadd.f32 %v2879, %v2439
    %v2881 = vadd.f32 %v2880, %v2442
    %v2882 = vadd.f32 %v2881, %v2445
    %v2883 = vsel %vm213, %v2448, 0.0
    %v2884 = vadd.f32 %v2882, %v2883
    %v2885 = vrot.slane %v2884, 4
    %v2886 = vadd.f32 %v2884, %v2885
    %v2887 = vrot.slane %v2886, 2
    %v2888 = vadd.f32 %v2886, %v2887
    %v2889 = vrot.slane %v2888, 1
    %v2890 = vadd.f32 %v2888, %v2889
    %v2891 = vadd.f32 %v2431, %v2434
    %v2892 = vadd.f32 %v2891, %v2437
    %v2893 = vadd.f32 %v2892, %v2440
    %v2894 = vadd.f32 %v2893, %v2443
    %v2895 = vadd.f32 %v2894, %v2446
    %v2896 = vsel %vm213, %v2449, 0.0
    %v2897 = vadd.f32 %v2895, %v2896
    %v2898 = vrot.slane %v2897, 4
    %v2899 = vadd.f32 %v2897, %v2898
    %v2900 = vrot.slane %v2899, 2
    %v2901 = vadd.f32 %v2899, %v2900
    %v2902 = vrot.slane %v2901, 1
    %v2903 = vadd.f32 %v2901, %v2902
    %2904 = vmatprep.subr.mxu0 0.0
    %2905 = vmatpush1.msra.mxu0 %v2631
    %2906 = vmatprep.subr.mxu0 0.0
    %2907 = vmatpush1.msra.mxu0 %v2630
    %2908 = vmatprep.subr.mxu0 0.0
    %2909 = vmatpush1.msra.mxu0 %v2629
    %2910 = vmatprep.subr.mxu0 0.0
    %2911 = vmatpush1.msra.mxu0 %v2628
    %2912 = vmatprep.subr.mxu0 0.0
    %2913 = vmatpush1.msra.mxu0 %v2627
    %2914 = vmatprep.subr.mxu0 0.0
    %2915 = vmatpush1.msra.mxu0 %v2626
    %2916 = vmatprep.subr.mxu0 0.0
    %2917 = vmatpush1.msra.mxu0 %v2625
    %2918 = vmatprep.subr.mxu0 0.0
    %2919 = vmatpush1.msra.mxu0 %v2624
    %2920 = vmatprep.subr.mxu0 0.0
    %2921 = vmatpush1.msra.mxu0 %v2623
    %2922 = vmatprep.subr.mxu0 0.0
    %2923 = vmatpush1.msra.mxu0 %v2622
    %2924 = vmatprep.subr.mxu0 0.0
    %2925 = vmatpush1.msra.mxu0 %v2621
    %2926 = vmatprep.subr.mxu0 0.0
    %2927 = vmatpush1.msra.mxu0 %v2620
    %2928 = vmatprep.subr.mxu0 0.0
    %2929 = vmatpush1.msra.mxu0 %v2619
    %2930 = vmatprep.subr.mxu0 0.0
    %2931 = vmatpush1.msra.mxu0 %v2618
    %2932 = vmatprep.subr.mxu0 0.0
    %2933 = vmatpush1.msra.mxu0 %v2617
    %2934 = vmatprep.subr.mxu0 0.0
    %2935 = vmatpush1.msra.mxu0 %v2616
    %2936 = vmatprep.subr.mxu0 0.0
    %2937 = vmatpush2.msra.mxu0 %v2647
    %2938 = vmatprep.subr.mxu0 0.0
    %2939 = vmatpush2.msra.mxu0 %v2646
    %2940 = vmatprep.subr.mxu0 0.0
    %2941 = vmatpush2.msra.mxu0 %v2645
    %2942 = vmatprep.subr.mxu0 0.0
    %2943 = vmatpush2.msra.mxu0 %v2644
    %2944 = vmatprep.subr.mxu0 0.0
    %2945 = vmatpush2.msra.mxu0 %v2643
    %2946 = vmatprep.subr.mxu0 0.0
    %2947 = vmatpush2.msra.mxu0 %v2642
    %2948 = vmatprep.subr.mxu0 0.0
    %2949 = vmatpush2.msra.mxu0 %v2641
    %2950 = vmatprep.subr.mxu0 0.0
    %2951 = vmatpush2.msra.mxu0 %v2640
    %2952 = vmatprep.subr.mxu0 0.0
    %2953 = vmatpush2.msra.mxu0 %v2639
    %2954 = vmatprep.subr.mxu0 0.0
    %2955 = vmatpush2.msra.mxu0 %v2638
    %2956 = vmatprep.subr.mxu0 0.0
    %2957 = vmatpush2.msra.mxu0 %v2637
    %2958 = vmatprep.subr.mxu0 0.0
    %2959 = vmatpush2.msra.mxu0 %v2636
    %2960 = vmatprep.subr.mxu0 0.0
    %2961 = vmatpush2.msra.mxu0 %v2635
    %2962 = vmatprep.subr.mxu0 0.0
    %2963 = vmatpush2.msra.mxu0 %v2634
    %2964 = vmatprep.subr.mxu0 0.0
    %2965 = vmatpush2.msra.mxu0 %v2633
    %2966 = vmatprep.subr.mxu0 0.0
    %2967 = vmatpush2.msra.mxu0 %v2632
    %2968 = vmatprep.mubr.f32.mxu0 %v2890
    %2969 = vmatmul.mubr.f32.gmra.mxu0 %v2877
    %v2970 = vpop.f32.mrf.mxu0
    %v2971 = vadd.f32 0.0, %v2970
    %v2972 = vpop.f32.mrf.mxu0
    %2973 = vdwg.mxu0
    %2974 = vmatprep.subr.mxu0 0.0
    %2975 = vmatpush1.msra.mxu0 %v2663
    %2976 = vmatprep.subr.mxu0 0.0
    %2977 = vmatpush1.msra.mxu0 %v2662
    %2978 = vmatprep.subr.mxu0 0.0
    %2979 = vmatpush1.msra.mxu0 %v2661
    %2980 = vmatprep.subr.mxu0 0.0
    %2981 = vmatpush1.msra.mxu0 %v2660
    %2982 = vmatprep.subr.mxu0 0.0
    %2983 = vmatpush1.msra.mxu0 %v2659
    %2984 = vmatprep.subr.mxu0 0.0
    %2985 = vmatpush1.msra.mxu0 %v2658
    %2986 = vmatprep.subr.mxu0 0.0
    %2987 = vmatpush1.msra.mxu0 %v2657
    %2988 = vmatprep.subr.mxu0 0.0
    %2989 = vmatpush1.msra.mxu0 %v2656
    %2990 = vmatprep.subr.mxu0 0.0
    %2991 = vmatpush1.msra.mxu0 %v2655
    %2992 = vmatprep.subr.mxu0 0.0
    %2993 = vmatpush1.msra.mxu0 %v2654
    %2994 = vmatprep.subr.mxu0 0.0
    %2995 = vmatpush1.msra.mxu0 %v2653
    %2996 = vmatprep.subr.mxu0 0.0
    %2997 = vmatpush1.msra.mxu0 %v2652
    %2998 = vmatprep.subr.mxu0 0.0
    %2999 = vmatpush1.msra.mxu0 %v2651
    %3000 = vmatprep.subr.mxu0 0.0
    %3001 = vmatpush1.msra.mxu0 %v2650
    %3002 = vmatprep.subr.mxu0 0.0
    %3003 = vmatpush1.msra.mxu0 %v2649
    %3004 = vmatprep.subr.mxu0 0.0
    %3005 = vmatpush1.msra.mxu0 %v2648
    %3006 = vmatprep.subr.mxu0 0.0
    %3007 = vmatpush2.msra.mxu0 0.0
    %3008 = vmatprep.subr.mxu0 0.0
    %3009 = vmatpush2.msra.mxu0 0.0
    %3010 = vmatprep.subr.mxu0 0.0
    %3011 = vmatpush2.msra.mxu0 0.0
    %3012 = vmatprep.subr.mxu0 0.0
    %3013 = vmatpush2.msra.mxu0 0.0
    %3014 = vmatprep.subr.mxu0 0.0
    %3015 = vmatpush2.msra.mxu0 0.0
    %3016 = vmatprep.subr.mxu0 0.0
    %3017 = vmatpush2.msra.mxu0 0.0
    %3018 = vmatprep.subr.mxu0 0.0
    %3019 = vmatpush2.msra.mxu0 0.0
    %3020 = vmatprep.subr.mxu0 0.0
    %3021 = vmatpush2.msra.mxu0 0.0
    %3022 = vmatprep.subr.mxu0 0.0
    %3023 = vmatpush2.msra.mxu0 0.0
    %3024 = vmatprep.subr.mxu0 0.0
    %3025 = vmatpush2.msra.mxu0 0.0
    %3026 = vmatprep.subr.mxu0 0.0
    %3027 = vmatpush2.msra.mxu0 0.0
    %3028 = vmatprep.subr.mxu0 0.0
    %3029 = vmatpush2.msra.mxu0 0.0
    %3030 = vmatprep.subr.mxu0 0.0
    %3031 = vmatpush2.msra.mxu0 0.0
    %3032 = vmatprep.subr.mxu0 0.0
    %3033 = vmatpush2.msra.mxu0 0.0
    %3034 = vmatprep.subr.mxu0 0.0
    %3035 = vmatpush2.msra.mxu0 0.0
    %3036 = vmatprep.subr.mxu0 0.0
    %3037 = vmatpush2.msra.mxu0 0.0
    %3038 = vmatprep.mubr.f32.mxu0 0.0
    %3039 = vmatmul.mubr.f32.gmra.mxu0 %v2903
    %v3040 = vpop.f32.mrf.mxu0
    %v3041 = vadd.f32 %v2971, %v3040
    %v3042 = vpop.f32.mrf.mxu0
    %3043 = vdwg.mxu0
    %v3044 = vmul.f32 %v2862, 0.00086805556
    %v3045 = vmul.f32 %v3041, 0.00086805556
    %v3046 = vmul.f32 %v3044, %v3044
    %v3047 = vsub.f32 %v3045, %v3046
    %v3048 = vld [vmem:[%s6] sm:$0x1]
    %v3049 = vld [vmem:[%s6 + $0x1] sm:$0x1]
    %v3050 = vadd.f32 %v3047, 1e-05
    %v3051 = vrsqrt.pop %v3050
    %v3052 = vmul.f32 %v3048, %v3051
    %v3053 = vmul.f32 %v3044, %v3052
    %v3054 = vsub.f32 %v3049, %v3053
    %vm3055 = vcmask 130048
    %v3057 = vsel %vm3055, %v3052, 0
    %3059 = vmatprep.subr.mxu0 0.0
    %3060 = vmatpush1.msra.mxu0 0.0
    %3061 = vmatprep.subr.mxu0 0.0
    %3062 = vmatpush1.msra.mxu0 0.0
    %3063 = vmatprep.subr.mxu0 0.0
    %3064 = vmatpush1.msra.mxu0 0.0
    %3065 = vmatprep.subr.mxu0 0.0
    %3066 = vmatpush1.msra.mxu0 0.0
    %3067 = vmatprep.subr.mxu0 0.0
    %3068 = vmatpush1.msra.mxu0 0.0
    %3069 = vmatprep.subr.mxu0 0.0
    %3070 = vmatpush1.msra.mxu0 0.0
    %3071 = vmatprep.subr.mxu0 0.0
    %3072 = vmatpush1.msra.mxu0 0.0
    %3073 = vmatprep.subr.mxu0 0.0
    %3074 = vmatpush1.msra.mxu0 0.0
    %3075 = vmatprep.subr.mxu0 0.0
    %3076 = vmatpush1.msra.mxu0 0.0
    %3077 = vmatprep.subr.mxu0 0.0
    %3078 = vmatpush1.msra.mxu0 0.0
    %3079 = vmatprep.subr.mxu0 0.0
    %3080 = vmatpush1.msra.mxu0 0.0
    %3081 = vmatprep.subr.mxu0 0.0
    %3082 = vmatpush1.msra.mxu0 0.0
    %3083 = vmatprep.subr.mxu0 0.0
    %3084 = vmatpush1.msra.mxu0 0.0
    %3085 = vmatprep.subr.mxu0 0.0
    %3086 = vmatpush1.msra.mxu0 0.0
    %3087 = vmatprep.subr.mxu0 %v2684
    %3088 = vmatpush1.msra.mxu0 %v2683
    %3089 = vmatprep.subr.mxu0 %v2681
    %3090 = vmatpush1.msra.mxu0 %v2680
    %3091 = vmatprep.subr.mxu0 0.0
    %3092 = vmatpush2.msra.mxu0 0.0
    %3093 = vmatprep.subr.mxu0 0.0
    %3094 = vmatpush2.msra.mxu0 0.0
    %3095 = vmatprep.subr.mxu0 0.0
    %3096 = vmatpush2.msra.mxu0 0.0
    %3097 = vmatprep.subr.mxu0 0.0
    %3098 = vmatpush2.msra.mxu0 0.0
    %3099 = vmatprep.subr.mxu0 0.0
    %3100 = vmatpush2.msra.mxu0 0.0
    %3101 = vmatprep.subr.mxu0 0.0
    %3102 = vmatpush2.msra.mxu0 0.0
    %3103 = vmatprep.subr.mxu0 0.0
    %3104 = vmatpush2.msra.mxu0 0.0
    %3105 = vmatprep.subr.mxu0 0.0
    %3106 = vmatpush2.msra.mxu0 0.0
    %3107 = vmatprep.subr.mxu0 0.0
    %3108 = vmatpush2.msra.mxu0 0.0
    %3109 = vmatprep.subr.mxu0 0.0
    %3110 = vmatpush2.msra.mxu0 0.0
    %3111 = vmatprep.subr.mxu0 0.0
    %3112 = vmatpush2.msra.mxu0 0.0
    %3113 = vmatprep.subr.mxu0 0.0
    %3114 = vmatpush2.msra.mxu0 0.0
    %3115 = vmatprep.subr.mxu0 0.0
    %3116 = vmatpush2.msra.mxu0 0.0
    %3117 = vmatprep.subr.mxu0 0.0
    %3118 = vmatpush2.msra.mxu0 0.0
    %3119 = vmatprep.subr.mxu0 0.0
    %3120 = vmatpush2.msra.mxu0 0.0
    %3121 = vmatprep.subr.mxu0 0.0
    %3122 = vmatpush2.msra.mxu0 0.0
    %3123 = vmatprep.mubr.f32.mxu0 0.0
    %3124 = vmatmul.mubr.f32.gmra.mxu0 %v3057
    %v3125 = vpop.f32.mrf.mxu0
    %v3126 = vadd.f32 0.0, %v3125
    %v3127 = vpop.f32.mrf.mxu0
    %v3128 = vadd.f32 0.0, %v3127
    %3129 = vdwg.mxu0
    %3130 = vmatprep.subr.mxu0 0.0
    %3131 = vmatpush1.msra.mxu0 0.0
    %3132 = vmatprep.subr.mxu0 0.0
    %3133 = vmatpush1.msra.mxu0 0.0
    %3134 = vmatprep.subr.mxu0 0.0
    %3135 = vmatpush1.msra.mxu0 0.0
    %3136 = vmatprep.subr.mxu0 0.0
    %3137 = vmatpush1.msra.mxu0 0.0
    %3138 = vmatprep.subr.mxu0 0.0
    %3139 = vmatpush1.msra.mxu0 0.0
    %3140 = vmatprep.subr.mxu0 0.0
    %3141 = vmatpush1.msra.mxu0 0.0
    %3142 = vmatprep.subr.mxu0 0.0
    %3143 = vmatpush1.msra.mxu0 0.0
    %3144 = vmatprep.subr.mxu0 0.0
    %3145 = vmatpush1.msra.mxu0 0.0
    %3146 = vmatprep.subr.mxu0 0.0
    %3147 = vmatpush1.msra.mxu0 0.0
    %3148 = vmatprep.subr.mxu0 0.0
    %3149 = vmatpush1.msra.mxu0 0.0
    %3150 = vmatprep.subr.mxu0 0.0
    %3151 = vmatpush1.msra.mxu0 0.0
    %3152 = vmatprep.subr.mxu0 0.0
    %3153 = vmatpush1.msra.mxu0 0.0
    %3154 = vmatprep.subr.mxu0 0.0
    %3155 = vmatpush1.msra.mxu0 0.0
    %3156 = vmatprep.subr.mxu0 0.0
    %3157 = vmatpush1.msra.mxu0 0.0
    %3158 = vmatprep.subr.mxu0 0.0
    %3159 = vmatpush1.msra.mxu0 %v2685
    %3160 = vmatprep.subr.mxu0 0.0
    %3161 = vmatpush1.msra.mxu0 %v2682
    %3162 = vmatprep.subr.mxu0 0.0
    %3163 = vmatpush2.msra.mxu0 0.0
    %3164 = vmatprep.subr.mxu0 0.0
    %3165 = vmatpush2.msra.mxu0 0.0
    %3166 = vmatprep.subr.mxu0 0.0
    %3167 = vmatpush2.msra.mxu0 0.0
    %3168 = vmatprep.subr.mxu0 0.0
    %3169 = vmatpush2.msra.mxu0 0.0
    %3170 = vmatprep.subr.mxu0 0.0
    %3171 = vmatpush2.msra.mxu0 0.0
    %3172 = vmatprep.subr.mxu0 0.0
    %3173 = vmatpush2.msra.mxu0 0.0
    %3174 = vmatprep.subr.mxu0 0.0
    %3175 = vmatpush2.msra.mxu0 0.0
    %3176 = vmatprep.subr.mxu0 0.0
    %3177 = vmatpush2.msra.mxu0 0.0
    %3178 = vmatprep.subr.mxu0 0.0
    %3179 = vmatpush2.msra.mxu0 0.0
    %3180 = vmatprep.subr.mxu0 0.0
    %3181 = vmatpush2.msra.mxu0 0.0
    %3182 = vmatprep.subr.mxu0 0.0
    %3183 = vmatpush2.msra.mxu0 0.0
    %3184 = vmatprep.subr.mxu0 0.0
    %3185 = vmatpush2.msra.mxu0 0.0
    %3186 = vmatprep.subr.mxu0 0.0
    %3187 = vmatpush2.msra.mxu0 0.0
    %3188 = vmatprep.subr.mxu0 0.0
    %3189 = vmatpush2.msra.mxu0 0.0
    %3190 = vmatprep.subr.mxu0 0.0
    %3191 = vmatpush2.msra.mxu0 0.0
    %3192 = vmatprep.subr.mxu0 0.0
    %3193 = vmatpush2.msra.mxu0 0.0
    %3194 = vmatprep.mubr.f32.mxu0 0.0
    %3195 = vmatmul.mubr.f32.gmra.mxu0 %v3057
    %v3196 = vpop.f32.mrf.mxu0
    %v3197 = vadd.f32 0.0, %v3196
    %v3198 = vpop.f32.mrf.mxu0
    %3199 = vdwg.mxu0
    %v3201 = vsel %vm3055, %v3054, 0
    %3203 = vmatprep.subr.mxu0 0.0
    %3204 = vmatpush1.msra.mxu0 0.0
    %3205 = vmatprep.subr.mxu0 0.0
    %3206 = vmatpush1.msra.mxu0 0.0
    %3207 = vmatprep.subr.mxu0 0.0
    %3208 = vmatpush1.msra.mxu0 0.0
    %3209 = vmatprep.subr.mxu0 0.0
    %3210 = vmatpush1.msra.mxu0 0.0
    %3211 = vmatprep.subr.mxu0 0.0
    %3212 = vmatpush1.msra.mxu0 0.0
    %3213 = vmatprep.subr.mxu0 0.0
    %3214 = vmatpush1.msra.mxu0 0.0
    %3215 = vmatprep.subr.mxu0 0.0
    %3216 = vmatpush1.msra.mxu0 0.0
    %3217 = vmatprep.subr.mxu0 0.0
    %3218 = vmatpush1.msra.mxu0 0.0
    %3219 = vmatprep.subr.mxu0 0.0
    %3220 = vmatpush1.msra.mxu0 0.0
    %3221 = vmatprep.subr.mxu0 0.0
    %3222 = vmatpush1.msra.mxu0 0.0
    %3223 = vmatprep.subr.mxu0 0.0
    %3224 = vmatpush1.msra.mxu0 0.0
    %3225 = vmatprep.subr.mxu0 0.0
    %3226 = vmatpush1.msra.mxu0 0.0
    %3227 = vmatprep.subr.mxu0 0.0
    %3228 = vmatpush1.msra.mxu0 0.0
    %3229 = vmatprep.subr.mxu0 0.0
    %3230 = vmatpush1.msra.mxu0 0.0
    %3231 = vmatprep.subr.mxu0 %v2684
    %3232 = vmatpush1.msra.mxu0 %v2683
    %3233 = vmatprep.subr.mxu0 %v2681
    %3234 = vmatpush1.msra.mxu0 %v2680
    %3235 = vmatprep.subr.mxu0 0.0
    %3236 = vmatpush2.msra.mxu0 0.0
    %3237 = vmatprep.subr.mxu0 0.0
    %3238 = vmatpush2.msra.mxu0 0.0
    %3239 = vmatprep.subr.mxu0 0.0
    %3240 = vmatpush2.msra.mxu0 0.0
    %3241 = vmatprep.subr.mxu0 0.0
    %3242 = vmatpush2.msra.mxu0 0.0
    %3243 = vmatprep.subr.mxu0 0.0
    %3244 = vmatpush2.msra.mxu0 0.0
    %3245 = vmatprep.subr.mxu0 0.0
    %3246 = vmatpush2.msra.mxu0 0.0
    %3247 = vmatprep.subr.mxu0 0.0
    %3248 = vmatpush2.msra.mxu0 0.0
    %3249 = vmatprep.subr.mxu0 0.0
    %3250 = vmatpush2.msra.mxu0 0.0
    %3251 = vmatprep.subr.mxu0 0.0
    %3252 = vmatpush2.msra.mxu0 0.0
    %3253 = vmatprep.subr.mxu0 0.0
    %3254 = vmatpush2.msra.mxu0 0.0
    %3255 = vmatprep.subr.mxu0 0.0
    %3256 = vmatpush2.msra.mxu0 0.0
    %3257 = vmatprep.subr.mxu0 0.0
    %3258 = vmatpush2.msra.mxu0 0.0
    %3259 = vmatprep.subr.mxu0 0.0
    %3260 = vmatpush2.msra.mxu0 0.0
    %3261 = vmatprep.subr.mxu0 0.0
    %3262 = vmatpush2.msra.mxu0 0.0
    %3263 = vmatprep.subr.mxu0 0.0
    %3264 = vmatpush2.msra.mxu0 0.0
    %3265 = vmatprep.subr.mxu0 0.0
    %3266 = vmatpush2.msra.mxu0 0.0
    %3267 = vmatprep.mubr.f32.mxu0 0.0
    %3268 = vmatmul.mubr.f32.gmra.mxu0 %v3201
    %v3269 = vpop.f32.mrf.mxu0
    %v3270 = vadd.f32 0.0, %v3269
    %v3271 = vpop.f32.mrf.mxu0
    %v3272 = vadd.f32 0.0, %v3271
    %3273 = vdwg.mxu0
    %3274 = vmatprep.subr.mxu0 0.0
    %3275 = vmatpush1.msra.mxu0 0.0
    %3276 = vmatprep.subr.mxu0 0.0
    %3277 = vmatpush1.msra.mxu0 0.0
    %3278 = vmatprep.subr.mxu0 0.0
    %3279 = vmatpush1.msra.mxu0 0.0
    %3280 = vmatprep.subr.mxu0 0.0
    %3281 = vmatpush1.msra.mxu0 0.0
    %3282 = vmatprep.subr.mxu0 0.0
    %3283 = vmatpush1.msra.mxu0 0.0
    %3284 = vmatprep.subr.mxu0 0.0
    %3285 = vmatpush1.msra.mxu0 0.0
    %3286 = vmatprep.subr.mxu0 0.0
    %3287 = vmatpush1.msra.mxu0 0.0
    %3288 = vmatprep.subr.mxu0 0.0
    %3289 = vmatpush1.msra.mxu0 0.0
    %3290 = vmatprep.subr.mxu0 0.0
    %3291 = vmatpush1.msra.mxu0 0.0
    %3292 = vmatprep.subr.mxu0 0.0
    %3293 = vmatpush1.msra.mxu0 0.0
    %3294 = vmatprep.subr.mxu0 0.0
    %3295 = vmatpush1.msra.mxu0 0.0
    %3296 = vmatprep.subr.mxu0 0.0
    %3297 = vmatpush1.msra.mxu0 0.0
    %3298 = vmatprep.subr.mxu0 0.0
    %3299 = vmatpush1.msra.mxu0 0.0
    %3300 = vmatprep.subr.mxu0 0.0
    %3301 = vmatpush1.msra.mxu0 0.0
    %3302 = vmatprep.subr.mxu0 0.0
    %3303 = vmatpush1.msra.mxu0 %v2685
    %3304 = vmatprep.subr.mxu0 0.0
    %3305 = vmatpush1.msra.mxu0 %v2682
    %3306 = vmatprep.subr.mxu0 0.0
    %3307 = vmatpush2.msra.mxu0 0.0
    %3308 = vmatprep.subr.mxu0 0.0
    %3309 = vmatpush2.msra.mxu0 0.0
    %3310 = vmatprep.subr.mxu0 0.0
    %3311 = vmatpush2.msra.mxu0 0.0
    %3312 = vmatprep.subr.mxu0 0.0
    %3313 = vmatpush2.msra.mxu0 0.0
    %3314 = vmatprep.subr.mxu0 0.0
    %3315 = vmatpush2.msra.mxu0 0.0
    %3316 = vmatprep.subr.mxu0 0.0
    %3317 = vmatpush2.msra.mxu0 0.0
    %3318 = vmatprep.subr.mxu0 0.0
    %3319 = vmatpush2.msra.mxu0 0.0
    %3320 = vmatprep.subr.mxu0 0.0
    %3321 = vmatpush2.msra.mxu0 0.0
    %3322 = vmatprep.subr.mxu0 0.0
    %3323 = vmatpush2.msra.mxu0 0.0
    %3324 = vmatprep.subr.mxu0 0.0
    %3325 = vmatpush2.msra.mxu0 0.0
    %3326 = vmatprep.subr.mxu0 0.0
    %3327 = vmatpush2.msra.mxu0 0.0
    %3328 = vmatprep.subr.mxu0 0.0
    %3329 = vmatpush2.msra.mxu0 0.0
    %3330 = vmatprep.subr.mxu0 0.0
    %3331 = vmatpush2.msra.mxu0 0.0
    %3332 = vmatprep.subr.mxu0 0.0
    %3333 = vmatpush2.msra.mxu0 0.0
    %3334 = vmatprep.subr.mxu0 0.0
    %3335 = vmatpush2.msra.mxu0 0.0
    %3336 = vmatprep.subr.mxu0 0.0
    %3337 = vmatpush2.msra.mxu0 0.0
    %3338 = vmatprep.mubr.f32.mxu0 0.0
    %3339 = vmatmul.mubr.f32.gmra.mxu0 %v3201
    %v3340 = vpop.f32.mrf.mxu0
    %v3341 = vadd.f32 0.0, %v3340
    %v3342 = vpop.f32.mrf.mxu0
    %3343 = vdwg.mxu0
    %v3344 = vlaneseq
    %v3345 = vshrl.u32 %v3344, 7
    %v3346 = vsub.s32 0, %v3345
    %v3347 = vrot.slane %v3126, %v3346
    %v3348 = vlaneseq
    %v3349 = vshrl.u32 %v3348, 7
    %v3350 = vsub.s32 0, %v3349
    %v3351 = vrot.slane %v3128, %v3350
    %v3352 = vlaneseq
    %v3353 = vshrl.u32 %v3352, 7
    %v3354 = vsub.s32 0, %v3353
    %v3355 = vrot.slane %v3197, %v3354
    %v3356 = vmul.f32 %v2324, %v3347
    %v3357 = vmul.f32 %v2325, %v3351
    %v3358 = vmul.f32 %v2326, %v3355
    %v3359 = vmul.f32 %v2327, %v3347
    %v3360 = vmul.f32 %v2328, %v3351
    %v3361 = vmul.f32 %v2329, %v3355
    %v3362 = vmul.f32 %v2330, %v3347
    %v3363 = vmul.f32 %v2331, %v3351
    %v3364 = vmul.f32 %v2332, %v3355
    %v3365 = vmul.f32 %v2333, %v3347
    %v3366 = vmul.f32 %v2334, %v3351
    %v3367 = vmul.f32 %v2335, %v3355
    %v3368 = vmul.f32 %v2336, %v3347
    %v3369 = vmul.f32 %v2337, %v3351
    %v3370 = vmul.f32 %v2338, %v3355
    %v3371 = vmul.f32 %v2339, %v3347
    %v3372 = vmul.f32 %v2340, %v3351
    %v3373 = vmul.f32 %v2341, %v3355
    %v3374 = vmul.f32 %v2342, %v3347
    %v3375 = vmul.f32 %v2343, %v3351
    %v3376 = vmul.f32 %v2344, %v3355
    %v3377 = vlaneseq
    %v3378 = vshrl.u32 %v3377, 7
    %v3379 = vsub.s32 0, %v3378
    %v3380 = vrot.slane %v3270, %v3379
    %v3381 = vlaneseq
    %v3382 = vshrl.u32 %v3381, 7
    %v3383 = vsub.s32 0, %v3382
    %v3384 = vrot.slane %v3272, %v3383
    %v3385 = vlaneseq
    %v3386 = vshrl.u32 %v3385, 7
    %v3387 = vsub.s32 0, %v3386
    %v3388 = vrot.slane %v3341, %v3387
    %v3389 = vadd.f32 %v3356, %v3380
    %v3390 = vadd.f32 %v3357, %v3384
    %v3391 = vadd.f32 %v3358, %v3388
    %v3392 = vadd.f32 %v3359, %v3380
    %v3393 = vadd.f32 %v3360, %v3384
    %v3394 = vadd.f32 %v3361, %v3388
    %v3395 = vadd.f32 %v3362, %v3380
    %v3396 = vadd.f32 %v3363, %v3384
    %v3397 = vadd.f32 %v3364, %v3388
    %v3398 = vadd.f32 %v3365, %v3380
    %v3399 = vadd.f32 %v3366, %v3384
    %v3400 = vadd.f32 %v3367, %v3388
    %v3401 = vadd.f32 %v3368, %v3380
    %v3402 = vadd.f32 %v3369, %v3384
    %v3403 = vadd.f32 %v3370, %v3388
    %v3404 = vadd.f32 %v3371, %v3380
    %v3405 = vadd.f32 %v3372, %v3384
    %v3406 = vadd.f32 %v3373, %v3388
    %v3407 = vadd.f32 %v3374, %v3380
    %v3408 = vadd.f32 %v3375, %v3384
    %v3409 = vadd.f32 %v3376, %v3388
    %v3410 = vmax.f32 %v3389, 0.0
    %v3411 = vmax.f32 %v3390, 0.0
    %v3412 = vmax.f32 %v3391, 0.0
    %v3413 = vmax.f32 %v3392, 0.0
    %v3414 = vmax.f32 %v3393, 0.0
    %v3415 = vmax.f32 %v3394, 0.0
    %v3416 = vmax.f32 %v3395, 0.0
    %v3417 = vmax.f32 %v3396, 0.0
    %v3418 = vmax.f32 %v3397, 0.0
    %v3419 = vmax.f32 %v3398, 0.0
    %v3420 = vmax.f32 %v3399, 0.0
    %v3421 = vmax.f32 %v3400, 0.0
    %v3422 = vmax.f32 %v3401, 0.0
    %v3423 = vmax.f32 %v3402, 0.0
    %v3424 = vmax.f32 %v3403, 0.0
    %v3425 = vmax.f32 %v3404, 0.0
    %v3426 = vmax.f32 %v3405, 0.0
    %v3427 = vmax.f32 %v3406, 0.0
    %v3428 = vmax.f32 %v3407, 0.0
    %v3429 = vmax.f32 %v3408, 0.0
    %v3430 = vmax.f32 %v3409, 0.0
    %v3431 = vld [vmem:[%s7] sm:$0xff]
    %v3432 = vld [vmem:[%s7 + $0x8] sm:$0xff]
    %v3433 = vld [vmem:[%s7 + $0x10] sm:$0xff]
    %v3434 = vld [vmem:[%s7 + $0x18] sm:$0xff]
    %v3435 = vld [vmem:[%s7 + $0x20] sm:$0xff]
    %v3436 = vld [vmem:[%s7 + $0x28] sm:$0xff]
    %v3437 = vld [vmem:[%s7 + $0x30] sm:$0xff]
    %v3438 = vld [vmem:[%s7 + $0x38] sm:$0xff]
    %v3439 = vld [vmem:[%s7 + $0x40] sm:$0xff]
    %v3440 = vld [vmem:[%s7 + $0x48] sm:$0xff]
    %v3441 = vld [vmem:[%s7 + $0x50] sm:$0xff]
    %v3442 = vld [vmem:[%s7 + $0x58] sm:$0xff]
    %v3443 = vld [vmem:[%s7 + $0x60] sm:$0xff]
    %v3444 = vld [vmem:[%s7 + $0x68] sm:$0xff]
    %v3445 = vld [vmem:[%s7 + $0x70] sm:$0xff]
    %v3446 = vld [vmem:[%s7 + $0x78] sm:$0xff]
    %v3447 = vld [vmem:[%s7 + $0x80] sm:$0xff]
    %v3448 = vld [vmem:[%s7 + $0x88] sm:$0xff]
    %v3449 = vld [vmem:[%s7 + $0x90] sm:$0xff]
    %v3450 = vld [vmem:[%s7 + $0x98] sm:$0xff]
    %v3451 = vld [vmem:[%s7 + $0xa0] sm:$0xff]
    %v3452 = vld [vmem:[%s7 + $0xa8] sm:$0xff]
    %v3453 = vld [vmem:[%s7 + $0xb0] sm:$0xff]
    %v3454 = vld [vmem:[%s7 + $0xb8] sm:$0xff]
    %v3455 = vld [vmem:[%s7 + $0xc0] sm:$0xff]
    %v3456 = vld [vmem:[%s7 + $0xc8] sm:$0xff]
    %v3457 = vld [vmem:[%s7 + $0xd0] sm:$0xff]
    %v3458 = vld [vmem:[%s7 + $0xd8] sm:$0xff]
    %v3459 = vld [vmem:[%s7 + $0xe0] sm:$0xff]
    %v3460 = vld [vmem:[%s7 + $0xe8] sm:$0xff]
    %v3461 = vld [vmem:[%s7 + $0xf0] sm:$0xff]
    %v3462 = vld [vmem:[%s7 + $0xf8] sm:$0xff]
    %v3463 = vld [vmem:[%s7 + $0x100] sm:$0xff]
    %v3464 = vld [vmem:[%s7 + $0x108] sm:$0xff]
    %v3465 = vld [vmem:[%s7 + $0x110] sm:$0xff]
    %v3466 = vld [vmem:[%s7 + $0x118] sm:$0xff]
    %v3467 = vld [vmem:[%s7 + $0x120] sm:$0xff]
    %v3468 = vld [vmem:[%s7 + $0x128] sm:$0xff]
    %v3469 = vld [vmem:[%s7 + $0x130] sm:$0xff]
    %v3470 = vld [vmem:[%s7 + $0x138] sm:$0xff]
    %v3471 = vld [vmem:[%s7 + $0x140] sm:$0xff]
    %v3472 = vld [vmem:[%s7 + $0x148] sm:$0xff]
    %v3473 = vld [vmem:[%s7 + $0x150] sm:$0xff]
    %v3474 = vld [vmem:[%s7 + $0x158] sm:$0xff]
    %v3475 = vld [vmem:[%s7 + $0x160] sm:$0xff]
    %v3476 = vld [vmem:[%s7 + $0x168] sm:$0xff]
    %v3477 = vld [vmem:[%s7 + $0x170] sm:$0xff]
    %v3478 = vld [vmem:[%s7 + $0x178] sm:$0xff]
    %v3479 = vld [vmem:[%s9] sm:$0x1]
    %v3481 = vlaneseq
    %v3482 = vshrl.u32 %v3481, 7
    %v3483 = vsub.s32 0, %v3482
    %v3484 = vrot.slane %v3479, %v3483
    %3486 = vmatprep.subr.mxu0 0.0
    %3487 = vmatpush1.msra.mxu0 %v3446
    %3488 = vmatprep.subr.mxu0 0.0
    %3489 = vmatpush1.msra.mxu0 %v3445
    %3490 = vmatprep.subr.mxu0 0.0
    %3491 = vmatpush1.msra.mxu0 %v3444
    %3492 = vmatprep.subr.mxu0 0.0
    %3493 = vmatpush1.msra.mxu0 %v3443
    %3494 = vmatprep.subr.mxu0 0.0
    %3495 = vmatpush1.msra.mxu0 %v3442
    %3496 = vmatprep.subr.mxu0 0.0
    %3497 = vmatpush1.msra.mxu0 %v3441
    %3498 = vmatprep.subr.mxu0 0.0
    %3499 = vmatpush1.msra.mxu0 %v3440
    %3500 = vmatprep.subr.mxu0 0.0
    %3501 = vmatpush1.msra.mxu0 %v3439
    %3502 = vmatprep.subr.mxu0 0.0
    %3503 = vmatpush1.msra.mxu0 %v3438
    %3504 = vmatprep.subr.mxu0 0.0
    %3505 = vmatpush1.msra.mxu0 %v3437
    %3506 = vmatprep.subr.mxu0 0.0
    %3507 = vmatpush1.msra.mxu0 %v3436
    %3508 = vmatprep.subr.mxu0 0.0
    %3509 = vmatpush1.msra.mxu0 %v3435
    %3510 = vmatprep.subr.mxu0 0.0
    %3511 = vmatpush1.msra.mxu0 %v3434
    %3512 = vmatprep.subr.mxu0 0.0
    %3513 = vmatpush1.msra.mxu0 %v3433
    %3514 = vmatprep.subr.mxu0 0.0
    %3515 = vmatpush1.msra.mxu0 %v3432
    %3516 = vmatprep.subr.mxu0 0.0
    %3517 = vmatpush1.msra.mxu0 %v3431
    %3518 = vmatprep.subr.mxu0 0.0
    %3519 = vmatpush2.msra.mxu0 %v3462
    %3520 = vmatprep.subr.mxu0 0.0
    %3521 = vmatpush2.msra.mxu0 %v3461
    %3522 = vmatprep.subr.mxu0 0.0
    %3523 = vmatpush2.msra.mxu0 %v3460
    %3524 = vmatprep.subr.mxu0 0.0
    %3525 = vmatpush2.msra.mxu0 %v3459
    %3526 = vmatprep.subr.mxu0 0.0
    %3527 = vmatpush2.msra.mxu0 %v3458
    %3528 = vmatprep.subr.mxu0 0.0
    %3529 = vmatpush2.msra.mxu0 %v3457
    %3530 = vmatprep.subr.mxu0 0.0
    %3531 = vmatpush2.msra.mxu0 %v3456
    %3532 = vmatprep.subr.mxu0 0.0
    %3533 = vmatpush2.msra.mxu0 %v3455
    %3534 = vmatprep.subr.mxu0 0.0
    %3535 = vmatpush2.msra.mxu0 %v3454
    %3536 = vmatprep.subr.mxu0 0.0
    %3537 = vmatpush2.msra.mxu0 %v3453
    %3538 = vmatprep.subr.mxu0 0.0
    %3539 = vmatpush2.msra.mxu0 %v3452
    %3540 = vmatprep.subr.mxu0 0.0
    %3541 = vmatpush2.msra.mxu0 %v3451
    %3542 = vmatprep.subr.mxu0 0.0
    %3543 = vmatpush2.msra.mxu0 %v3450
    %3544 = vmatprep.subr.mxu0 0.0
    %3545 = vmatpush2.msra.mxu0 %v3449
    %3546 = vmatprep.subr.mxu0 0.0
    %3547 = vmatpush2.msra.mxu0 %v3448
    %3548 = vmatprep.subr.mxu0 0.0
    %3549 = vmatpush2.msra.mxu0 %v3447
    %3550 = vmatprep.mubr.f32.mxu0 %v3411
    %3551 = vmatmul.mubr.f32.gmra.mxu0 %v3410
    %v3552 = vpop.f32.mrf.mxu0
    %v3553 = vadd.f32 %v3484, %v3552
    %v3554 = vpop.f32.mrf.mxu0
    %3555 = vmatprep.mubr.f32.mxu0 %v3414
    %3556 = vmatmul.mubr.f32.gmra.mxu0 %v3413
    %v3557 = vpop.f32.mrf.mxu0
    %v3558 = vadd.f32 %v3484, %v3557
    %v3559 = vpop.f32.mrf.mxu0
    %3560 = vmatprep.mubr.f32.mxu0 %v3417
    %3561 = vmatmul.mubr.f32.gmra.mxu0 %v3416
    %v3562 = vpop.f32.mrf.mxu0
    %v3563 = vadd.f32 %v3484, %v3562
    %v3564 = vpop.f32.mrf.mxu0
    %3565 = vmatprep.mubr.f32.mxu0 %v3420
    %3566 = vmatmul.mubr.f32.gmra.mxu0 %v3419
    %v3567 = vpop.f32.mrf.mxu0
    %v3568 = vadd.f32 %v3484, %v3567
    %v3569 = vpop.f32.mrf.mxu0
    %3570 = vmatprep.mubr.f32.mxu0 %v3423
    %3571 = vmatmul.mubr.f32.gmra.mxu0 %v3422
    %v3572 = vpop.f32.mrf.mxu0
    %v3573 = vadd.f32 %v3484, %v3572
    %v3574 = vpop.f32.mrf.mxu0
    %3575 = vmatprep.mubr.f32.mxu0 %v3426
    %3576 = vmatmul.mubr.f32.gmra.mxu0 %v3425
    %v3577 = vpop.f32.mrf.mxu0
    %v3578 = vadd.f32 %v3484, %v3577
    %v3579 = vpop.f32.mrf.mxu0
    %3580 = vmatprep.mubr.f32.mxu0 %v3429
    %3581 = vmatmul.mubr.f32.gmra.mxu0 %v3428
    %v3582 = vpop.f32.mrf.mxu0
    %v3583 = vadd.f32 %v3484, %v3582
    %v3584 = vpop.f32.mrf.mxu0
    %3585 = vdwg.mxu0
    %3586 = vmatprep.subr.mxu0 0.0
    %3587 = vmatpush1.msra.mxu0 %v3478
    %3588 = vmatprep.subr.mxu0 0.0
    %3589 = vmatpush1.msra.mxu0 %v3477
    %3590 = vmatprep.subr.mxu0 0.0
    %3591 = vmatpush1.msra.mxu0 %v3476
    %3592 = vmatprep.subr.mxu0 0.0
    %3593 = vmatpush1.msra.mxu0 %v3475
    %3594 = vmatprep.subr.mxu0 0.0
    %3595 = vmatpush1.msra.mxu0 %v3474
    %3596 = vmatprep.subr.mxu0 0.0
    %3597 = vmatpush1.msra.mxu0 %v3473
    %3598 = vmatprep.subr.mxu0 0.0
    %3599 = vmatpush1.msra.mxu0 %v3472
    %3600 = vmatprep.subr.mxu0 0.0
    %3601 = vmatpush1.msra.mxu0 %v3471
    %3602 = vmatprep.subr.mxu0 0.0
    %3603 = vmatpush1.msra.mxu0 %v3470
    %3604 = vmatprep.subr.mxu0 0.0
    %3605 = vmatpush1.msra.mxu0 %v3469
    %3606 = vmatprep.subr.mxu0 0.0
    %3607 = vmatpush1.msra.mxu0 %v3468
    %3608 = vmatprep.subr.mxu0 0.0
    %3609 = vmatpush1.msra.mxu0 %v3467
    %3610 = vmatprep.subr.mxu0 0.0
    %3611 = vmatpush1.msra.mxu0 %v3466
    %3612 = vmatprep.subr.mxu0 0.0
    %3613 = vmatpush1.msra.mxu0 %v3465
    %3614 = vmatprep.subr.mxu0 0.0
    %3615 = vmatpush1.msra.mxu0 %v3464
    %3616 = vmatprep.subr.mxu0 0.0
    %3617 = vmatpush1.msra.mxu0 %v3463
    %3618 = vmatprep.subr.mxu0 0.0
    %3619 = vmatpush2.msra.mxu0 0.0
    %3620 = vmatprep.subr.mxu0 0.0
    %3621 = vmatpush2.msra.mxu0 0.0
    %3622 = vmatprep.subr.mxu0 0.0
    %3623 = vmatpush2.msra.mxu0 0.0
    %3624 = vmatprep.subr.mxu0 0.0
    %3625 = vmatpush2.msra.mxu0 0.0
    %3626 = vmatprep.subr.mxu0 0.0
    %3627 = vmatpush2.msra.mxu0 0.0
    %3628 = vmatprep.subr.mxu0 0.0
    %3629 = vmatpush2.msra.mxu0 0.0
    %3630 = vmatprep.subr.mxu0 0.0
    %3631 = vmatpush2.msra.mxu0 0.0
    %3632 = vmatprep.subr.mxu0 0.0
    %3633 = vmatpush2.msra.mxu0 0.0
    %3634 = vmatprep.subr.mxu0 0.0
    %3635 = vmatpush2.msra.mxu0 0.0
    %3636 = vmatprep.subr.mxu0 0.0
    %3637 = vmatpush2.msra.mxu0 0.0
    %3638 = vmatprep.subr.mxu0 0.0
    %3639 = vmatpush2.msra.mxu0 0.0
    %3640 = vmatprep.subr.mxu0 0.0
    %3641 = vmatpush2.msra.mxu0 0.0
    %3642 = vmatprep.subr.mxu0 0.0
    %3643 = vmatpush2.msra.mxu0 0.0
    %3644 = vmatprep.subr.mxu0 0.0
    %3645 = vmatpush2.msra.mxu0 0.0
    %3646 = vmatprep.subr.mxu0 0.0
    %3647 = vmatpush2.msra.mxu0 0.0
    %3648 = vmatprep.subr.mxu0 0.0
    %3649 = vmatpush2.msra.mxu0 0.0
    %3650 = vmatprep.mubr.f32.mxu0 0.0
    %3651 = vmatmul.mubr.f32.gmra.mxu0 %v3412
    %v3652 = vpop.f32.mrf.mxu0
    %v3653 = vadd.f32 %v3553, %v3652
    %v3654 = vpop.f32.mrf.mxu0
    %3655 = vmatprep.mubr.f32.mxu0 0.0
    %3656 = vmatmul.mubr.f32.gmra.mxu0 %v3415
    %v3657 = vpop.f32.mrf.mxu0
    %v3658 = vadd.f32 %v3558, %v3657
    %v3659 = vpop.f32.mrf.mxu0
    %3660 = vmatprep.mubr.f32.mxu0 0.0
    %3661 = vmatmul.mubr.f32.gmra.mxu0 %v3418
    %v3662 = vpop.f32.mrf.mxu0
    %v3663 = vadd.f32 %v3563, %v3662
    %v3664 = vpop.f32.mrf.mxu0
    %3665 = vmatprep.mubr.f32.mxu0 0.0
    %3666 = vmatmul.mubr.f32.gmra.mxu0 %v3421
    %v3667 = vpop.f32.mrf.mxu0
    %v3668 = vadd.f32 %v3568, %v3667
    %v3669 = vpop.f32.mrf.mxu0
    %3670 = vmatprep.mubr.f32.mxu0 0.0
    %3671 = vmatmul.mubr.f32.gmra.mxu0 %v3424
    %v3672 = vpop.f32.mrf.mxu0
    %v3673 = vadd.f32 %v3573, %v3672
    %v3674 = vpop.f32.mrf.mxu0
    %3675 = vmatprep.mubr.f32.mxu0 0.0
    %3676 = vmatmul.mubr.f32.gmra.mxu0 %v3427
    %v3677 = vpop.f32.mrf.mxu0
    %v3678 = vadd.f32 %v3578, %v3677
    %v3679 = vpop.f32.mrf.mxu0
    %3680 = vmatprep.mubr.f32.mxu0 0.0
    %3681 = vmatmul.mubr.f32.gmra.mxu0 %v3430
    %v3682 = vpop.f32.mrf.mxu0
    %v3683 = vadd.f32 %v3583, %v3682
    %v3684 = vpop.f32.mrf.mxu0
    %3685 = vdwg.mxu0
    %v3686 = vld [vmem:[%s8] sm:$0xff]
    %v3687 = vld [vmem:[%s8 + $0x8] sm:$0xff]
    %v3688 = vld [vmem:[%s8 + $0x10] sm:$0xff]
    %v3689 = vld [vmem:[%s8 + $0x18] sm:$0xff]
    %v3690 = vld [vmem:[%s8 + $0x20] sm:$0xff]
    %v3691 = vld [vmem:[%s8 + $0x28] sm:$0xff]
    %v3692 = vld [vmem:[%s8 + $0x30] sm:$0xff]
    %v3693 = vld [vmem:[%s8 + $0x38] sm:$0xff]
    %v3694 = vld [vmem:[%s8 + $0x40] sm:$0xff]
    %v3695 = vld [vmem:[%s8 + $0x48] sm:$0xff]
    %v3696 = vld [vmem:[%s8 + $0x50] sm:$0xff]
    %v3697 = vld [vmem:[%s8 + $0x58] sm:$0xff]
    %v3698 = vld [vmem:[%s8 + $0x60] sm:$0xff]
    %v3699 = vld [vmem:[%s8 + $0x68] sm:$0xff]
    %v3700 = vld [vmem:[%s8 + $0x70] sm:$0xff]
    %v3701 = vld [vmem:[%s8 + $0x78] sm:$0xff]
    %v3702 = vld [vmem:[%s8 + $0x80] sm:$0xff]
    %v3703 = vld [vmem:[%s8 + $0x88] sm:$0xff]
    %v3704 = vld [vmem:[%s8 + $0x90] sm:$0xff]
    %v3705 = vld [vmem:[%s8 + $0x98] sm:$0xff]
    %v3706 = vld [vmem:[%s8 + $0xa0] sm:$0xff]
    %v3707 = vld [vmem:[%s8 + $0xa8] sm:$0xff]
    %v3708 = vld [vmem:[%s8 + $0xb0] sm:$0xff]
    %v3709 = vld [vmem:[%s8 + $0xb8] sm:$0xff]
    %v3710 = vld [vmem:[%s8 + $0xc0] sm:$0xff]
    %v3711 = vld [vmem:[%s8 + $0xc8] sm:$0xff]
    %v3712 = vld [vmem:[%s8 + $0xd0] sm:$0xff]
    %v3713 = vld [vmem:[%s8 + $0xd8] sm:$0xff]
    %v3714 = vld [vmem:[%s8 + $0xe0] sm:$0xff]
    %v3715 = vld [vmem:[%s8 + $0xe8] sm:$0xff]
    %v3716 = vld [vmem:[%s8 + $0xf0] sm:$0xff]
    %v3717 = vld [vmem:[%s8 + $0xf8] sm:$0xff]
    %v3718 = vld [vmem:[%s8 + $0x100] sm:$0xff]
    %v3719 = vld [vmem:[%s8 + $0x108] sm:$0xff]
    %v3720 = vld [vmem:[%s8 + $0x110] sm:$0xff]
    %v3721 = vld [vmem:[%s8 + $0x118] sm:$0xff]
    %v3722 = vld [vmem:[%s8 + $0x120] sm:$0xff]
    %v3723 = vld [vmem:[%s8 + $0x128] sm:$0xff]
    %v3724 = vld [vmem:[%s8 + $0x130] sm:$0xff]
    %v3725 = vld [vmem:[%s8 + $0x138] sm:$0xff]
    %v3726 = vld [vmem:[%s8 + $0x140] sm:$0xff]
    %v3727 = vld [vmem:[%s8 + $0x148] sm:$0xff]
    %v3728 = vld [vmem:[%s8 + $0x150] sm:$0xff]
    %v3729 = vld [vmem:[%s8 + $0x158] sm:$0xff]
    %v3730 = vld [vmem:[%s8 + $0x160] sm:$0xff]
    %v3731 = vld [vmem:[%s8 + $0x168] sm:$0xff]
    %v3732 = vld [vmem:[%s8 + $0x170] sm:$0xff]
    %v3733 = vld [vmem:[%s8 + $0x178] sm:$0xff]
    %3734 = vmatprep.subr.mxu0 0.0
    %3735 = vmatpush1.msra.mxu0 %v3701
    %3736 = vmatprep.subr.mxu0 0.0
    %3737 = vmatpush1.msra.mxu0 %v3700
    %3738 = vmatprep.subr.mxu0 0.0
    %3739 = vmatpush1.msra.mxu0 %v3699
    %3740 = vmatprep.subr.mxu0 0.0
    %3741 = vmatpush1.msra.mxu0 %v3698
    %3742 = vmatprep.subr.mxu0 0.0
    %3743 = vmatpush1.msra.mxu0 %v3697
    %3744 = vmatprep.subr.mxu0 0.0
    %3745 = vmatpush1.msra.mxu0 %v3696
    %3746 = vmatprep.subr.mxu0 0.0
    %3747 = vmatpush1.msra.mxu0 %v3695
    %3748 = vmatprep.subr.mxu0 0.0
    %3749 = vmatpush1.msra.mxu0 %v3694
    %3750 = vmatprep.subr.mxu0 0.0
    %3751 = vmatpush1.msra.mxu0 %v3693
    %3752 = vmatprep.subr.mxu0 0.0
    %3753 = vmatpush1.msra.mxu0 %v3692
    %3754 = vmatprep.subr.mxu0 0.0
    %3755 = vmatpush1.msra.mxu0 %v3691
    %3756 = vmatprep.subr.mxu0 0.0
    %3757 = vmatpush1.msra.mxu0 %v3690
    %3758 = vmatprep.subr.mxu0 0.0
    %3759 = vmatpush1.msra.mxu0 %v3689
    %3760 = vmatprep.subr.mxu0 0.0
    %3761 = vmatpush1.msra.mxu0 %v3688
    %3762 = vmatprep.subr.mxu0 0.0
    %3763 = vmatpush1.msra.mxu0 %v3687
    %3764 = vmatprep.subr.mxu0 0.0
    %3765 = vmatpush1.msra.mxu0 %v3686
    %3766 = vmatprep.subr.mxu0 0.0
    %3767 = vmatpush2.msra.mxu0 %v3717
    %3768 = vmatprep.subr.mxu0 0.0
    %3769 = vmatpush2.msra.mxu0 %v3716
    %3770 = vmatprep.subr.mxu0 0.0
    %3771 = vmatpush2.msra.mxu0 %v3715
    %3772 = vmatprep.subr.mxu0 0.0
    %3773 = vmatpush2.msra.mxu0 %v3714
    %3774 = vmatprep.subr.mxu0 0.0
    %3775 = vmatpush2.msra.mxu0 %v3713
    %3776 = vmatprep.subr.mxu0 0.0
    %3777 = vmatpush2.msra.mxu0 %v3712
    %3778 = vmatprep.subr.mxu0 0.0
    %3779 = vmatpush2.msra.mxu0 %v3711
    %3780 = vmatprep.subr.mxu0 0.0
    %3781 = vmatpush2.msra.mxu0 %v3710
    %3782 = vmatprep.subr.mxu0 0.0
    %3783 = vmatpush2.msra.mxu0 %v3709
    %3784 = vmatprep.subr.mxu0 0.0
    %3785 = vmatpush2.msra.mxu0 %v3708
    %3786 = vmatprep.subr.mxu0 0.0
    %3787 = vmatpush2.msra.mxu0 %v3707
    %3788 = vmatprep.subr.mxu0 0.0
    %3789 = vmatpush2.msra.mxu0 %v3706
    %3790 = vmatprep.subr.mxu0 0.0
    %3791 = vmatpush2.msra.mxu0 %v3705
    %3792 = vmatprep.subr.mxu0 0.0
    %3793 = vmatpush2.msra.mxu0 %v3704
    %3794 = vmatprep.subr.mxu0 0.0
    %3795 = vmatpush2.msra.mxu0 %v3703
    %3796 = vmatprep.subr.mxu0 0.0
    %3797 = vmatpush2.msra.mxu0 %v3702
    %3798 = vmatprep.mubr.f32.mxu0 %v3411
    %3799 = vmatmul.mubr.f32.gmra.mxu0 %v3410
    %v3800 = vpop.f32.mrf.mxu0
    %v3801 = vadd.f32 %v3484, %v3800
    %v3802 = vpop.f32.mrf.mxu0
    %3803 = vmatprep.mubr.f32.mxu0 %v3414
    %3804 = vmatmul.mubr.f32.gmra.mxu0 %v3413
    %v3805 = vpop.f32.mrf.mxu0
    %v3806 = vadd.f32 %v3484, %v3805
    %v3807 = vpop.f32.mrf.mxu0
    %3808 = vmatprep.mubr.f32.mxu0 %v3417
    %3809 = vmatmul.mubr.f32.gmra.mxu0 %v3416
    %v3810 = vpop.f32.mrf.mxu0
    %v3811 = vadd.f32 %v3484, %v3810
    %v3812 = vpop.f32.mrf.mxu0
    %3813 = vmatprep.mubr.f32.mxu0 %v3420
    %3814 = vmatmul.mubr.f32.gmra.mxu0 %v3419
    %v3815 = vpop.f32.mrf.mxu0
    %v3816 = vadd.f32 %v3484, %v3815
    %v3817 = vpop.f32.mrf.mxu0
    %3818 = vmatprep.mubr.f32.mxu0 %v3423
    %3819 = vmatmul.mubr.f32.gmra.mxu0 %v3422
    %v3820 = vpop.f32.mrf.mxu0
    %v3821 = vadd.f32 %v3484, %v3820
    %v3822 = vpop.f32.mrf.mxu0
    %3823 = vmatprep.mubr.f32.mxu0 %v3426
    %3824 = vmatmul.mubr.f32.gmra.mxu0 %v3425
    %v3825 = vpop.f32.mrf.mxu0
    %v3826 = vadd.f32 %v3484, %v3825
    %v3827 = vpop.f32.mrf.mxu0
    %3828 = vmatprep.mubr.f32.mxu0 %v3429
    %3829 = vmatmul.mubr.f32.gmra.mxu0 %v3428
    %v3830 = vpop.f32.mrf.mxu0
    %v3831 = vadd.f32 %v3484, %v3830
    %v3832 = vpop.f32.mrf.mxu0
    %3833 = vdwg.mxu0
    %3834 = vmatprep.subr.mxu0 0.0
    %3835 = vmatpush1.msra.mxu0 %v3733
    %3836 = vmatprep.subr.mxu0 0.0
    %3837 = vmatpush1.msra.mxu0 %v3732
    %3838 = vmatprep.subr.mxu0 0.0
    %3839 = vmatpush1.msra.mxu0 %v3731
    %3840 = vmatprep.subr.mxu0 0.0
    %3841 = vmatpush1.msra.mxu0 %v3730
    %3842 = vmatprep.subr.mxu0 0.0
    %3843 = vmatpush1.msra.mxu0 %v3729
    %3844 = vmatprep.subr.mxu0 0.0
    %3845 = vmatpush1.msra.mxu0 %v3728
    %3846 = vmatprep.subr.mxu0 0.0
    %3847 = vmatpush1.msra.mxu0 %v3727
    %3848 = vmatprep.subr.mxu0 0.0
    %3849 = vmatpush1.msra.mxu0 %v3726
    %3850 = vmatprep.subr.mxu0 0.0
    %3851 = vmatpush1.msra.mxu0 %v3725
    %3852 = vmatprep.subr.mxu0 0.0
    %3853 = vmatpush1.msra.mxu0 %v3724
    %3854 = vmatprep.subr.mxu0 0.0
    %3855 = vmatpush1.msra.mxu0 %v3723
    %3856 = vmatprep.subr.mxu0 0.0
    %3857 = vmatpush1.msra.mxu0 %v3722
    %3858 = vmatprep.subr.mxu0 0.0
    %3859 = vmatpush1.msra.mxu0 %v3721
    %3860 = vmatprep.subr.mxu0 0.0
    %3861 = vmatpush1.msra.mxu0 %v3720
    %3862 = vmatprep.subr.mxu0 0.0
    %3863 = vmatpush1.msra.mxu0 %v3719
    %3864 = vmatprep.subr.mxu0 0.0
    %3865 = vmatpush1.msra.mxu0 %v3718
    %3866 = vmatprep.subr.mxu0 0.0
    %3867 = vmatpush2.msra.mxu0 0.0
    %3868 = vmatprep.subr.mxu0 0.0
    %3869 = vmatpush2.msra.mxu0 0.0
    %3870 = vmatprep.subr.mxu0 0.0
    %3871 = vmatpush2.msra.mxu0 0.0
    %3872 = vmatprep.subr.mxu0 0.0
    %3873 = vmatpush2.msra.mxu0 0.0
    %3874 = vmatprep.subr.mxu0 0.0
    %3875 = vmatpush2.msra.mxu0 0.0
    %3876 = vmatprep.subr.mxu0 0.0
    %3877 = vmatpush2.msra.mxu0 0.0
    %3878 = vmatprep.subr.mxu0 0.0
    %3879 = vmatpush2.msra.mxu0 0.0
    %3880 = vmatprep.subr.mxu0 0.0
    %3881 = vmatpush2.msra.mxu0 0.0
    %3882 = vmatprep.subr.mxu0 0.0
    %3883 = vmatpush2.msra.mxu0 0.0
    %3884 = vmatprep.subr.mxu0 0.0
    %3885 = vmatpush2.msra.mxu0 0.0
    %3886 = vmatprep.subr.mxu0 0.0
    %3887 = vmatpush2.msra.mxu0 0.0
    %3888 = vmatprep.subr.mxu0 0.0
    %3889 = vmatpush2.msra.mxu0 0.0
    %3890 = vmatprep.subr.mxu0 0.0
    %3891 = vmatpush2.msra.mxu0 0.0
    %3892 = vmatprep.subr.mxu0 0.0
    %3893 = vmatpush2.msra.mxu0 0.0
    %3894 = vmatprep.subr.mxu0 0.0
    %3895 = vmatpush2.msra.mxu0 0.0
    %3896 = vmatprep.subr.mxu0 0.0
    %3897 = vmatpush2.msra.mxu0 0.0
    %3898 = vmatprep.mubr.f32.mxu0 0.0
    %3899 = vmatmul.mubr.f32.gmra.mxu0 %v3412
    %v3900 = vpop.f32.mrf.mxu0
    %v3901 = vadd.f32 %v3801, %v3900
    %v3902 = vpop.f32.mrf.mxu0
    %3903 = vmatprep.mubr.f32.mxu0 0.0
    %3904 = vmatmul.mubr.f32.gmra.mxu0 %v3415
    %v3905 = vpop.f32.mrf.mxu0
    %v3906 = vadd.f32 %v3806, %v3905
    %v3907 = vpop.f32.mrf.mxu0
    %3908 = vmatprep.mubr.f32.mxu0 0.0
    %3909 = vmatmul.mubr.f32.gmra.mxu0 %v3418
    %v3910 = vpop.f32.mrf.mxu0
    %v3911 = vadd.f32 %v3811, %v3910
    %v3912 = vpop.f32.mrf.mxu0
    %3913 = vmatprep.mubr.f32.mxu0 0.0
    %3914 = vmatmul.mubr.f32.gmra.mxu0 %v3421
    %v3915 = vpop.f32.mrf.mxu0
    %v3916 = vadd.f32 %v3816, %v3915
    %v3917 = vpop.f32.mrf.mxu0
    %3918 = vmatprep.mubr.f32.mxu0 0.0
    %3919 = vmatmul.mubr.f32.gmra.mxu0 %v3424
    %v3920 = vpop.f32.mrf.mxu0
    %v3921 = vadd.f32 %v3821, %v3920
    %v3922 = vpop.f32.mrf.mxu0
    %3923 = vmatprep.mubr.f32.mxu0 0.0
    %3924 = vmatmul.mubr.f32.gmra.mxu0 %v3427
    %v3925 = vpop.f32.mrf.mxu0
    %v3926 = vadd.f32 %v3826, %v3925
    %v3927 = vpop.f32.mrf.mxu0
    %3928 = vmatprep.mubr.f32.mxu0 0.0
    %3929 = vmatmul.mubr.f32.gmra.mxu0 %v3430
    %v3930 = vpop.f32.mrf.mxu0
    %v3931 = vadd.f32 %v3831, %v3930
    %v3932 = vpop.f32.mrf.mxu0
    %3933 = vdwg.mxu0
    %v3934 = vmax.f32 %v3653, %v3901
    %v3935 = vmax.f32 %v3658, %v3906
    %v3936 = vmax.f32 %v3663, %v3911
    %v3937 = vmax.f32 %v3668, %v3916
    %v3938 = vmax.f32 %v3673, %v3921
    %v3939 = vmax.f32 %v3678, %v3926
    %v3940 = vmax.f32 %v3683, %v3931
    %v3941 = vld [vmem:[%s10] sm:$0xff]
    %v3942 = vld [vmem:[%s10 + $0x8] sm:$0xff]
    %v3943 = vld [vmem:[%s10 + $0x10] sm:$0xff]
    %v3944 = vld [vmem:[%s10 + $0x18] sm:$0x3]
    %vm3945 = vcmask 424960
    %v3947 = vsel %vm3945, %v3941, 0
    %v3950 = vsel %vm3945, %v3942, 0
    %v3953 = vsel %vm3945, %v3943, 0
    %v3956 = vsel %vm3945, %v3944, 0
    %v3959 = vsel %vm213, %v3940, 0
    %3961 = vmatprep.subr.mxu0 0.0
    %3962 = vmatpush1.msra.mxu0 0.0
    %3963 = vmatprep.subr.mxu0 0.0
    %3964 = vmatpush1.msra.mxu0 0.0
    %3965 = vmatprep.subr.mxu0 0.0
    %3966 = vmatpush1.msra.mxu0 0.0
    %3967 = vmatprep.subr.mxu0 0.0
    %3968 = vmatpush1.msra.mxu0 0.0
    %3969 = vmatprep.subr.mxu0 0.0
    %3970 = vmatpush1.msra.mxu0 0.0
    %3971 = vmatprep.subr.mxu0 0.0
    %3972 = vmatpush1.msra.mxu0 0.0
    %3973 = vmatprep.subr.mxu0 0.0
    %3974 = vmatpush1.msra.mxu0 0.0
    %3975 = vmatprep.subr.mxu0 0.0
    %3976 = vmatpush1.msra.mxu0 0.0
    %3977 = vmatprep.subr.mxu0 0.0
    %3978 = vmatpush1.msra.mxu0 0.0
    %3979 = vmatprep.subr.mxu0 0.0
    %3980 = vmatpush1.msra.mxu0 %v3959
    %3981 = vmatprep.subr.mxu0 0.0
    %3982 = vmatpush1.msra.mxu0 %v3939
    %3983 = vmatprep.subr.mxu0 0.0
    %3984 = vmatpush1.msra.mxu0 %v3938
    %3985 = vmatprep.subr.mxu0 0.0
    %3986 = vmatpush1.msra.mxu0 %v3937
    %3987 = vmatprep.subr.mxu0 0.0
    %3988 = vmatpush1.msra.mxu0 %v3936
    %3989 = vmatprep.subr.mxu0 0.0
    %3990 = vmatpush1.msra.mxu0 %v3935
    %3991 = vmatprep.subr.mxu0 0.0
    %3992 = vmatpush1.msra.mxu0 %v3934
    %3993 = vmatprep.subr.mxu0 0.0
    %3994 = vmatpush2.msra.mxu0 0.0
    %3995 = vmatprep.subr.mxu0 0.0
    %3996 = vmatpush2.msra.mxu0 0.0
    %3997 = vmatprep.subr.mxu0 0.0
    %3998 = vmatpush2.msra.mxu0 0.0
    %3999 = vmatprep.subr.mxu0 0.0
    %4000 = vmatpush2.msra.mxu0 0.0
    %4001 = vmatprep.subr.mxu0 0.0
    %4002 = vmatpush2.msra.mxu0 0.0
    %4003 = vmatprep.subr.mxu0 0.0
    %4004 = vmatpush2.msra.mxu0 0.0
    %4005 = vmatprep.subr.mxu0 0.0
    %4006 = vmatpush2.msra.mxu0 0.0
    %4007 = vmatprep.subr.mxu0 0.0
    %4008 = vmatpush2.msra.mxu0 0.0
    %4009 = vmatprep.subr.mxu0 0.0
    %4010 = vmatpush2.msra.mxu0 0.0
    %4011 = vmatprep.subr.mxu0 0.0
    %4012 = vmatpush2.msra.mxu0 0.0
    %4013 = vmatprep.subr.mxu0 0.0
    %4014 = vmatpush2.msra.mxu0 0.0
    %4015 = vmatprep.subr.mxu0 0.0
    %4016 = vmatpush2.msra.mxu0 0.0
    %4017 = vmatprep.subr.mxu0 0.0
    %4018 = vmatpush2.msra.mxu0 0.0
    %4019 = vmatprep.subr.mxu0 0.0
    %4020 = vmatpush2.msra.mxu0 0.0
    %4021 = vmatprep.subr.mxu0 0.0
    %4022 = vmatpush2.msra.mxu0 0.0
    %4023 = vmatprep.subr.mxu0 0.0
    %4024 = vmatpush2.msra.mxu0 0.0
    %4025 = vmatprep.mubr.f32.mxu0 0.0
    %4026 = vmatmul.mubr.f32.gmra.mxu0 %v3947
    %v4027 = vpop.f32.mrf.mxu0
    %v4028 = vadd.f32 0.0, %v4027
    %v4029 = vpop.f32.mrf.mxu0
    %4030 = vmatprep.mubr.f32.mxu0 0.0
    %4031 = vmatmul.mubr.f32.gmra.mxu0 %v3950
    %v4032 = vpop.f32.mrf.mxu0
    %v4033 = vadd.f32 0.0, %v4032
    %v4034 = vpop.f32.mrf.mxu0
    %4035 = vmatprep.mubr.f32.mxu0 0.0
    %4036 = vmatmul.mubr.f32.gmra.mxu0 %v3953
    %v4037 = vpop.f32.mrf.mxu0
    %v4038 = vadd.f32 0.0, %v4037
    %v4039 = vpop.f32.mrf.mxu0
    %4040 = vmatprep.mubr.f32.mxu0 0.0
    %4041 = vmatmul.mubr.f32.gmra.mxu0 %v3956
    %v4042 = vpop.f32.mrf.mxu0
    %v4043 = vadd.f32 0.0, %v4042
    %v4044 = vpop.f32.mrf.mxu0
    %4045 = vdwg.mxu0
    %v4046 = vld [vmem:[%s11] sm:$0xff]
    %v4047 = vld [vmem:[%s11 + $0x8] sm:$0xff]
    %v4048 = vld [vmem:[%s11 + $0x10] sm:$0xff]
    %v4049 = vld [vmem:[%s11 + $0x18] sm:$0x3]
    %v4051 = vsel %vm3945, %v4046, 0
    %v4054 = vsel %vm3945, %v4047, 0
    %v4057 = vsel %vm3945, %v4048, 0
    %v4060 = vsel %vm3945, %v4049, 0
    %4062 = vmatprep.subr.mxu0 0.0
    %4063 = vmatpush1.msra.mxu0 0.0
    %4064 = vmatprep.subr.mxu0 0.0
    %4065 = vmatpush1.msra.mxu0 0.0
    %4066 = vmatprep.subr.mxu0 0.0
    %4067 = vmatpush1.msra.mxu0 0.0
    %4068 = vmatprep.subr.mxu0 0.0
    %4069 = vmatpush1.msra.mxu0 0.0
    %4070 = vmatprep.subr.mxu0 0.0
    %4071 = vmatpush1.msra.mxu0 0.0
    %4072 = vmatprep.subr.mxu0 0.0
    %4073 = vmatpush1.msra.mxu0 0.0
    %4074 = vmatprep.subr.mxu0 0.0
    %4075 = vmatpush1.msra.mxu0 0.0
    %4076 = vmatprep.subr.mxu0 0.0
    %4077 = vmatpush1.msra.mxu0 0.0
    %4078 = vmatprep.subr.mxu0 0.0
    %4079 = vmatpush1.msra.mxu0 0.0
    %4080 = vmatprep.subr.mxu0 0.0
    %4081 = vmatpush1.msra.mxu0 %v3959
    %4082 = vmatprep.subr.mxu0 0.0
    %4083 = vmatpush1.msra.mxu0 %v3939
    %4084 = vmatprep.subr.mxu0 0.0
    %4085 = vmatpush1.msra.mxu0 %v3938
    %4086 = vmatprep.subr.mxu0 0.0
    %4087 = vmatpush1.msra.mxu0 %v3937
    %4088 = vmatprep.subr.mxu0 0.0
    %4089 = vmatpush1.msra.mxu0 %v3936
    %4090 = vmatprep.subr.mxu0 0.0
    %4091 = vmatpush1.msra.mxu0 %v3935
    %4092 = vmatprep.subr.mxu0 0.0
    %4093 = vmatpush1.msra.mxu0 %v3934
    %4094 = vmatprep.subr.mxu0 0.0
    %4095 = vmatpush2.msra.mxu0 0.0
    %4096 = vmatprep.subr.mxu0 0.0
    %4097 = vmatpush2.msra.mxu0 0.0
    %4098 = vmatprep.subr.mxu0 0.0
    %4099 = vmatpush2.msra.mxu0 0.0
    %4100 = vmatprep.subr.mxu0 0.0
    %4101 = vmatpush2.msra.mxu0 0.0
    %4102 = vmatprep.subr.mxu0 0.0
    %4103 = vmatpush2.msra.mxu0 0.0
    %4104 = vmatprep.subr.mxu0 0.0
    %4105 = vmatpush2.msra.mxu0 0.0
    %4106 = vmatprep.subr.mxu0 0.0
    %4107 = vmatpush2.msra.mxu0 0.0
    %4108 = vmatprep.subr.mxu0 0.0
    %4109 = vmatpush2.msra.mxu0 0.0
    %4110 = vmatprep.subr.mxu0 0.0
    %4111 = vmatpush2.msra.mxu0 0.0
    %4112 = vmatprep.subr.mxu0 0.0
    %4113 = vmatpush2.msra.mxu0 0.0
    %4114 = vmatprep.subr.mxu0 0.0
    %4115 = vmatpush2.msra.mxu0 0.0
    %4116 = vmatprep.subr.mxu0 0.0
    %4117 = vmatpush2.msra.mxu0 0.0
    %4118 = vmatprep.subr.mxu0 0.0
    %4119 = vmatpush2.msra.mxu0 0.0
    %4120 = vmatprep.subr.mxu0 0.0
    %4121 = vmatpush2.msra.mxu0 0.0
    %4122 = vmatprep.subr.mxu0 0.0
    %4123 = vmatpush2.msra.mxu0 0.0
    %4124 = vmatprep.subr.mxu0 0.0
    %4125 = vmatpush2.msra.mxu0 0.0
    %4126 = vmatprep.mubr.f32.mxu0 0.0
    %4127 = vmatmul.mubr.f32.gmra.mxu0 %v4051
    %v4128 = vpop.f32.mrf.mxu0
    %v4129 = vadd.f32 0.0, %v4128
    %v4130 = vpop.f32.mrf.mxu0
    %4131 = vmatprep.mubr.f32.mxu0 0.0
    %4132 = vmatmul.mubr.f32.gmra.mxu0 %v4054
    %v4133 = vpop.f32.mrf.mxu0
    %v4134 = vadd.f32 0.0, %v4133
    %v4135 = vpop.f32.mrf.mxu0
    %4136 = vmatprep.mubr.f32.mxu0 0.0
    %4137 = vmatmul.mubr.f32.gmra.mxu0 %v4057
    %v4138 = vpop.f32.mrf.mxu0
    %v4139 = vadd.f32 0.0, %v4138
    %v4140 = vpop.f32.mrf.mxu0
    %4141 = vmatprep.mubr.f32.mxu0 0.0
    %4142 = vmatmul.mubr.f32.gmra.mxu0 %v4060
    %v4143 = vpop.f32.mrf.mxu0
    %v4144 = vadd.f32 0.0, %v4143
    %v4145 = vpop.f32.mrf.mxu0
    %4146 = vdwg.mxu0
    %v4147 = vmax.f32 %v4028, %v4129
    %v4148 = vmax.f32 %v4033, %v4134
    %v4149 = vmax.f32 %v4038, %v4139
    %v4150 = vmax.f32 %v4043, %v4144
    %v4151 = vld [vmem:[%s12] sm:$0xff]
    %v4152 = vld [vmem:[%s12 + $0x8] sm:$0xff]
    %v4153 = vld [vmem:[%s12 + $0x10] sm:$0xff]
    %v4154 = vld [vmem:[%s12 + $0x18] sm:$0xff]
    %v4155 = vld [vmem:[%s12 + $0x20] sm:$0xff]
    %v4156 = vld [vmem:[%s12 + $0x28] sm:$0xff]
    %v4157 = vld [vmem:[%s12 + $0x30] sm:$0xff]
    %v4158 = vld [vmem:[%s12 + $0x38] sm:$0xff]
    %v4159 = vld [vmem:[%s12 + $0x40] sm:$0xff]
    %v4160 = vld [vmem:[%s12 + $0x48] sm:$0xff]
    %v4161 = vld [vmem:[%s12 + $0x50] sm:$0xff]
    %v4162 = vld [vmem:[%s12 + $0x58] sm:$0xff]
    %v4163 = vld [vmem:[%s12 + $0x60] sm:$0xff]
    %v4164 = vld [vmem:[%s12 + $0x68] sm:$0xff]
    %v4165 = vld [vmem:[%s12 + $0x70] sm:$0xff]
    %v4166 = vld [vmem:[%s12 + $0x78] sm:$0xff]
    %v4167 = vld [vmem:[%s12 + $0x80] sm:$0xff]
    %v4168 = vld [vmem:[%s12 + $0x88] sm:$0xff]
    %v4169 = vld [vmem:[%s12 + $0x90] sm:$0xff]
    %v4170 = vld [vmem:[%s12 + $0x98] sm:$0xff]
    %v4171 = vld [vmem:[%s12 + $0xa0] sm:$0xff]
    %v4172 = vld [vmem:[%s12 + $0xa8] sm:$0xff]
    %v4173 = vld [vmem:[%s12 + $0xb0] sm:$0xff]
    %v4174 = vld [vmem:[%s12 + $0xb8] sm:$0xff]
    %v4175 = vld [vmem:[%s12 + $0xc0] sm:$0xff]
    %v4176 = vld [vmem:[%s12 + $0xc8] sm:$0xff]
    %v4177 = vld [vmem:[%s12 + $0xd0] sm:$0xff]
    %v4178 = vld [vmem:[%s12 + $0xd8] sm:$0xff]
    %v4179 = vld [vmem:[%s12 + $0xe0] sm:$0xff]
    %v4180 = vld [vmem:[%s12 + $0xe8] sm:$0xff]
    %s4181 = scalar_lea.vmem %s12, 240
    %v4182 = vld [vmem:[%s4181] sm:$0xff]
    %v4183 = vld [vmem:[%s4181 + $0x8] sm:$0xff]
    %v4184 = vld [vmem:[%s4181 + $0x10] sm:$0xff]
    %v4185 = vld [vmem:[%s4181 + $0x18] sm:$0xff]
    %v4186 = vld [vmem:[%s4181 + $0x20] sm:$0xff]
    %v4187 = vld [vmem:[%s4181 + $0x28] sm:$0xff]
    %v4188 = vld [vmem:[%s4181 + $0x30] sm:$0xff]
    %v4189 = vld [vmem:[%s4181 + $0x38] sm:$0xff]
    %v4190 = vld [vmem:[%s4181 + $0x40] sm:$0xff]
    %v4191 = vld [vmem:[%s4181 + $0x48] sm:$0xff]
    %v4192 = vld [vmem:[%s4181 + $0x50] sm:$0xff]
    %v4193 = vld [vmem:[%s4181 + $0x58] sm:$0xff]
    %v4194 = vld [vmem:[%s4181 + $0x60] sm:$0xff]
    %v4195 = vld [vmem:[%s4181 + $0x68] sm:$0xff]
    %v4196 = vld [vmem:[%s4181 + $0x70] sm:$0xff]
    %v4197 = vld [vmem:[%s4181 + $0x78] sm:$0xff]
    %v4198 = vld [vmem:[%s4181 + $0x80] sm:$0xff]
    %v4199 = vld [vmem:[%s4181 + $0x88] sm:$0xff]
    %v4200 = vld [vmem:[%s4181 + $0x90] sm:$0xff]
    %v4201 = vld [vmem:[%s4181 + $0x98] sm:$0xff]
    %v4202 = vld [vmem:[%s4181 + $0xa0] sm:$0xff]
    %v4203 = vld [vmem:[%s4181 + $0xa8] sm:$0xff]
    %v4204 = vld [vmem:[%s4181 + $0xb0] sm:$0xff]
    %v4205 = vld [vmem:[%s4181 + $0xb8] sm:$0xff]
    %v4206 = vld [vmem:[%s4181 + $0xc0] sm:$0xff]
    %v4207 = vld [vmem:[%s4181 + $0xc8] sm:$0xff]
    %v4208 = vld [vmem:[%s4181 + $0xd0] sm:$0xff]
    %v4209 = vld [vmem:[%s4181 + $0xd8] sm:$0xff]
    %v4210 = vld [vmem:[%s4181 + $0xe0] sm:$0xff]
    %v4211 = vld [vmem:[%s4181 + $0xe8] sm:$0xff]
    %v4216 = vrot.slane %v4147, 1
    %v4217 = vrot.slane %v4148, 1
    %v4218 = vsel %vm184, %v4216, %v4217
    %v4219 = vrot.slane %v4149, 1
    %v4220 = vsel %vm184, %v4217, %v4219
    %v4221 = vrot.slane %v4150, 1
    %v4222 = vsel %vm184, %v4219, %v4221
    %vm4223 = vcmask 982016
    %v4224 = vsel %vm4223, %v4218, 0
    %v4226 = vsel %vm4223, %v4220, 0
    %v4228 = vsel %vm4223, %v4222, 0
    %4230 = vmatprep.subr.mxu0 0.0
    %4231 = vmatpush1.msra.mxu0 0.0
    %4232 = vmatprep.subr.mxu0 %v4211
    %4233 = vmatpush1.msra.mxu0 %v4210
    %4234 = vmatprep.subr.mxu0 %v4209
    %4235 = vmatpush1.msra.mxu0 %v4208
    %4236 = vmatprep.subr.mxu0 %v4207
    %4237 = vmatpush1.msra.mxu0 %v4206
    %4238 = vmatprep.subr.mxu0 %v4205
    %4239 = vmatpush1.msra.mxu0 %v4204
    %4240 = vmatprep.subr.mxu0 %v4203
    %4241 = vmatpush1.msra.mxu0 %v4202
    %4242 = vmatprep.subr.mxu0 %v4201
    %4243 = vmatpush1.msra.mxu0 %v4200
    %4244 = vmatprep.subr.mxu0 %v4199
    %4245 = vmatpush1.msra.mxu0 %v4198
    %4246 = vmatprep.subr.mxu0 %v4197
    %4247 = vmatpush1.msra.mxu0 %v4196
    %4248 = vmatprep.subr.mxu0 %v4195
    %4249 = vmatpush1.msra.mxu0 %v4194
    %4250 = vmatprep.subr.mxu0 %v4193
    %4251 = vmatpush1.msra.mxu0 %v4192
    %4252 = vmatprep.subr.mxu0 %v4191
    %4253 = vmatpush1.msra.mxu0 %v4190
    %4254 = vmatprep.subr.mxu0 %v4189
    %4255 = vmatpush1.msra.mxu0 %v4188
    %4256 = vmatprep.subr.mxu0 %v4187
    %4257 = vmatpush1.msra.mxu0 %v4186
    %4258 = vmatprep.subr.mxu0 %v4185
    %4259 = vmatpush1.msra.mxu0 %v4184
    %4260 = vmatprep.subr.mxu0 %v4183
    %4261 = vmatpush1.msra.mxu0 %v4182
    %4262 = vmatprep.subr.mxu0 0.0
    %4263 = vmatpush2.msra.mxu0 0.0
    %4264 = vmatprep.subr.mxu0 0.0
    %4265 = vmatpush2.msra.mxu0 0.0
    %4266 = vmatprep.subr.mxu0 0.0
    %4267 = vmatpush2.msra.mxu0 0.0
    %4268 = vmatprep.subr.mxu0 0.0
    %4269 = vmatpush2.msra.mxu0 0.0
    %4270 = vmatprep.subr.mxu0 0.0
    %4271 = vmatpush2.msra.mxu0 0.0
    %4272 = vmatprep.subr.mxu0 0.0
    %4273 = vmatpush2.msra.mxu0 0.0
    %4274 = vmatprep.subr.mxu0 0.0
    %4275 = vmatpush2.msra.mxu0 0.0
    %4276 = vmatprep.subr.mxu0 0.0
    %4277 = vmatpush2.msra.mxu0 0.0
    %4278 = vmatprep.subr.mxu0 0.0
    %4279 = vmatpush2.msra.mxu0 0.0
    %4280 = vmatprep.subr.mxu0 0.0
    %4281 = vmatpush2.msra.mxu0 0.0
    %4282 = vmatprep.subr.mxu0 0.0
    %4283 = vmatpush2.msra.mxu0 0.0
    %4284 = vmatprep.subr.mxu0 0.0
    %4285 = vmatpush2.msra.mxu0 0.0
    %4286 = vmatprep.subr.mxu0 0.0
    %4287 = vmatpush2.msra.mxu0 0.0
    %4288 = vmatprep.subr.mxu0 0.0
    %4289 = vmatpush2.msra.mxu0 0.0
    %4290 = vmatprep.subr.mxu0 0.0
    %4291 = vmatpush2.msra.mxu0 0.0
    %4292 = vmatprep.subr.mxu0 0.0
    %4293 = vmatpush2.msra.mxu0 0.0
    %4294 = vmatprep.mubr.f32.mxu0 0.0
    %4295 = vmatmul.mubr.f32.gmra.mxu0 %v4224
    %v4296 = vpop.f32.mrf.mxu0
    %v4297 = vadd.f32 0.0, %v4296
    %v4298 = vpop.f32.mrf.mxu0
    %v4299 = vadd.f32 0.0, %v4298
    %4300 = vmatprep.mubr.f32.mxu0 0.0
    %4301 = vmatmul.mubr.f32.gmra.mxu0 %v4226
    %v4302 = vpop.f32.mrf.mxu0
    %v4303 = vadd.f32 0.0, %v4302
    %v4304 = vpop.f32.mrf.mxu0
    %v4305 = vadd.f32 0.0, %v4304
    %4306 = vmatprep.mubr.f32.mxu0 0.0
    %4307 = vmatmul.mubr.f32.gmra.mxu0 %v4228
    %v4308 = vpop.f32.mrf.mxu0
    %v4309 = vadd.f32 0.0, %v4308
    %v4310 = vpop.f32.mrf.mxu0
    %v4311 = vadd.f32 0.0, %v4310
    %4312 = vdwg.mxu0
    %v4313 = vsel %vm4223, %v4147, 0
    %v4315 = vsel %vm4223, %v4148, 0
    %v4317 = vsel %vm4223, %v4149, 0
    %4319 = vmatprep.subr.mxu0 0.0
    %4320 = vmatpush1.msra.mxu0 0.0
    %4321 = vmatprep.subr.mxu0 %v4180
    %4322 = vmatpush1.msra.mxu0 %v4179
    %4323 = vmatprep.subr.mxu0 %v4178
    %4324 = vmatpush1.msra.mxu0 %v4177
    %4325 = vmatprep.subr.mxu0 %v4176
    %4326 = vmatpush1.msra.mxu0 %v4175
    %4327 = vmatprep.subr.mxu0 %v4174
    %4328 = vmatpush1.msra.mxu0 %v4173
    %4329 = vmatprep.subr.mxu0 %v4172
    %4330 = vmatpush1.msra.mxu0 %v4171
    %4331 = vmatprep.subr.mxu0 %v4170
    %4332 = vmatpush1.msra.mxu0 %v4169
    %4333 = vmatprep.subr.mxu0 %v4168
    %4334 = vmatpush1.msra.mxu0 %v4167
    %4335 = vmatprep.subr.mxu0 %v4166
    %4336 = vmatpush1.msra.mxu0 %v4165
    %4337 = vmatprep.subr.mxu0 %v4164
    %4338 = vmatpush1.msra.mxu0 %v4163
    %4339 = vmatprep.subr.mxu0 %v4162
    %4340 = vmatpush1.msra.mxu0 %v4161
    %4341 = vmatprep.subr.mxu0 %v4160
    %4342 = vmatpush1.msra.mxu0 %v4159
    %4343 = vmatprep.subr.mxu0 %v4158
    %4344 = vmatpush1.msra.mxu0 %v4157
    %4345 = vmatprep.subr.mxu0 %v4156
    %4346 = vmatpush1.msra.mxu0 %v4155
    %4347 = vmatprep.subr.mxu0 %v4154
    %4348 = vmatpush1.msra.mxu0 %v4153
    %4349 = vmatprep.subr.mxu0 %v4152
    %4350 = vmatpush1.msra.mxu0 %v4151
    %4351 = vmatprep.subr.mxu0 0.0
    %4352 = vmatpush2.msra.mxu0 0.0
    %4353 = vmatprep.subr.mxu0 0.0
    %4354 = vmatpush2.msra.mxu0 0.0
    %4355 = vmatprep.subr.mxu0 0.0
    %4356 = vmatpush2.msra.mxu0 0.0
    %4357 = vmatprep.subr.mxu0 0.0
    %4358 = vmatpush2.msra.mxu0 0.0
    %4359 = vmatprep.subr.mxu0 0.0
    %4360 = vmatpush2.msra.mxu0 0.0
    %4361 = vmatprep.subr.mxu0 0.0
    %4362 = vmatpush2.msra.mxu0 0.0
    %4363 = vmatprep.subr.mxu0 0.0
    %4364 = vmatpush2.msra.mxu0 0.0
    %4365 = vmatprep.subr.mxu0 0.0
    %4366 = vmatpush2.msra.mxu0 0.0
    %4367 = vmatprep.subr.mxu0 0.0
    %4368 = vmatpush2.msra.mxu0 0.0
    %4369 = vmatprep.subr.mxu0 0.0
    %4370 = vmatpush2.msra.mxu0 0.0
    %4371 = vmatprep.subr.mxu0 0.0
    %4372 = vmatpush2.msra.mxu0 0.0
    %4373 = vmatprep.subr.mxu0 0.0
    %4374 = vmatpush2.msra.mxu0 0.0
    %4375 = vmatprep.subr.mxu0 0.0
    %4376 = vmatpush2.msra.mxu0 0.0
    %4377 = vmatprep.subr.mxu0 0.0
    %4378 = vmatpush2.msra.mxu0 0.0
    %4379 = vmatprep.subr.mxu0 0.0
    %4380 = vmatpush2.msra.mxu0 0.0
    %4381 = vmatprep.subr.mxu0 0.0
    %4382 = vmatpush2.msra.mxu0 0.0
    %4383 = vmatprep.mubr.f32.mxu0 0.0
    %4384 = vmatmul.mubr.f32.gmra.mxu0 %v4313
    %v4385 = vpop.f32.mrf.mxu0
    %v4386 = vadd.f32 %v4297, %v4385
    %v4387 = vpop.f32.mrf.mxu0
    %v4388 = vadd.f32 %v4299, %v4387
    %4389 = vmatprep.mubr.f32.mxu0 0.0
    %4390 = vmatmul.mubr.f32.gmra.mxu0 %v4315
    %v4391 = vpop.f32.mrf.mxu0
    %v4392 = vadd.f32 %v4303, %v4391
    %v4393 = vpop.f32.mrf.mxu0
    %v4394 = vadd.f32 %v4305, %v4393
    %4395 = vmatprep.mubr.f32.mxu0 0.0
    %4396 = vmatmul.mubr.f32.gmra.mxu0 %v4317
    %v4397 = vpop.f32.mrf.mxu0
    %v4398 = vadd.f32 %v4309, %v4397
    %v4399 = vpop.f32.mrf.mxu0
    %v4400 = vadd.f32 %v4311, %v4399
    %4401 = vdwg.mxu0
    %s4402 = scalar_lea.vmem %s12, 480
    %v4403 = vld [vmem:[%s4402] sm:$0xff]
    %v4404 = vld [vmem:[%s4402 + $0x8] sm:$0xff]
    %v4405 = vld [vmem:[%s4402 + $0x10] sm:$0xff]
    %v4406 = vld [vmem:[%s4402 + $0x18] sm:$0xff]
    %v4407 = vld [vmem:[%s4402 + $0x20] sm:$0xff]
    %v4408 = vld [vmem:[%s4402 + $0x28] sm:$0xff]
    %v4409 = vld [vmem:[%s4402 + $0x30] sm:$0xff]
    %v4410 = vld [vmem:[%s4402 + $0x38] sm:$0xff]
    %v4411 = vld [vmem:[%s4402 + $0x40] sm:$0xff]
    %v4412 = vld [vmem:[%s4402 + $0x48] sm:$0xff]
    %v4413 = vld [vmem:[%s4402 + $0x50] sm:$0xff]
    %v4414 = vld [vmem:[%s4402 + $0x58] sm:$0xff]
    %v4415 = vld [vmem:[%s4402 + $0x60] sm:$0xff]
    %v4416 = vld [vmem:[%s4402 + $0x68] sm:$0xff]
    %v4417 = vld [vmem:[%s4402 + $0x70] sm:$0xff]
    %v4418 = vld [vmem:[%s4402 + $0x78] sm:$0xff]
    %v4419 = vld [vmem:[%s4402 + $0x80] sm:$0xff]
    %v4420 = vld [vmem:[%s4402 + $0x88] sm:$0xff]
    %v4421 = vld [vmem:[%s4402 + $0x90] sm:$0xff]
    %v4422 = vld [vmem:[%s4402 + $0x98] sm:$0xff]
    %v4423 = vld [vmem:[%s4402 + $0xa0] sm:$0xff]
    %v4424 = vld [vmem:[%s4402 + $0xa8] sm:$0xff]
    %v4425 = vld [vmem:[%s4402 + $0xb0] sm:$0xff]
    %v4426 = vld [vmem:[%s4402 + $0xb8] sm:$0xff]
    %v4427 = vld [vmem:[%s4402 + $0xc0] sm:$0xff]
    %v4428 = vld [vmem:[%s4402 + $0xc8] sm:$0xff]
    %v4429 = vld [vmem:[%s4402 + $0xd0] sm:$0xff]
    %v4430 = vld [vmem:[%s4402 + $0xd8] sm:$0xff]
    %v4431 = vld [vmem:[%s4402 + $0xe0] sm:$0xff]
    %v4432 = vld [vmem:[%s4402 + $0xe8] sm:$0xff]
    %v4433 = vrot.slane %v4147, 2
    %v4434 = vrot.slane %v4148, 2
    %v4435 = vsel %vm463, %v4433, %v4434
    %v4436 = vrot.slane %v4149, 2
    %v4437 = vsel %vm463, %v4434, %v4436
    %v4438 = vrot.slane %v4150, 2
    %v4439 = vsel %vm463, %v4436, %v4438
    %v4440 = vsel %vm4223, %v4435, 0
    %v4442 = vsel %vm4223, %v4437, 0
    %v4444 = vsel %vm4223, %v4439, 0
    %4446 = vmatprep.subr.mxu0 0.0
    %4447 = vmatpush1.msra.mxu0 0.0
    %4448 = vmatprep.subr.mxu0 %v4432
    %4449 = vmatpush1.msra.mxu0 %v4431
    %4450 = vmatprep.subr.mxu0 %v4430
    %4451 = vmatpush1.msra.mxu0 %v4429
    %4452 = vmatprep.subr.mxu0 %v4428
    %4453 = vmatpush1.msra.mxu0 %v4427
    %4454 = vmatprep.subr.mxu0 %v4426
    %4455 = vmatpush1.msra.mxu0 %v4425
    %4456 = vmatprep.subr.mxu0 %v4424
    %4457 = vmatpush1.msra.mxu0 %v4423
    %4458 = vmatprep.subr.mxu0 %v4422
    %4459 = vmatpush1.msra.mxu0 %v4421
    %4460 = vmatprep.subr.mxu0 %v4420
    %4461 = vmatpush1.msra.mxu0 %v4419
    %4462 = vmatprep.subr.mxu0 %v4418
    %4463 = vmatpush1.msra.mxu0 %v4417
    %4464 = vmatprep.subr.mxu0 %v4416
    %4465 = vmatpush1.msra.mxu0 %v4415
    %4466 = vmatprep.subr.mxu0 %v4414
    %4467 = vmatpush1.msra.mxu0 %v4413
    %4468 = vmatprep.subr.mxu0 %v4412
    %4469 = vmatpush1.msra.mxu0 %v4411
    %4470 = vmatprep.subr.mxu0 %v4410
    %4471 = vmatpush1.msra.mxu0 %v4409
    %4472 = vmatprep.subr.mxu0 %v4408
    %4473 = vmatpush1.msra.mxu0 %v4407
    %4474 = vmatprep.subr.mxu0 %v4406
    %4475 = vmatpush1.msra.mxu0 %v4405
    %4476 = vmatprep.subr.mxu0 %v4404
    %4477 = vmatpush1.msra.mxu0 %v4403
    %4478 = vmatprep.subr.mxu0 0.0
    %4479 = vmatpush2.msra.mxu0 0.0
    %4480 = vmatprep.subr.mxu0 0.0
    %4481 = vmatpush2.msra.mxu0 0.0
    %4482 = vmatprep.subr.mxu0 0.0
    %4483 = vmatpush2.msra.mxu0 0.0
    %4484 = vmatprep.subr.mxu0 0.0
    %4485 = vmatpush2.msra.mxu0 0.0
    %4486 = vmatprep.subr.mxu0 0.0
    %4487 = vmatpush2.msra.mxu0 0.0
    %4488 = vmatprep.subr.mxu0 0.0
    %4489 = vmatpush2.msra.mxu0 0.0
    %4490 = vmatprep.subr.mxu0 0.0
    %4491 = vmatpush2.msra.mxu0 0.0
    %4492 = vmatprep.subr.mxu0 0.0
    %4493 = vmatpush2.msra.mxu0 0.0
    %4494 = vmatprep.subr.mxu0 0.0
    %4495 = vmatpush2.msra.mxu0 0.0
    %4496 = vmatprep.subr.mxu0 0.0
    %4497 = vmatpush2.msra.mxu0 0.0
    %4498 = vmatprep.subr.mxu0 0.0
    %4499 = vmatpush2.msra.mxu0 0.0
    %4500 = vmatprep.subr.mxu0 0.0
    %4501 = vmatpush2.msra.mxu0 0.0
    %4502 = vmatprep.subr.mxu0 0.0
    %4503 = vmatpush2.msra.mxu0 0.0
    %4504 = vmatprep.subr.mxu0 0.0
    %4505 = vmatpush2.msra.mxu0 0.0
    %4506 = vmatprep.subr.mxu0 0.0
    %4507 = vmatpush2.msra.mxu0 0.0
    %4508 = vmatprep.subr.mxu0 0.0
    %4509 = vmatpush2.msra.mxu0 0.0
    %4510 = vmatprep.mubr.f32.mxu0 0.0
    %4511 = vmatmul.mubr.f32.gmra.mxu0 %v4440
    %v4512 = vpop.f32.mrf.mxu0
    %v4513 = vadd.f32 0.0, %v4512
    %v4514 = vpop.f32.mrf.mxu0
    %v4515 = vadd.f32 0.0, %v4514
    %4516 = vmatprep.mubr.f32.mxu0 0.0
    %4517 = vmatmul.mubr.f32.gmra.mxu0 %v4442
    %v4518 = vpop.f32.mrf.mxu0
    %v4519 = vadd.f32 0.0, %v4518
    %v4520 = vpop.f32.mrf.mxu0
    %v4521 = vadd.f32 0.0, %v4520
    %4522 = vmatprep.mubr.f32.mxu0 0.0
    %4523 = vmatmul.mubr.f32.gmra.mxu0 %v4444
    %v4524 = vpop.f32.mrf.mxu0
    %v4525 = vadd.f32 0.0, %v4524
    %v4526 = vpop.f32.mrf.mxu0
    %v4527 = vadd.f32 0.0, %v4526
    %4528 = vdwg.mxu0
    %v4529 = vadd.f32 %v4386, %v4513
    %v4530 = vadd.f32 %v4388, %v4515
    %v4531 = vadd.f32 %v4392, %v4519
    %v4532 = vadd.f32 %v4394, %v4521
    %v4533 = vadd.f32 %v4398, %v4525
    %v4534 = vadd.f32 %v4400, %v4527
    %v4535 = vld [vmem:[%s13] sm:$0x3]
    %v4537 = vlaneseq
    %v4538 = vshrl.u32 %v4537, 7
    %v4539 = vsub.s32 0, %v4538
    %v4540 = vrot.slane %v4535, %v4539
    %v4541 = vlaneseq
    %v4542 = vshrl.u32 %v4541, 7
    %v4543 = vsub.s32 1, %v4542
    %v4544 = vrot.slane %v4535, %v4543
    %v4547 = vadd.f32 %v4529, %v4540
    %v4548 = vadd.f32 %v4530, %v4544
    %v4549 = vadd.f32 %v4531, %v4540
    %v4550 = vadd.f32 %v4532, %v4544
    %v4551 = vadd.f32 %v4533, %v4540
    %v4552 = vadd.f32 %v4534, %v4544
    %vm4553 = vcmp.lt.s32.totalorder %v645, 10
    %vm4554 = vcmp.lt.s32.totalorder %v646, 10
    %vm4555 = vcmp.lt.s32.totalorder %v647, 10
    %vm4556 = vcmp.ge.s32.totalorder %v645, 14
    %vm4557 = vcmp.ge.s32.totalorder %v646, 14
    %vm4558 = vcmp.ge.s32.totalorder %v647, 14
    %vm4559 = vmand %vm4556, %vm2345
    %vm4560 = vmand %vm4557, %vm2346
    %vm4561 = vmand %vm4558, %vm2347
    %vm4562 = vmor %vm4553, %vm4559
    %vm4563 = vmor %vm4554, %vm4560
    %vm4564 = vmor %vm4555, %vm4561
    %v4565 = vsel %vm4562, 1, 0
    %v4566 = vsel %vm4563, 1, 0
    %v4567 = vsel %vm4564, 1, 0
    %vm4568 = vcmp.eq.s32.totalorder %v4565, 1
    %vm4569 = vcmp.eq.s32.totalorder %v4566, 1
    %vm4570 = vcmp.eq.s32.totalorder %v4567, 1
    %v4571 = vsel %vm4568, %v4547, 0.0
    %v4572 = vsel %vm4568, %v4548, 0.0
    %v4573 = vsel %vm4569, %v4549, 0.0
    %v4574 = vsel %vm4569, %v4550, 0.0
    %v4575 = vsel %vm4570, %v4551, 0.0
    %v4576 = vsel %vm4570, %v4552, 0.0
    %v4577 = vmul.f32 %v4547, %v4547
    %v4578 = vmul.f32 %v4548, %v4548
    %v4579 = vmul.f32 %v4549, %v4549
    %v4580 = vmul.f32 %v4550, %v4550
    %v4581 = vmul.f32 %v4551, %v4551
    %v4582 = vmul.f32 %v4552, %v4552
    %v4583 = vsel %vm4568, %v4577, 0.0
    %v4584 = vsel %vm4568, %v4578, 0.0
    %v4585 = vsel %vm4569, %v4579, 0.0
    %v4586 = vsel %vm4569, %v4580, 0.0
    %v4587 = vsel %vm4570, %v4581, 0.0
    %v4588 = vsel %vm4570, %v4582, 0.0
    %v4589 = vadd.f32 %v4571, %v4573
    %v4590 = vadd.f32 %v4589, %v4575
    %v4591 = vrot.slane %v4590, 4
    %v4592 = vadd.f32 %v4590, %v4591
    %v4593 = vrot.slane %v4592, 2
    %v4594 = vadd.f32 %v4592, %v4593
    %v4595 = vrot.slane %v4594, 1
    %v4596 = vadd.f32 %v4594, %v4595
    %vm4597 = vcmask 261120
    %v4598 = vsel %vm4597, %v4572, 0.0
    %v4599 = vsel %vm4597, %v4574, 0.0
    %v4600 = vadd.f32 %v4598, %v4599
    %v4601 = vsel %vm4597, %v4576, 0.0
    %v4602 = vadd.f32 %v4600, %v4601
    %v4603 = vrot.slane %v4602, 4
    %v4604 = vadd.f32 %v4602, %v4603
    %v4605 = vrot.slane %v4604, 2
    %v4606 = vadd.f32 %v4604, %v4605
    %v4607 = vrot.slane %v4606, 1
    %v4608 = vadd.f32 %v4606, %v4607
    %v4610 = vsel %vm4597, %v4608, 0
    %4612 = vmatprep.subr.mxu0 0.0
    %4613 = vmatpush1.msra.mxu0 %v2631
    %4614 = vmatprep.subr.mxu0 0.0
    %4615 = vmatpush1.msra.mxu0 %v2630
    %4616 = vmatprep.subr.mxu0 0.0
    %4617 = vmatpush1.msra.mxu0 %v2629
    %4618 = vmatprep.subr.mxu0 0.0
    %4619 = vmatpush1.msra.mxu0 %v2628
    %4620 = vmatprep.subr.mxu0 0.0
    %4621 = vmatpush1.msra.mxu0 %v2627
    %4622 = vmatprep.subr.mxu0 0.0
    %4623 = vmatpush1.msra.mxu0 %v2626
    %4624 = vmatprep.subr.mxu0 0.0
    %4625 = vmatpush1.msra.mxu0 %v2625
    %4626 = vmatprep.subr.mxu0 0.0
    %4627 = vmatpush1.msra.mxu0 %v2624
    %4628 = vmatprep.subr.mxu0 0.0
    %4629 = vmatpush1.msra.mxu0 %v2623
    %4630 = vmatprep.subr.mxu0 0.0
    %4631 = vmatpush1.msra.mxu0 %v2622
    %4632 = vmatprep.subr.mxu0 0.0
    %4633 = vmatpush1.msra.mxu0 %v2621
    %4634 = vmatprep.subr.mxu0 0.0
    %4635 = vmatpush1.msra.mxu0 %v2620
    %4636 = vmatprep.subr.mxu0 0.0
    %4637 = vmatpush1.msra.mxu0 %v2619
    %4638 = vmatprep.subr.mxu0 0.0
    %4639 = vmatpush1.msra.mxu0 %v2618
    %4640 = vmatprep.subr.mxu0 0.0
    %4641 = vmatpush1.msra.mxu0 %v2617
    %4642 = vmatprep.subr.mxu0 0.0
    %4643 = vmatpush1.msra.mxu0 %v2616
    %4644 = vmatprep.subr.mxu0 0.0
    %4645 = vmatpush2.msra.mxu0 0.0
    %4646 = vmatprep.subr.mxu0 0.0
    %4647 = vmatpush2.msra.mxu0 0.0
    %4648 = vmatprep.subr.mxu0 0.0
    %4649 = vmatpush2.msra.mxu0 0.0
    %4650 = vmatprep.subr.mxu0 0.0
    %4651 = vmatpush2.msra.mxu0 0.0
    %4652 = vmatprep.subr.mxu0 0.0
    %4653 = vmatpush2.msra.mxu0 0.0
    %4654 = vmatprep.subr.mxu0 0.0
    %4655 = vmatpush2.msra.mxu0 0.0
    %4656 = vmatprep.subr.mxu0 0.0
    %4657 = vmatpush2.msra.mxu0 0.0
    %4658 = vmatprep.subr.mxu0 0.0
    %4659 = vmatpush2.msra.mxu0 0.0
    %4660 = vmatprep.subr.mxu0 0.0
    %4661 = vmatpush2.msra.mxu0 0.0
    %4662 = vmatprep.subr.mxu0 0.0
    %4663 = vmatpush2.msra.mxu0 0.0
    %4664 = vmatprep.subr.mxu0 0.0
    %4665 = vmatpush2.msra.mxu0 0.0
    %4666 = vmatprep.subr.mxu0 0.0
    %4667 = vmatpush2.msra.mxu0 0.0
    %4668 = vmatprep.subr.mxu0 0.0
    %4669 = vmatpush2.msra.mxu0 %v2635
    %4670 = vmatprep.subr.mxu0 0.0
    %4671 = vmatpush2.msra.mxu0 %v2634
    %4672 = vmatprep.subr.mxu0 0.0
    %4673 = vmatpush2.msra.mxu0 %v2633
    %4674 = vmatprep.subr.mxu0 0.0
    %4675 = vmatpush2.msra.mxu0 %v2632
    %4676 = vmatprep.mubr.f32.mxu0 %v4610
    %4677 = vmatmul.mubr.f32.gmra.mxu0 %v4596
    %v4678 = vpop.f32.mrf.mxu0
    %v4679 = vadd.f32 0.0, %v4678
    %v4680 = vpop.f32.mrf.mxu0
    %4681 = vdwg.mxu0
    %v4682 = vadd.f32 %v4583, %v4585
    %v4683 = vadd.f32 %v4682, %v4587
    %v4684 = vrot.slane %v4683, 4
    %v4685 = vadd.f32 %v4683, %v4684
    %v4686 = vrot.slane %v4685, 2
    %v4687 = vadd.f32 %v4685, %v4686
    %v4688 = vrot.slane %v4687, 1
    %v4689 = vadd.f32 %v4687, %v4688
    %v4690 = vsel %vm4597, %v4584, 0.0
    %v4691 = vsel %vm4597, %v4586, 0.0
    %v4692 = vadd.f32 %v4690, %v4691
    %v4693 = vsel %vm4597, %v4588, 0.0
    %v4694 = vadd.f32 %v4692, %v4693
    %v4695 = vrot.slane %v4694, 4
    %v4696 = vadd.f32 %v4694, %v4695
    %v4697 = vrot.slane %v4696, 2
    %v4698 = vadd.f32 %v4696, %v4697
    %v4699 = vrot.slane %v4698, 1
    %v4700 = vadd.f32 %v4698, %v4699
    %v4702 = vsel %vm4597, %v4700, 0
    %4704 = vmatprep.subr.mxu0 0.0
    %4705 = vmatpush1.msra.mxu0 %v2631
    %4706 = vmatprep.subr.mxu0 0.0
    %4707 = vmatpush1.msra.mxu0 %v2630
    %4708 = vmatprep.subr.mxu0 0.0
    %4709 = vmatpush1.msra.mxu0 %v2629
    %4710 = vmatprep.subr.mxu0 0.0
    %4711 = vmatpush1.msra.mxu0 %v2628
    %4712 = vmatprep.subr.mxu0 0.0
    %4713 = vmatpush1.msra.mxu0 %v2627
    %4714 = vmatprep.subr.mxu0 0.0
    %4715 = vmatpush1.msra.mxu0 %v2626
    %4716 = vmatprep.subr.mxu0 0.0
    %4717 = vmatpush1.msra.mxu0 %v2625
    %4718 = vmatprep.subr.mxu0 0.0
    %4719 = vmatpush1.msra.mxu0 %v2624
    %4720 = vmatprep.subr.mxu0 0.0
    %4721 = vmatpush1.msra.mxu0 %v2623
    %4722 = vmatprep.subr.mxu0 0.0
    %4723 = vmatpush1.msra.mxu0 %v2622
    %4724 = vmatprep.subr.mxu0 0.0
    %4725 = vmatpush1.msra.mxu0 %v2621
    %4726 = vmatprep.subr.mxu0 0.0
    %4727 = vmatpush1.msra.mxu0 %v2620
    %4728 = vmatprep.subr.mxu0 0.0
    %4729 = vmatpush1.msra.mxu0 %v2619
    %4730 = vmatprep.subr.mxu0 0.0
    %4731 = vmatpush1.msra.mxu0 %v2618
    %4732 = vmatprep.subr.mxu0 0.0
    %4733 = vmatpush1.msra.mxu0 %v2617
    %4734 = vmatprep.subr.mxu0 0.0
    %4735 = vmatpush1.msra.mxu0 %v2616
    %4736 = vmatprep.subr.mxu0 0.0
    %4737 = vmatpush2.msra.mxu0 0.0
    %4738 = vmatprep.subr.mxu0 0.0
    %4739 = vmatpush2.msra.mxu0 0.0
    %4740 = vmatprep.subr.mxu0 0.0
    %4741 = vmatpush2.msra.mxu0 0.0
    %4742 = vmatprep.subr.mxu0 0.0
    %4743 = vmatpush2.msra.mxu0 0.0
    %4744 = vmatprep.subr.mxu0 0.0
    %4745 = vmatpush2.msra.mxu0 0.0
    %4746 = vmatprep.subr.mxu0 0.0
    %4747 = vmatpush2.msra.mxu0 0.0
    %4748 = vmatprep.subr.mxu0 0.0
    %4749 = vmatpush2.msra.mxu0 0.0
    %4750 = vmatprep.subr.mxu0 0.0
    %4751 = vmatpush2.msra.mxu0 0.0
    %4752 = vmatprep.subr.mxu0 0.0
    %4753 = vmatpush2.msra.mxu0 0.0
    %4754 = vmatprep.subr.mxu0 0.0
    %4755 = vmatpush2.msra.mxu0 0.0
    %4756 = vmatprep.subr.mxu0 0.0
    %4757 = vmatpush2.msra.mxu0 0.0
    %4758 = vmatprep.subr.mxu0 0.0
    %4759 = vmatpush2.msra.mxu0 0.0
    %4760 = vmatprep.subr.mxu0 0.0
    %4761 = vmatpush2.msra.mxu0 %v2635
    %4762 = vmatprep.subr.mxu0 0.0
    %4763 = vmatpush2.msra.mxu0 %v2634
    %4764 = vmatprep.subr.mxu0 0.0
    %4765 = vmatpush2.msra.mxu0 %v2633
    %4766 = vmatprep.subr.mxu0 0.0
    %4767 = vmatpush2.msra.mxu0 %v2632
    %4768 = vmatprep.mubr.f32.mxu0 %v4702
    %4769 = vmatmul.mubr.f32.gmra.mxu0 %v4689
    %v4770 = vpop.f32.mrf.mxu0
    %v4771 = vadd.f32 0.0, %v4770
    %v4772 = vpop.f32.mrf.mxu0
    %4773 = vdwg.mxu0
    %v4774 = vmul.f32 %v4679, 0.005
    %v4775 = vmul.f32 %v4771, 0.005
    %v4776 = vmul.f32 %v4774, %v4774
    %v4777 = vsub.f32 %v4775, %v4776
    %v4778 = vld [vmem:[%s14] sm:$0x1]
    %v4779 = vld [vmem:[%s14 + $0x1] sm:$0x1]
    %v4780 = vadd.f32 %v4777, 1e-05
    %v4781 = vrsqrt.pop %v4780
    %v4782 = vmul.f32 %v4778, %v4781
    %v4783 = vmul.f32 %v4774, %v4782
    %v4784 = vsub.f32 %v4779, %v4783
    %v4786 = vsel %vm3055, %v4782, 0
    %4788 = vmatprep.subr.mxu0 0.0
    %4789 = vmatpush1.msra.mxu0 0.0
    %4790 = vmatprep.subr.mxu0 0.0
    %4791 = vmatpush1.msra.mxu0 0.0
    %4792 = vmatprep.subr.mxu0 0.0
    %4793 = vmatpush1.msra.mxu0 0.0
    %4794 = vmatprep.subr.mxu0 0.0
    %4795 = vmatpush1.msra.mxu0 0.0
    %4796 = vmatprep.subr.mxu0 0.0
    %4797 = vmatpush1.msra.mxu0 0.0
    %4798 = vmatprep.subr.mxu0 0.0
    %4799 = vmatpush1.msra.mxu0 0.0
    %4800 = vmatprep.subr.mxu0 0.0
    %4801 = vmatpush1.msra.mxu0 0.0
    %4802 = vmatprep.subr.mxu0 0.0
    %4803 = vmatpush1.msra.mxu0 0.0
    %4804 = vmatprep.subr.mxu0 0.0
    %4805 = vmatpush1.msra.mxu0 0.0
    %4806 = vmatprep.subr.mxu0 0.0
    %4807 = vmatpush1.msra.mxu0 0.0
    %4808 = vmatprep.subr.mxu0 0.0
    %4809 = vmatpush1.msra.mxu0 0.0
    %4810 = vmatprep.subr.mxu0 0.0
    %4811 = vmatpush1.msra.mxu0 0.0
    %4812 = vmatprep.subr.mxu0 0.0
    %4813 = vmatpush1.msra.mxu0 0.0
    %4814 = vmatprep.subr.mxu0 0.0
    %4815 = vmatpush1.msra.mxu0 0.0
    %4816 = vmatprep.subr.mxu0 %v2684
    %4817 = vmatpush1.msra.mxu0 %v2683
    %4818 = vmatprep.subr.mxu0 %v2681
    %4819 = vmatpush1.msra.mxu0 %v2680
    %4820 = vmatprep.subr.mxu0 0.0
    %4821 = vmatpush2.msra.mxu0 0.0
    %4822 = vmatprep.subr.mxu0 0.0
    %4823 = vmatpush2.msra.mxu0 0.0
    %4824 = vmatprep.subr.mxu0 0.0
    %4825 = vmatpush2.msra.mxu0 0.0
    %4826 = vmatprep.subr.mxu0 0.0
    %4827 = vmatpush2.msra.mxu0 0.0
    %4828 = vmatprep.subr.mxu0 0.0
    %4829 = vmatpush2.msra.mxu0 0.0
    %4830 = vmatprep.subr.mxu0 0.0
    %4831 = vmatpush2.msra.mxu0 0.0
    %4832 = vmatprep.subr.mxu0 0.0
    %4833 = vmatpush2.msra.mxu0 0.0
    %4834 = vmatprep.subr.mxu0 0.0
    %4835 = vmatpush2.msra.mxu0 0.0
    %4836 = vmatprep.subr.mxu0 0.0
    %4837 = vmatpush2.msra.mxu0 0.0
    %4838 = vmatprep.subr.mxu0 0.0
    %4839 = vmatpush2.msra.mxu0 0.0
    %4840 = vmatprep.subr.mxu0 0.0
    %4841 = vmatpush2.msra.mxu0 0.0
    %4842 = vmatprep.subr.mxu0 0.0
    %4843 = vmatpush2.msra.mxu0 0.0
    %4844 = vmatprep.subr.mxu0 0.0
    %4845 = vmatpush2.msra.mxu0 0.0
    %4846 = vmatprep.subr.mxu0 0.0
    %4847 = vmatpush2.msra.mxu0 0.0
    %4848 = vmatprep.subr.mxu0 0.0
    %4849 = vmatpush2.msra.mxu0 0.0
    %4850 = vmatprep.subr.mxu0 0.0
    %4851 = vmatpush2.msra.mxu0 0.0
    %4852 = vmatprep.mubr.f32.mxu0 0.0
    %4853 = vmatmul.mubr.f32.gmra.mxu0 %v4786
    %v4854 = vpop.f32.mrf.mxu0
    %v4855 = vadd.f32 0.0, %v4854
    %v4856 = vpop.f32.mrf.mxu0
    %v4857 = vadd.f32 0.0, %v4856
    %4858 = vdwg.mxu0
    %v4860 = vsel %vm3055, %v4784, 0
    %4862 = vmatprep.subr.mxu0 0.0
    %4863 = vmatpush1.msra.mxu0 0.0
    %4864 = vmatprep.subr.mxu0 0.0
    %4865 = vmatpush1.msra.mxu0 0.0
    %4866 = vmatprep.subr.mxu0 0.0
    %4867 = vmatpush1.msra.mxu0 0.0
    %4868 = vmatprep.subr.mxu0 0.0
    %4869 = vmatpush1.msra.mxu0 0.0
    %4870 = vmatprep.subr.mxu0 0.0
    %4871 = vmatpush1.msra.mxu0 0.0
    %4872 = vmatprep.subr.mxu0 0.0
    %4873 = vmatpush1.msra.mxu0 0.0
    %4874 = vmatprep.subr.mxu0 0.0
    %4875 = vmatpush1.msra.mxu0 0.0
    %4876 = vmatprep.subr.mxu0 0.0
    %4877 = vmatpush1.msra.mxu0 0.0
    %4878 = vmatprep.subr.mxu0 0.0
    %4879 = vmatpush1.msra.mxu0 0.0
    %4880 = vmatprep.subr.mxu0 0.0
    %4881 = vmatpush1.msra.mxu0 0.0
    %4882 = vmatprep.subr.mxu0 0.0
    %4883 = vmatpush1.msra.mxu0 0.0
    %4884 = vmatprep.subr.mxu0 0.0
    %4885 = vmatpush1.msra.mxu0 0.0
    %4886 = vmatprep.subr.mxu0 0.0
    %4887 = vmatpush1.msra.mxu0 0.0
    %4888 = vmatprep.subr.mxu0 0.0
    %4889 = vmatpush1.msra.mxu0 0.0
    %4890 = vmatprep.subr.mxu0 %v2684
    %4891 = vmatpush1.msra.mxu0 %v2683
    %4892 = vmatprep.subr.mxu0 %v2681
    %4893 = vmatpush1.msra.mxu0 %v2680
    %4894 = vmatprep.subr.mxu0 0.0
    %4895 = vmatpush2.msra.mxu0 0.0
    %4896 = vmatprep.subr.mxu0 0.0
    %4897 = vmatpush2.msra.mxu0 0.0
    %4898 = vmatprep.subr.mxu0 0.0
    %4899 = vmatpush2.msra.mxu0 0.0
    %4900 = vmatprep.subr.mxu0 0.0
    %4901 = vmatpush2.msra.mxu0 0.0
    %4902 = vmatprep.subr.mxu0 0.0
    %4903 = vmatpush2.msra.mxu0 0.0
    %4904 = vmatprep.subr.mxu0 0.0
    %4905 = vmatpush2.msra.mxu0 0.0
    %4906 = vmatprep.subr.mxu0 0.0
    %4907 = vmatpush2.msra.mxu0 0.0
    %4908 = vmatprep.subr.mxu0 0.0
    %4909 = vmatpush2.msra.mxu0 0.0
    %4910 = vmatprep.subr.mxu0 0.0
    %4911 = vmatpush2.msra.mxu0 0.0
    %4912 = vmatprep.subr.mxu0 0.0
    %4913 = vmatpush2.msra.mxu0 0.0
    %4914 = vmatprep.subr.mxu0 0.0
    %4915 = vmatpush2.msra.mxu0 0.0
    %4916 = vmatprep.subr.mxu0 0.0
    %4917 = vmatpush2.msra.mxu0 0.0
    %4918 = vmatprep.subr.mxu0 0.0
    %4919 = vmatpush2.msra.mxu0 0.0
    %4920 = vmatprep.subr.mxu0 0.0
    %4921 = vmatpush2.msra.mxu0 0.0
    %4922 = vmatprep.subr.mxu0 0.0
    %4923 = vmatpush2.msra.mxu0 0.0
    %4924 = vmatprep.subr.mxu0 0.0
    %4925 = vmatpush2.msra.mxu0 0.0
    %4926 = vmatprep.mubr.f32.mxu0 0.0
    %4927 = vmatmul.mubr.f32.gmra.mxu0 %v4860
    %v4928 = vpop.f32.mrf.mxu0
    %v4929 = vadd.f32 0.0, %v4928
    %v4930 = vpop.f32.mrf.mxu0
    %v4931 = vadd.f32 0.0, %v4930
    %4932 = vdwg.mxu0
    %v4933 = vlaneseq
    %v4934 = vshrl.u32 %v4933, 7
    %v4935 = vsub.s32 0, %v4934
    %v4936 = vrot.slane %v4855, %v4935
    %v4937 = vlaneseq
    %v4938 = vshrl.u32 %v4937, 7
    %v4939 = vsub.s32 0, %v4938
    %v4940 = vrot.slane %v4857, %v4939
    %v4941 = vmul.f32 %v4547, %v4936
    %v4942 = vmul.f32 %v4548, %v4940
    %v4943 = vmul.f32 %v4549, %v4936
    %v4944 = vmul.f32 %v4550, %v4940
    %v4945 = vmul.f32 %v4551, %v4936
    %v4946 = vmul.f32 %v4552, %v4940
    %v4947 = vlaneseq
    %v4948 = vshrl.u32 %v4947, 7
    %v4949 = vsub.s32 0, %v4948
    %v4950 = vrot.slane %v4929, %v4949
    %v4951 = vlaneseq
    %v4952 = vshrl.u32 %v4951, 7
    %v4953 = vsub.s32 0, %v4952
    %v4954 = vrot.slane %v4931, %v4953
    %v4955 = vadd.f32 %v4941, %v4950
    %v4956 = vadd.f32 %v4942, %v4954
    %v4957 = vadd.f32 %v4943, %v4950
    %v4958 = vadd.f32 %v4944, %v4954
    %v4959 = vadd.f32 %v4945, %v4950
    %v4960 = vadd.f32 %v4946, %v4954
    %v4961 = vmax.f32 %v4955, 0.0
    %v4962 = vmax.f32 %v4956, 0.0
    %v4963 = vmax.f32 %v4957, 0.0
    %v4964 = vmax.f32 %v4958, 0.0
    %v4965 = vmax.f32 %v4959, 0.0
    %v4966 = vmax.f32 %v4960, 0.0
    %v4967 = vld [vmem:[%s15] sm:$0xff]
    %v4968 = vld [vmem:[%s15 + $0x8] sm:$0xff]
    %v4969 = vld [vmem:[%s15 + $0x10] sm:$0xff]
    %v4970 = vld [vmem:[%s15 + $0x18] sm:$0xff]
    %v4971 = vld [vmem:[%s15 + $0x20] sm:$0xff]
    %v4972 = vld [vmem:[%s15 + $0x28] sm:$0xff]
    %v4973 = vld [vmem:[%s15 + $0x30] sm:$0xff]
    %v4974 = vld [vmem:[%s15 + $0x38] sm:$0xff]
    %v4975 = vld [vmem:[%s15 + $0x40] sm:$0xff]
    %v4976 = vld [vmem:[%s15 + $0x48] sm:$0xff]
    %v4977 = vld [vmem:[%s15 + $0x50] sm:$0xff]
    %v4978 = vld [vmem:[%s15 + $0x58] sm:$0xff]
    %v4979 = vld [vmem:[%s15 + $0x60] sm:$0xff]
    %v4980 = vld [vmem:[%s15 + $0x68] sm:$0xff]
    %v4981 = vld [vmem:[%s15 + $0x70] sm:$0xff]
    %v4982 = vld [vmem:[%s15 + $0x78] sm:$0xff]
    %v4983 = vld [vmem:[%s15 + $0x80] sm:$0xff]
    %v4984 = vld [vmem:[%s15 + $0x88] sm:$0xff]
    %v4985 = vld [vmem:[%s15 + $0x90] sm:$0xff]
    %v4986 = vld [vmem:[%s15 + $0x98] sm:$0xff]
    %s4987 = scalar_lea.vmem %s15, 160
    %v4988 = vld [vmem:[%s4987] sm:$0xff]
    %v4989 = vld [vmem:[%s4987 + $0x8] sm:$0xff]
    %v4990 = vld [vmem:[%s4987 + $0x10] sm:$0xff]
    %v4991 = vld [vmem:[%s4987 + $0x18] sm:$0xff]
    %v4992 = vld [vmem:[%s4987 + $0x20] sm:$0xff]
    %v4993 = vld [vmem:[%s4987 + $0x28] sm:$0xff]
    %v4994 = vld [vmem:[%s4987 + $0x30] sm:$0xff]
    %v4995 = vld [vmem:[%s4987 + $0x38] sm:$0xff]
    %v4996 = vld [vmem:[%s4987 + $0x40] sm:$0xff]
    %v4997 = vld [vmem:[%s4987 + $0x48] sm:$0xff]
    %v4998 = vld [vmem:[%s4987 + $0x50] sm:$0xff]
    %v4999 = vld [vmem:[%s4987 + $0x58] sm:$0xff]
    %v5000 = vld [vmem:[%s4987 + $0x60] sm:$0xff]
    %v5001 = vld [vmem:[%s4987 + $0x68] sm:$0xff]
    %v5002 = vld [vmem:[%s4987 + $0x70] sm:$0xff]
    %v5003 = vld [vmem:[%s4987 + $0x78] sm:$0xff]
    %v5004 = vld [vmem:[%s4987 + $0x80] sm:$0xff]
    %v5005 = vld [vmem:[%s4987 + $0x88] sm:$0xff]
    %v5006 = vld [vmem:[%s4987 + $0x90] sm:$0xff]
    %v5007 = vld [vmem:[%s4987 + $0x98] sm:$0xff]
    %v5014 = vrot.slane %v4961, 1
    %v5015 = vrot.slane %v4963, 1
    %v5016 = vsel %vm184, %v5014, %v5015
    %v5017 = vrot.slane %v4962, 1
    %v5018 = vrot.slane %v4964, 1
    %v5019 = vsel %vm184, %v5017, %v5018
    %v5020 = vrot.slane %v4965, 1
    %v5021 = vsel %vm184, %v5015, %v5020
    %v5022 = vrot.slane %v4966, 1
    %v5023 = vsel %vm184, %v5018, %v5022
    %v5027 = vsel %vm4597, %v5019, 0
    %v5029 = vsel %vm4597, %v5023, 0
    %v5031 = vsel %vm4597, %v5022, 0
    %5033 = vmatprep.subr.mxu0 0.0
    %5034 = vmatpush1.msra.mxu0 %v5003
    %5035 = vmatprep.subr.mxu0 0.0
    %5036 = vmatpush1.msra.mxu0 %v5002
    %5037 = vmatprep.subr.mxu0 0.0
    %5038 = vmatpush1.msra.mxu0 %v5001
    %5039 = vmatprep.subr.mxu0 0.0
    %5040 = vmatpush1.msra.mxu0 %v5000
    %5041 = vmatprep.subr.mxu0 0.0
    %5042 = vmatpush1.msra.mxu0 %v4999
    %5043 = vmatprep.subr.mxu0 0.0
    %5044 = vmatpush1.msra.mxu0 %v4998
    %5045 = vmatprep.subr.mxu0 0.0
    %5046 = vmatpush1.msra.mxu0 %v4997
    %5047 = vmatprep.subr.mxu0 0.0
    %5048 = vmatpush1.msra.mxu0 %v4996
    %5049 = vmatprep.subr.mxu0 0.0
    %5050 = vmatpush1.msra.mxu0 %v4995
    %5051 = vmatprep.subr.mxu0 0.0
    %5052 = vmatpush1.msra.mxu0 %v4994
    %5053 = vmatprep.subr.mxu0 0.0
    %5054 = vmatpush1.msra.mxu0 %v4993
    %5055 = vmatprep.subr.mxu0 0.0
    %5056 = vmatpush1.msra.mxu0 %v4992
    %5057 = vmatprep.subr.mxu0 0.0
    %5058 = vmatpush1.msra.mxu0 %v4991
    %5059 = vmatprep.subr.mxu0 0.0
    %5060 = vmatpush1.msra.mxu0 %v4990
    %5061 = vmatprep.subr.mxu0 0.0
    %5062 = vmatpush1.msra.mxu0 %v4989
    %5063 = vmatprep.subr.mxu0 0.0
    %5064 = vmatpush1.msra.mxu0 %v4988
    %5065 = vmatprep.subr.mxu0 0.0
    %5066 = vmatpush2.msra.mxu0 0.0
    %5067 = vmatprep.subr.mxu0 0.0
    %5068 = vmatpush2.msra.mxu0 0.0
    %5069 = vmatprep.subr.mxu0 0.0
    %5070 = vmatpush2.msra.mxu0 0.0
    %5071 = vmatprep.subr.mxu0 0.0
    %5072 = vmatpush2.msra.mxu0 0.0
    %5073 = vmatprep.subr.mxu0 0.0
    %5074 = vmatpush2.msra.mxu0 0.0
    %5075 = vmatprep.subr.mxu0 0.0
    %5076 = vmatpush2.msra.mxu0 0.0
    %5077 = vmatprep.subr.mxu0 0.0
    %5078 = vmatpush2.msra.mxu0 0.0
    %5079 = vmatprep.subr.mxu0 0.0
    %5080 = vmatpush2.msra.mxu0 0.0
    %5081 = vmatprep.subr.mxu0 0.0
    %5082 = vmatpush2.msra.mxu0 0.0
    %5083 = vmatprep.subr.mxu0 0.0
    %5084 = vmatpush2.msra.mxu0 0.0
    %5085 = vmatprep.subr.mxu0 0.0
    %5086 = vmatpush2.msra.mxu0 0.0
    %5087 = vmatprep.subr.mxu0 0.0
    %5088 = vmatpush2.msra.mxu0 0.0
    %5089 = vmatprep.subr.mxu0 0.0
    %5090 = vmatpush2.msra.mxu0 %v5007
    %5091 = vmatprep.subr.mxu0 0.0
    %5092 = vmatpush2.msra.mxu0 %v5006
    %5093 = vmatprep.subr.mxu0 0.0
    %5094 = vmatpush2.msra.mxu0 %v5005
    %5095 = vmatprep.subr.mxu0 0.0
    %5096 = vmatpush2.msra.mxu0 %v5004
    %5097 = vmatprep.mubr.f32.mxu0 %v5027
    %5098 = vmatmul.mubr.f32.gmra.mxu0 %v5016
    %v5099 = vpop.f32.mrf.mxu0
    %v5100 = vadd.f32 0.0, %v5099
    %v5101 = vpop.f32.mrf.mxu0
    %5102 = vmatprep.mubr.f32.mxu0 %v5029
    %5103 = vmatmul.mubr.f32.gmra.mxu0 %v5021
    %v5104 = vpop.f32.mrf.mxu0
    %v5105 = vadd.f32 0.0, %v5104
    %v5106 = vpop.f32.mrf.mxu0
    %5107 = vmatprep.mubr.f32.mxu0 %v5031
    %5108 = vmatmul.mubr.f32.gmra.mxu0 %v5020
    %v5109 = vpop.f32.mrf.mxu0
    %v5110 = vadd.f32 0.0, %v5109
    %v5111 = vpop.f32.mrf.mxu0
    %5112 = vdwg.mxu0
    %v5113 = vsel %vm4597, %v4962, 0
    %v5115 = vsel %vm4597, %v4964, 0
    %v5117 = vsel %vm4597, %v4966, 0
    %5119 = vmatprep.subr.mxu0 0.0
    %5120 = vmatpush1.msra.mxu0 %v4982
    %5121 = vmatprep.subr.mxu0 0.0
    %5122 = vmatpush1.msra.mxu0 %v4981
    %5123 = vmatprep.subr.mxu0 0.0
    %5124 = vmatpush1.msra.mxu0 %v4980
    %5125 = vmatprep.subr.mxu0 0.0
    %5126 = vmatpush1.msra.mxu0 %v4979
    %5127 = vmatprep.subr.mxu0 0.0
    %5128 = vmatpush1.msra.mxu0 %v4978
    %5129 = vmatprep.subr.mxu0 0.0
    %5130 = vmatpush1.msra.mxu0 %v4977
    %5131 = vmatprep.subr.mxu0 0.0
    %5132 = vmatpush1.msra.mxu0 %v4976
    %5133 = vmatprep.subr.mxu0 0.0
    %5134 = vmatpush1.msra.mxu0 %v4975
    %5135 = vmatprep.subr.mxu0 0.0
    %5136 = vmatpush1.msra.mxu0 %v4974
    %5137 = vmatprep.subr.mxu0 0.0
    %5138 = vmatpush1.msra.mxu0 %v4973
    %5139 = vmatprep.subr.mxu0 0.0
    %5140 = vmatpush1.msra.mxu0 %v4972
    %5141 = vmatprep.subr.mxu0 0.0
    %5142 = vmatpush1.msra.mxu0 %v4971
    %5143 = vmatprep.subr.mxu0 0.0
    %5144 = vmatpush1.msra.mxu0 %v4970
    %5145 = vmatprep.subr.mxu0 0.0
    %5146 = vmatpush1.msra.mxu0 %v4969
    %5147 = vmatprep.subr.mxu0 0.0
    %5148 = vmatpush1.msra.mxu0 %v4968
    %5149 = vmatprep.subr.mxu0 0.0
    %5150 = vmatpush1.msra.mxu0 %v4967
    %5151 = vmatprep.subr.mxu0 0.0
    %5152 = vmatpush2.msra.mxu0 0.0
    %5153 = vmatprep.subr.mxu0 0.0
    %5154 = vmatpush2.msra.mxu0 0.0
    %5155 = vmatprep.subr.mxu0 0.0
    %5156 = vmatpush2.msra.mxu0 0.0
    %5157 = vmatprep.subr.mxu0 0.0
    %5158 = vmatpush2.msra.mxu0 0.0
    %5159 = vmatprep.subr.mxu0 0.0
    %5160 = vmatpush2.msra.mxu0 0.0
    %5161 = vmatprep.subr.mxu0 0.0
    %5162 = vmatpush2.msra.mxu0 0.0
    %5163 = vmatprep.subr.mxu0 0.0
    %5164 = vmatpush2.msra.mxu0 0.0
    %5165 = vmatprep.subr.mxu0 0.0
    %5166 = vmatpush2.msra.mxu0 0.0
    %5167 = vmatprep.subr.mxu0 0.0
    %5168 = vmatpush2.msra.mxu0 0.0
    %5169 = vmatprep.subr.mxu0 0.0
    %5170 = vmatpush2.msra.mxu0 0.0
    %5171 = vmatprep.subr.mxu0 0.0
    %5172 = vmatpush2.msra.mxu0 0.0
    %5173 = vmatprep.subr.mxu0 0.0
    %5174 = vmatpush2.msra.mxu0 0.0
    %5175 = vmatprep.subr.mxu0 0.0
    %5176 = vmatpush2.msra.mxu0 %v4986
    %5177 = vmatprep.subr.mxu0 0.0
    %5178 = vmatpush2.msra.mxu0 %v4985
    %5179 = vmatprep.subr.mxu0 0.0
    %5180 = vmatpush2.msra.mxu0 %v4984
    %5181 = vmatprep.subr.mxu0 0.0
    %5182 = vmatpush2.msra.mxu0 %v4983
    %5183 = vmatprep.mubr.f32.mxu0 %v5113
    %5184 = vmatmul.mubr.f32.gmra.mxu0 %v4961
    %v5185 = vpop.f32.mrf.mxu0
    %v5186 = vadd.f32 %v5100, %v5185
    %v5187 = vpop.f32.mrf.mxu0
    %5188 = vmatprep.mubr.f32.mxu0 %v5115
    %5189 = vmatmul.mubr.f32.gmra.mxu0 %v4963
    %v5190 = vpop.f32.mrf.mxu0
    %v5191 = vadd.f32 %v5105, %v5190
    %v5192 = vpop.f32.mrf.mxu0
    %5193 = vmatprep.mubr.f32.mxu0 %v5117
    %5194 = vmatmul.mubr.f32.gmra.mxu0 %v4965
    %v5195 = vpop.f32.mrf.mxu0
    %v5196 = vadd.f32 %v5110, %v5195
    %v5197 = vpop.f32.mrf.mxu0
    %5198 = vdwg.mxu0
    %s5199 = scalar_lea.vmem %s15, 320
    %v5200 = vld [vmem:[%s5199] sm:$0xff]
    %v5201 = vld [vmem:[%s5199 + $0x8] sm:$0xff]
    %v5202 = vld [vmem:[%s5199 + $0x10] sm:$0xff]
    %v5203 = vld [vmem:[%s5199 + $0x18] sm:$0xff]
    %v5204 = vld [vmem:[%s5199 + $0x20] sm:$0xff]
    %v5205 = vld [vmem:[%s5199 + $0x28] sm:$0xff]
    %v5206 = vld [vmem:[%s5199 + $0x30] sm:$0xff]
    %v5207 = vld [vmem:[%s5199 + $0x38] sm:$0xff]
    %v5208 = vld [vmem:[%s5199 + $0x40] sm:$0xff]
    %v5209 = vld [vmem:[%s5199 + $0x48] sm:$0xff]
    %v5210 = vld [vmem:[%s5199 + $0x50] sm:$0xff]
    %v5211 = vld [vmem:[%s5199 + $0x58] sm:$0xff]
    %v5212 = vld [vmem:[%s5199 + $0x60] sm:$0xff]
    %v5213 = vld [vmem:[%s5199 + $0x68] sm:$0xff]
    %v5214 = vld [vmem:[%s5199 + $0x70] sm:$0xff]
    %v5215 = vld [vmem:[%s5199 + $0x78] sm:$0xff]
    %v5216 = vld [vmem:[%s5199 + $0x80] sm:$0xff]
    %v5217 = vld [vmem:[%s5199 + $0x88] sm:$0xff]
    %v5218 = vld [vmem:[%s5199 + $0x90] sm:$0xff]
    %v5219 = vld [vmem:[%s5199 + $0x98] sm:$0xff]
    %v5220 = vrot.slane %v4961, 2
    %v5221 = vrot.slane %v4963, 2
    %v5222 = vsel %vm463, %v5220, %v5221
    %v5223 = vrot.slane %v4962, 2
    %v5224 = vrot.slane %v4964, 2
    %v5225 = vsel %vm463, %v5223, %v5224
    %v5226 = vrot.slane %v4965, 2
    %v5227 = vsel %vm463, %v5221, %v5226
    %v5228 = vrot.slane %v4966, 2
    %v5229 = vsel %vm463, %v5224, %v5228
    %v5233 = vsel %vm4597, %v5225, 0
    %v5235 = vsel %vm4597, %v5229, 0
    %v5237 = vsel %vm4597, %v5228, 0
    %5239 = vmatprep.subr.mxu0 0.0
    %5240 = vmatpush1.msra.mxu0 %v5215
    %5241 = vmatprep.subr.mxu0 0.0
    %5242 = vmatpush1.msra.mxu0 %v5214
    %5243 = vmatprep.subr.mxu0 0.0
    %5244 = vmatpush1.msra.mxu0 %v5213
    %5245 = vmatprep.subr.mxu0 0.0
    %5246 = vmatpush1.msra.mxu0 %v5212
    %5247 = vmatprep.subr.mxu0 0.0
    %5248 = vmatpush1.msra.mxu0 %v5211
    %5249 = vmatprep.subr.mxu0 0.0
    %5250 = vmatpush1.msra.mxu0 %v5210
    %5251 = vmatprep.subr.mxu0 0.0
    %5252 = vmatpush1.msra.mxu0 %v5209
    %5253 = vmatprep.subr.mxu0 0.0
    %5254 = vmatpush1.msra.mxu0 %v5208
    %5255 = vmatprep.subr.mxu0 0.0
    %5256 = vmatpush1.msra.mxu0 %v5207
    %5257 = vmatprep.subr.mxu0 0.0
    %5258 = vmatpush1.msra.mxu0 %v5206
    %5259 = vmatprep.subr.mxu0 0.0
    %5260 = vmatpush1.msra.mxu0 %v5205
    %5261 = vmatprep.subr.mxu0 0.0
    %5262 = vmatpush1.msra.mxu0 %v5204
    %5263 = vmatprep.subr.mxu0 0.0
    %5264 = vmatpush1.msra.mxu0 %v5203
    %5265 = vmatprep.subr.mxu0 0.0
    %5266 = vmatpush1.msra.mxu0 %v5202
    %5267 = vmatprep.subr.mxu0 0.0
    %5268 = vmatpush1.msra.mxu0 %v5201
    %5269 = vmatprep.subr.mxu0 0.0
    %5270 = vmatpush1.msra.mxu0 %v5200
    %5271 = vmatprep.subr.mxu0 0.0
    %5272 = vmatpush2.msra.mxu0 0.0
    %5273 = vmatprep.subr.mxu0 0.0
    %5274 = vmatpush2.msra.mxu0 0.0
    %5275 = vmatprep.subr.mxu0 0.0
    %5276 = vmatpush2.msra.mxu0 0.0
    %5277 = vmatprep.subr.mxu0 0.0
    %5278 = vmatpush2.msra.mxu0 0.0
    %5279 = vmatprep.subr.mxu0 0.0
    %5280 = vmatpush2.msra.mxu0 0.0
    %5281 = vmatprep.subr.mxu0 0.0
    %5282 = vmatpush2.msra.mxu0 0.0
    %5283 = vmatprep.subr.mxu0 0.0
    %5284 = vmatpush2.msra.mxu0 0.0
    %5285 = vmatprep.subr.mxu0 0.0
    %5286 = vmatpush2.msra.mxu0 0.0
    %5287 = vmatprep.subr.mxu0 0.0
    %5288 = vmatpush2.msra.mxu0 0.0
    %5289 = vmatprep.subr.mxu0 0.0
    %5290 = vmatpush2.msra.mxu0 0.0
    %5291 = vmatprep.subr.mxu0 0.0
    %5292 = vmatpush2.msra.mxu0 0.0
    %5293 = vmatprep.subr.mxu0 0.0
    %5294 = vmatpush2.msra.mxu0 0.0
    %5295 = vmatprep.subr.mxu0 0.0
    %5296 = vmatpush2.msra.mxu0 %v5219
    %5297 = vmatprep.subr.mxu0 0.0
    %5298 = vmatpush2.msra.mxu0 %v5218
    %5299 = vmatprep.subr.mxu0 0.0
    %5300 = vmatpush2.msra.mxu0 %v5217
    %5301 = vmatprep.subr.mxu0 0.0
    %5302 = vmatpush2.msra.mxu0 %v5216
    %5303 = vmatprep.mubr.f32.mxu0 %v5233
    %5304 = vmatmul.mubr.f32.gmra.mxu0 %v5222
    %v5305 = vpop.f32.mrf.mxu0
    %v5306 = vadd.f32 0.0, %v5305
    %v5307 = vpop.f32.mrf.mxu0
    %5308 = vmatprep.mubr.f32.mxu0 %v5235
    %5309 = vmatmul.mubr.f32.gmra.mxu0 %v5227
    %v5310 = vpop.f32.mrf.mxu0
    %v5311 = vadd.f32 0.0, %v5310
    %v5312 = vpop.f32.mrf.mxu0
    %5313 = vmatprep.mubr.f32.mxu0 %v5237
    %5314 = vmatmul.mubr.f32.gmra.mxu0 %v5226
    %v5315 = vpop.f32.mrf.mxu0
    %v5316 = vadd.f32 0.0, %v5315
    %v5317 = vpop.f32.mrf.mxu0
    %5318 = vdwg.mxu0
    %v5319 = vadd.f32 %v5186, %v5306
    %v5320 = vadd.f32 %v5191, %v5311
    %v5321 = vadd.f32 %v5196, %v5316
    %v5322 = vld [vmem:[#allocation2] sm:$0x1]
    %v5324 = vlaneseq
    %v5325 = vshrl.u32 %v5324, 7
    %v5326 = vsub.s32 0, %v5325
    %v5327 = vrot.slane %v5322, %v5326
    %v5329 = vadd.f32 %v5319, %v5327
    %v5330 = vadd.f32 %v5320, %v5327
    %v5331 = vadd.f32 %v5321, %v5327
    %vm5332 = vcmp.lt.s32.totalorder %v645, 8
    %vm5333 = vcmp.lt.s32.totalorder %v646, 8
    %vm5334 = vcmp.lt.s32.totalorder %v647, 8
    %vm5335 = vcmp.lt.s32.totalorder %v645, 22
    %vm5336 = vcmp.lt.s32.totalorder %v646, 22
    %vm5337 = vcmp.lt.s32.totalorder %v647, 22
    %vm5338 = vmand %vm4556, %vm5335
    %vm5339 = vmand %vm4557, %vm5336
    %vm5340 = vmand %vm4558, %vm5337
    %vm5341 = vmor %vm5332, %vm5338
    %vm5342 = vmor %vm5333, %vm5339
    %vm5343 = vmor %vm5334, %vm5340
    %v5344 = vsel %vm5341, 1, 0
    %v5345 = vsel %vm5342, 1, 0
    %v5346 = vsel %vm5343, 1, 0
    %vm5347 = vcmp.eq.s32.totalorder %v5344, 1
    %vm5348 = vcmp.eq.s32.totalorder %v5345, 1
    %vm5349 = vcmp.eq.s32.totalorder %v5346, 1
    %v5350 = vsel %vm5347, %v5329, 0.0
    %v5351 = vsel %vm5348, %v5330, 0.0
    %v5352 = vsel %vm5349, %v5331, 0.0
    %v5353 = vmul.f32 %v5329, %v5329
    %v5354 = vmul.f32 %v5330, %v5330
    %v5355 = vmul.f32 %v5331, %v5331
    %v5356 = vsel %vm5347, %v5353, 0.0
    %v5357 = vsel %vm5348, %v5354, 0.0
    %v5358 = vsel %vm5349, %v5355, 0.0
    %v5359 = vadd.f32 %v5350, %v5351
    %v5360 = vsel %vm463, %v5352, 0.0
    %v5361 = vadd.f32 %v5359, %v5360
    %v5362 = vrot.slane %v5361, 4
    %v5363 = vadd.f32 %v5361, %v5362
    %v5364 = vrot.slane %v5363, 2
    %v5365 = vadd.f32 %v5363, %v5364
    %v5366 = vrot.slane %v5365, 1
    %v5367 = vadd.f32 %v5365, %v5366
    %5368 = vmatprep.subr.mxu0 0.0
    %5369 = vmatpush1.msra.mxu0 %v2631
    %5370 = vmatprep.subr.mxu0 0.0
    %5371 = vmatpush1.msra.mxu0 %v2630
    %5372 = vmatprep.subr.mxu0 0.0
    %5373 = vmatpush1.msra.mxu0 %v2629
    %5374 = vmatprep.subr.mxu0 0.0
    %5375 = vmatpush1.msra.mxu0 %v2628
    %5376 = vmatprep.subr.mxu0 0.0
    %5377 = vmatpush1.msra.mxu0 %v2627
    %5378 = vmatprep.subr.mxu0 0.0
    %5379 = vmatpush1.msra.mxu0 %v2626
    %5380 = vmatprep.subr.mxu0 0.0
    %5381 = vmatpush1.msra.mxu0 %v2625
    %5382 = vmatprep.subr.mxu0 0.0
    %5383 = vmatpush1.msra.mxu0 %v2624
    %5384 = vmatprep.subr.mxu0 0.0
    %5385 = vmatpush1.msra.mxu0 %v2623
    %5386 = vmatprep.subr.mxu0 0.0
    %5387 = vmatpush1.msra.mxu0 %v2622
    %5388 = vmatprep.subr.mxu0 0.0
    %5389 = vmatpush1.msra.mxu0 %v2621
    %5390 = vmatprep.subr.mxu0 0.0
    %5391 = vmatpush1.msra.mxu0 %v2620
    %5392 = vmatprep.subr.mxu0 0.0
    %5393 = vmatpush1.msra.mxu0 %v2619
    %5394 = vmatprep.subr.mxu0 0.0
    %5395 = vmatpush1.msra.mxu0 %v2618
    %5396 = vmatprep.subr.mxu0 0.0
    %5397 = vmatpush1.msra.mxu0 %v2617
    %5398 = vmatprep.subr.mxu0 0.0
    %5399 = vmatpush1.msra.mxu0 %v2616
    %5400 = vmatprep.subr.mxu0 0.0
    %5401 = vmatpush2.msra.mxu0 0.0
    %5402 = vmatprep.subr.mxu0 0.0
    %5403 = vmatpush2.msra.mxu0 0.0
    %5404 = vmatprep.subr.mxu0 0.0
    %5405 = vmatpush2.msra.mxu0 0.0
    %5406 = vmatprep.subr.mxu0 0.0
    %5407 = vmatpush2.msra.mxu0 0.0
    %5408 = vmatprep.subr.mxu0 0.0
    %5409 = vmatpush2.msra.mxu0 0.0
    %5410 = vmatprep.subr.mxu0 0.0
    %5411 = vmatpush2.msra.mxu0 0.0
    %5412 = vmatprep.subr.mxu0 0.0
    %5413 = vmatpush2.msra.mxu0 0.0
    %5414 = vmatprep.subr.mxu0 0.0
    %5415 = vmatpush2.msra.mxu0 0.0
    %5416 = vmatprep.subr.mxu0 0.0
    %5417 = vmatpush2.msra.mxu0 0.0
    %5418 = vmatprep.subr.mxu0 0.0
    %5419 = vmatpush2.msra.mxu0 0.0
    %5420 = vmatprep.subr.mxu0 0.0
    %5421 = vmatpush2.msra.mxu0 0.0
    %5422 = vmatprep.subr.mxu0 0.0
    %5423 = vmatpush2.msra.mxu0 0.0
    %5424 = vmatprep.subr.mxu0 0.0
    %5425 = vmatpush2.msra.mxu0 0.0
    %5426 = vmatprep.subr.mxu0 0.0
    %5427 = vmatpush2.msra.mxu0 0.0
    %5428 = vmatprep.subr.mxu0 0.0
    %5429 = vmatpush2.msra.mxu0 0.0
    %5430 = vmatprep.subr.mxu0 0.0
    %5431 = vmatpush2.msra.mxu0 0.0
    %5432 = vmatprep.mubr.f32.mxu0 0.0
    %5433 = vmatmul.mubr.f32.gmra.mxu0 %v5367
    %v5434 = vpop.f32.mrf.mxu0
    %v5435 = vadd.f32 0.0, %v5434
    %v5436 = vpop.f32.mrf.mxu0
    %5437 = vdwg.mxu0
    %v5438 = vadd.f32 %v5356, %v5357
    %v5439 = vsel %vm463, %v5358, 0.0
    %v5440 = vadd.f32 %v5438, %v5439
    %v5441 = vrot.slane %v5440, 4
    %v5442 = vadd.f32 %v5440, %v5441
    %v5443 = vrot.slane %v5442, 2
    %v5444 = vadd.f32 %v5442, %v5443
    %v5445 = vrot.slane %v5444, 1
    %v5446 = vadd.f32 %v5444, %v5445
    %5447 = vmatprep.subr.mxu0 0.0
    %5448 = vmatpush1.msra.mxu0 %v2631
    %5449 = vmatprep.subr.mxu0 0.0
    %5450 = vmatpush1.msra.mxu0 %v2630
    %5451 = vmatprep.subr.mxu0 0.0
    %5452 = vmatpush1.msra.mxu0 %v2629
    %5453 = vmatprep.subr.mxu0 0.0
    %5454 = vmatpush1.msra.mxu0 %v2628
    %5455 = vmatprep.subr.mxu0 0.0
    %5456 = vmatpush1.msra.mxu0 %v2627
    %5457 = vmatprep.subr.mxu0 0.0
    %5458 = vmatpush1.msra.mxu0 %v2626
    %5459 = vmatprep.subr.mxu0 0.0
    %5460 = vmatpush1.msra.mxu0 %v2625
    %5461 = vmatprep.subr.mxu0 0.0
    %5462 = vmatpush1.msra.mxu0 %v2624
    %5463 = vmatprep.subr.mxu0 0.0
    %5464 = vmatpush1.msra.mxu0 %v2623
    %5465 = vmatprep.subr.mxu0 0.0
    %5466 = vmatpush1.msra.mxu0 %v2622
    %5467 = vmatprep.subr.mxu0 0.0
    %5468 = vmatpush1.msra.mxu0 %v2621
    %5469 = vmatprep.subr.mxu0 0.0
    %5470 = vmatpush1.msra.mxu0 %v2620
    %5471 = vmatprep.subr.mxu0 0.0
    %5472 = vmatpush1.msra.mxu0 %v2619
    %5473 = vmatprep.subr.mxu0 0.0
    %5474 = vmatpush1.msra.mxu0 %v2618
    %5475 = vmatprep.subr.mxu0 0.0
    %5476 = vmatpush1.msra.mxu0 %v2617
    %5477 = vmatprep.subr.mxu0 0.0
    %5478 = vmatpush1.msra.mxu0 %v2616
    %5479 = vmatprep.subr.mxu0 0.0
    %5480 = vmatpush2.msra.mxu0 0.0
    %5481 = vmatprep.subr.mxu0 0.0
    %5482 = vmatpush2.msra.mxu0 0.0
    %5483 = vmatprep.subr.mxu0 0.0
    %5484 = vmatpush2.msra.mxu0 0.0
    %5485 = vmatprep.subr.mxu0 0.0
    %5486 = vmatpush2.msra.mxu0 0.0
    %5487 = vmatprep.subr.mxu0 0.0
    %5488 = vmatpush2.msra.mxu0 0.0
    %5489 = vmatprep.subr.mxu0 0.0
    %5490 = vmatpush2.msra.mxu0 0.0
    %5491 = vmatprep.subr.mxu0 0.0
    %5492 = vmatpush2.msra.mxu0 0.0
    %5493 = vmatprep.subr.mxu0 0.0
    %5494 = vmatpush2.msra.mxu0 0.0
    %5495 = vmatprep.subr.mxu0 0.0
    %5496 = vmatpush2.msra.mxu0 0.0
    %5497 = vmatprep.subr.mxu0 0.0
    %5498 = vmatpush2.msra.mxu0 0.0
    %5499 = vmatprep.subr.mxu0 0.0
    %5500 = vmatpush2.msra.mxu0 0.0
    %5501 = vmatprep.subr.mxu0 0.0
    %5502 = vmatpush2.msra.mxu0 0.0
    %5503 = vmatprep.subr.mxu0 0.0
    %5504 = vmatpush2.msra.mxu0 0.0
    %5505 = vmatprep.subr.mxu0 0.0
    %5506 = vmatpush2.msra.mxu0 0.0
    %5507 = vmatprep.subr.mxu0 0.0
    %5508 = vmatpush2.msra.mxu0 0.0
    %5509 = vmatprep.subr.mxu0 0.0
    %5510 = vmatpush2.msra.mxu0 0.0
    %5511 = vmatprep.mubr.f32.mxu0 0.0
    %5512 = vmatmul.mubr.f32.gmra.mxu0 %v5446
    %v5513 = vpop.f32.mrf.mxu0
    %v5514 = vadd.f32 0.0, %v5513
    %v5515 = vpop.f32.mrf.mxu0
    %5516 = vdwg.mxu0
    %v5517 = vmul.f32 %v5435, 0.0078125
    %v5518 = vmul.f32 %v5514, 0.0078125
    %v5519 = vmul.f32 %v5517, %v5517
    %v5520 = vsub.f32 %v5518, %v5519
    %v5521 = vld [vmem:[%s17] sm:$0x1]
    %v5522 = vld [vmem:[%s17 + $0x1] sm:$0x1]
    %v5523 = vadd.f32 %v5520, 1e-05
    %v5524 = vrsqrt.pop %v5523
    %v5525 = vmul.f32 %v5521, %v5524
    %v5526 = vmul.f32 %v5517, %v5525
    %v5527 = vsub.f32 %v5522, %v5526
    %v5529 = vsel %vm3055, %v5525, 0
    %5531 = vmatprep.subr.mxu0 0.0
    %5532 = vmatpush1.msra.mxu0 0.0
    %5533 = vmatprep.subr.mxu0 0.0
    %5534 = vmatpush1.msra.mxu0 0.0
    %5535 = vmatprep.subr.mxu0 0.0
    %5536 = vmatpush1.msra.mxu0 0.0
    %5537 = vmatprep.subr.mxu0 0.0
    %5538 = vmatpush1.msra.mxu0 0.0
    %5539 = vmatprep.subr.mxu0 0.0
    %5540 = vmatpush1.msra.mxu0 0.0
    %5541 = vmatprep.subr.mxu0 0.0
    %5542 = vmatpush1.msra.mxu0 0.0
    %5543 = vmatprep.subr.mxu0 0.0
    %5544 = vmatpush1.msra.mxu0 0.0
    %5545 = vmatprep.subr.mxu0 0.0
    %5546 = vmatpush1.msra.mxu0 0.0
    %5547 = vmatprep.subr.mxu0 0.0
    %5548 = vmatpush1.msra.mxu0 0.0
    %5549 = vmatprep.subr.mxu0 0.0
    %5550 = vmatpush1.msra.mxu0 0.0
    %5551 = vmatprep.subr.mxu0 0.0
    %5552 = vmatpush1.msra.mxu0 0.0
    %5553 = vmatprep.subr.mxu0 0.0
    %5554 = vmatpush1.msra.mxu0 0.0
    %5555 = vmatprep.subr.mxu0 0.0
    %5556 = vmatpush1.msra.mxu0 0.0
    %5557 = vmatprep.subr.mxu0 0.0
    %5558 = vmatpush1.msra.mxu0 0.0
    %5559 = vmatprep.subr.mxu0 0.0
    %5560 = vmatpush1.msra.mxu0 %v2683
    %5561 = vmatprep.subr.mxu0 0.0
    %5562 = vmatpush1.msra.mxu0 %v2680
    %5563 = vmatprep.subr.mxu0 0.0
    %5564 = vmatpush2.msra.mxu0 0.0
    %5565 = vmatprep.subr.mxu0 0.0
    %5566 = vmatpush2.msra.mxu0 0.0
    %5567 = vmatprep.subr.mxu0 0.0
    %5568 = vmatpush2.msra.mxu0 0.0
    %5569 = vmatprep.subr.mxu0 0.0
    %5570 = vmatpush2.msra.mxu0 0.0
    %5571 = vmatprep.subr.mxu0 0.0
    %5572 = vmatpush2.msra.mxu0 0.0
    %5573 = vmatprep.subr.mxu0 0.0
    %5574 = vmatpush2.msra.mxu0 0.0
    %5575 = vmatprep.subr.mxu0 0.0
    %5576 = vmatpush2.msra.mxu0 0.0
    %5577 = vmatprep.subr.mxu0 0.0
    %5578 = vmatpush2.msra.mxu0 0.0
    %5579 = vmatprep.subr.mxu0 0.0
    %5580 = vmatpush2.msra.mxu0 0.0
    %5581 = vmatprep.subr.mxu0 0.0
    %5582 = vmatpush2.msra.mxu0 0.0
    %5583 = vmatprep.subr.mxu0 0.0
    %5584 = vmatpush2.msra.mxu0 0.0
    %5585 = vmatprep.subr.mxu0 0.0
    %5586 = vmatpush2.msra.mxu0 0.0
    %5587 = vmatprep.subr.mxu0 0.0
    %5588 = vmatpush2.msra.mxu0 0.0
    %5589 = vmatprep.subr.mxu0 0.0
    %5590 = vmatpush2.msra.mxu0 0.0
    %5591 = vmatprep.subr.mxu0 0.0
    %5592 = vmatpush2.msra.mxu0 0.0
    %5593 = vmatprep.subr.mxu0 0.0
    %5594 = vmatpush2.msra.mxu0 0.0
    %5595 = vmatprep.mubr.f32.mxu0 0.0
    %5596 = vmatmul.mubr.f32.gmra.mxu0 %v5529
    %v5597 = vpop.f32.mrf.mxu0
    %v5598 = vadd.f32 0.0, %v5597
    %v5599 = vpop.f32.mrf.mxu0
    %5600 = vdwg.mxu0
    %v5602 = vsel %vm3055, %v5527, 0
    %5604 = vmatprep.subr.mxu0 0.0
    %5605 = vmatpush1.msra.mxu0 0.0
    %5606 = vmatprep.subr.mxu0 0.0
    %5607 = vmatpush1.msra.mxu0 0.0
    %5608 = vmatprep.subr.mxu0 0.0
    %5609 = vmatpush1.msra.mxu0 0.0
    %5610 = vmatprep.subr.mxu0 0.0
    %5611 = vmatpush1.msra.mxu0 0.0
    %5612 = vmatprep.subr.mxu0 0.0
    %5613 = vmatpush1.msra.mxu0 0.0
    %5614 = vmatprep.subr.mxu0 0.0
    %5615 = vmatpush1.msra.mxu0 0.0
    %5616 = vmatprep.subr.mxu0 0.0
    %5617 = vmatpush1.msra.mxu0 0.0
    %5618 = vmatprep.subr.mxu0 0.0
    %5619 = vmatpush1.msra.mxu0 0.0
    %5620 = vmatprep.subr.mxu0 0.0
    %5621 = vmatpush1.msra.mxu0 0.0
    %5622 = vmatprep.subr.mxu0 0.0
    %5623 = vmatpush1.msra.mxu0 0.0
    %5624 = vmatprep.subr.mxu0 0.0
    %5625 = vmatpush1.msra.mxu0 0.0
    %5626 = vmatprep.subr.mxu0 0.0
    %5627 = vmatpush1.msra.mxu0 0.0
    %5628 = vmatprep.subr.mxu0 0.0
    %5629 = vmatpush1.msra.mxu0 0.0
    %5630 = vmatprep.subr.mxu0 0.0
    %5631 = vmatpush1.msra.mxu0 0.0
    %5632 = vmatprep.subr.mxu0 0.0
    %5633 = vmatpush1.msra.mxu0 %v2683
    %5634 = vmatprep.subr.mxu0 0.0
    %5635 = vmatpush1.msra.mxu0 %v2680
    %5636 = vmatprep.subr.mxu0 0.0
    %5637 = vmatpush2.msra.mxu0 0.0
    %5638 = vmatprep.subr.mxu0 0.0
    %5639 = vmatpush2.msra.mxu0 0.0
    %5640 = vmatprep.subr.mxu0 0.0
    %5641 = vmatpush2.msra.mxu0 0.0
    %5642 = vmatprep.subr.mxu0 0.0
    %5643 = vmatpush2.msra.mxu0 0.0
    %5644 = vmatprep.subr.mxu0 0.0
    %5645 = vmatpush2.msra.mxu0 0.0
    %5646 = vmatprep.subr.mxu0 0.0
    %5647 = vmatpush2.msra.mxu0 0.0
    %5648 = vmatprep.subr.mxu0 0.0
    %5649 = vmatpush2.msra.mxu0 0.0
    %5650 = vmatprep.subr.mxu0 0.0
    %5651 = vmatpush2.msra.mxu0 0.0
    %5652 = vmatprep.subr.mxu0 0.0
    %5653 = vmatpush2.msra.mxu0 0.0
    %5654 = vmatprep.subr.mxu0 0.0
    %5655 = vmatpush2.msra.mxu0 0.0
    %5656 = vmatprep.subr.mxu0 0.0
    %5657 = vmatpush2.msra.mxu0 0.0
    %5658 = vmatprep.subr.mxu0 0.0
    %5659 = vmatpush2.msra.mxu0 0.0
    %5660 = vmatprep.subr.mxu0 0.0
    %5661 = vmatpush2.msra.mxu0 0.0
    %5662 = vmatprep.subr.mxu0 0.0
    %5663 = vmatpush2.msra.mxu0 0.0
    %5664 = vmatprep.subr.mxu0 0.0
    %5665 = vmatpush2.msra.mxu0 0.0
    %5666 = vmatprep.subr.mxu0 0.0
    %5667 = vmatpush2.msra.mxu0 0.0
    %5668 = vmatprep.mubr.f32.mxu0 0.0
    %5669 = vmatmul.mubr.f32.gmra.mxu0 %v5602
    %v5670 = vpop.f32.mrf.mxu0
    %v5671 = vadd.f32 0.0, %v5670
    %v5672 = vpop.f32.mrf.mxu0
    %5673 = vdwg.mxu0
    %v5674 = vlaneseq
    %v5675 = vshrl.u32 %v5674, 7
    %v5676 = vsub.s32 0, %v5675
    %v5677 = vrot.slane %v5598, %v5676
    %v5678 = vmul.f32 %v5329, %v5677
    %v5679 = vmul.f32 %v5330, %v5677
    %v5680 = vmul.f32 %v5331, %v5677
    %v5681 = vlaneseq
    %v5682 = vshrl.u32 %v5681, 7
    %v5683 = vsub.s32 0, %v5682
    %v5684 = vrot.slane %v5671, %v5683
    %v5685 = vadd.f32 %v5678, %v5684
    %v5686 = vadd.f32 %v5679, %v5684
    %v5687 = vadd.f32 %v5680, %v5684
    %v5688 = vmax.f32 %v5685, 0.0
    %v5689 = vmax.f32 %v5686, 0.0
    %v5690 = vmax.f32 %v5687, 0.0
    %v5691 = vld [vmem:[%s18] sm:$0xff]
    %v5692 = vld [vmem:[%s18 + $0x8] sm:$0xff]
    %v5693 = vld [vmem:[%s18 + $0x10] sm:$0xf]
    %vm5694 = vcmask 179200
    %v5696 = vsel %vm5694, %v5691, 0
    %v5699 = vsel %vm5694, %v5692, 0
    %v5702 = vsel %vm5694, %v5693, 0
    %v5705 = vsel %vm463, %v5690, 0
    %5707 = vmatprep.subr.mxu0 0.0
    %5708 = vmatpush1.msra.mxu0 0.0
    %5709 = vmatprep.subr.mxu0 0.0
    %5710 = vmatpush1.msra.mxu0 0.0
    %5711 = vmatprep.subr.mxu0 0.0
    %5712 = vmatpush1.msra.mxu0 0.0
    %5713 = vmatprep.subr.mxu0 0.0
    %5714 = vmatpush1.msra.mxu0 0.0
    %5715 = vmatprep.subr.mxu0 0.0
    %5716 = vmatpush1.msra.mxu0 0.0
    %5717 = vmatprep.subr.mxu0 0.0
    %5718 = vmatpush1.msra.mxu0 0.0
    %5719 = vmatprep.subr.mxu0 0.0
    %5720 = vmatpush1.msra.mxu0 0.0
    %5721 = vmatprep.subr.mxu0 0.0
    %5722 = vmatpush1.msra.mxu0 0.0
    %5723 = vmatprep.subr.mxu0 0.0
    %5724 = vmatpush1.msra.mxu0 0.0
    %5725 = vmatprep.subr.mxu0 0.0
    %5726 = vmatpush1.msra.mxu0 0.0
    %5727 = vmatprep.subr.mxu0 0.0
    %5728 = vmatpush1.msra.mxu0 0.0
    %5729 = vmatprep.subr.mxu0 0.0
    %5730 = vmatpush1.msra.mxu0 0.0
    %5731 = vmatprep.subr.mxu0 0.0
    %5732 = vmatpush1.msra.mxu0 0.0
    %5733 = vmatprep.subr.mxu0 0.0
    %5734 = vmatpush1.msra.mxu0 %v5705
    %5735 = vmatprep.subr.mxu0 0.0
    %5736 = vmatpush1.msra.mxu0 %v5689
    %5737 = vmatprep.subr.mxu0 0.0
    %5738 = vmatpush1.msra.mxu0 %v5688
    %5739 = vmatprep.subr.mxu0 0.0
    %5740 = vmatpush2.msra.mxu0 0.0
    %5741 = vmatprep.subr.mxu0 0.0
    %5742 = vmatpush2.msra.mxu0 0.0
    %5743 = vmatprep.subr.mxu0 0.0
    %5744 = vmatpush2.msra.mxu0 0.0
    %5745 = vmatprep.subr.mxu0 0.0
    %5746 = vmatpush2.msra.mxu0 0.0
    %5747 = vmatprep.subr.mxu0 0.0
    %5748 = vmatpush2.msra.mxu0 0.0
    %5749 = vmatprep.subr.mxu0 0.0
    %5750 = vmatpush2.msra.mxu0 0.0
    %5751 = vmatprep.subr.mxu0 0.0
    %5752 = vmatpush2.msra.mxu0 0.0
    %5753 = vmatprep.subr.mxu0 0.0
    %5754 = vmatpush2.msra.mxu0 0.0
    %5755 = vmatprep.subr.mxu0 0.0
    %5756 = vmatpush2.msra.mxu0 0.0
    %5757 = vmatprep.subr.mxu0 0.0
    %5758 = vmatpush2.msra.mxu0 0.0
    %5759 = vmatprep.subr.mxu0 0.0
    %5760 = vmatpush2.msra.mxu0 0.0
    %5761 = vmatprep.subr.mxu0 0.0
    %5762 = vmatpush2.msra.mxu0 0.0
    %5763 = vmatprep.subr.mxu0 0.0
    %5764 = vmatpush2.msra.mxu0 0.0
    %5765 = vmatprep.subr.mxu0 0.0
    %5766 = vmatpush2.msra.mxu0 0.0
    %5767 = vmatprep.subr.mxu0 0.0
    %5768 = vmatpush2.msra.mxu0 0.0
    %5769 = vmatprep.subr.mxu0 0.0
    %5770 = vmatpush2.msra.mxu0 0.0
    %5771 = vmatprep.mubr.f32.mxu0 0.0
    %5772 = vmatmul.mubr.f32.gmra.mxu0 %v5696
    %v5773 = vpop.f32.mrf.mxu0
    %v5774 = vadd.f32 0.0, %v5773
    %v5775 = vpop.f32.mrf.mxu0
    %5776 = vmatprep.mubr.f32.mxu0 0.0
    %5777 = vmatmul.mubr.f32.gmra.mxu0 %v5699
    %v5778 = vpop.f32.mrf.mxu0
    %v5779 = vadd.f32 0.0, %v5778
    %v5780 = vpop.f32.mrf.mxu0
    %5781 = vmatprep.mubr.f32.mxu0 0.0
    %5782 = vmatmul.mubr.f32.gmra.mxu0 %v5702
    %v5783 = vpop.f32.mrf.mxu0
    %v5784 = vadd.f32 0.0, %v5783
    %v5785 = vpop.f32.mrf.mxu0
    %5786 = vdwg.mxu0
    %v5787 = vld [vmem:[#allocation5] sm:$0xff]
    %v5788 = vld [vmem:[#allocation5 + $0x8] sm:$0xff]
    %v5789 = vld [vmem:[#allocation5 + $0x10] sm:$0xff]
    %v5790 = vld [vmem:[#allocation5 + $0x18] sm:$0xff]
    %v5791 = vld [vmem:[#allocation5 + $0x20] sm:$0xff]
    %v5792 = vld [vmem:[#allocation5 + $0x28] sm:$0xff]
    %v5793 = vld [vmem:[#allocation5 + $0x30] sm:$0xff]
    %v5794 = vld [vmem:[#allocation5 + $0x38] sm:$0xff]
    %v5795 = vld [vmem:[#allocation5 + $0x40] sm:$0xff]
    %v5796 = vld [vmem:[#allocation5 + $0x48] sm:$0xff]
    %v5797 = vld [vmem:[#allocation5 + $0x50] sm:$0xff]
    %v5798 = vld [vmem:[#allocation5 + $0x58] sm:$0xff]
    %v5799 = vld [vmem:[#allocation5 + $0x60] sm:$0xff]
    %v5800 = vld [vmem:[#allocation5 + $0x68] sm:$0xff]
    %v5801 = vld [vmem:[#allocation5 + $0x70] sm:$0xff]
    %v5802 = vld [vmem:[#allocation5 + $0x78] sm:$0xff]
    %s5803 = scalar_lea.vmem [#allocation5], 128
    %v5804 = vld [vmem:[%s5803] sm:$0xff]
    %v5805 = vld [vmem:[%s5803 + $0x8] sm:$0xff]
    %v5806 = vld [vmem:[%s5803 + $0x10] sm:$0xff]
    %v5807 = vld [vmem:[%s5803 + $0x18] sm:$0xff]
    %v5808 = vld [vmem:[%s5803 + $0x20] sm:$0xff]
    %v5809 = vld [vmem:[%s5803 + $0x28] sm:$0xff]
    %v5810 = vld [vmem:[%s5803 + $0x30] sm:$0xff]
    %v5811 = vld [vmem:[%s5803 + $0x38] sm:$0xff]
    %v5812 = vld [vmem:[%s5803 + $0x40] sm:$0xff]
    %v5813 = vld [vmem:[%s5803 + $0x48] sm:$0xff]
    %v5814 = vld [vmem:[%s5803 + $0x50] sm:$0xff]
    %v5815 = vld [vmem:[%s5803 + $0x58] sm:$0xff]
    %v5816 = vld [vmem:[%s5803 + $0x60] sm:$0xff]
    %v5817 = vld [vmem:[%s5803 + $0x68] sm:$0xff]
    %v5818 = vld [vmem:[%s5803 + $0x70] sm:$0xff]
    %v5819 = vld [vmem:[%s5803 + $0x78] sm:$0xff]
    %v5823 = vrot.slane %v5774, 1
    %v5824 = vrot.slane %v5779, 1
    %v5825 = vsel %vm184, %v5823, %v5824
    %v5826 = vrot.slane %v5784, 1
    %v5827 = vsel %vm184, %v5824, %v5826
    %5831 = vmatprep.subr.mxu0 0.0
    %5832 = vmatpush1.msra.mxu0 %v5819
    %5833 = vmatprep.subr.mxu0 0.0
    %5834 = vmatpush1.msra.mxu0 %v5818
    %5835 = vmatprep.subr.mxu0 0.0
    %5836 = vmatpush1.msra.mxu0 %v5817
    %5837 = vmatprep.subr.mxu0 0.0
    %5838 = vmatpush1.msra.mxu0 %v5816
    %5839 = vmatprep.subr.mxu0 0.0
    %5840 = vmatpush1.msra.mxu0 %v5815
    %5841 = vmatprep.subr.mxu0 0.0
    %5842 = vmatpush1.msra.mxu0 %v5814
    %5843 = vmatprep.subr.mxu0 0.0
    %5844 = vmatpush1.msra.mxu0 %v5813
    %5845 = vmatprep.subr.mxu0 0.0
    %5846 = vmatpush1.msra.mxu0 %v5812
    %5847 = vmatprep.subr.mxu0 0.0
    %5848 = vmatpush1.msra.mxu0 %v5811
    %5849 = vmatprep.subr.mxu0 0.0
    %5850 = vmatpush1.msra.mxu0 %v5810
    %5851 = vmatprep.subr.mxu0 0.0
    %5852 = vmatpush1.msra.mxu0 %v5809
    %5853 = vmatprep.subr.mxu0 0.0
    %5854 = vmatpush1.msra.mxu0 %v5808
    %5855 = vmatprep.subr.mxu0 0.0
    %5856 = vmatpush1.msra.mxu0 %v5807
    %5857 = vmatprep.subr.mxu0 0.0
    %5858 = vmatpush1.msra.mxu0 %v5806
    %5859 = vmatprep.subr.mxu0 0.0
    %5860 = vmatpush1.msra.mxu0 %v5805
    %5861 = vmatprep.subr.mxu0 0.0
    %5862 = vmatpush1.msra.mxu0 %v5804
    %5863 = vmatprep.subr.mxu0 0.0
    %5864 = vmatpush2.msra.mxu0 0.0
    %5865 = vmatprep.subr.mxu0 0.0
    %5866 = vmatpush2.msra.mxu0 0.0
    %5867 = vmatprep.subr.mxu0 0.0
    %5868 = vmatpush2.msra.mxu0 0.0
    %5869 = vmatprep.subr.mxu0 0.0
    %5870 = vmatpush2.msra.mxu0 0.0
    %5871 = vmatprep.subr.mxu0 0.0
    %5872 = vmatpush2.msra.mxu0 0.0
    %5873 = vmatprep.subr.mxu0 0.0
    %5874 = vmatpush2.msra.mxu0 0.0
    %5875 = vmatprep.subr.mxu0 0.0
    %5876 = vmatpush2.msra.mxu0 0.0
    %5877 = vmatprep.subr.mxu0 0.0
    %5878 = vmatpush2.msra.mxu0 0.0
    %5879 = vmatprep.subr.mxu0 0.0
    %5880 = vmatpush2.msra.mxu0 0.0
    %5881 = vmatprep.subr.mxu0 0.0
    %5882 = vmatpush2.msra.mxu0 0.0
    %5883 = vmatprep.subr.mxu0 0.0
    %5884 = vmatpush2.msra.mxu0 0.0
    %5885 = vmatprep.subr.mxu0 0.0
    %5886 = vmatpush2.msra.mxu0 0.0
    %5887 = vmatprep.subr.mxu0 0.0
    %5888 = vmatpush2.msra.mxu0 0.0
    %5889 = vmatprep.subr.mxu0 0.0
    %5890 = vmatpush2.msra.mxu0 0.0
    %5891 = vmatprep.subr.mxu0 0.0
    %5892 = vmatpush2.msra.mxu0 0.0
    %5893 = vmatprep.subr.mxu0 0.0
    %5894 = vmatpush2.msra.mxu0 0.0
    %5895 = vmatprep.mubr.f32.mxu0 0.0
    %5896 = vmatmul.mubr.f32.gmra.mxu0 %v5825
    %v5897 = vpop.f32.mrf.mxu0
    %v5898 = vadd.f32 0.0, %v5897
    %v5899 = vpop.f32.mrf.mxu0
    %5900 = vmatprep.mubr.f32.mxu0 0.0
    %5901 = vmatmul.mubr.f32.gmra.mxu0 %v5827
    %v5902 = vpop.f32.mrf.mxu0
    %v5903 = vadd.f32 0.0, %v5902
    %v5904 = vpop.f32.mrf.mxu0
    %5905 = vmatprep.mubr.f32.mxu0 0.0
    %5906 = vmatmul.mubr.f32.gmra.mxu0 %v5826
    %v5907 = vpop.f32.mrf.mxu0
    %v5908 = vadd.f32 0.0, %v5907
    %v5909 = vpop.f32.mrf.mxu0
    %5910 = vdwg.mxu0
    %5911 = vmatprep.subr.mxu0 0.0
    %5912 = vmatpush1.msra.mxu0 %v5802
    %5913 = vmatprep.subr.mxu0 0.0
    %5914 = vmatpush1.msra.mxu0 %v5801
    %5915 = vmatprep.subr.mxu0 0.0
    %5916 = vmatpush1.msra.mxu0 %v5800
    %5917 = vmatprep.subr.mxu0 0.0
    %5918 = vmatpush1.msra.mxu0 %v5799
    %5919 = vmatprep.subr.mxu0 0.0
    %5920 = vmatpush1.msra.mxu0 %v5798
    %5921 = vmatprep.subr.mxu0 0.0
    %5922 = vmatpush1.msra.mxu0 %v5797
    %5923 = vmatprep.subr.mxu0 0.0
    %5924 = vmatpush1.msra.mxu0 %v5796
    %5925 = vmatprep.subr.mxu0 0.0
    %5926 = vmatpush1.msra.mxu0 %v5795
    %5927 = vmatprep.subr.mxu0 0.0
    %5928 = vmatpush1.msra.mxu0 %v5794
    %5929 = vmatprep.subr.mxu0 0.0
    %5930 = vmatpush1.msra.mxu0 %v5793
    %5931 = vmatprep.subr.mxu0 0.0
    %5932 = vmatpush1.msra.mxu0 %v5792
    %5933 = vmatprep.subr.mxu0 0.0
    %5934 = vmatpush1.msra.mxu0 %v5791
    %5935 = vmatprep.subr.mxu0 0.0
    %5936 = vmatpush1.msra.mxu0 %v5790
    %5937 = vmatprep.subr.mxu0 0.0
    %5938 = vmatpush1.msra.mxu0 %v5789
    %5939 = vmatprep.subr.mxu0 0.0
    %5940 = vmatpush1.msra.mxu0 %v5788
    %5941 = vmatprep.subr.mxu0 0.0
    %5942 = vmatpush1.msra.mxu0 %v5787
    %5943 = vmatprep.subr.mxu0 0.0
    %5944 = vmatpush2.msra.mxu0 0.0
    %5945 = vmatprep.subr.mxu0 0.0
    %5946 = vmatpush2.msra.mxu0 0.0
    %5947 = vmatprep.subr.mxu0 0.0
    %5948 = vmatpush2.msra.mxu0 0.0
    %5949 = vmatprep.subr.mxu0 0.0
    %5950 = vmatpush2.msra.mxu0 0.0
    %5951 = vmatprep.subr.mxu0 0.0
    %5952 = vmatpush2.msra.mxu0 0.0
    %5953 = vmatprep.subr.mxu0 0.0
    %5954 = vmatpush2.msra.mxu0 0.0
    %5955 = vmatprep.subr.mxu0 0.0
    %5956 = vmatpush2.msra.mxu0 0.0
    %5957 = vmatprep.subr.mxu0 0.0
    %5958 = vmatpush2.msra.mxu0 0.0
    %5959 = vmatprep.subr.mxu0 0.0
    %5960 = vmatpush2.msra.mxu0 0.0
    %5961 = vmatprep.subr.mxu0 0.0
    %5962 = vmatpush2.msra.mxu0 0.0
    %5963 = vmatprep.subr.mxu0 0.0
    %5964 = vmatpush2.msra.mxu0 0.0
    %5965 = vmatprep.subr.mxu0 0.0
    %5966 = vmatpush2.msra.mxu0 0.0
    %5967 = vmatprep.subr.mxu0 0.0
    %5968 = vmatpush2.msra.mxu0 0.0
    %5969 = vmatprep.subr.mxu0 0.0
    %5970 = vmatpush2.msra.mxu0 0.0
    %5971 = vmatprep.subr.mxu0 0.0
    %5972 = vmatpush2.msra.mxu0 0.0
    %5973 = vmatprep.subr.mxu0 0.0
    %5974 = vmatpush2.msra.mxu0 0.0
    %5975 = vmatprep.mubr.f32.mxu0 0.0
    %5976 = vmatmul.mubr.f32.gmra.mxu0 %v5774
    %v5977 = vpop.f32.mrf.mxu0
    %v5978 = vadd.f32 %v5898, %v5977
    %v5979 = vpop.f32.mrf.mxu0
    %5980 = vmatprep.mubr.f32.mxu0 0.0
    %5981 = vmatmul.mubr.f32.gmra.mxu0 %v5779
    %v5982 = vpop.f32.mrf.mxu0
    %v5983 = vadd.f32 %v5903, %v5982
    %v5984 = vpop.f32.mrf.mxu0
    %5985 = vmatprep.mubr.f32.mxu0 0.0
    %5986 = vmatmul.mubr.f32.gmra.mxu0 %v5784
    %v5987 = vpop.f32.mrf.mxu0
    %v5988 = vadd.f32 %v5908, %v5987
    %v5989 = vpop.f32.mrf.mxu0
    %5990 = vdwg.mxu0
    %s5991 = scalar_lea.vmem [#allocation5], 256
    %v5992 = vld [vmem:[%s5991] sm:$0xff]
    %v5993 = vld [vmem:[%s5991 + $0x8] sm:$0xff]
    %v5994 = vld [vmem:[%s5991 + $0x10] sm:$0xff]
    %v5995 = vld [vmem:[%s5991 + $0x18] sm:$0xff]
    %v5996 = vld [vmem:[%s5991 + $0x20] sm:$0xff]
    %v5997 = vld [vmem:[%s5991 + $0x28] sm:$0xff]
    %v5998 = vld [vmem:[%s5991 + $0x30] sm:$0xff]
    %v5999 = vld [vmem:[%s5991 + $0x38] sm:$0xff]
    %v6000 = vld [vmem:[%s5991 + $0x40] sm:$0xff]
    %v6001 = vld [vmem:[%s5991 + $0x48] sm:$0xff]
    %v6002 = vld [vmem:[%s5991 + $0x50] sm:$0xff]
    %v6003 = vld [vmem:[%s5991 + $0x58] sm:$0xff]
    %v6004 = vld [vmem:[%s5991 + $0x60] sm:$0xff]
    %v6005 = vld [vmem:[%s5991 + $0x68] sm:$0xff]
    %v6006 = vld [vmem:[%s5991 + $0x70] sm:$0xff]
    %v6007 = vld [vmem:[%s5991 + $0x78] sm:$0xff]
    %v6008 = vrot.slane %v5774, 2
    %v6009 = vrot.slane %v5779, 2
    %v6010 = vsel %vm463, %v6008, %v6009
    %v6011 = vrot.slane %v5784, 2
    %v6012 = vsel %vm463, %v6009, %v6011
    %6016 = vmatprep.subr.mxu0 0.0
    %6017 = vmatpush1.msra.mxu0 %v6007
    %6018 = vmatprep.subr.mxu0 0.0
    %6019 = vmatpush1.msra.mxu0 %v6006
    %6020 = vmatprep.subr.mxu0 0.0
    %6021 = vmatpush1.msra.mxu0 %v6005
    %6022 = vmatprep.subr.mxu0 0.0
    %6023 = vmatpush1.msra.mxu0 %v6004
    %6024 = vmatprep.subr.mxu0 0.0
    %6025 = vmatpush1.msra.mxu0 %v6003
    %6026 = vmatprep.subr.mxu0 0.0
    %6027 = vmatpush1.msra.mxu0 %v6002
    %6028 = vmatprep.subr.mxu0 0.0
    %6029 = vmatpush1.msra.mxu0 %v6001
    %6030 = vmatprep.subr.mxu0 0.0
    %6031 = vmatpush1.msra.mxu0 %v6000
    %6032 = vmatprep.subr.mxu0 0.0
    %6033 = vmatpush1.msra.mxu0 %v5999
    %6034 = vmatprep.subr.mxu0 0.0
    %6035 = vmatpush1.msra.mxu0 %v5998
    %6036 = vmatprep.subr.mxu0 0.0
    %6037 = vmatpush1.msra.mxu0 %v5997
    %6038 = vmatprep.subr.mxu0 0.0
    %6039 = vmatpush1.msra.mxu0 %v5996
    %6040 = vmatprep.subr.mxu0 0.0
    %6041 = vmatpush1.msra.mxu0 %v5995
    %6042 = vmatprep.subr.mxu0 0.0
    %6043 = vmatpush1.msra.mxu0 %v5994
    %6044 = vmatprep.subr.mxu0 0.0
    %6045 = vmatpush1.msra.mxu0 %v5993
    %6046 = vmatprep.subr.mxu0 0.0
    %6047 = vmatpush1.msra.mxu0 %v5992
    %6048 = vmatprep.subr.mxu0 0.0
    %6049 = vmatpush2.msra.mxu0 0.0
    %6050 = vmatprep.subr.mxu0 0.0
    %6051 = vmatpush2.msra.mxu0 0.0
    %6052 = vmatprep.subr.mxu0 0.0
    %6053 = vmatpush2.msra.mxu0 0.0
    %6054 = vmatprep.subr.mxu0 0.0
    %6055 = vmatpush2.msra.mxu0 0.0
    %6056 = vmatprep.subr.mxu0 0.0
    %6057 = vmatpush2.msra.mxu0 0.0
    %6058 = vmatprep.subr.mxu0 0.0
    %6059 = vmatpush2.msra.mxu0 0.0
    %6060 = vmatprep.subr.mxu0 0.0
    %6061 = vmatpush2.msra.mxu0 0.0
    %6062 = vmatprep.subr.mxu0 0.0
    %6063 = vmatpush2.msra.mxu0 0.0
    %6064 = vmatprep.subr.mxu0 0.0
    %6065 = vmatpush2.msra.mxu0 0.0
    %6066 = vmatprep.subr.mxu0 0.0
    %6067 = vmatpush2.msra.mxu0 0.0
    %6068 = vmatprep.subr.mxu0 0.0
    %6069 = vmatpush2.msra.mxu0 0.0
    %6070 = vmatprep.subr.mxu0 0.0
    %6071 = vmatpush2.msra.mxu0 0.0
    %6072 = vmatprep.subr.mxu0 0.0
    %6073 = vmatpush2.msra.mxu0 0.0
    %6074 = vmatprep.subr.mxu0 0.0
    %6075 = vmatpush2.msra.mxu0 0.0
    %6076 = vmatprep.subr.mxu0 0.0
    %6077 = vmatpush2.msra.mxu0 0.0
    %6078 = vmatprep.subr.mxu0 0.0
    %6079 = vmatpush2.msra.mxu0 0.0
    %6080 = vmatprep.mubr.f32.mxu0 0.0
    %6081 = vmatmul.mubr.f32.gmra.mxu0 %v6010
    %v6082 = vpop.f32.mrf.mxu0
    %v6083 = vadd.f32 0.0, %v6082
    %v6084 = vpop.f32.mrf.mxu0
    %6085 = vmatprep.mubr.f32.mxu0 0.0
    %6086 = vmatmul.mubr.f32.gmra.mxu0 %v6012
    %v6087 = vpop.f32.mrf.mxu0
    %v6088 = vadd.f32 0.0, %v6087
    %v6089 = vpop.f32.mrf.mxu0
    %6090 = vmatprep.mubr.f32.mxu0 0.0
    %6091 = vmatmul.mubr.f32.gmra.mxu0 %v6011
    %v6092 = vpop.f32.mrf.mxu0
    %v6093 = vadd.f32 0.0, %v6092
    %v6094 = vpop.f32.mrf.mxu0
    %6095 = vdwg.mxu0
    %v6096 = vadd.f32 %v5978, %v6083
    %v6097 = vadd.f32 %v5983, %v6088
    %v6098 = vadd.f32 %v5988, %v6093
    %v6099 = vld [vmem:[#allocation7] sm:$0x1]
    %v6101 = vlaneseq
    %v6102 = vshrl.u32 %v6101, 7
    %v6103 = vsub.s32 0, %v6102
    %v6104 = vrot.slane %v6099, %v6103
    %v6106 = vadd.f32 %v6096, %v6104
    %v6107 = vadd.f32 %v6097, %v6104
    %v6108 = vadd.f32 %v6098, %v6104
    %vm6109 = vcmp.ge.s32.totalorder %v645, 10
    %vm6110 = vcmp.ge.s32.totalorder %v646, 10
    %vm6111 = vcmp.ge.s32.totalorder %v647, 10
    %vm6112 = vcmp.lt.s32.totalorder %v645, 18
    %vm6113 = vcmp.lt.s32.totalorder %v646, 18
    %vm6114 = vcmp.lt.s32.totalorder %v647, 18
    %vm6115 = vmand %vm6109, %vm6112
    %vm6116 = vmand %vm6110, %vm6113
    %vm6117 = vmand %vm6111, %vm6114
    %vm6118 = vmor %vm5332, %vm6115
    %vm6119 = vmor %vm5333, %vm6116
    %vm6120 = vmor %vm5334, %vm6117
    %v6121 = vsel %vm6118, 1, 0
    %v6122 = vsel %vm6119, 1, 0
    %v6123 = vsel %vm6120, 1, 0
    %vm6124 = vcmp.eq.s32.totalorder %v6121, 1
    %vm6125 = vcmp.eq.s32.totalorder %v6122, 1
    %vm6126 = vcmp.eq.s32.totalorder %v6123, 1
    %v6127 = vsel %vm6124, %v6106, 0.0
    %v6128 = vsel %vm6125, %v6107, 0.0
    %v6129 = vsel %vm6126, %v6108, 0.0
    %v6130 = vmul.f32 %v6106, %v6106
    %v6131 = vmul.f32 %v6107, %v6107
    %v6132 = vmul.f32 %v6108, %v6108
    %v6133 = vsel %vm6124, %v6130, 0.0
    %v6134 = vsel %vm6125, %v6131, 0.0
    %v6135 = vsel %vm6126, %v6132, 0.0
    %v6136 = vadd.f32 %v6127, %v6128
    %vm6137 = vcmask 1041408
    %v6138 = vsel %vm6137, %v6129, 0.0
    %v6139 = vadd.f32 %v6136, %v6138
    %v6140 = vrot.slane %v6139, 4
    %v6141 = vadd.f32 %v6139, %v6140
    %v6142 = vrot.slane %v6141, 2
    %v6143 = vadd.f32 %v6141, %v6142
    %v6144 = vrot.slane %v6143, 1
    %v6145 = vadd.f32 %v6143, %v6144
    %6146 = vmatprep.subr.mxu0 0.0
    %6147 = vmatpush1.msra.mxu0 %v2631
    %6148 = vmatprep.subr.mxu0 0.0
    %6149 = vmatpush1.msra.mxu0 %v2630
    %6150 = vmatprep.subr.mxu0 0.0
    %6151 = vmatpush1.msra.mxu0 %v2629
    %6152 = vmatprep.subr.mxu0 0.0
    %6153 = vmatpush1.msra.mxu0 %v2628
    %6154 = vmatprep.subr.mxu0 0.0
    %6155 = vmatpush1.msra.mxu0 %v2627
    %6156 = vmatprep.subr.mxu0 0.0
    %6157 = vmatpush1.msra.mxu0 %v2626
    %6158 = vmatprep.subr.mxu0 0.0
    %6159 = vmatpush1.msra.mxu0 %v2625
    %6160 = vmatprep.subr.mxu0 0.0
    %6161 = vmatpush1.msra.mxu0 %v2624
    %6162 = vmatprep.subr.mxu0 0.0
    %6163 = vmatpush1.msra.mxu0 %v2623
    %6164 = vmatprep.subr.mxu0 0.0
    %6165 = vmatpush1.msra.mxu0 %v2622
    %6166 = vmatprep.subr.mxu0 0.0
    %6167 = vmatpush1.msra.mxu0 %v2621
    %6168 = vmatprep.subr.mxu0 0.0
    %6169 = vmatpush1.msra.mxu0 %v2620
    %6170 = vmatprep.subr.mxu0 0.0
    %6171 = vmatpush1.msra.mxu0 %v2619
    %6172 = vmatprep.subr.mxu0 0.0
    %6173 = vmatpush1.msra.mxu0 %v2618
    %6174 = vmatprep.subr.mxu0 0.0
    %6175 = vmatpush1.msra.mxu0 %v2617
    %6176 = vmatprep.subr.mxu0 0.0
    %6177 = vmatpush1.msra.mxu0 %v2616
    %6178 = vmatprep.subr.mxu0 0.0
    %6179 = vmatpush2.msra.mxu0 0.0
    %6180 = vmatprep.subr.mxu0 0.0
    %6181 = vmatpush2.msra.mxu0 0.0
    %6182 = vmatprep.subr.mxu0 0.0
    %6183 = vmatpush2.msra.mxu0 0.0
    %6184 = vmatprep.subr.mxu0 0.0
    %6185 = vmatpush2.msra.mxu0 0.0
    %6186 = vmatprep.subr.mxu0 0.0
    %6187 = vmatpush2.msra.mxu0 0.0
    %6188 = vmatprep.subr.mxu0 0.0
    %6189 = vmatpush2.msra.mxu0 0.0
    %6190 = vmatprep.subr.mxu0 0.0
    %6191 = vmatpush2.msra.mxu0 0.0
    %6192 = vmatprep.subr.mxu0 0.0
    %6193 = vmatpush2.msra.mxu0 0.0
    %6194 = vmatprep.subr.mxu0 0.0
    %6195 = vmatpush2.msra.mxu0 0.0
    %6196 = vmatprep.subr.mxu0 0.0
    %6197 = vmatpush2.msra.mxu0 0.0
    %6198 = vmatprep.subr.mxu0 0.0
    %6199 = vmatpush2.msra.mxu0 0.0
    %6200 = vmatprep.subr.mxu0 0.0
    %6201 = vmatpush2.msra.mxu0 0.0
    %6202 = vmatprep.subr.mxu0 0.0
    %6203 = vmatpush2.msra.mxu0 0.0
    %6204 = vmatprep.subr.mxu0 0.0
    %6205 = vmatpush2.msra.mxu0 0.0
    %6206 = vmatprep.subr.mxu0 0.0
    %6207 = vmatpush2.msra.mxu0 0.0
    %6208 = vmatprep.subr.mxu0 0.0
    %6209 = vmatpush2.msra.mxu0 0.0
    %6210 = vmatprep.mubr.f32.mxu0 0.0
    %6211 = vmatmul.mubr.f32.gmra.mxu0 %v6145
    %v6212 = vpop.f32.mrf.mxu0
    %v6213 = vadd.f32 0.0, %v6212
    %v6214 = vpop.f32.mrf.mxu0
    %6215 = vdwg.mxu0
    %v6216 = vadd.f32 %v6133, %v6134
    %v6217 = vsel %vm6137, %v6135, 0.0
    %v6218 = vadd.f32 %v6216, %v6217
    %v6219 = vrot.slane %v6218, 4
    %v6220 = vadd.f32 %v6218, %v6219
    %v6221 = vrot.slane %v6220, 2
    %v6222 = vadd.f32 %v6220, %v6221
    %v6223 = vrot.slane %v6222, 1
    %v6224 = vadd.f32 %v6222, %v6223
    %6225 = vmatprep.subr.mxu0 0.0
    %6226 = vmatpush1.msra.mxu0 %v2631
    %6227 = vmatprep.subr.mxu0 0.0
    %6228 = vmatpush1.msra.mxu0 %v2630
    %6229 = vmatprep.subr.mxu0 0.0
    %6230 = vmatpush1.msra.mxu0 %v2629
    %6231 = vmatprep.subr.mxu0 0.0
    %6232 = vmatpush1.msra.mxu0 %v2628
    %6233 = vmatprep.subr.mxu0 0.0
    %6234 = vmatpush1.msra.mxu0 %v2627
    %6235 = vmatprep.subr.mxu0 0.0
    %6236 = vmatpush1.msra.mxu0 %v2626
    %6237 = vmatprep.subr.mxu0 0.0
    %6238 = vmatpush1.msra.mxu0 %v2625
    %6239 = vmatprep.subr.mxu0 0.0
    %6240 = vmatpush1.msra.mxu0 %v2624
    %6241 = vmatprep.subr.mxu0 0.0
    %6242 = vmatpush1.msra.mxu0 %v2623
    %6243 = vmatprep.subr.mxu0 0.0
    %6244 = vmatpush1.msra.mxu0 %v2622
    %6245 = vmatprep.subr.mxu0 0.0
    %6246 = vmatpush1.msra.mxu0 %v2621
    %6247 = vmatprep.subr.mxu0 0.0
    %6248 = vmatpush1.msra.mxu0 %v2620
    %6249 = vmatprep.subr.mxu0 0.0
    %6250 = vmatpush1.msra.mxu0 %v2619
    %6251 = vmatprep.subr.mxu0 0.0
    %6252 = vmatpush1.msra.mxu0 %v2618
    %6253 = vmatprep.subr.mxu0 0.0
    %6254 = vmatpush1.msra.mxu0 %v2617
    %6255 = vmatprep.subr.mxu0 0.0
    %6256 = vmatpush1.msra.mxu0 %v2616
    %6257 = vmatprep.subr.mxu0 0.0
    %6258 = vmatpush2.msra.mxu0 0.0
    %6259 = vmatprep.subr.mxu0 0.0
    %6260 = vmatpush2.msra.mxu0 0.0
    %6261 = vmatprep.subr.mxu0 0.0
    %6262 = vmatpush2.msra.mxu0 0.0
    %6263 = vmatprep.subr.mxu0 0.0
    %6264 = vmatpush2.msra.mxu0 0.0
    %6265 = vmatprep.subr.mxu0 0.0
    %6266 = vmatpush2.msra.mxu0 0.0
    %6267 = vmatprep.subr.mxu0 0.0
    %6268 = vmatpush2.msra.mxu0 0.0
    %6269 = vmatprep.subr.mxu0 0.0
    %6270 = vmatpush2.msra.mxu0 0.0
    %6271 = vmatprep.subr.mxu0 0.0
    %6272 = vmatpush2.msra.mxu0 0.0
    %6273 = vmatprep.subr.mxu0 0.0
    %6274 = vmatpush2.msra.mxu0 0.0
    %6275 = vmatprep.subr.mxu0 0.0
    %6276 = vmatpush2.msra.mxu0 0.0
    %6277 = vmatprep.subr.mxu0 0.0
    %6278 = vmatpush2.msra.mxu0 0.0
    %6279 = vmatprep.subr.mxu0 0.0
    %6280 = vmatpush2.msra.mxu0 0.0
    %6281 = vmatprep.subr.mxu0 0.0
    %6282 = vmatpush2.msra.mxu0 0.0
    %6283 = vmatprep.subr.mxu0 0.0
    %6284 = vmatpush2.msra.mxu0 0.0
    %6285 = vmatprep.subr.mxu0 0.0
    %6286 = vmatpush2.msra.mxu0 0.0
    %6287 = vmatprep.subr.mxu0 0.0
    %6288 = vmatpush2.msra.mxu0 0.0
    %6289 = vmatprep.mubr.f32.mxu0 0.0
    %6290 = vmatmul.mubr.f32.gmra.mxu0 %v6224
    %v6291 = vpop.f32.mrf.mxu0
    %v6292 = vadd.f32 0.0, %v6291
    %v6293 = vpop.f32.mrf.mxu0
    %6294 = vdwg.mxu0
    %v6295 = vmul.f32 %v6213, 0.0078125
    %v6296 = vmul.f32 %v6292, 0.0078125
    %v6297 = vmul.f32 %v6295, %v6295
    %v6298 = vsub.f32 %v6296, %v6297
    %v6299 = vld [vmem:[#allocation8] sm:$0x1]
    %v6300 = vld [vmem:[#allocation8 + $0x1] sm:$0x1]
    %v6301 = vadd.f32 %v6298, 1e-05
    %v6302 = vrsqrt.pop %v6301
    %v6303 = vmul.f32 %v6299, %v6302
    %v6304 = vmul.f32 %v6295, %v6303
    %v6305 = vsub.f32 %v6300, %v6304
    %v6307 = vsel %vm3055, %v6303, 0
    %6309 = vmatprep.subr.mxu0 0.0
    %6310 = vmatpush1.msra.mxu0 0.0
    %6311 = vmatprep.subr.mxu0 0.0
    %6312 = vmatpush1.msra.mxu0 0.0
    %6313 = vmatprep.subr.mxu0 0.0
    %6314 = vmatpush1.msra.mxu0 0.0
    %6315 = vmatprep.subr.mxu0 0.0
    %6316 = vmatpush1.msra.mxu0 0.0
    %6317 = vmatprep.subr.mxu0 0.0
    %6318 = vmatpush1.msra.mxu0 0.0
    %6319 = vmatprep.subr.mxu0 0.0
    %6320 = vmatpush1.msra.mxu0 0.0
    %6321 = vmatprep.subr.mxu0 0.0
    %6322 = vmatpush1.msra.mxu0 0.0
    %6323 = vmatprep.subr.mxu0 0.0
    %6324 = vmatpush1.msra.mxu0 0.0
    %6325 = vmatprep.subr.mxu0 0.0
    %6326 = vmatpush1.msra.mxu0 0.0
    %6327 = vmatprep.subr.mxu0 0.0
    %6328 = vmatpush1.msra.mxu0 0.0
    %6329 = vmatprep.subr.mxu0 0.0
    %6330 = vmatpush1.msra.mxu0 0.0
    %6331 = vmatprep.subr.mxu0 0.0
    %6332 = vmatpush1.msra.mxu0 0.0
    %6333 = vmatprep.subr.mxu0 0.0
    %6334 = vmatpush1.msra.mxu0 0.0
    %6335 = vmatprep.subr.mxu0 0.0
    %6336 = vmatpush1.msra.mxu0 0.0
    %6337 = vmatprep.subr.mxu0 0.0
    %6338 = vmatpush1.msra.mxu0 %v2683
    %6339 = vmatprep.subr.mxu0 0.0
    %6340 = vmatpush1.msra.mxu0 %v2680
    %6341 = vmatprep.subr.mxu0 0.0
    %6342 = vmatpush2.msra.mxu0 0.0
    %6343 = vmatprep.subr.mxu0 0.0
    %6344 = vmatpush2.msra.mxu0 0.0
    %6345 = vmatprep.subr.mxu0 0.0
    %6346 = vmatpush2.msra.mxu0 0.0
    %6347 = vmatprep.subr.mxu0 0.0
    %6348 = vmatpush2.msra.mxu0 0.0
    %6349 = vmatprep.subr.mxu0 0.0
    %6350 = vmatpush2.msra.mxu0 0.0
    %6351 = vmatprep.subr.mxu0 0.0
    %6352 = vmatpush2.msra.mxu0 0.0
    %6353 = vmatprep.subr.mxu0 0.0
    %6354 = vmatpush2.msra.mxu0 0.0
    %6355 = vmatprep.subr.mxu0 0.0
    %6356 = vmatpush2.msra.mxu0 0.0
    %6357 = vmatprep.subr.mxu0 0.0
    %6358 = vmatpush2.msra.mxu0 0.0
    %6359 = vmatprep.subr.mxu0 0.0
    %6360 = vmatpush2.msra.mxu0 0.0
    %6361 = vmatprep.subr.mxu0 0.0
    %6362 = vmatpush2.msra.mxu0 0.0
    %6363 = vmatprep.subr.mxu0 0.0
    %6364 = vmatpush2.msra.mxu0 0.0
    %6365 = vmatprep.subr.mxu0 0.0
    %6366 = vmatpush2.msra.mxu0 0.0
    %6367 = vmatprep.subr.mxu0 0.0
    %6368 = vmatpush2.msra.mxu0 0.0
    %6369 = vmatprep.subr.mxu0 0.0
    %6370 = vmatpush2.msra.mxu0 0.0
    %6371 = vmatprep.subr.mxu0 0.0
    %6372 = vmatpush2.msra.mxu0 0.0
    %6373 = vmatprep.mubr.f32.mxu0 0.0
    %6374 = vmatmul.mubr.f32.gmra.mxu0 %v6307
    %v6375 = vpop.f32.mrf.mxu0
    %v6376 = vadd.f32 0.0, %v6375
    %v6377 = vpop.f32.mrf.mxu0
    %6378 = vdwg.mxu0
    %v6380 = vsel %vm3055, %v6305, 0
    %6382 = vmatprep.subr.mxu0 0.0
    %6383 = vmatpush1.msra.mxu0 0.0
    %6384 = vmatprep.subr.mxu0 0.0
    %6385 = vmatpush1.msra.mxu0 0.0
    %6386 = vmatprep.subr.mxu0 0.0
    %6387 = vmatpush1.msra.mxu0 0.0
    %6388 = vmatprep.subr.mxu0 0.0
    %6389 = vmatpush1.msra.mxu0 0.0
    %6390 = vmatprep.subr.mxu0 0.0
    %6391 = vmatpush1.msra.mxu0 0.0
    %6392 = vmatprep.subr.mxu0 0.0
    %6393 = vmatpush1.msra.mxu0 0.0
    %6394 = vmatprep.subr.mxu0 0.0
    %6395 = vmatpush1.msra.mxu0 0.0
    %6396 = vmatprep.subr.mxu0 0.0
    %6397 = vmatpush1.msra.mxu0 0.0
    %6398 = vmatprep.subr.mxu0 0.0
    %6399 = vmatpush1.msra.mxu0 0.0
    %6400 = vmatprep.subr.mxu0 0.0
    %6401 = vmatpush1.msra.mxu0 0.0
    %6402 = vmatprep.subr.mxu0 0.0
    %6403 = vmatpush1.msra.mxu0 0.0
    %6404 = vmatprep.subr.mxu0 0.0
    %6405 = vmatpush1.msra.mxu0 0.0
    %6406 = vmatprep.subr.mxu0 0.0
    %6407 = vmatpush1.msra.mxu0 0.0
    %6408 = vmatprep.subr.mxu0 0.0
    %6409 = vmatpush1.msra.mxu0 0.0
    %6410 = vmatprep.subr.mxu0 0.0
    %6411 = vmatpush1.msra.mxu0 %v2683
    %6412 = vmatprep.subr.mxu0 0.0
    %6413 = vmatpush1.msra.mxu0 %v2680
    %6414 = vmatprep.subr.mxu0 0.0
    %6415 = vmatpush2.msra.mxu0 0.0
    %6416 = vmatprep.subr.mxu0 0.0
    %6417 = vmatpush2.msra.mxu0 0.0
    %6418 = vmatprep.subr.mxu0 0.0
    %6419 = vmatpush2.msra.mxu0 0.0
    %6420 = vmatprep.subr.mxu0 0.0
    %6421 = vmatpush2.msra.mxu0 0.0
    %6422 = vmatprep.subr.mxu0 0.0
    %6423 = vmatpush2.msra.mxu0 0.0
    %6424 = vmatprep.subr.mxu0 0.0
    %6425 = vmatpush2.msra.mxu0 0.0
    %6426 = vmatprep.subr.mxu0 0.0
    %6427 = vmatpush2.msra.mxu0 0.0
    %6428 = vmatprep.subr.mxu0 0.0
    %6429 = vmatpush2.msra.mxu0 0.0
    %6430 = vmatprep.subr.mxu0 0.0
    %6431 = vmatpush2.msra.mxu0 0.0
    %6432 = vmatprep.subr.mxu0 0.0
    %6433 = vmatpush2.msra.mxu0 0.0
    %6434 = vmatprep.subr.mxu0 0.0
    %6435 = vmatpush2.msra.mxu0 0.0
    %6436 = vmatprep.subr.mxu0 0.0
    %6437 = vmatpush2.msra.mxu0 0.0
    %6438 = vmatprep.subr.mxu0 0.0
    %6439 = vmatpush2.msra.mxu0 0.0
    %6440 = vmatprep.subr.mxu0 0.0
    %6441 = vmatpush2.msra.mxu0 0.0
    %6442 = vmatprep.subr.mxu0 0.0
    %6443 = vmatpush2.msra.mxu0 0.0
    %6444 = vmatprep.subr.mxu0 0.0
    %6445 = vmatpush2.msra.mxu0 0.0
    %6446 = vmatprep.mubr.f32.mxu0 0.0
    %6447 = vmatmul.mubr.f32.gmra.mxu0 %v6380
    %v6448 = vpop.f32.mrf.mxu0
    %v6449 = vadd.f32 0.0, %v6448
    %v6450 = vpop.f32.mrf.mxu0
    %6451 = vdwg.mxu0
    %v6452 = vlaneseq
    %v6453 = vshrl.u32 %v6452, 7
    %v6454 = vsub.s32 0, %v6453
    %v6455 = vrot.slane %v6376, %v6454
    %v6456 = vmul.f32 %v6106, %v6455
    %v6457 = vmul.f32 %v6107, %v6455
    %v6458 = vmul.f32 %v6108, %v6455
    %v6459 = vlaneseq
    %v6460 = vshrl.u32 %v6459, 7
    %v6461 = vsub.s32 0, %v6460
    %v6462 = vrot.slane %v6449, %v6461
    %v6463 = vadd.f32 %v6456, %v6462
    %v6464 = vadd.f32 %v6457, %v6462
    %v6465 = vadd.f32 %v6458, %v6462
    %v6466 = vmax.f32 %v6463, 0.0
    %v6467 = vmax.f32 %v6464, 0.0
    %v6468 = vmax.f32 %v6465, 0.0
    %vm6469 = vcmp.lt.s32.totalorder %v645, 96
    %vm6470 = vcmp.lt.s32.totalorder %v646, 96
    %vm6471 = vcmp.lt.s32.totalorder %v647, 96
    %vm6472 = vcmp.lt.s32.totalorder %v648, 96
    %vm6473 = vcmp.lt.s32.totalorder %v649, 96
    %vm6474 = vcmp.lt.s32.totalorder %v650, 96
    %vm6475 = vcmp.lt.s32.totalorder %v651, 96
    %vm6476 = vcmp.lt.s32.totalorder %v743, 96
    %vm6477 = vcmp.lt.s32.totalorder %v744, 96
    %vm6478 = vcmp.lt.s32.totalorder %v745, 96
    %vm6479 = vcmp.lt.s32.totalorder %v746, 96
    %vm6480 = vcmp.lt.s32.totalorder %v747, 96
    %vm6481 = vcmp.lt.s32.totalorder %v748, 96
    %vm6482 = vcmp.lt.s32.totalorder %v749, 96
    %vm6483 = vcmp.lt.s32.totalorder %v750, 96
    %vm6484 = vcmp.lt.s32.totalorder %v751, 96
    %vm6485 = vmand %vm2520, %vm6469
    %vm6486 = vmand %vm2521, %vm6470
    %vm6487 = vmand %vm2522, %vm6471
    %vm6488 = vmand %vm2523, %vm6472
    %vm6489 = vmand %vm2524, %vm6473
    %vm6490 = vmand %vm2525, %vm6474
    %vm6491 = vmand %vm2526, %vm6475
    %vm6492 = vmand %vm2527, %vm6476
    %vm6493 = vmand %vm2528, %vm6477
    %vm6494 = vmand %vm2529, %vm6478
    %vm6495 = vmand %vm2530, %vm6479
    %vm6496 = vmand %vm2531, %vm6480
    %vm6497 = vmand %vm2532, %vm6481
    %vm6498 = vmand %vm2533, %vm6482
    %vm6499 = vmand %vm2534, %vm6483
    %vm6500 = vmand %vm2535, %vm6484
    %v6501 = vsel %vm6485, 1, 0
    %v6502 = vsel %vm6486, 1, 0
    %v6503 = vsel %vm6487, 1, 0
    %v6504 = vsel %vm6488, 1, 0
    %v6505 = vsel %vm6489, 1, 0
    %v6506 = vsel %vm6490, 1, 0
    %v6507 = vsel %vm6491, 1, 0
    %v6508 = vsel %vm6492, 1, 0
    %v6509 = vsel %vm6493, 1, 0
    %v6510 = vsel %vm6494, 1, 0
    %v6511 = vsel %vm6495, 1, 0
    %v6512 = vsel %vm6496, 1, 0
    %v6513 = vsel %vm6497, 1, 0
    %v6514 = vsel %vm6498, 1, 0
    %v6515 = vsel %vm6499, 1, 0
    %v6516 = vsel %vm6500, 1, 0
    %v6517 = vcvt.s32.f32 %v6501
    %v6518 = vcvt.s32.f32 %v6502
    %v6519 = vcvt.s32.f32 %v6503
    %v6520 = vcvt.s32.f32 %v6504
    %v6521 = vcvt.s32.f32 %v6505
    %v6522 = vcvt.s32.f32 %v6506
    %v6523 = vcvt.s32.f32 %v6507
    %v6524 = vcvt.s32.f32 %v6508
    %v6525 = vcvt.s32.f32 %v6509
    %v6526 = vcvt.s32.f32 %v6510
    %v6527 = vcvt.s32.f32 %v6511
    %v6528 = vcvt.s32.f32 %v6512
    %v6529 = vcvt.s32.f32 %v6513
    %v6530 = vcvt.s32.f32 %v6514
    %v6531 = vcvt.s32.f32 %v6515
    %v6532 = vcvt.s32.f32 %v6516
    %v6533 = vmul.f32 %v6517, 0.027777778
    %v6534 = vmul.f32 %v6518, 0.027777778
    %v6535 = vmul.f32 %v6519, 0.027777778
    %v6536 = vmul.f32 %v6520, 0.027777778
    %v6537 = vmul.f32 %v6521, 0.027777778
    %v6538 = vmul.f32 %v6522, 0.027777778
    %v6539 = vmul.f32 %v6523, 0.027777778
    %v6540 = vmul.f32 %v6524, 0.027777778
    %v6541 = vmul.f32 %v6525, 0.027777778
    %v6542 = vmul.f32 %v6526, 0.027777778
    %v6543 = vmul.f32 %v6527, 0.027777778
    %v6544 = vmul.f32 %v6528, 0.027777778
    %v6545 = vmul.f32 %v6529, 0.027777778
    %v6546 = vmul.f32 %v6530, 0.027777778
    %v6547 = vmul.f32 %v6531, 0.027777778
    %v6548 = vmul.f32 %v6532, 0.027777778
    %v6549 = vld [vmem:[#allocation10] sm:$0x3]
    %vm6550 = vcmask 146432
    %v6552 = vsel %vm6550, %v6549, 0
    %v6555 = vsel %vm6137, %v6468, 0
    %6557 = vmatprep.subr.mxu0 0.0
    %6558 = vmatpush1.msra.mxu0 0.0
    %6559 = vmatprep.subr.mxu0 0.0
    %6560 = vmatpush1.msra.mxu0 0.0
    %6561 = vmatprep.subr.mxu0 0.0
    %6562 = vmatpush1.msra.mxu0 0.0
    %6563 = vmatprep.subr.mxu0 0.0
    %6564 = vmatpush1.msra.mxu0 0.0
    %6565 = vmatprep.subr.mxu0 0.0
    %6566 = vmatpush1.msra.mxu0 0.0
    %6567 = vmatprep.subr.mxu0 0.0
    %6568 = vmatpush1.msra.mxu0 0.0
    %6569 = vmatprep.subr.mxu0 0.0
    %6570 = vmatpush1.msra.mxu0 0.0
    %6571 = vmatprep.subr.mxu0 0.0
    %6572 = vmatpush1.msra.mxu0 0.0
    %6573 = vmatprep.subr.mxu0 0.0
    %6574 = vmatpush1.msra.mxu0 0.0
    %6575 = vmatprep.subr.mxu0 0.0
    %6576 = vmatpush1.msra.mxu0 0.0
    %6577 = vmatprep.subr.mxu0 0.0
    %6578 = vmatpush1.msra.mxu0 0.0
    %6579 = vmatprep.subr.mxu0 0.0
    %6580 = vmatpush1.msra.mxu0 0.0
    %6581 = vmatprep.subr.mxu0 0.0
    %6582 = vmatpush1.msra.mxu0 0.0
    %6583 = vmatprep.subr.mxu0 0.0
    %6584 = vmatpush1.msra.mxu0 %v6555
    %6585 = vmatprep.subr.mxu0 0.0
    %6586 = vmatpush1.msra.mxu0 %v6467
    %6587 = vmatprep.subr.mxu0 0.0
    %6588 = vmatpush1.msra.mxu0 %v6466
    %6589 = vmatprep.subr.mxu0 0.0
    %6590 = vmatpush2.msra.mxu0 0.0
    %6591 = vmatprep.subr.mxu0 0.0
    %6592 = vmatpush2.msra.mxu0 0.0
    %6593 = vmatprep.subr.mxu0 0.0
    %6594 = vmatpush2.msra.mxu0 0.0
    %6595 = vmatprep.subr.mxu0 0.0
    %6596 = vmatpush2.msra.mxu0 0.0
    %6597 = vmatprep.subr.mxu0 0.0
    %6598 = vmatpush2.msra.mxu0 0.0
    %6599 = vmatprep.subr.mxu0 0.0
    %6600 = vmatpush2.msra.mxu0 0.0
    %6601 = vmatprep.subr.mxu0 0.0
    %6602 = vmatpush2.msra.mxu0 0.0
    %6603 = vmatprep.subr.mxu0 0.0
    %6604 = vmatpush2.msra.mxu0 0.0
    %6605 = vmatprep.subr.mxu0 0.0
    %6606 = vmatpush2.msra.mxu0 0.0
    %6607 = vmatprep.subr.mxu0 0.0
    %6608 = vmatpush2.msra.mxu0 0.0
    %6609 = vmatprep.subr.mxu0 0.0
    %6610 = vmatpush2.msra.mxu0 0.0
    %6611 = vmatprep.subr.mxu0 0.0
    %6612 = vmatpush2.msra.mxu0 0.0
    %6613 = vmatprep.subr.mxu0 0.0
    %6614 = vmatpush2.msra.mxu0 0.0
    %6615 = vmatprep.subr.mxu0 0.0
    %6616 = vmatpush2.msra.mxu0 0.0
    %6617 = vmatprep.subr.mxu0 0.0
    %6618 = vmatpush2.msra.mxu0 0.0
    %6619 = vmatprep.subr.mxu0 0.0
    %6620 = vmatpush2.msra.mxu0 0.0
    %6621 = vmatprep.mubr.f32.mxu0 0.0
    %6622 = vmatmul.mubr.f32.gmra.mxu0 %v6552
    %v6623 = vpop.f32.mrf.mxu0
    %v6624 = vadd.f32 0.0, %v6623
    %v6625 = vpop.f32.mrf.mxu0
    %6626 = vdwg.mxu0
    %6627 = vmatprep.subr.mxu0 0.0
    %6628 = vmatpush1.msra.mxu0 %v6548
    %6629 = vmatprep.subr.mxu0 0.0
    %6630 = vmatpush1.msra.mxu0 %v6547
    %6631 = vmatprep.subr.mxu0 0.0
    %6632 = vmatpush1.msra.mxu0 %v6546
    %6633 = vmatprep.subr.mxu0 0.0
    %6634 = vmatpush1.msra.mxu0 %v6545
    %6635 = vmatprep.subr.mxu0 0.0
    %6636 = vmatpush1.msra.mxu0 %v6544
    %6637 = vmatprep.subr.mxu0 0.0
    %6638 = vmatpush1.msra.mxu0 %v6543
    %6639 = vmatprep.subr.mxu0 0.0
    %6640 = vmatpush1.msra.mxu0 %v6542
    %6641 = vmatprep.subr.mxu0 0.0
    %6642 = vmatpush1.msra.mxu0 %v6541
    %6643 = vmatprep.subr.mxu0 0.0
    %6644 = vmatpush1.msra.mxu0 %v6540
    %6645 = vmatprep.subr.mxu0 0.0
    %6646 = vmatpush1.msra.mxu0 %v6539
    %6647 = vmatprep.subr.mxu0 0.0
    %6648 = vmatpush1.msra.mxu0 %v6538
    %6649 = vmatprep.subr.mxu0 0.0
    %6650 = vmatpush1.msra.mxu0 %v6537
    %6651 = vmatprep.subr.mxu0 0.0
    %6652 = vmatpush1.msra.mxu0 %v6536
    %6653 = vmatprep.subr.mxu0 0.0
    %6654 = vmatpush1.msra.mxu0 %v6535
    %6655 = vmatprep.subr.mxu0 0.0
    %6656 = vmatpush1.msra.mxu0 %v6534
    %6657 = vmatprep.subr.mxu0 0.0
    %6658 = vmatpush1.msra.mxu0 %v6533
    %6659 = vmatprep.subr.mxu0 0.0
    %6660 = vmatpush2.msra.mxu0 0.0
    %6661 = vmatprep.subr.mxu0 0.0
    %6662 = vmatpush2.msra.mxu0 0.0
    %6663 = vmatprep.subr.mxu0 0.0
    %6664 = vmatpush2.msra.mxu0 0.0
    %6665 = vmatprep.subr.mxu0 0.0
    %6666 = vmatpush2.msra.mxu0 0.0
    %6667 = vmatprep.subr.mxu0 0.0
    %6668 = vmatpush2.msra.mxu0 0.0
    %6669 = vmatprep.subr.mxu0 0.0
    %6670 = vmatpush2.msra.mxu0 0.0
    %6671 = vmatprep.subr.mxu0 0.0
    %6672 = vmatpush2.msra.mxu0 0.0
    %6673 = vmatprep.subr.mxu0 0.0
    %6674 = vmatpush2.msra.mxu0 0.0
    %6675 = vmatprep.subr.mxu0 0.0
    %6676 = vmatpush2.msra.mxu0 0.0
    %6677 = vmatprep.subr.mxu0 0.0
    %6678 = vmatpush2.msra.mxu0 0.0
    %6679 = vmatprep.subr.mxu0 0.0
    %6680 = vmatpush2.msra.mxu0 0.0
    %6681 = vmatprep.subr.mxu0 0.0
    %6682 = vmatpush2.msra.mxu0 0.0
    %6683 = vmatprep.subr.mxu0 0.0
    %6684 = vmatpush2.msra.mxu0 0.0
    %6685 = vmatprep.subr.mxu0 0.0
    %6686 = vmatpush2.msra.mxu0 0.0
    %6687 = vmatprep.subr.mxu0 0.0
    %6688 = vmatpush2.msra.mxu0 0.0
    %6689 = vmatprep.subr.mxu0 0.0
    %6690 = vmatpush2.msra.mxu0 0.0
    %6691 = vmatprep.mubr.f32.mxu0 0.0
    %6692 = vmatmul.mubr.f32.gmra.mxu0 %v6624
    %v6693 = vpop.f32.mrf.mxu0
    %v6694 = vadd.f32 0.0, %v6693
    %v6695 = vpop.f32.mrf.mxu0
    %6696 = vdwg.mxu0
    %v6697 = vld [vmem:[%s23] sm:$0xff]
    %v6698 = vld [vmem:[%s23 + $0x8] sm:$0xff]
    %v6699 = vld [vmem:[#allocation11] sm:$0x1]
    %v6701 = vlaneseq
    %v6702 = vshrl.u32 %v6701, 7
    %v6703 = vsub.s32 0, %v6702
    %v6704 = vrot.slane %v6699, %v6703
    %v6707 = vsel %vm3055, %v6694, 0
    %6709 = vmatprep.subr.mxu0 0.0
    %6710 = vmatpush1.msra.mxu0 0.0
    %6711 = vmatprep.subr.mxu0 0.0
    %6712 = vmatpush1.msra.mxu0 0.0
    %6713 = vmatprep.subr.mxu0 0.0
    %6714 = vmatpush1.msra.mxu0 0.0
    %6715 = vmatprep.subr.mxu0 0.0
    %6716 = vmatpush1.msra.mxu0 0.0
    %6717 = vmatprep.subr.mxu0 0.0
    %6718 = vmatpush1.msra.mxu0 0.0
    %6719 = vmatprep.subr.mxu0 0.0
    %6720 = vmatpush1.msra.mxu0 0.0
    %6721 = vmatprep.subr.mxu0 0.0
    %6722 = vmatpush1.msra.mxu0 0.0
    %6723 = vmatprep.subr.mxu0 0.0
    %6724 = vmatpush1.msra.mxu0 0.0
    %6725 = vmatprep.subr.mxu0 0.0
    %6726 = vmatpush1.msra.mxu0 0.0
    %6727 = vmatprep.subr.mxu0 0.0
    %6728 = vmatpush1.msra.mxu0 0.0
    %6729 = vmatprep.subr.mxu0 0.0
    %6730 = vmatpush1.msra.mxu0 0.0
    %6731 = vmatprep.subr.mxu0 0.0
    %6732 = vmatpush1.msra.mxu0 0.0
    %6733 = vmatprep.subr.mxu0 0.0
    %6734 = vmatpush1.msra.mxu0 0.0
    %6735 = vmatprep.subr.mxu0 0.0
    %6736 = vmatpush1.msra.mxu0 0.0
    %6737 = vmatprep.subr.mxu0 0.0
    %6738 = vmatpush1.msra.mxu0 %v6698
    %6739 = vmatprep.subr.mxu0 0.0
    %6740 = vmatpush1.msra.mxu0 %v6697
    %6741 = vmatprep.subr.mxu0 0.0
    %6742 = vmatpush2.msra.mxu0 0.0
    %6743 = vmatprep.subr.mxu0 0.0
    %6744 = vmatpush2.msra.mxu0 0.0
    %6745 = vmatprep.subr.mxu0 0.0
    %6746 = vmatpush2.msra.mxu0 0.0
    %6747 = vmatprep.subr.mxu0 0.0
    %6748 = vmatpush2.msra.mxu0 0.0
    %6749 = vmatprep.subr.mxu0 0.0
    %6750 = vmatpush2.msra.mxu0 0.0
    %6751 = vmatprep.subr.mxu0 0.0
    %6752 = vmatpush2.msra.mxu0 0.0
    %6753 = vmatprep.subr.mxu0 0.0
    %6754 = vmatpush2.msra.mxu0 0.0
    %6755 = vmatprep.subr.mxu0 0.0
    %6756 = vmatpush2.msra.mxu0 0.0
    %6757 = vmatprep.subr.mxu0 0.0
    %6758 = vmatpush2.msra.mxu0 0.0
    %6759 = vmatprep.subr.mxu0 0.0
    %6760 = vmatpush2.msra.mxu0 0.0
    %6761 = vmatprep.subr.mxu0 0.0
    %6762 = vmatpush2.msra.mxu0 0.0
    %6763 = vmatprep.subr.mxu0 0.0
    %6764 = vmatpush2.msra.mxu0 0.0
    %6765 = vmatprep.subr.mxu0 0.0
    %6766 = vmatpush2.msra.mxu0 0.0
    %6767 = vmatprep.subr.mxu0 0.0
    %6768 = vmatpush2.msra.mxu0 0.0
    %6769 = vmatprep.subr.mxu0 0.0
    %6770 = vmatpush2.msra.mxu0 0.0
    %6771 = vmatprep.subr.mxu0 0.0
    %6772 = vmatpush2.msra.mxu0 0.0
    %6773 = vmatprep.mubr.f32.mxu0 0.0
    %6774 = vmatmul.mubr.f32.gmra.mxu0 %v6707
    %v6775 = vpop.f32.mrf.mxu0
    %v6776 = vadd.f32 %v6704, %v6775
    %v6777 = vpop.f32.mrf.mxu0
    %6778 = vdwg.mxu0
    %vm6779 = vcmask 74752
    %v6780 = vsel %vm6779, %v6776, -inf
    %6781 = vmax.xlane.f32.xlu0 %v6780
    %v6782 = vpop.xlane.xlu0 %6781
    %v6783 = vsub.f32 %v6776, %v6782
    %v6784 = vmul.f32 %v6783, 1.442695
    %v6785 = vpow.pop %v6784
    %v6786 = vsel %vm6779, %v6785, 0.0
    %6787 = vadd.xlane.f32.xlu0 %v6786
    %v6788 = vpop.xlane.xlu0 %6787
    %v6789 = vlog2.pop %v6788
    %v6790 = vmul.f32 %v6789, 0.6931472
    %v6791 = vsub.f32 %v6783, %v6790
    %6792 = vst.msk [vmem:[#allocation13] sm:$0x3] %vm6779, %v6791
    // Predicated region
    $region126: #{model3_forward.1} parent=1 // pred_check
      _
    $region127: #{model3_forward.1} parent=1 // pred_check_branch
      %6794 = sbr.rel (0) target = $region129
    $region128: #{model3_forward.1} parent=1 // pred_region
      %s6796 = ssub.s32 32, 32
      %6797 = vsyncadd [#allocation4], %s6796
      %s6799 = sshll.u32 [#allocation13], 4
      %s6800 = int_to_ptr.vmem [resolvable:$true] %s6799
      %6802 = dma.vmem_to_hbm [thread:$0]  %s6800, 32, %s25, [#allocation4]
    $region129: #{model3_forward.1} parent=1 // pred_fallthru
      _
    // Predicated region
    $region130: #{model3_forward.1} parent=1 // pred_check
      _
    $region131: #{model3_forward.1} parent=1 // pred_check_branch
      %6804 = sbr.rel (0) target = $region133
    $region132: #{model3_forward.1} parent=1 // pred_region
      %6805 = dma.done [#allocation4], 32
    $region133: #{model3_forward.1} parent=1 // pred_fallthru
      _
    %6806 = vsyncpa [#allocation3], 1
    %6807 = vsyncpa [#allocation6], 1
    %6808 = vsyncpa [#allocation9], 1
    %6809 = vsyncpa [#allocation12], 1
    %6810 = vsyncpa [#allocation4], 1

</llo_original>
